<compile_context>
chip_gen: v7x
topology: tpu7x:2x2x1
jax: 0.10.0
libtpu: 0.0.40
codegen_flags: <defaults>
</compile_context>

<pallas_src>
import functools

import jax
import jax.numpy as jnp
import numpy as np
from jax.experimental import pallas as pl
from jax.experimental.pallas import tpu as pltpu

EPS = 1e-5        # default eps of InstanceNorm2d / BatchNorm2d
LANE = 128        # TPU lane width
YPAD_LEFT = 16    # left W-halo of the bf16 scratch (= one bf16 sublane tile)


def _round_up(x, m):
    return (x + m - 1) // m * m


# ---------------------------------------------------------------------------
# In-kernel helpers (traced inside the Pallas kernel body)
# ---------------------------------------------------------------------------
def _ibn_relu(y, g_ref, b_ref, half):
    """IBN (first `half` channels InstanceNorm, rest training-mode BatchNorm) + ReLU.

    One pass of sum / sum-of-squares over (H, W); BN stats are derived from the
    per-instance partial sums; the tensor is normalized exactly once via a
    per-channel selected scale/shift, fused with the ReLU.
    """
    N, H, W, C = y.shape
    s1 = jnp.sum(y, axis=(1, 2), keepdims=True)                   # (N,1,1,C)
    s2 = jnp.sum(y * y, axis=(1, 2), keepdims=True)               # (N,1,1,C)

    cnt_in = float(H * W)
    mean_in = s1 / cnt_in
    var_in = s2 / cnt_in - mean_in * mean_in

    cnt_bn = float(N * H * W)
    mean_bn = jnp.sum(s1, axis=0, keepdims=True) / cnt_bn         # (1,1,1,C)
    var_bn = jnp.sum(s2, axis=0, keepdims=True) / cnt_bn - mean_bn * mean_bn

    # TODO(synk): single-pass E[x^2]-E[x]^2 variance can cancel for large channel means
    # at production weight scales; switch to a shifted/two-pass variance if needed.
    c_idx = jax.lax.broadcasted_iota(jnp.int32, (1, 1, 1, C), 3)
    use_in = c_idx < half
    mean = jnp.where(use_in, mean_in, mean_bn)                    # (N,1,1,C) tiny select
    var = jnp.maximum(jnp.where(use_in, var_in, var_bn), 0.0)

    scale = jax.lax.rsqrt(var + EPS) * g_ref[...].reshape(1, 1, 1, C)
    shift = b_ref[...].reshape(1, 1, 1, C) - mean * scale
    return jnp.maximum(y * scale + shift, 0.0)                    # fused norm + ReLU


# ---------------------------------------------------------------------------
# Pallas kernel: whole DoubleConvBlock forward, everything resident in VMEM
# ---------------------------------------------------------------------------
def double_conv_kernel(p1_ref, w1_ref, g1_ref, be1_ref,
                       w2_ref, g2_ref, be2_ref,
                       out_ref, ypad_ref, *, half):
    N, H, W, K1 = p1_ref.shape
    CO = out_ref.shape[-1]
    L = YPAD_LEFT

    # ---- Conv1: one MXU matmul over wrapper-built im2col patches (K1 = one lane tile).
    # Conv bias is intentionally dropped: it is exactly cancelled by the IN/BN mean
    # subtraction that follows.
    p1 = p1_ref[...].reshape(N * H * W, K1)                       # bf16
    y1 = jnp.dot(p1, w1_ref[...], preferred_element_type=jnp.float32)
    y1 = _ibn_relu(y1.reshape(N, H, W, CO), g1_ref, be1_ref, half)

    # ---- Stage y1 in a padded bf16 scratch whose interior is sublane-aligned
    # (W offset = 16): the big interior store is unmasked; only halos are masked.
    ypad_ref[:, :, 0:L, :] = jnp.zeros((N, H + 2, L, CO), ypad_ref.dtype)
    ypad_ref[:, :, L + W:L + W + 1, :] = jnp.zeros((N, H + 2, 1, CO), ypad_ref.dtype)
    ypad_ref[:, 0:1, :, :] = jnp.zeros((N, 1, L + W + 1, CO), ypad_ref.dtype)
    ypad_ref[:, H + 1:H + 2, :, :] = jnp.zeros((N, 1, L + W + 1, CO), ypad_ref.dtype)
    ypad_ref[:, 1:H + 1, L:L + W, :] = y1.astype(ypad_ref.dtype)

    # ---- Conv2: 3 accumulated matmuls of K = 3*CO (one per dy row shift); only 3
    # dx-shifted slabs are live at a time instead of a 9x im2col buffer.
    ypad = ypad_ref[...]
    w2 = w2_ref[...]                                              # (3, 3*CO, CO) bf16
    acc = None
    for dy in range(3):
        slab = ypad[:, dy:dy + H, :, :]                           # (N, H, L+W+1, CO)
        taps = [slab[:, :, L - 1 + dx:L - 1 + dx + W, :] for dx in range(3)]
        patches = jnp.concatenate(taps, axis=-1).reshape(N * H * W, 3 * CO)
        part = jnp.dot(patches, w2[dy], preferred_element_type=jnp.float32)
        acc = part if acc is None else acc + part
    y2 = _ibn_relu(acc.reshape(N, H, W, CO), g2_ref, be2_ref, half)
    out_ref[...] = y2.astype(out_ref.dtype)                       # lane-dense store


# ---------------------------------------------------------------------------
# Wrapper: layout conversion, conv1 im2col at real cin, weight prep, pallas_call
# ---------------------------------------------------------------------------
def _compiler_params():
    # Per-chip VMEM budget with ~25% headroom (v7x: ~48 of 64 MiB; v5e/v6e: ~96 of 128).
    try:
        cap = pltpu.get_tpu_info().vmem_capacity_bytes
        return pltpu.CompilerParams(vmem_limit_bytes=int(cap) * 3 // 4)
    except Exception:
        return pltpu.CompilerParams()


def double_conv_block(x_nchw, params):
    N, cin, H, W = x_nchw.shape
    cout = params["w1"].shape[0]
    half = cout // 2
    CO = _round_up(cout, LANE)
    K1 = _round_up(9 * cin, LANE)

    # NCHW -> NHWC, 1-px halo, then im2col at *real* cin granularity in the wrapper so
    # the kernel's conv1 K dim is a single padded lane tile (128) instead of 9*128.
    x = jnp.transpose(x_nchw, (0, 2, 3, 1)).astype(jnp.float32)
    xpad = jnp.pad(x, ((0, 0), (1, 1), (1, 1), (0, 0)))
    taps = [xpad[:, dy:dy + H, dx:dx + W, :] for dy in range(3) for dx in range(3)]
    p1 = jnp.concatenate(taps, axis=-1)                           # (N, H, W, 9*cin)
    p1 = jnp.pad(p1, ((0, 0), (0, 0), (0, 0), (0, K1 - 9 * cin))).astype(jnp.bfloat16)

    # Conv1 weight: (out,in,3,3) -> (kh,kw,in,out) -> (9*cin,cout) -> zero-pad (K1,CO).
    w1 = jnp.transpose(params["w1"], (2, 3, 1, 0)).reshape(9 * cin, cout)
    w1 = jnp.pad(w1, ((0, K1 - 9 * cin), (0, CO - cout))).astype(jnp.bfloat16)

    # Conv2 weight: (out,in,3,3) -> (kh,kw,in,out) -> zero-pad in/out -> (3, 3*CO, CO).
    # Zero-padded "in" rows guarantee padded lanes never leak into real channels.
    w2 = jnp.transpose(params["w2"], (2, 3, 1, 0))
    w2 = jnp.pad(w2, ((0, 0), (0, 0), (0, CO - cout), (0, CO - cout)))
    w2 = w2.reshape(3, 3 * CO, CO).astype(jnp.bfloat16)

    def prep_vec(v):   # gamma / beta; zero-padded lanes keep padded channels exactly 0
        return jnp.pad(v, (0, CO - cout)).reshape(1, CO).astype(jnp.float32)

    g1, be1 = prep_vec(params["g1"]), prep_vec(params["be1"])
    g2, be2 = prep_vec(params["g2"]), prep_vec(params["be2"])
    # Conv biases b1/b2 are intentionally NOT passed to the kernel (cancelled by IBN).

    kernel = functools.partial(double_conv_kernel, half=half)
    vmem = pl.BlockSpec(memory_space=pltpu.MemorySpace.VMEM)

    out_nhwc = pl.pallas_call(
        kernel,
        out_shape=jax.ShapeDtypeStruct((N, H, W, CO), jnp.float32),
        in_specs=[vmem] * 7,
        out_specs=vmem,
        scratch_shapes=[pltpu.VMEM((N, H + 2, YPAD_LEFT + W + 1, CO), jnp.bfloat16)],
        compiler_params=_compiler_params(),
    )(p1, w1, g1, be1, w2, g2, be2)

    # Drop padded lanes, back to NCHW f32 to match the PyTorch module.
    # TODO(synk): at production shapes emit bf16 and fuse this slice/transpose into the
    # consumer to cut output HBM traffic (largest relative win on v5e).
    return jnp.transpose(out_nhwc[..., :cout], (0, 3, 1, 2))


# ---------------------------------------------------------------------------
# Pure-JAX reference (correctness check only; includes the conv biases to validate
# that dropping them inside the kernel is exactly cancelled by the normalization)
# ---------------------------------------------------------------------------
def reference(x_nchw, params):
    x = jnp.transpose(x_nchw, (0, 2, 3, 1)).astype(jnp.float32)

    def conv(x, w, b):
        w_hwio = jnp.transpose(w, (2, 3, 1, 0))
        y = jax.lax.conv_general_dilated(
            x, w_hwio, (1, 1), "SAME",
            dimension_numbers=("NHWC", "HWIO", "NHWC"))
        return y + b.reshape(1, 1, 1, -1)

    def ibn_relu(y, g, b):
        C = y.shape[-1]
        half = C // 2
        m_in = y.mean(axis=(1, 2), keepdims=True)
        v_in = ((y - m_in) ** 2).mean(axis=(1, 2), keepdims=True)
        n_in = (y - m_in) / jnp.sqrt(v_in + EPS)
        m_bn = y.mean(axis=(0, 1, 2), keepdims=True)
        v_bn = ((y - m_bn) ** 2).mean(axis=(0, 1, 2), keepdims=True)
        n_bn = (y - m_bn) / jnp.sqrt(v_bn + EPS)
        cidx = jnp.arange(C).reshape(1, 1, 1, C)
        n = jnp.where(cidx < half, n_in, n_bn)
        return jnp.maximum(n * g.reshape(1, 1, 1, C) + b.reshape(1, 1, 1, C), 0.0)

    y = ibn_relu(conv(x, params["w1"], params["b1"]), params["g1"], params["be1"])
    y = ibn_relu(conv(y, params["w2"], params["b2"]), params["g2"], params["be2"])
    return jnp.transpose(y, (0, 3, 1, 2))


# ---------------------------------------------------------------------------
if __name__ == "__main__":
    key = jax.random.PRNGKey(0)
    k_x, k_w1, k_b1, k_w2, k_b2 = jax.random.split(key, 5)

    N, in_ch, out_ch, H, W = 2, 4, 8, 16, 16
    x = jax.random.normal(k_x, (N, in_ch, H, W), jnp.float32)

    params = {
        "w1": jax.random.normal(k_w1, (out_ch, in_ch, 3, 3), jnp.float32) * 0.1,
        "b1": jax.random.normal(k_b1, (out_ch,), jnp.float32) * 0.01,
        "g1": jnp.ones((out_ch,), jnp.float32),    # IBN affine weight (init = 1)
        "be1": jnp.zeros((out_ch,), jnp.float32),  # IBN affine bias   (init = 0)
        "w2": jax.random.normal(k_w2, (out_ch, out_ch, 3, 3), jnp.float32) * 0.1,
        "b2": jax.random.normal(k_b2, (out_ch,), jnp.float32) * 0.01,
        "g2": jnp.ones((out_ch,), jnp.float32),
        "be2": jnp.zeros((out_ch,), jnp.float32),
    }

    out = jax.block_until_ready(double_conv_block(x, params))
    ref = jax.block_until_ready(reference(x, params))

    assert out.shape == (N, out_ch, H, W)
    assert np.allclose(np.asarray(out), np.asarray(ref), atol=5e-2, rtol=5e-2)

    print("KERNEL_OK")
</pallas_src>

<mosaic_0001>
module attributes {stable_mosaic.version = 11 : i64} {
  func.func @double_conv_kernel(%arg0: memref<2x16x16x128xbf16, #tpu.memory_space<vmem>>, %arg1: memref<128x128xbf16, #tpu.memory_space<vmem>>, %arg2: memref<1x128xf32, #tpu.memory_space<vmem>>, %arg3: memref<1x128xf32, #tpu.memory_space<vmem>>, %arg4: memref<3x384x128xbf16, #tpu.memory_space<vmem>>, %arg5: memref<1x128xf32, #tpu.memory_space<vmem>>, %arg6: memref<1x128xf32, #tpu.memory_space<vmem>>, %arg7: memref<2x16x16x128xf32, #tpu.memory_space<vmem>>, %arg8: memref<2x18x33x128xbf16, #tpu.memory_space<vmem>>) attributes {dimension_semantics = [], scalar_prefetch = 0 : i64, scratch_operands = 1 : i64, tpu.core_type = #tpu.core_type<tc>} {
    %c0 = arith.constant 0 : index
    %c0_0 = arith.constant 0 : index
    %c0_1 = arith.constant 0 : index
    %c0_2 = arith.constant 0 : index
    %0 = vector.load %arg0[%c0, %c0_0, %c0_1, %c0_2] : memref<2x16x16x128xbf16, #tpu.memory_space<vmem>>, vector<2x16x16x128xbf16>
    %1 = vector.shape_cast %0 : vector<2x16x16x128xbf16> to vector<512x128xbf16>
    %c0_3 = arith.constant 0 : index
    %c0_4 = arith.constant 0 : index
    %2 = vector.load %arg1[%c0_3, %c0_4] : memref<128x128xbf16, #tpu.memory_space<vmem>>, vector<128x128xbf16>
    %cst = arith.constant dense<0.000000e+00> : vector<512x128xf32>
    %3 = tpu.matmul %1, %2, %cst {dimension_numbers = #tpu.dot_dimension_numbers<[1], [0], [0], [1], [0, 0, 1, 1], [], []>} : vector<512x128xbf16>, vector<128x128xbf16>, vector<512x128xf32> -> vector<512x128xf32>
    %4 = vector.shape_cast %3 : vector<512x128xf32> to vector<2x16x16x128xf32>
    %cst_5 = arith.constant dense<0.000000e+00> : vector<2x128xf32>
    %5 = vector.multi_reduction <add>, %4, %cst_5 [1, 2] : vector<2x16x16x128xf32> to vector<2x128xf32>
    %6 = vector.shape_cast %5 : vector<2x128xf32> to vector<2x1x1x128xf32>
    %7 = arith.mulf %4, %4 : vector<2x16x16x128xf32>
    %cst_6 = arith.constant dense<0.000000e+00> : vector<2x128xf32>
    %8 = vector.multi_reduction <add>, %7, %cst_6 [1, 2] : vector<2x16x16x128xf32> to vector<2x128xf32>
    %9 = vector.shape_cast %8 : vector<2x128xf32> to vector<2x1x1x128xf32>
    %cst_7 = arith.constant 2.560000e+02 : f32
    %10 = vector.broadcast %cst_7 : f32 to vector<2x1x1x128xf32>
    %11 = arith.divf %6, %10 : vector<2x1x1x128xf32>
    %cst_8 = arith.constant 2.560000e+02 : f32
    %12 = vector.broadcast %cst_8 : f32 to vector<2x1x1x128xf32>
    %13 = arith.divf %9, %12 : vector<2x1x1x128xf32>
    %14 = arith.mulf %11, %11 : vector<2x1x1x128xf32>
    %15 = arith.subf %13, %14 : vector<2x1x1x128xf32>
    %cst_9 = arith.constant dense<0.000000e+00> : vector<1x1x128xf32>
    %16 = vector.multi_reduction <add>, %6, %cst_9 [0] : vector<2x1x1x128xf32> to vector<1x1x128xf32>
    %17 = vector.shape_cast %16 : vector<1x1x128xf32> to vector<1x1x1x128xf32>
    %cst_10 = arith.constant 5.120000e+02 : f32
    %18 = vector.broadcast %cst_10 : f32 to vector<1x1x1x128xf32>
    %19 = arith.divf %17, %18 : vector<1x1x1x128xf32>
    %cst_11 = arith.constant dense<0.000000e+00> : vector<1x1x128xf32>
    %20 = vector.multi_reduction <add>, %9, %cst_11 [0] : vector<2x1x1x128xf32> to vector<1x1x128xf32>
    %21 = vector.shape_cast %20 : vector<1x1x128xf32> to vector<1x1x1x128xf32>
    %cst_12 = arith.constant 5.120000e+02 : f32
    %22 = vector.broadcast %cst_12 : f32 to vector<1x1x1x128xf32>
    %23 = arith.divf %21, %22 : vector<1x1x1x128xf32>
    %24 = arith.mulf %19, %19 : vector<1x1x1x128xf32>
    %25 = arith.subf %23, %24 : vector<1x1x1x128xf32>
    %26 = tpu.iota {dimensions = array<i32: 3>} : vector<1x1x1x128xi32>
    %c4_i32 = arith.constant 4 : i32
    %27 = vector.broadcast %c4_i32 : i32 to vector<1x1x1x128xi32>
    %28 = arith.cmpi slt, %26, %27 : vector<1x1x1x128xi32>
    %29 = vector.shape_cast %28 : vector<1x1x1x128xi1> to vector<1x1x1x128xi1>
    %30 = vector.broadcast %29 : vector<1x1x1x128xi1> to vector<2x1x1x128xi1>
    %31 = vector.shape_cast %19 : vector<1x1x1x128xf32> to vector<1x1x1x128xf32>
    %32 = vector.broadcast %31 : vector<1x1x1x128xf32> to vector<2x1x1x128xf32>
    %33 = arith.select %30, %11, %32 : vector<2x1x1x128xi1>, vector<2x1x1x128xf32>
    %34 = vector.shape_cast %28 : vector<1x1x1x128xi1> to vector<1x1x1x128xi1>
    %35 = vector.broadcast %34 : vector<1x1x1x128xi1> to vector<2x1x1x128xi1>
    %36 = vector.shape_cast %25 : vector<1x1x1x128xf32> to vector<1x1x1x128xf32>
    %37 = vector.broadcast %36 : vector<1x1x1x128xf32> to vector<2x1x1x128xf32>
    %38 = arith.select %35, %15, %37 : vector<2x1x1x128xi1>, vector<2x1x1x128xf32>
    %cst_13 = arith.constant 0.000000e+00 : f32
    %39 = vector.broadcast %cst_13 : f32 to vector<2x1x1x128xf32>
    %40 = arith.maximumf %38, %39 : vector<2x1x1x128xf32>
    %cst_14 = arith.constant 9.99999974E-6 : f32
    %41 = vector.broadcast %cst_14 : f32 to vector<2x1x1x128xf32>
    %42 = arith.addf %40, %41 : vector<2x1x1x128xf32>
    %43 = math.rsqrt %42 : vector<2x1x1x128xf32>
    %c0_15 = arith.constant 0 : index
    %c0_16 = arith.constant 0 : index
    %44 = vector.load %arg2[%c0_15, %c0_16] : memref<1x128xf32, #tpu.memory_space<vmem>>, vector<1x128xf32>
    %45 = vector.shape_cast %44 : vector<1x128xf32> to vector<1x1x1x128xf32>
    %46 = vector.broadcast %45 : vector<1x1x1x128xf32> to vector<2x1x1x128xf32>
    %47 = arith.mulf %43, %46 : vector<2x1x1x128xf32>
    %c0_17 = arith.constant 0 : index
    %c0_18 = arith.constant 0 : index
    %48 = vector.load %arg3[%c0_17, %c0_18] : memref<1x128xf32, #tpu.memory_space<vmem>>, vector<1x128xf32>
    %49 = vector.shape_cast %48 : vector<1x128xf32> to vector<1x1x1x128xf32>
    %50 = arith.mulf %33, %47 : vector<2x1x1x128xf32>
    %51 = vector.broadcast %49 : vector<1x1x1x128xf32> to vector<2x1x1x128xf32>
    %52 = arith.subf %51, %50 : vector<2x1x1x128xf32>
    %53 = vector.broadcast %47 : vector<2x1x1x128xf32> to vector<2x16x16x128xf32>
    %54 = arith.mulf %4, %53 : vector<2x16x16x128xf32>
    %55 = vector.broadcast %52 : vector<2x1x1x128xf32> to vector<2x16x16x128xf32>
    %56 = arith.addf %54, %55 : vector<2x16x16x128xf32>
    %cst_19 = arith.constant 0.000000e+00 : f32
    %57 = vector.broadcast %cst_19 : f32 to vector<2x16x16x128xf32>
    %58 = arith.maximumf %56, %57 : vector<2x16x16x128xf32>
    %cst_20 = arith.constant 0.000000e+00 : bf16
    %59 = vector.broadcast %cst_20 : bf16 to vector<2x18x16x128xbf16>
    %c0_21 = arith.constant 0 : index
    %c0_22 = arith.constant 0 : index
    %c0_23 = arith.constant 0 : index
    %c0_24 = arith.constant 0 : index
    %60 = vector.load %arg8[%c0_21, %c0_22, %c0_23, %c0_24] : memref<2x18x33x128xbf16, #tpu.memory_space<vmem>>, vector<2x18x16x128xbf16>
    tpu.vector_store %arg8[%c0_21, %c0_22, %c0_23, %c0_24], %59 {strides = array<i32>} : memref<2x18x33x128xbf16, #tpu.memory_space<vmem>>, vector<2x18x16x128xbf16>,
    %cst_25 = arith.constant 0.000000e+00 : bf16
    %61 = vector.broadcast %cst_25 : bf16 to vector<2x18x1x128xbf16>
    %c0_26 = arith.constant 0 : index
    %c0_27 = arith.constant 0 : index
    %c32 = arith.constant 32 : index
    %c0_28 = arith.constant 0 : index
    %62 = vector.load %arg8[%c0_26, %c0_27, %c32, %c0_28] : memref<2x18x33x128xbf16, #tpu.memory_space<vmem>>, vector<2x18x1x128xbf16>
    tpu.vector_store %arg8[%c0_26, %c0_27, %c32, %c0_28], %61 {strides = array<i32>} : memref<2x18x33x128xbf16, #tpu.memory_space<vmem>>, vector<2x18x1x128xbf16>,
    %cst_29 = arith.constant 0.000000e+00 : bf16
    %63 = vector.broadcast %cst_29 : bf16 to vector<2x1x33x128xbf16>
    %c0_30 = arith.constant 0 : index
    %c0_31 = arith.constant 0 : index
    %c0_32 = arith.constant 0 : index
    %c0_33 = arith.constant 0 : index
    %64 = vector.load %arg8[%c0_30, %c0_31, %c0_32, %c0_33] : memref<2x18x33x128xbf16, #tpu.memory_space<vmem>>, vector<2x1x33x128xbf16>
    tpu.vector_store %arg8[%c0_30, %c0_31, %c0_32, %c0_33], %63 {strides = array<i32>} : memref<2x18x33x128xbf16, #tpu.memory_space<vmem>>, vector<2x1x33x128xbf16>,
    %cst_34 = arith.constant 0.000000e+00 : bf16
    %65 = vector.broadcast %cst_34 : bf16 to vector<2x1x33x128xbf16>
    %c0_35 = arith.constant 0 : index
    %c17 = arith.constant 17 : index
    %c0_36 = arith.constant 0 : index
    %c0_37 = arith.constant 0 : index
    %66 = vector.load %arg8[%c0_35, %c17, %c0_36, %c0_37] : memref<2x18x33x128xbf16, #tpu.memory_space<vmem>>, vector<2x1x33x128xbf16>
    tpu.vector_store %arg8[%c0_35, %c17, %c0_36, %c0_37], %65 {strides = array<i32>} : memref<2x18x33x128xbf16, #tpu.memory_space<vmem>>, vector<2x1x33x128xbf16>,
    %67 = arith.truncf %58 : vector<2x16x16x128xf32> to vector<2x16x16x128xbf16>
    %c0_38 = arith.constant 0 : index
    %c1 = arith.constant 1 : index
    %c16 = arith.constant 16 : index
    %c0_39 = arith.constant 0 : index
    %68 = vector.load %arg8[%c0_38, %c1, %c16, %c0_39] : memref<2x18x33x128xbf16, #tpu.memory_space<vmem>>, vector<2x16x16x128xbf16>
    tpu.vector_store %arg8[%c0_38, %c1, %c16, %c0_39], %67 {strides = array<i32>} : memref<2x18x33x128xbf16, #tpu.memory_space<vmem>>, vector<2x16x16x128xbf16>,
    %c0_40 = arith.constant 0 : index
    %c0_41 = arith.constant 0 : index
    %c0_42 = arith.constant 0 : index
    %c0_43 = arith.constant 0 : index
    %69 = vector.load %arg8[%c0_40, %c0_41, %c0_42, %c0_43] : memref<2x18x33x128xbf16, #tpu.memory_space<vmem>>, vector<2x18x33x128xbf16>
    %c0_44 = arith.constant 0 : index
    %c0_45 = arith.constant 0 : index
    %c0_46 = arith.constant 0 : index
    %70 = vector.load %arg4[%c0_44, %c0_45, %c0_46] : memref<3x384x128xbf16, #tpu.memory_space<vmem>>, vector<3x384x128xbf16>
    %71 = vector.extract_strided_slice %69 {offsets = [0, 0, 0, 0], sizes = [2, 16, 33, 128], strides = [1, 1, 1, 1]} : vector<2x18x33x128xbf16> to vector<2x16x33x128xbf16>
    %72 = vector.extract_strided_slice %71 {offsets = [0, 0, 15, 0], sizes = [2, 16, 16, 128], strides = [1, 1, 1, 1]} : vector<2x16x33x128xbf16> to vector<2x16x16x128xbf16>
    %73 = vector.extract_strided_slice %71 {offsets = [0, 0, 16, 0], sizes = [2, 16, 16, 128], strides = [1, 1, 1, 1]} : vector<2x16x33x128xbf16> to vector<2x16x16x128xbf16>
    %74 = vector.extract_strided_slice %71 {offsets = [0, 0, 17, 0], sizes = [2, 16, 16, 128], strides = [1, 1, 1, 1]} : vector<2x16x33x128xbf16> to vector<2x16x16x128xbf16>
    %75 = tpu.concatenate %72, %73, %74 in 3 : vector<2x16x16x128xbf16>, vector<2x16x16x128xbf16>, vector<2x16x16x128xbf16> -> vector<2x16x16x384xbf16>
    %76 = vector.shape_cast %75 : vector<2x16x16x384xbf16> to vector<512x384xbf16>
    %77 = vector.extract_strided_slice %70 {offsets = [0, 0, 0], sizes = [1, 384, 128], strides = [1, 1, 1]} : vector<3x384x128xbf16> to vector<1x384x128xbf16>
    %78 = vector.shape_cast %77 : vector<1x384x128xbf16> to vector<384x128xbf16>
    %cst_47 = arith.constant dense<0.000000e+00> : vector<512x128xf32>
    %79 = tpu.matmul %76, %78, %cst_47 {dimension_numbers = #tpu.dot_dimension_numbers<[1], [0], [0], [1], [0, 0, 1, 1], [], []>} : vector<512x384xbf16>, vector<384x128xbf16>, vector<512x128xf32> -> vector<512x128xf32>
    %80 = vector.extract_strided_slice %69 {offsets = [0, 1, 0, 0], sizes = [2, 16, 33, 128], strides = [1, 1, 1, 1]} : vector<2x18x33x128xbf16> to vector<2x16x33x128xbf16>
    %81 = vector.extract_strided_slice %80 {offsets = [0, 0, 15, 0], sizes = [2, 16, 16, 128], strides = [1, 1, 1, 1]} : vector<2x16x33x128xbf16> to vector<2x16x16x128xbf16>
    %82 = vector.extract_strided_slice %80 {offsets = [0, 0, 16, 0], sizes = [2, 16, 16, 128], strides = [1, 1, 1, 1]} : vector<2x16x33x128xbf16> to vector<2x16x16x128xbf16>
    %83 = vector.extract_strided_slice %80 {offsets = [0, 0, 17, 0], sizes = [2, 16, 16, 128], strides = [1, 1, 1, 1]} : vector<2x16x33x128xbf16> to vector<2x16x16x128xbf16>
    %84 = tpu.concatenate %81, %82, %83 in 3 : vector<2x16x16x128xbf16>, vector<2x16x16x128xbf16>, vector<2x16x16x128xbf16> -> vector<2x16x16x384xbf16>
    %85 = vector.shape_cast %84 : vector<2x16x16x384xbf16> to vector<512x384xbf16>
    %86 = vector.extract_strided_slice %70 {offsets = [1, 0, 0], sizes = [1, 384, 128], strides = [1, 1, 1]} : vector<3x384x128xbf16> to vector<1x384x128xbf16>
    %87 = vector.shape_cast %86 : vector<1x384x128xbf16> to vector<384x128xbf16>
    %cst_48 = arith.constant dense<0.000000e+00> : vector<512x128xf32>
    %88 = tpu.matmul %85, %87, %cst_48 {dimension_numbers = #tpu.dot_dimension_numbers<[1], [0], [0], [1], [0, 0, 1, 1], [], []>} : vector<512x384xbf16>, vector<384x128xbf16>, vector<512x128xf32> -> vector<512x128xf32>
    %89 = arith.addf %79, %88 : vector<512x128xf32>
    %90 = vector.extract_strided_slice %69 {offsets = [0, 2, 0, 0], sizes = [2, 16, 33, 128], strides = [1, 1, 1, 1]} : vector<2x18x33x128xbf16> to vector<2x16x33x128xbf16>
    %91 = vector.extract_strided_slice %90 {offsets = [0, 0, 15, 0], sizes = [2, 16, 16, 128], strides = [1, 1, 1, 1]} : vector<2x16x33x128xbf16> to vector<2x16x16x128xbf16>
    %92 = vector.extract_strided_slice %90 {offsets = [0, 0, 16, 0], sizes = [2, 16, 16, 128], strides = [1, 1, 1, 1]} : vector<2x16x33x128xbf16> to vector<2x16x16x128xbf16>
    %93 = vector.extract_strided_slice %90 {offsets = [0, 0, 17, 0], sizes = [2, 16, 16, 128], strides = [1, 1, 1, 1]} : vector<2x16x33x128xbf16> to vector<2x16x16x128xbf16>
    %94 = tpu.concatenate %91, %92, %93 in 3 : vector<2x16x16x128xbf16>, vector<2x16x16x128xbf16>, vector<2x16x16x128xbf16> -> vector<2x16x16x384xbf16>
    %95 = vector.shape_cast %94 : vector<2x16x16x384xbf16> to vector<512x384xbf16>
    %96 = vector.extract_strided_slice %70 {offsets = [2, 0, 0], sizes = [1, 384, 128], strides = [1, 1, 1]} : vector<3x384x128xbf16> to vector<1x384x128xbf16>
    %97 = vector.shape_cast %96 : vector<1x384x128xbf16> to vector<384x128xbf16>
    %cst_49 = arith.constant dense<0.000000e+00> : vector<512x128xf32>
    %98 = tpu.matmul %95, %97, %cst_49 {dimension_numbers = #tpu.dot_dimension_numbers<[1], [0], [0], [1], [0, 0, 1, 1], [], []>} : vector<512x384xbf16>, vector<384x128xbf16>, vector<512x128xf32> -> vector<512x128xf32>
    %99 = arith.addf %89, %98 : vector<512x128xf32>
    %100 = vector.shape_cast %99 : vector<512x128xf32> to vector<2x16x16x128xf32>
    %cst_50 = arith.constant dense<0.000000e+00> : vector<2x128xf32>
    %101 = vector.multi_reduction <add>, %100, %cst_50 [1, 2] : vector<2x16x16x128xf32> to vector<2x128xf32>
    %102 = vector.shape_cast %101 : vector<2x128xf32> to vector<2x1x1x128xf32>
    %103 = arith.mulf %100, %100 : vector<2x16x16x128xf32>
    %cst_51 = arith.constant dense<0.000000e+00> : vector<2x128xf32>
    %104 = vector.multi_reduction <add>, %103, %cst_51 [1, 2] : vector<2x16x16x128xf32> to vector<2x128xf32>
    %105 = vector.shape_cast %104 : vector<2x128xf32> to vector<2x1x1x128xf32>
    %cst_52 = arith.constant 2.560000e+02 : f32
    %106 = vector.broadcast %cst_52 : f32 to vector<2x1x1x128xf32>
    %107 = arith.divf %102, %106 : vector<2x1x1x128xf32>
    %cst_53 = arith.constant 2.560000e+02 : f32
    %108 = vector.broadcast %cst_53 : f32 to vector<2x1x1x128xf32>
    %109 = arith.divf %105, %108 : vector<2x1x1x128xf32>
    %110 = arith.mulf %107, %107 : vector<2x1x1x128xf32>
    %111 = arith.subf %109, %110 : vector<2x1x1x128xf32>
    %cst_54 = arith.constant dense<0.000000e+00> : vector<1x1x128xf32>
    %112 = vector.multi_reduction <add>, %102, %cst_54 [0] : vector<2x1x1x128xf32> to vector<1x1x128xf32>
    %113 = vector.shape_cast %112 : vector<1x1x128xf32> to vector<1x1x1x128xf32>
    %cst_55 = arith.constant 5.120000e+02 : f32
    %114 = vector.broadcast %cst_55 : f32 to vector<1x1x1x128xf32>
    %115 = arith.divf %113, %114 : vector<1x1x1x128xf32>
    %cst_56 = arith.constant dense<0.000000e+00> : vector<1x1x128xf32>
    %116 = vector.multi_reduction <add>, %105, %cst_56 [0] : vector<2x1x1x128xf32> to vector<1x1x128xf32>
    %117 = vector.shape_cast %116 : vector<1x1x128xf32> to vector<1x1x1x128xf32>
    %cst_57 = arith.constant 5.120000e+02 : f32
    %118 = vector.broadcast %cst_57 : f32 to vector<1x1x1x128xf32>
    %119 = arith.divf %117, %118 : vector<1x1x1x128xf32>
    %120 = arith.mulf %115, %115 : vector<1x1x1x128xf32>
    %121 = arith.subf %119, %120 : vector<1x1x1x128xf32>
    %122 = tpu.iota {dimensions = array<i32: 3>} : vector<1x1x1x128xi32>
    %c4_i32_58 = arith.constant 4 : i32
    %123 = vector.broadcast %c4_i32_58 : i32 to vector<1x1x1x128xi32>
    %124 = arith.cmpi slt, %122, %123 : vector<1x1x1x128xi32>
    %125 = vector.shape_cast %124 : vector<1x1x1x128xi1> to vector<1x1x1x128xi1>
    %126 = vector.broadcast %125 : vector<1x1x1x128xi1> to vector<2x1x1x128xi1>
    %127 = vector.shape_cast %115 : vector<1x1x1x128xf32> to vector<1x1x1x128xf32>
    %128 = vector.broadcast %127 : vector<1x1x1x128xf32> to vector<2x1x1x128xf32>
    %129 = arith.select %126, %107, %128 : vector<2x1x1x128xi1>, vector<2x1x1x128xf32>
    %130 = vector.shape_cast %124 : vector<1x1x1x128xi1> to vector<1x1x1x128xi1>
    %131 = vector.broadcast %130 : vector<1x1x1x128xi1> to vector<2x1x1x128xi1>
    %132 = vector.shape_cast %121 : vector<1x1x1x128xf32> to vector<1x1x1x128xf32>
    %133 = vector.broadcast %132 : vector<1x1x1x128xf32> to vector<2x1x1x128xf32>
    %134 = arith.select %131, %111, %133 : vector<2x1x1x128xi1>, vector<2x1x1x128xf32>
    %cst_59 = arith.constant 0.000000e+00 : f32
    %135 = vector.broadcast %cst_59 : f32 to vector<2x1x1x128xf32>
    %136 = arith.maximumf %134, %135 : vector<2x1x1x128xf32>
    %cst_60 = arith.constant 9.99999974E-6 : f32
    %137 = vector.broadcast %cst_60 : f32 to vector<2x1x1x128xf32>
    %138 = arith.addf %136, %137 : vector<2x1x1x128xf32>
    %139 = math.rsqrt %138 : vector<2x1x1x128xf32>
    %c0_61 = arith.constant 0 : index
    %c0_62 = arith.constant 0 : index
    %140 = vector.load %arg5[%c0_61, %c0_62] : memref<1x128xf32, #tpu.memory_space<vmem>>, vector<1x128xf32>
    %141 = vector.shape_cast %140 : vector<1x128xf32> to vector<1x1x1x128xf32>
    %142 = vector.broadcast %141 : vector<1x1x1x128xf32> to vector<2x1x1x128xf32>
    %143 = arith.mulf %139, %142 : vector<2x1x1x128xf32>
    %c0_63 = arith.constant 0 : index
    %c0_64 = arith.constant 0 : index
    %144 = vector.load %arg6[%c0_63, %c0_64] : memref<1x128xf32, #tpu.memory_space<vmem>>, vector<1x128xf32>
    %145 = vector.shape_cast %144 : vector<1x128xf32> to vector<1x1x1x128xf32>
    %146 = arith.mulf %129, %143 : vector<2x1x1x128xf32>
    %147 = vector.broadcast %145 : vector<1x1x1x128xf32> to vector<2x1x1x128xf32>
    %148 = arith.subf %147, %146 : vector<2x1x1x128xf32>
    %149 = vector.broadcast %143 : vector<2x1x1x128xf32> to vector<2x16x16x128xf32>
    %150 = arith.mulf %100, %149 : vector<2x16x16x128xf32>
    %151 = vector.broadcast %148 : vector<2x1x1x128xf32> to vector<2x16x16x128xf32>
    %152 = arith.addf %150, %151 : vector<2x16x16x128xf32>
    %cst_65 = arith.constant 0.000000e+00 : f32
    %153 = vector.broadcast %cst_65 : f32 to vector<2x16x16x128xf32>
    %154 = arith.maximumf %152, %153 : vector<2x16x16x128xf32>
    %c0_66 = arith.constant 0 : index
    %c0_67 = arith.constant 0 : index
    %c0_68 = arith.constant 0 : index
    %c0_69 = arith.constant 0 : index
    %155 = vector.load %arg7[%c0_66, %c0_67, %c0_68, %c0_69] : memref<2x16x16x128xf32, #tpu.memory_space<vmem>>, vector<2x16x16x128xf32>
    tpu.vector_store %arg7[%c0_66, %c0_67, %c0_68, %c0_69], %154 {strides = array<i32>} : memref<2x16x16x128xf32, #tpu.memory_space<vmem>>, vector<2x16x16x128xf32>,
    return
  }
}

</mosaic_0001>

<llo_original>
// kernel: tpu_custom_call.1
$region0: #{tpu_custom_call.1}
  #allocation0 [shape = 'u32[]', space=smem, size = 0x4, offset = 0x4, fixed_abs, tag = 'smem constant byte address 0x4 - core index']
  #allocation1 [shape = 'u32[144,128]{1,0:T(1,128)}', space=vmem, size = 0x12000, scoped, tag = 'internal scratch']
  #allocation2 [shape = 'bf16[2,18,33,128]{3,2,1,0:T(8,128)(2,1)}', space=vmem, size = 0x5a000, scoped, tag = 'scratch operand']
  %s0 = inlined_call_operand.hbm [shape: bf16[2,16,16,128], index: 0, kind: input, shape index: {}]
  %s1 = inlined_call_operand.hbm [shape: bf16[128,128], index: 1, kind: input, shape index: {}]
  %s2 = inlined_call_operand.vmem [shape: f32[1,128], index: 2, kind: input, shape index: {}]
  %s3 = inlined_call_operand.vmem [shape: f32[1,128], index: 3, kind: input, shape index: {}]
  %s4 = inlined_call_operand.hbm [shape: bf16[3,384,128], index: 4, kind: input, shape index: {}]
  %s5 = inlined_call_operand.vmem [shape: f32[1,128], index: 5, kind: input, shape index: {}]
  %s6 = inlined_call_operand.vmem [shape: f32[1,128], index: 6, kind: input, shape index: {}]
  %s7 = inlined_call_operand.hbm [shape: f32[2,16,16,128], index: 7, kind: output, shape index: {}]
  %s8 = sld [smem:[#allocation0]]
  $region50: #{tpu_custom_call.1} parent=0
    _
  %s10 = ssub.s32 1, %s8
  %s11 = scalar_select 0, %s10, %s8
  $region1: #{tpu_custom_call.1} parent=0
    #allocation3 [shape = 'u8[131072]{0}', space=vmem, size = 0x20000, scoped, tag = 'input window, operand 0, single buffered']
    #allocation4 [shape = 's32[1]{0}', space=sflag, size = 0x4, scoped, tag = 'scoped memory for tpu_custom_call.1']
    #allocation5 [shape = 's32[1]{0}', space=sflag, size = 0x4, scoped, tag = 'scoped memory for tpu_custom_call.1']
    #allocation6 [shape = 'u8[32768]{0}', space=vmem, size = 0x8000, scoped, tag = 'input window, operand 1, single buffered']
    #allocation7 [shape = 's32[1]{0}', space=sflag, size = 0x4, scoped, tag = 'scoped memory for tpu_custom_call.1']
    #allocation8 [shape = 'u8[294912]{0}', space=vmem, size = 0x48000, scoped, tag = 'input window, operand 4, single buffered']
    #allocation9 [shape = 'u8[262144]{0}', space=vmem, size = 0x40000, scoped, tag = 'output window, operand 0, single buffered']
    %12 = vsyncpa [#allocation4], 0
    %13 = vsyncpa [#allocation7], 0
    %14 = vsyncpa [#allocation5], 0
    // Predicated region
    $region2: #{tpu_custom_call.1} parent=1 // pred_check
      _
    $region3: #{tpu_custom_call.1} parent=1 // pred_check_branch
      %16 = sbr.rel (0) target = $region5
    $region4: #{tpu_custom_call.1} parent=1 // pred_region
      %s18 = ssub.s32 4096, 4096
      %19 = vsyncadd [#allocation4], %s18
      %s20 = sshll.u32 [#allocation3], 4
      %s21 = int_to_ptr.vmem [resolvable:$true] %s20
      %26 = dma.hbm_to_vmem [thread:$0]  %s0, 4096, %s21, [#allocation4], 64, 64, 4
    $region5: #{tpu_custom_call.1} parent=1 // pred_fallthru
      _
    // Predicated region
    $region6: #{tpu_custom_call.1} parent=1 // pred_check
      _
    $region7: #{tpu_custom_call.1} parent=1 // pred_check_branch
      %28 = sbr.rel (0) target = $region9
    $region8: #{tpu_custom_call.1} parent=1 // pred_region
      %s30 = ssub.s32 1024, 1024
      %31 = vsyncadd [#allocation7], %s30
      %s32 = sshll.u32 [#allocation6], 4
      %s33 = int_to_ptr.vmem [resolvable:$true] %s32
      %38 = dma.hbm_to_vmem [thread:$0]  %s1, 1024, %s33, [#allocation7], 64, 64, 4
    $region9: #{tpu_custom_call.1} parent=1 // pred_fallthru
      _
    // Predicated region
    $region10: #{tpu_custom_call.1} parent=1 // pred_check
      _
    $region11: #{tpu_custom_call.1} parent=1 // pred_check_branch
      %40 = sbr.rel (0) target = $region13
    $region12: #{tpu_custom_call.1} parent=1 // pred_region
      _
    $region13: #{tpu_custom_call.1} parent=1 // pred_fallthru
      _
    // Predicated region
    $region14: #{tpu_custom_call.1} parent=1 // pred_check
      _
    $region15: #{tpu_custom_call.1} parent=1 // pred_check_branch
      %42 = sbr.rel (0) target = $region17
    $region16: #{tpu_custom_call.1} parent=1 // pred_region
      _
    $region17: #{tpu_custom_call.1} parent=1 // pred_fallthru
      _
    // Predicated region
    $region18: #{tpu_custom_call.1} parent=1 // pred_check
      _
    $region19: #{tpu_custom_call.1} parent=1 // pred_check_branch
      %44 = sbr.rel (0) target = $region21
    $region20: #{tpu_custom_call.1} parent=1 // pred_region
      %s46 = ssub.s32 9216, 9216
      %47 = vsyncadd [#allocation7], %s46
      %s48 = sshll.u32 [#allocation8], 4
      %s49 = int_to_ptr.vmem [resolvable:$true] %s48
      %54 = dma.hbm_to_vmem [thread:$0]  %s4, 9216, %s49, [#allocation7], 64, 64, 4
    $region21: #{tpu_custom_call.1} parent=1 // pred_fallthru
      _
    // Predicated region
    $region22: #{tpu_custom_call.1} parent=1 // pred_check
      _
    $region23: #{tpu_custom_call.1} parent=1 // pred_check_branch
      %56 = sbr.rel (0) target = $region25
    $region24: #{tpu_custom_call.1} parent=1 // pred_region
      _
    $region25: #{tpu_custom_call.1} parent=1 // pred_fallthru
      _
    // Predicated region
    $region26: #{tpu_custom_call.1} parent=1 // pred_check
      _
    $region27: #{tpu_custom_call.1} parent=1 // pred_check_branch
      %58 = sbr.rel (0) target = $region29
    $region28: #{tpu_custom_call.1} parent=1 // pred_region
      _
    $region29: #{tpu_custom_call.1} parent=1 // pred_fallthru
      _
    // Predicated region
    $region30: #{tpu_custom_call.1} parent=1 // pred_check
      _
    $region31: #{tpu_custom_call.1} parent=1 // pred_check_branch
      %60 = sbr.rel (0) target = $region33
    $region32: #{tpu_custom_call.1} parent=1 // pred_region
      %61 = dma.done [#allocation4], 4096
    $region33: #{tpu_custom_call.1} parent=1 // pred_fallthru
      _
    // Predicated region
    $region34: #{tpu_custom_call.1} parent=1 // pred_check
      _
    $region35: #{tpu_custom_call.1} parent=1 // pred_check_branch
      %63 = sbr.rel (0) target = $region37
    $region36: #{tpu_custom_call.1} parent=1 // pred_region
      %64 = dma.done [#allocation7], 1024
    $region37: #{tpu_custom_call.1} parent=1 // pred_fallthru
      _
    // Predicated region
    $region38: #{tpu_custom_call.1} parent=1 // pred_check
      _
    $region39: #{tpu_custom_call.1} parent=1 // pred_check_branch
      %66 = sbr.rel (0) target = $region41
    $region40: #{tpu_custom_call.1} parent=1 // pred_region
      %67 = dma.done [#allocation7], 9216
    $region41: #{tpu_custom_call.1} parent=1 // pred_fallthru
      _
    %v69 = vld [vmem:[#allocation3] sm:$0xf]
    %v70 = vld [vmem:[#allocation3 + $0x4] sm:$0xf]
    %v71 = vld [vmem:[#allocation3 + $0x8] sm:$0xf]
    %v72 = vld [vmem:[#allocation3 + $0xc] sm:$0xf]
    %v73 = vld [vmem:[#allocation3 + $0x10] sm:$0xf]
    %v74 = vld [vmem:[#allocation3 + $0x14] sm:$0xf]
    %v75 = vld [vmem:[#allocation3 + $0x18] sm:$0xf]
    %v76 = vld [vmem:[#allocation3 + $0x1c] sm:$0xf]
    %v77 = vld [vmem:[#allocation3 + $0x20] sm:$0xf]
    %v78 = vld [vmem:[#allocation3 + $0x24] sm:$0xf]
    %v79 = vld [vmem:[#allocation3 + $0x28] sm:$0xf]
    %v80 = vld [vmem:[#allocation3 + $0x2c] sm:$0xf]
    %v81 = vld [vmem:[#allocation3 + $0x30] sm:$0xf]
    %v82 = vld [vmem:[#allocation3 + $0x34] sm:$0xf]
    %v83 = vld [vmem:[#allocation3 + $0x38] sm:$0xf]
    %v84 = vld [vmem:[#allocation3 + $0x3c] sm:$0xf]
    %v85 = vld [vmem:[#allocation3 + $0x40] sm:$0xf]
    %v86 = vld [vmem:[#allocation3 + $0x44] sm:$0xf]
    %v87 = vld [vmem:[#allocation3 + $0x48] sm:$0xf]
    %v88 = vld [vmem:[#allocation3 + $0x4c] sm:$0xf]
    %v89 = vld [vmem:[#allocation3 + $0x50] sm:$0xf]
    %v90 = vld [vmem:[#allocation3 + $0x54] sm:$0xf]
    %v91 = vld [vmem:[#allocation3 + $0x58] sm:$0xf]
    %v92 = vld [vmem:[#allocation3 + $0x5c] sm:$0xf]
    %v93 = vld [vmem:[#allocation3 + $0x60] sm:$0xf]
    %v94 = vld [vmem:[#allocation3 + $0x64] sm:$0xf]
    %v95 = vld [vmem:[#allocation3 + $0x68] sm:$0xf]
    %v96 = vld [vmem:[#allocation3 + $0x6c] sm:$0xf]
    %v97 = vld [vmem:[#allocation3 + $0x70] sm:$0xf]
    %v98 = vld [vmem:[#allocation3 + $0x74] sm:$0xf]
    %v99 = vld [vmem:[#allocation3 + $0x78] sm:$0xf]
    %v100 = vld [vmem:[#allocation3 + $0x7c] sm:$0xf]
    %v101 = vld [vmem:[#allocation3 + $0x80] sm:$0xf]
    %v102 = vld [vmem:[#allocation3 + $0x84] sm:$0xf]
    %v103 = vld [vmem:[#allocation3 + $0x88] sm:$0xf]
    %v104 = vld [vmem:[#allocation3 + $0x8c] sm:$0xf]
    %v105 = vld [vmem:[#allocation3 + $0x90] sm:$0xf]
    %v106 = vld [vmem:[#allocation3 + $0x94] sm:$0xf]
    %v107 = vld [vmem:[#allocation3 + $0x98] sm:$0xf]
    %v108 = vld [vmem:[#allocation3 + $0x9c] sm:$0xf]
    %v109 = vld [vmem:[#allocation3 + $0xa0] sm:$0xf]
    %v110 = vld [vmem:[#allocation3 + $0xa4] sm:$0xf]
    %v111 = vld [vmem:[#allocation3 + $0xa8] sm:$0xf]
    %v112 = vld [vmem:[#allocation3 + $0xac] sm:$0xf]
    %v113 = vld [vmem:[#allocation3 + $0xb0] sm:$0xf]
    %v114 = vld [vmem:[#allocation3 + $0xb4] sm:$0xf]
    %v115 = vld [vmem:[#allocation3 + $0xb8] sm:$0xf]
    %v116 = vld [vmem:[#allocation3 + $0xbc] sm:$0xf]
    %v117 = vld [vmem:[#allocation3 + $0xc0] sm:$0xf]
    %v118 = vld [vmem:[#allocation3 + $0xc4] sm:$0xf]
    %v119 = vld [vmem:[#allocation3 + $0xc8] sm:$0xf]
    %v120 = vld [vmem:[#allocation3 + $0xcc] sm:$0xf]
    %v121 = vld [vmem:[#allocation3 + $0xd0] sm:$0xf]
    %v122 = vld [vmem:[#allocation3 + $0xd4] sm:$0xf]
    %v123 = vld [vmem:[#allocation3 + $0xd8] sm:$0xf]
    %v124 = vld [vmem:[#allocation3 + $0xdc] sm:$0xf]
    %v125 = vld [vmem:[#allocation3 + $0xe0] sm:$0xf]
    %v126 = vld [vmem:[#allocation3 + $0xe4] sm:$0xf]
    %v127 = vld [vmem:[#allocation3 + $0xe8] sm:$0xf]
    %v128 = vld [vmem:[#allocation3 + $0xec] sm:$0xf]
    %v129 = vld [vmem:[#allocation3 + $0xf0] sm:$0xf]
    %v130 = vld [vmem:[#allocation3 + $0xf4] sm:$0xf]
    %v131 = vld [vmem:[#allocation3 + $0xf8] sm:$0xf]
    %v132 = vld [vmem:[#allocation3 + $0xfc] sm:$0xf]
    %v133 = vld [vmem:[#allocation6] sm:$0xf]
    %v134 = vld [vmem:[#allocation6 + $0x4] sm:$0xf]
    %v135 = vld [vmem:[#allocation6 + $0x8] sm:$0xf]
    %v136 = vld [vmem:[#allocation6 + $0xc] sm:$0xf]
    %v137 = vld [vmem:[#allocation6 + $0x10] sm:$0xf]
    %v138 = vld [vmem:[#allocation6 + $0x14] sm:$0xf]
    %v139 = vld [vmem:[#allocation6 + $0x18] sm:$0xf]
    %v140 = vld [vmem:[#allocation6 + $0x1c] sm:$0xf]
    %v141 = vld [vmem:[#allocation6 + $0x20] sm:$0xf]
    %v142 = vld [vmem:[#allocation6 + $0x24] sm:$0xf]
    %v143 = vld [vmem:[#allocation6 + $0x28] sm:$0xf]
    %v144 = vld [vmem:[#allocation6 + $0x2c] sm:$0xf]
    %v145 = vld [vmem:[#allocation6 + $0x30] sm:$0xf]
    %v146 = vld [vmem:[#allocation6 + $0x34] sm:$0xf]
    %v147 = vld [vmem:[#allocation6 + $0x38] sm:$0xf]
    %v148 = vld [vmem:[#allocation6 + $0x3c] sm:$0xf]
    %v213 = vunpack.c.l.b16 %v69
    %v214 = vunpack.c.l.b16 %v70
    %v215 = vunpack.c.l.b16 %v71
    %v216 = vunpack.c.l.b16 %v72
    %v217 = vunpack.c.l.b16 %v73
    %v218 = vunpack.c.l.b16 %v74
    %v219 = vunpack.c.l.b16 %v75
    %v220 = vunpack.c.l.b16 %v76
    %v221 = vunpack.c.l.b16 %v77
    %v222 = vunpack.c.l.b16 %v78
    %v223 = vunpack.c.l.b16 %v79
    %v224 = vunpack.c.l.b16 %v80
    %v225 = vunpack.c.l.b16 %v81
    %v226 = vunpack.c.l.b16 %v82
    %v227 = vunpack.c.l.b16 %v83
    %v228 = vunpack.c.l.b16 %v84
    %v229 = vunpack.c.l.b16 %v85
    %v230 = vunpack.c.l.b16 %v86
    %v231 = vunpack.c.l.b16 %v87
    %v232 = vunpack.c.l.b16 %v88
    %v233 = vunpack.c.l.b16 %v89
    %v234 = vunpack.c.l.b16 %v90
    %v235 = vunpack.c.l.b16 %v91
    %v236 = vunpack.c.l.b16 %v92
    %v237 = vunpack.c.l.b16 %v93
    %v238 = vunpack.c.l.b16 %v94
    %v239 = vunpack.c.l.b16 %v95
    %v240 = vunpack.c.l.b16 %v96
    %v241 = vunpack.c.l.b16 %v97
    %v242 = vunpack.c.l.b16 %v98
    %v243 = vunpack.c.l.b16 %v99
    %v244 = vunpack.c.l.b16 %v100
    %v245 = vunpack.c.l.b16 %v101
    %v246 = vunpack.c.l.b16 %v102
    %v247 = vunpack.c.l.b16 %v103
    %v248 = vunpack.c.l.b16 %v104
    %v249 = vunpack.c.l.b16 %v105
    %v250 = vunpack.c.l.b16 %v106
    %v251 = vunpack.c.l.b16 %v107
    %v252 = vunpack.c.l.b16 %v108
    %v253 = vunpack.c.l.b16 %v109
    %v254 = vunpack.c.l.b16 %v110
    %v255 = vunpack.c.l.b16 %v111
    %v256 = vunpack.c.l.b16 %v112
    %v257 = vunpack.c.l.b16 %v113
    %v258 = vunpack.c.l.b16 %v114
    %v259 = vunpack.c.l.b16 %v115
    %v260 = vunpack.c.l.b16 %v116
    %v261 = vunpack.c.l.b16 %v117
    %v262 = vunpack.c.l.b16 %v118
    %v263 = vunpack.c.l.b16 %v119
    %v264 = vunpack.c.l.b16 %v120
    %v265 = vunpack.c.l.b16 %v121
    %v266 = vunpack.c.l.b16 %v122
    %v267 = vunpack.c.l.b16 %v123
    %v268 = vunpack.c.l.b16 %v124
    %v269 = vunpack.c.l.b16 %v125
    %v270 = vunpack.c.l.b16 %v126
    %v271 = vunpack.c.l.b16 %v127
    %v272 = vunpack.c.l.b16 %v128
    %v273 = vunpack.c.l.b16 %v129
    %v274 = vunpack.c.l.b16 %v130
    %v275 = vunpack.c.l.b16 %v131
    %v276 = vunpack.c.l.b16 %v132
    %v277 = vpack.c.b16 %v214, %v213
    %v278 = vpack.c.b16 %v216, %v215
    %v279 = vpack.c.b16 %v218, %v217
    %v280 = vpack.c.b16 %v220, %v219
    %v281 = vpack.c.b16 %v222, %v221
    %v282 = vpack.c.b16 %v224, %v223
    %v283 = vpack.c.b16 %v226, %v225
    %v284 = vpack.c.b16 %v228, %v227
    %v285 = vpack.c.b16 %v230, %v229
    %v286 = vpack.c.b16 %v232, %v231
    %v287 = vpack.c.b16 %v234, %v233
    %v288 = vpack.c.b16 %v236, %v235
    %v289 = vpack.c.b16 %v238, %v237
    %v290 = vpack.c.b16 %v240, %v239
    %v291 = vpack.c.b16 %v242, %v241
    %v292 = vpack.c.b16 %v244, %v243
    %v293 = vpack.c.b16 %v246, %v245
    %v294 = vpack.c.b16 %v248, %v247
    %v295 = vpack.c.b16 %v250, %v249
    %v296 = vpack.c.b16 %v252, %v251
    %v297 = vpack.c.b16 %v254, %v253
    %v298 = vpack.c.b16 %v256, %v255
    %v299 = vpack.c.b16 %v258, %v257
    %v300 = vpack.c.b16 %v260, %v259
    %v301 = vpack.c.b16 %v262, %v261
    %v302 = vpack.c.b16 %v264, %v263
    %v303 = vpack.c.b16 %v266, %v265
    %v304 = vpack.c.b16 %v268, %v267
    %v305 = vpack.c.b16 %v270, %v269
    %v306 = vpack.c.b16 %v272, %v271
    %v307 = vpack.c.b16 %v274, %v273
    %v308 = vpack.c.b16 %v276, %v275
    %v357 = vunpack.c.l.b16 %v133
    %v358 = vunpack.c.l.b16 %v134
    %v359 = vunpack.c.l.b16 %v135
    %v360 = vunpack.c.l.b16 %v136
    %v361 = vunpack.c.l.b16 %v137
    %v362 = vunpack.c.l.b16 %v138
    %v363 = vunpack.c.l.b16 %v139
    %v364 = vunpack.c.l.b16 %v140
    %v365 = vunpack.c.l.b16 %v141
    %v366 = vunpack.c.l.b16 %v142
    %v367 = vunpack.c.l.b16 %v143
    %v368 = vunpack.c.l.b16 %v144
    %v369 = vunpack.c.l.b16 %v145
    %v370 = vunpack.c.l.b16 %v146
    %v371 = vunpack.c.l.b16 %v147
    %v372 = vunpack.c.l.b16 %v148
    %v373 = vpack.c.b16 %v358, %v357
    %v374 = vpack.c.b16 %v360, %v359
    %v375 = vpack.c.b16 %v362, %v361
    %v376 = vpack.c.b16 %v364, %v363
    %v377 = vpack.c.b16 %v366, %v365
    %v378 = vpack.c.b16 %v368, %v367
    %v379 = vpack.c.b16 %v370, %v369
    %v380 = vpack.c.b16 %v372, %v371
    %389 = vmatprep.subr.bf16.mxu0 0
    %390 = vmatpush1.bf16.msra.mxu0 %v373
    %391 = vmatprep.subr.bf16.mxu0 0
    %392 = vmatpush1.bf16.msra.mxu0 %v374
    %393 = vmatprep.subr.bf16.mxu0 0
    %394 = vmatpush1.bf16.msra.mxu0 %v375
    %395 = vmatprep.subr.bf16.mxu0 0
    %396 = vmatpush1.bf16.msra.mxu0 %v376
    %397 = vmatprep.subr.bf16.mxu0 0
    %398 = vmatpush1.bf16.msra.mxu0 %v377
    %399 = vmatprep.subr.bf16.mxu0 0
    %400 = vmatpush1.bf16.msra.mxu0 %v378
    %401 = vmatprep.subr.bf16.mxu0 0
    %402 = vmatpush1.bf16.msra.mxu0 %v379
    %403 = vmatprep.subr.bf16.mxu0 0
    %404 = vmatpush1.bf16.msra.mxu0 %v380
    %405 = vmatprep.subr.bf16.mxu0 0
    %406 = vmatpush1.bf16.msra.mxu0 0
    %407 = vmatprep.subr.bf16.mxu0 0
    %408 = vmatpush1.bf16.msra.mxu0 0
    %409 = vmatprep.subr.bf16.mxu0 0
    %410 = vmatpush1.bf16.msra.mxu0 0
    %411 = vmatprep.subr.bf16.mxu0 0
    %412 = vmatpush1.bf16.msra.mxu0 0
    %413 = vmatprep.subr.bf16.mxu0 0
    %414 = vmatpush1.bf16.msra.mxu0 0
    %415 = vmatprep.subr.bf16.mxu0 0
    %416 = vmatpush1.bf16.msra.mxu0 0
    %417 = vmatprep.subr.bf16.mxu0 0
    %418 = vmatpush1.bf16.msra.mxu0 0
    %419 = vmatprep.subr.bf16.mxu0 0
    %420 = vmatpush1.bf16.msra.mxu0 0
    %421 = vmatprep.mubr.bf16.mxu0 0
    %422 = vmatmul.mubr.bf16.gmra.mrb[0].mxu0 %v277
    %v423 = vpop.f32.mrb[0].mxu0
    %v424 = vadd.f32 0.0, %v423
    %v425 = vpop.f32.mrb[0].mxu0
    %v426 = vpop.f32.mrb[0].mxu0
    %v427 = vadd.f32 0.0, %v426
    %v428 = vpop.f32.mrb[0].mxu0
    %429 = vmatprep.mubr.bf16.mxu0 0
    %430 = vmatmul.mubr.bf16.gmra.mrb[0].mxu0 %v278
    %v431 = vpop.f32.mrb[0].mxu0
    %v432 = vadd.f32 0.0, %v431
    %v433 = vpop.f32.mrb[0].mxu0
    %v434 = vpop.f32.mrb[0].mxu0
    %v435 = vadd.f32 0.0, %v434
    %v436 = vpop.f32.mrb[0].mxu0
    %437 = vmatprep.mubr.bf16.mxu0 0
    %438 = vmatmul.mubr.bf16.gmra.mrb[0].mxu0 %v279
    %v439 = vpop.f32.mrb[0].mxu0
    %v440 = vadd.f32 0.0, %v439
    %v441 = vpop.f32.mrb[0].mxu0
    %v442 = vpop.f32.mrb[0].mxu0
    %v443 = vadd.f32 0.0, %v442
    %v444 = vpop.f32.mrb[0].mxu0
    %445 = vmatprep.mubr.bf16.mxu0 0
    %446 = vmatmul.mubr.bf16.gmra.mrb[0].mxu0 %v280
    %v447 = vpop.f32.mrb[0].mxu0
    %v448 = vadd.f32 0.0, %v447
    %v449 = vpop.f32.mrb[0].mxu0
    %v450 = vpop.f32.mrb[0].mxu0
    %v451 = vadd.f32 0.0, %v450
    %v452 = vpop.f32.mrb[0].mxu0
    %453 = vmatprep.mubr.bf16.mxu0 0
    %454 = vmatmul.mubr.bf16.gmra.mrb[0].mxu0 %v281
    %v455 = vpop.f32.mrb[0].mxu0
    %v456 = vadd.f32 0.0, %v455
    %v457 = vpop.f32.mrb[0].mxu0
    %v458 = vpop.f32.mrb[0].mxu0
    %v459 = vadd.f32 0.0, %v458
    %v460 = vpop.f32.mrb[0].mxu0
    %461 = vmatprep.mubr.bf16.mxu0 0
    %462 = vmatmul.mubr.bf16.gmra.mrb[0].mxu0 %v282
    %v463 = vpop.f32.mrb[0].mxu0
    %v464 = vadd.f32 0.0, %v463
    %v465 = vpop.f32.mrb[0].mxu0
    %v466 = vpop.f32.mrb[0].mxu0
    %v467 = vadd.f32 0.0, %v466
    %v468 = vpop.f32.mrb[0].mxu0
    %469 = vmatprep.mubr.bf16.mxu0 0
    %470 = vmatmul.mubr.bf16.gmra.mrb[0].mxu0 %v283
    %v471 = vpop.f32.mrb[0].mxu0
    %v472 = vadd.f32 0.0, %v471
    %v473 = vpop.f32.mrb[0].mxu0
    %v474 = vpop.f32.mrb[0].mxu0
    %v475 = vadd.f32 0.0, %v474
    %v476 = vpop.f32.mrb[0].mxu0
    %477 = vmatprep.mubr.bf16.mxu0 0
    %478 = vmatmul.mubr.bf16.gmra.mrb[0].mxu0 %v284
    %v479 = vpop.f32.mrb[0].mxu0
    %v480 = vadd.f32 0.0, %v479
    %v481 = vpop.f32.mrb[0].mxu0
    %v482 = vpop.f32.mrb[0].mxu0
    %v483 = vadd.f32 0.0, %v482
    %v484 = vpop.f32.mrb[0].mxu0
    %485 = vmatprep.mubr.bf16.mxu0 0
    %486 = vmatmul.mubr.bf16.gmra.mrb[0].mxu0 %v285
    %v487 = vpop.f32.mrb[0].mxu0
    %v488 = vadd.f32 0.0, %v487
    %v489 = vpop.f32.mrb[0].mxu0
    %v490 = vpop.f32.mrb[0].mxu0
    %v491 = vadd.f32 0.0, %v490
    %v492 = vpop.f32.mrb[0].mxu0
    %493 = vmatprep.mubr.bf16.mxu0 0
    %494 = vmatmul.mubr.bf16.gmra.mrb[0].mxu0 %v286
    %v495 = vpop.f32.mrb[0].mxu0
    %v496 = vadd.f32 0.0, %v495
    %v497 = vpop.f32.mrb[0].mxu0
    %v498 = vpop.f32.mrb[0].mxu0
    %v499 = vadd.f32 0.0, %v498
    %v500 = vpop.f32.mrb[0].mxu0
    %501 = vmatprep.mubr.bf16.mxu0 0
    %502 = vmatmul.mubr.bf16.gmra.mrb[0].mxu0 %v287
    %v503 = vpop.f32.mrb[0].mxu0
    %v504 = vadd.f32 0.0, %v503
    %v505 = vpop.f32.mrb[0].mxu0
    %v506 = vpop.f32.mrb[0].mxu0
    %v507 = vadd.f32 0.0, %v506
    %v508 = vpop.f32.mrb[0].mxu0
    %509 = vmatprep.mubr.bf16.mxu0 0
    %510 = vmatmul.mubr.bf16.gmra.mrb[0].mxu0 %v288
    %v511 = vpop.f32.mrb[0].mxu0
    %v512 = vadd.f32 0.0, %v511
    %v513 = vpop.f32.mrb[0].mxu0
    %v514 = vpop.f32.mrb[0].mxu0
    %v515 = vadd.f32 0.0, %v514
    %v516 = vpop.f32.mrb[0].mxu0
    %517 = vmatprep.mubr.bf16.mxu0 0
    %518 = vmatmul.mubr.bf16.gmra.mrb[0].mxu0 %v289
    %v519 = vpop.f32.mrb[0].mxu0
    %v520 = vadd.f32 0.0, %v519
    %v521 = vpop.f32.mrb[0].mxu0
    %v522 = vpop.f32.mrb[0].mxu0
    %v523 = vadd.f32 0.0, %v522
    %v524 = vpop.f32.mrb[0].mxu0
    %525 = vmatprep.mubr.bf16.mxu0 0
    %526 = vmatmul.mubr.bf16.gmra.mrb[0].mxu0 %v290
    %v527 = vpop.f32.mrb[0].mxu0
    %v528 = vadd.f32 0.0, %v527
    %v529 = vpop.f32.mrb[0].mxu0
    %v530 = vpop.f32.mrb[0].mxu0
    %v531 = vadd.f32 0.0, %v530
    %v532 = vpop.f32.mrb[0].mxu0
    %533 = vmatprep.mubr.bf16.mxu0 0
    %534 = vmatmul.mubr.bf16.gmra.mrb[0].mxu0 %v291
    %v535 = vpop.f32.mrb[0].mxu0
    %v536 = vadd.f32 0.0, %v535
    %v537 = vpop.f32.mrb[0].mxu0
    %v538 = vpop.f32.mrb[0].mxu0
    %v539 = vadd.f32 0.0, %v538
    %v540 = vpop.f32.mrb[0].mxu0
    %541 = vmatprep.mubr.bf16.mxu0 0
    %542 = vmatmul.mubr.bf16.gmra.mrb[0].mxu0 %v292
    %v543 = vpop.f32.mrb[0].mxu0
    %v544 = vadd.f32 0.0, %v543
    %v545 = vpop.f32.mrb[0].mxu0
    %v546 = vpop.f32.mrb[0].mxu0
    %v547 = vadd.f32 0.0, %v546
    %v548 = vpop.f32.mrb[0].mxu0
    %549 = vmatprep.mubr.bf16.mxu0 0
    %550 = vmatmul.mubr.bf16.gmra.mrb[0].mxu0 %v293
    %v551 = vpop.f32.mrb[0].mxu0
    %v552 = vadd.f32 0.0, %v551
    %v553 = vpop.f32.mrb[0].mxu0
    %v554 = vpop.f32.mrb[0].mxu0
    %v555 = vadd.f32 0.0, %v554
    %v556 = vpop.f32.mrb[0].mxu0
    %557 = vmatprep.mubr.bf16.mxu0 0
    %558 = vmatmul.mubr.bf16.gmra.mrb[0].mxu0 %v294
    %v559 = vpop.f32.mrb[0].mxu0
    %v560 = vadd.f32 0.0, %v559
    %v561 = vpop.f32.mrb[0].mxu0
    %v562 = vpop.f32.mrb[0].mxu0
    %v563 = vadd.f32 0.0, %v562
    %v564 = vpop.f32.mrb[0].mxu0
    %565 = vmatprep.mubr.bf16.mxu0 0
    %566 = vmatmul.mubr.bf16.gmra.mrb[0].mxu0 %v295
    %v567 = vpop.f32.mrb[0].mxu0
    %v568 = vadd.f32 0.0, %v567
    %v569 = vpop.f32.mrb[0].mxu0
    %v570 = vpop.f32.mrb[0].mxu0
    %v571 = vadd.f32 0.0, %v570
    %v572 = vpop.f32.mrb[0].mxu0
    %573 = vmatprep.mubr.bf16.mxu0 0
    %574 = vmatmul.mubr.bf16.gmra.mrb[0].mxu0 %v296
    %v575 = vpop.f32.mrb[0].mxu0
    %v576 = vadd.f32 0.0, %v575
    %v577 = vpop.f32.mrb[0].mxu0
    %v578 = vpop.f32.mrb[0].mxu0
    %v579 = vadd.f32 0.0, %v578
    %v580 = vpop.f32.mrb[0].mxu0
    %581 = vmatprep.mubr.bf16.mxu0 0
    %582 = vmatmul.mubr.bf16.gmra.mrb[0].mxu0 %v297
    %v583 = vpop.f32.mrb[0].mxu0
    %v584 = vadd.f32 0.0, %v583
    %v585 = vpop.f32.mrb[0].mxu0
    %v586 = vpop.f32.mrb[0].mxu0
    %v587 = vadd.f32 0.0, %v586
    %v588 = vpop.f32.mrb[0].mxu0
    %589 = vmatprep.mubr.bf16.mxu0 0
    %590 = vmatmul.mubr.bf16.gmra.mrb[0].mxu0 %v298
    %v591 = vpop.f32.mrb[0].mxu0
    %v592 = vadd.f32 0.0, %v591
    %v593 = vpop.f32.mrb[0].mxu0
    %v594 = vpop.f32.mrb[0].mxu0
    %v595 = vadd.f32 0.0, %v594
    %v596 = vpop.f32.mrb[0].mxu0
    %597 = vmatprep.mubr.bf16.mxu0 0
    %598 = vmatmul.mubr.bf16.gmra.mrb[0].mxu0 %v299
    %v599 = vpop.f32.mrb[0].mxu0
    %v600 = vadd.f32 0.0, %v599
    %v601 = vpop.f32.mrb[0].mxu0
    %v602 = vpop.f32.mrb[0].mxu0
    %v603 = vadd.f32 0.0, %v602
    %v604 = vpop.f32.mrb[0].mxu0
    %605 = vmatprep.mubr.bf16.mxu0 0
    %606 = vmatmul.mubr.bf16.gmra.mrb[0].mxu0 %v300
    %v607 = vpop.f32.mrb[0].mxu0
    %v608 = vadd.f32 0.0, %v607
    %v609 = vpop.f32.mrb[0].mxu0
    %v610 = vpop.f32.mrb[0].mxu0
    %v611 = vadd.f32 0.0, %v610
    %v612 = vpop.f32.mrb[0].mxu0
    %613 = vmatprep.mubr.bf16.mxu0 0
    %614 = vmatmul.mubr.bf16.gmra.mrb[0].mxu0 %v301
    %v615 = vpop.f32.mrb[0].mxu0
    %v616 = vadd.f32 0.0, %v615
    %v617 = vpop.f32.mrb[0].mxu0
    %v618 = vpop.f32.mrb[0].mxu0
    %v619 = vadd.f32 0.0, %v618
    %v620 = vpop.f32.mrb[0].mxu0
    %621 = vmatprep.mubr.bf16.mxu0 0
    %622 = vmatmul.mubr.bf16.gmra.mrb[0].mxu0 %v302
    %v623 = vpop.f32.mrb[0].mxu0
    %v624 = vadd.f32 0.0, %v623
    %v625 = vpop.f32.mrb[0].mxu0
    %v626 = vpop.f32.mrb[0].mxu0
    %v627 = vadd.f32 0.0, %v626
    %v628 = vpop.f32.mrb[0].mxu0
    %629 = vmatprep.mubr.bf16.mxu0 0
    %630 = vmatmul.mubr.bf16.gmra.mrb[0].mxu0 %v303
    %v631 = vpop.f32.mrb[0].mxu0
    %v632 = vadd.f32 0.0, %v631
    %v633 = vpop.f32.mrb[0].mxu0
    %v634 = vpop.f32.mrb[0].mxu0
    %v635 = vadd.f32 0.0, %v634
    %v636 = vpop.f32.mrb[0].mxu0
    %637 = vmatprep.mubr.bf16.mxu0 0
    %638 = vmatmul.mubr.bf16.gmra.mrb[0].mxu0 %v304
    %v639 = vpop.f32.mrb[0].mxu0
    %v640 = vadd.f32 0.0, %v639
    %v641 = vpop.f32.mrb[0].mxu0
    %v642 = vpop.f32.mrb[0].mxu0
    %v643 = vadd.f32 0.0, %v642
    %v644 = vpop.f32.mrb[0].mxu0
    %645 = vmatprep.mubr.bf16.mxu0 0
    %646 = vmatmul.mubr.bf16.gmra.mrb[0].mxu0 %v305
    %v647 = vpop.f32.mrb[0].mxu0
    %v648 = vadd.f32 0.0, %v647
    %v649 = vpop.f32.mrb[0].mxu0
    %v650 = vpop.f32.mrb[0].mxu0
    %v651 = vadd.f32 0.0, %v650
    %v652 = vpop.f32.mrb[0].mxu0
    %653 = vmatprep.mubr.bf16.mxu0 0
    %654 = vmatmul.mubr.bf16.gmra.mrb[0].mxu0 %v306
    %v655 = vpop.f32.mrb[0].mxu0
    %v656 = vadd.f32 0.0, %v655
    %v657 = vpop.f32.mrb[0].mxu0
    %v658 = vpop.f32.mrb[0].mxu0
    %v659 = vadd.f32 0.0, %v658
    %v660 = vpop.f32.mrb[0].mxu0
    %661 = vmatprep.mubr.bf16.mxu0 0
    %662 = vmatmul.mubr.bf16.gmra.mrb[0].mxu0 %v307
    %v663 = vpop.f32.mrb[0].mxu0
    %v664 = vadd.f32 0.0, %v663
    %v665 = vpop.f32.mrb[0].mxu0
    %v666 = vpop.f32.mrb[0].mxu0
    %v667 = vadd.f32 0.0, %v666
    %v668 = vpop.f32.mrb[0].mxu0
    %669 = vmatprep.mubr.bf16.mxu0 0
    %670 = vmatmul.mubr.bf16.gmra.mrb[0].mxu0 %v308
    %v671 = vpop.f32.mrb[0].mxu0
    %v672 = vadd.f32 0.0, %v671
    %v673 = vpop.f32.mrb[0].mxu0
    %v674 = vpop.f32.mrb[0].mxu0
    %v675 = vadd.f32 0.0, %v674
    %v676 = vpop.f32.mrb[0].mxu0
    %677 = vdwg.mxu0
    %v678 = vadd.f32 %v424, %v427
    %v679 = vadd.f32 %v678, %v432
    %v680 = vadd.f32 %v679, %v435
    %v681 = vadd.f32 %v680, %v440
    %v682 = vadd.f32 %v681, %v443
    %v683 = vadd.f32 %v682, %v448
    %v684 = vadd.f32 %v683, %v451
    %v685 = vadd.f32 %v684, %v456
    %v686 = vadd.f32 %v685, %v459
    %v687 = vadd.f32 %v686, %v464
    %v688 = vadd.f32 %v687, %v467
    %v689 = vadd.f32 %v688, %v472
    %v690 = vadd.f32 %v689, %v475
    %v691 = vadd.f32 %v690, %v480
    %v692 = vadd.f32 %v691, %v483
    %v693 = vadd.f32 %v692, %v488
    %v694 = vadd.f32 %v693, %v491
    %v695 = vadd.f32 %v694, %v496
    %v696 = vadd.f32 %v695, %v499
    %v697 = vadd.f32 %v696, %v504
    %v698 = vadd.f32 %v697, %v507
    %v699 = vadd.f32 %v698, %v512
    %v700 = vadd.f32 %v699, %v515
    %v701 = vadd.f32 %v700, %v520
    %v702 = vadd.f32 %v701, %v523
    %v703 = vadd.f32 %v702, %v528
    %v704 = vadd.f32 %v703, %v531
    %v705 = vadd.f32 %v704, %v536
    %v706 = vadd.f32 %v705, %v539
    %v707 = vadd.f32 %v706, %v544
    %v708 = vadd.f32 %v707, %v547
    %v709 = vrot.slane %v708, 4
    %v710 = vadd.f32 %v708, %v709
    %v711 = vrot.slane %v710, 2
    %v712 = vadd.f32 %v710, %v711
    %v713 = vrot.slane %v712, 1
    %v714 = vadd.f32 %v712, %v713
    %v715 = vadd.f32 %v552, %v555
    %v716 = vadd.f32 %v715, %v560
    %v717 = vadd.f32 %v716, %v563
    %v718 = vadd.f32 %v717, %v568
    %v719 = vadd.f32 %v718, %v571
    %v720 = vadd.f32 %v719, %v576
    %v721 = vadd.f32 %v720, %v579
    %v722 = vadd.f32 %v721, %v584
    %v723 = vadd.f32 %v722, %v587
    %v724 = vadd.f32 %v723, %v592
    %v725 = vadd.f32 %v724, %v595
    %v726 = vadd.f32 %v725, %v600
    %v727 = vadd.f32 %v726, %v603
    %v728 = vadd.f32 %v727, %v608
    %v729 = vadd.f32 %v728, %v611
    %v730 = vadd.f32 %v729, %v616
    %v731 = vadd.f32 %v730, %v619
    %v732 = vadd.f32 %v731, %v624
    %v733 = vadd.f32 %v732, %v627
    %v734 = vadd.f32 %v733, %v632
    %v735 = vadd.f32 %v734, %v635
    %v736 = vadd.f32 %v735, %v640
    %v737 = vadd.f32 %v736, %v643
    %v738 = vadd.f32 %v737, %v648
    %v739 = vadd.f32 %v738, %v651
    %v740 = vadd.f32 %v739, %v656
    %v741 = vadd.f32 %v740, %v659
    %v742 = vadd.f32 %v741, %v664
    %v743 = vadd.f32 %v742, %v667
    %v744 = vadd.f32 %v743, %v672
    %v745 = vadd.f32 %v744, %v675
    %v746 = vrot.slane %v745, 4
    %v747 = vadd.f32 %v745, %v746
    %v748 = vrot.slane %v747, 2
    %v749 = vadd.f32 %v747, %v748
    %v750 = vrot.slane %v749, 1
    %v751 = vadd.f32 %v749, %v750
    %v752 = vmul.f32 %v424, %v424
    %v753 = vmul.f32 %v427, %v427
    %v754 = vmul.f32 %v432, %v432
    %v755 = vmul.f32 %v435, %v435
    %v756 = vmul.f32 %v440, %v440
    %v757 = vmul.f32 %v443, %v443
    %v758 = vmul.f32 %v448, %v448
    %v759 = vmul.f32 %v451, %v451
    %v760 = vmul.f32 %v456, %v456
    %v761 = vmul.f32 %v459, %v459
    %v762 = vmul.f32 %v464, %v464
    %v763 = vmul.f32 %v467, %v467
    %v764 = vmul.f32 %v472, %v472
    %v765 = vmul.f32 %v475, %v475
    %v766 = vmul.f32 %v480, %v480
    %v767 = vmul.f32 %v483, %v483
    %v768 = vmul.f32 %v488, %v488
    %v769 = vmul.f32 %v491, %v491
    %v770 = vmul.f32 %v496, %v496
    %v771 = vmul.f32 %v499, %v499
    %v772 = vmul.f32 %v504, %v504
    %v773 = vmul.f32 %v507, %v507
    %v774 = vmul.f32 %v512, %v512
    %v775 = vmul.f32 %v515, %v515
    %v776 = vmul.f32 %v520, %v520
    %v777 = vmul.f32 %v523, %v523
    %v778 = vmul.f32 %v528, %v528
    %v779 = vmul.f32 %v531, %v531
    %v780 = vmul.f32 %v536, %v536
    %v781 = vmul.f32 %v539, %v539
    %v782 = vmul.f32 %v544, %v544
    %v783 = vmul.f32 %v547, %v547
    %v784 = vmul.f32 %v552, %v552
    %v785 = vmul.f32 %v555, %v555
    %v786 = vmul.f32 %v560, %v560
    %v787 = vmul.f32 %v563, %v563
    %v788 = vmul.f32 %v568, %v568
    %v789 = vmul.f32 %v571, %v571
    %v790 = vmul.f32 %v576, %v576
    %v791 = vmul.f32 %v579, %v579
    %v792 = vmul.f32 %v584, %v584
    %v793 = vmul.f32 %v587, %v587
    %v794 = vmul.f32 %v592, %v592
    %v795 = vmul.f32 %v595, %v595
    %v796 = vmul.f32 %v600, %v600
    %v797 = vmul.f32 %v603, %v603
    %v798 = vmul.f32 %v608, %v608
    %v799 = vmul.f32 %v611, %v611
    %v800 = vmul.f32 %v616, %v616
    %v801 = vmul.f32 %v619, %v619
    %v802 = vmul.f32 %v624, %v624
    %v803 = vmul.f32 %v627, %v627
    %v804 = vmul.f32 %v632, %v632
    %v805 = vmul.f32 %v635, %v635
    %v806 = vmul.f32 %v640, %v640
    %v807 = vmul.f32 %v643, %v643
    %v808 = vmul.f32 %v648, %v648
    %v809 = vmul.f32 %v651, %v651
    %v810 = vmul.f32 %v656, %v656
    %v811 = vmul.f32 %v659, %v659
    %v812 = vmul.f32 %v664, %v664
    %v813 = vmul.f32 %v667, %v667
    %v814 = vmul.f32 %v672, %v672
    %v815 = vmul.f32 %v675, %v675
    %v816 = vadd.f32 %v752, %v753
    %v817 = vadd.f32 %v816, %v754
    %v818 = vadd.f32 %v817, %v755
    %v819 = vadd.f32 %v818, %v756
    %v820 = vadd.f32 %v819, %v757
    %v821 = vadd.f32 %v820, %v758
    %v822 = vadd.f32 %v821, %v759
    %v823 = vadd.f32 %v822, %v760
    %v824 = vadd.f32 %v823, %v761
    %v825 = vadd.f32 %v824, %v762
    %v826 = vadd.f32 %v825, %v763
    %v827 = vadd.f32 %v826, %v764
    %v828 = vadd.f32 %v827, %v765
    %v829 = vadd.f32 %v828, %v766
    %v830 = vadd.f32 %v829, %v767
    %v831 = vadd.f32 %v830, %v768
    %v832 = vadd.f32 %v831, %v769
    %v833 = vadd.f32 %v832, %v770
    %v834 = vadd.f32 %v833, %v771
    %v835 = vadd.f32 %v834, %v772
    %v836 = vadd.f32 %v835, %v773
    %v837 = vadd.f32 %v836, %v774
    %v838 = vadd.f32 %v837, %v775
    %v839 = vadd.f32 %v838, %v776
    %v840 = vadd.f32 %v839, %v777
    %v841 = vadd.f32 %v840, %v778
    %v842 = vadd.f32 %v841, %v779
    %v843 = vadd.f32 %v842, %v780
    %v844 = vadd.f32 %v843, %v781
    %v845 = vadd.f32 %v844, %v782
    %v846 = vadd.f32 %v845, %v783
    %v847 = vrot.slane %v846, 4
    %v848 = vadd.f32 %v846, %v847
    %v849 = vrot.slane %v848, 2
    %v850 = vadd.f32 %v848, %v849
    %v851 = vrot.slane %v850, 1
    %v852 = vadd.f32 %v850, %v851
    %v853 = vadd.f32 %v784, %v785
    %v854 = vadd.f32 %v853, %v786
    %v855 = vadd.f32 %v854, %v787
    %v856 = vadd.f32 %v855, %v788
    %v857 = vadd.f32 %v856, %v789
    %v858 = vadd.f32 %v857, %v790
    %v859 = vadd.f32 %v858, %v791
    %v860 = vadd.f32 %v859, %v792
    %v861 = vadd.f32 %v860, %v793
    %v862 = vadd.f32 %v861, %v794
    %v863 = vadd.f32 %v862, %v795
    %v864 = vadd.f32 %v863, %v796
    %v865 = vadd.f32 %v864, %v797
    %v866 = vadd.f32 %v865, %v798
    %v867 = vadd.f32 %v866, %v799
    %v868 = vadd.f32 %v867, %v800
    %v869 = vadd.f32 %v868, %v801
    %v870 = vadd.f32 %v869, %v802
    %v871 = vadd.f32 %v870, %v803
    %v872 = vadd.f32 %v871, %v804
    %v873 = vadd.f32 %v872, %v805
    %v874 = vadd.f32 %v873, %v806
    %v875 = vadd.f32 %v874, %v807
    %v876 = vadd.f32 %v875, %v808
    %v877 = vadd.f32 %v876, %v809
    %v878 = vadd.f32 %v877, %v810
    %v879 = vadd.f32 %v878, %v811
    %v880 = vadd.f32 %v879, %v812
    %v881 = vadd.f32 %v880, %v813
    %v882 = vadd.f32 %v881, %v814
    %v883 = vadd.f32 %v882, %v815
    %v884 = vrot.slane %v883, 4
    %v885 = vadd.f32 %v883, %v884
    %v886 = vrot.slane %v885, 2
    %v887 = vadd.f32 %v885, %v886
    %v888 = vrot.slane %v887, 1
    %v889 = vadd.f32 %v887, %v888
    %v890 = vrcp.pop 256.0
    %v891 = vmul.f32 %v714, %v890
    %v892 = vmul.f32 %v751, %v890
    %v893 = vmul.f32 %v852, %v890
    %v894 = vmul.f32 %v889, %v890
    %v895 = vmul.f32 %v891, %v891
    %v896 = vmul.f32 %v892, %v892
    %v897 = vsub.f32 %v893, %v895
    %v898 = vsub.f32 %v894, %v896
    %v899 = vadd.f32 %v714, %v751
    %v900 = vrcp.pop 512.0
    %v901 = vmul.f32 %v899, %v900
    %v902 = vadd.f32 %v852, %v889
    %v903 = vmul.f32 %v902, %v900
    %v904 = vmul.f32 %v901, %v901
    %v905 = vsub.f32 %v903, %v904
    %v906 = vlaneseq
    %v907 = vand.u32 %v906, 127
    %vm908 = vcmp.lt.s32.totalorder %v907, 4
    %v909 = vsel %vm908, 1, 0
    %vm910 = vcmp.eq.s32.totalorder %v909, 1
    %v911 = vsel %vm910, %v891, %v901
    %v912 = vsel %vm910, %v892, %v901
    %v913 = vsel %vm910, %v897, %v905
    %v914 = vsel %vm910, %v898, %v905
    %v915 = vmax.f32 %v913, 0.0
    %v916 = vmax.f32 %v914, 0.0
    %v917 = vadd.f32 %v915, 1e-05
    %v918 = vadd.f32 %v916, 1e-05
    %v919 = vrsqrt.pop %v917
    %v920 = vrsqrt.pop %v918
    %v921 = vld [vmem:[%s2] sm:$0x1]
    %v922 = vmul.f32 %v919, %v921
    %v923 = vmul.f32 %v920, %v921
    %v924 = vld [vmem:[%s3] sm:$0x1]
    %v925 = vmul.f32 %v911, %v922
    %v926 = vmul.f32 %v912, %v923
    %v927 = vsub.f32 %v924, %v925
    %v928 = vsub.f32 %v924, %v926
    %v929 = vlaneseq
    %v930 = vshrl.u32 %v929, 7
    %v931 = vsub.s32 0, %v930
    %v932 = vrot.slane %v922, %v931
    %v933 = vlaneseq
    %v934 = vshrl.u32 %v933, 7
    %v935 = vsub.s32 0, %v934
    %v936 = vrot.slane %v923, %v935
    %v937 = vmul.f32 %v424, %v932
    %v938 = vmul.f32 %v427, %v932
    %v939 = vmul.f32 %v432, %v932
    %v940 = vmul.f32 %v435, %v932
    %v941 = vmul.f32 %v440, %v932
    %v942 = vmul.f32 %v443, %v932
    %v943 = vmul.f32 %v448, %v932
    %v944 = vmul.f32 %v451, %v932
    %v945 = vmul.f32 %v456, %v932
    %v946 = vmul.f32 %v459, %v932
    %v947 = vmul.f32 %v464, %v932
    %v948 = vmul.f32 %v467, %v932
    %v949 = vmul.f32 %v472, %v932
    %v950 = vmul.f32 %v475, %v932
    %v951 = vmul.f32 %v480, %v932
    %v952 = vmul.f32 %v483, %v932
    %v953 = vmul.f32 %v488, %v932
    %v954 = vmul.f32 %v491, %v932
    %v955 = vmul.f32 %v496, %v932
    %v956 = vmul.f32 %v499, %v932
    %v957 = vmul.f32 %v504, %v932
    %v958 = vmul.f32 %v507, %v932
    %v959 = vmul.f32 %v512, %v932
    %v960 = vmul.f32 %v515, %v932
    %v961 = vmul.f32 %v520, %v932
    %v962 = vmul.f32 %v523, %v932
    %v963 = vmul.f32 %v528, %v932
    %v964 = vmul.f32 %v531, %v932
    %v965 = vmul.f32 %v536, %v932
    %v966 = vmul.f32 %v539, %v932
    %v967 = vmul.f32 %v544, %v932
    %v968 = vmul.f32 %v547, %v932
    %v969 = vmul.f32 %v552, %v936
    %v970 = vmul.f32 %v555, %v936
    %v971 = vmul.f32 %v560, %v936
    %v972 = vmul.f32 %v563, %v936
    %v973 = vmul.f32 %v568, %v936
    %v974 = vmul.f32 %v571, %v936
    %v975 = vmul.f32 %v576, %v936
    %v976 = vmul.f32 %v579, %v936
    %v977 = vmul.f32 %v584, %v936
    %v978 = vmul.f32 %v587, %v936
    %v979 = vmul.f32 %v592, %v936
    %v980 = vmul.f32 %v595, %v936
    %v981 = vmul.f32 %v600, %v936
    %v982 = vmul.f32 %v603, %v936
    %v983 = vmul.f32 %v608, %v936
    %v984 = vmul.f32 %v611, %v936
    %v985 = vmul.f32 %v616, %v936
    %v986 = vmul.f32 %v619, %v936
    %v987 = vmul.f32 %v624, %v936
    %v988 = vmul.f32 %v627, %v936
    %v989 = vmul.f32 %v632, %v936
    %v990 = vmul.f32 %v635, %v936
    %v991 = vmul.f32 %v640, %v936
    %v992 = vmul.f32 %v643, %v936
    %v993 = vmul.f32 %v648, %v936
    %v994 = vmul.f32 %v651, %v936
    %v995 = vmul.f32 %v656, %v936
    %v996 = vmul.f32 %v659, %v936
    %v997 = vmul.f32 %v664, %v936
    %v998 = vmul.f32 %v667, %v936
    %v999 = vmul.f32 %v672, %v936
    %v1000 = vmul.f32 %v675, %v936
    %v1003 = vlaneseq
    %v1004 = vshrl.u32 %v1003, 7
    %v1005 = vsub.s32 0, %v1004
    %v1006 = vrot.slane %v927, %v1005
    %v1007 = vlaneseq
    %v1008 = vshrl.u32 %v1007, 7
    %v1009 = vsub.s32 0, %v1008
    %v1010 = vrot.slane %v928, %v1009
    %v1013 = vadd.f32 %v937, %v1006
    %v1014 = vadd.f32 %v938, %v1006
    %v1015 = vadd.f32 %v939, %v1006
    %v1016 = vadd.f32 %v940, %v1006
    %v1017 = vadd.f32 %v941, %v1006
    %v1018 = vadd.f32 %v942, %v1006
    %v1019 = vadd.f32 %v943, %v1006
    %v1020 = vadd.f32 %v944, %v1006
    %v1021 = vadd.f32 %v945, %v1006
    %v1022 = vadd.f32 %v946, %v1006
    %v1023 = vadd.f32 %v947, %v1006
    %v1024 = vadd.f32 %v948, %v1006
    %v1025 = vadd.f32 %v949, %v1006
    %v1026 = vadd.f32 %v950, %v1006
    %v1027 = vadd.f32 %v951, %v1006
    %v1028 = vadd.f32 %v952, %v1006
    %v1029 = vadd.f32 %v953, %v1006
    %v1030 = vadd.f32 %v954, %v1006
    %v1031 = vadd.f32 %v955, %v1006
    %v1032 = vadd.f32 %v956, %v1006
    %v1033 = vadd.f32 %v957, %v1006
    %v1034 = vadd.f32 %v958, %v1006
    %v1035 = vadd.f32 %v959, %v1006
    %v1036 = vadd.f32 %v960, %v1006
    %v1037 = vadd.f32 %v961, %v1006
    %v1038 = vadd.f32 %v962, %v1006
    %v1039 = vadd.f32 %v963, %v1006
    %v1040 = vadd.f32 %v964, %v1006
    %v1041 = vadd.f32 %v965, %v1006
    %v1042 = vadd.f32 %v966, %v1006
    %v1043 = vadd.f32 %v967, %v1006
    %v1044 = vadd.f32 %v968, %v1006
    %v1045 = vadd.f32 %v969, %v1010
    %v1046 = vadd.f32 %v970, %v1010
    %v1047 = vadd.f32 %v971, %v1010
    %v1048 = vadd.f32 %v972, %v1010
    %v1049 = vadd.f32 %v973, %v1010
    %v1050 = vadd.f32 %v974, %v1010
    %v1051 = vadd.f32 %v975, %v1010
    %v1052 = vadd.f32 %v976, %v1010
    %v1053 = vadd.f32 %v977, %v1010
    %v1054 = vadd.f32 %v978, %v1010
    %v1055 = vadd.f32 %v979, %v1010
    %v1056 = vadd.f32 %v980, %v1010
    %v1057 = vadd.f32 %v981, %v1010
    %v1058 = vadd.f32 %v982, %v1010
    %v1059 = vadd.f32 %v983, %v1010
    %v1060 = vadd.f32 %v984, %v1010
    %v1061 = vadd.f32 %v985, %v1010
    %v1062 = vadd.f32 %v986, %v1010
    %v1063 = vadd.f32 %v987, %v1010
    %v1064 = vadd.f32 %v988, %v1010
    %v1065 = vadd.f32 %v989, %v1010
    %v1066 = vadd.f32 %v990, %v1010
    %v1067 = vadd.f32 %v991, %v1010
    %v1068 = vadd.f32 %v992, %v1010
    %v1069 = vadd.f32 %v993, %v1010
    %v1070 = vadd.f32 %v994, %v1010
    %v1071 = vadd.f32 %v995, %v1010
    %v1072 = vadd.f32 %v996, %v1010
    %v1073 = vadd.f32 %v997, %v1010
    %v1074 = vadd.f32 %v998, %v1010
    %v1075 = vadd.f32 %v999, %v1010
    %v1076 = vadd.f32 %v1000, %v1010
    %v1077 = vmax.f32 %v1013, 0.0
    %v1078 = vmax.f32 %v1014, 0.0
    %v1079 = vmax.f32 %v1015, 0.0
    %v1080 = vmax.f32 %v1016, 0.0
    %v1081 = vmax.f32 %v1017, 0.0
    %v1082 = vmax.f32 %v1018, 0.0
    %v1083 = vmax.f32 %v1019, 0.0
    %v1084 = vmax.f32 %v1020, 0.0
    %v1085 = vmax.f32 %v1021, 0.0
    %v1086 = vmax.f32 %v1022, 0.0
    %v1087 = vmax.f32 %v1023, 0.0
    %v1088 = vmax.f32 %v1024, 0.0
    %v1089 = vmax.f32 %v1025, 0.0
    %v1090 = vmax.f32 %v1026, 0.0
    %v1091 = vmax.f32 %v1027, 0.0
    %v1092 = vmax.f32 %v1028, 0.0
    %v1093 = vmax.f32 %v1029, 0.0
    %v1094 = vmax.f32 %v1030, 0.0
    %v1095 = vmax.f32 %v1031, 0.0
    %v1096 = vmax.f32 %v1032, 0.0
    %v1097 = vmax.f32 %v1033, 0.0
    %v1098 = vmax.f32 %v1034, 0.0
    %v1099 = vmax.f32 %v1035, 0.0
    %v1100 = vmax.f32 %v1036, 0.0
    %v1101 = vmax.f32 %v1037, 0.0
    %v1102 = vmax.f32 %v1038, 0.0
    %v1103 = vmax.f32 %v1039, 0.0
    %v1104 = vmax.f32 %v1040, 0.0
    %v1105 = vmax.f32 %v1041, 0.0
    %v1106 = vmax.f32 %v1042, 0.0
    %v1107 = vmax.f32 %v1043, 0.0
    %v1108 = vmax.f32 %v1044, 0.0
    %v1109 = vmax.f32 %v1045, 0.0
    %v1110 = vmax.f32 %v1046, 0.0
    %v1111 = vmax.f32 %v1047, 0.0
    %v1112 = vmax.f32 %v1048, 0.0
    %v1113 = vmax.f32 %v1049, 0.0
    %v1114 = vmax.f32 %v1050, 0.0
    %v1115 = vmax.f32 %v1051, 0.0
    %v1116 = vmax.f32 %v1052, 0.0
    %v1117 = vmax.f32 %v1053, 0.0
    %v1118 = vmax.f32 %v1054, 0.0
    %v1119 = vmax.f32 %v1055, 0.0
    %v1120 = vmax.f32 %v1056, 0.0
    %v1121 = vmax.f32 %v1057, 0.0
    %v1122 = vmax.f32 %v1058, 0.0
    %v1123 = vmax.f32 %v1059, 0.0
    %v1124 = vmax.f32 %v1060, 0.0
    %v1125 = vmax.f32 %v1061, 0.0
    %v1126 = vmax.f32 %v1062, 0.0
    %v1127 = vmax.f32 %v1063, 0.0
    %v1128 = vmax.f32 %v1064, 0.0
    %v1129 = vmax.f32 %v1065, 0.0
    %v1130 = vmax.f32 %v1066, 0.0
    %v1131 = vmax.f32 %v1067, 0.0
    %v1132 = vmax.f32 %v1068, 0.0
    %v1133 = vmax.f32 %v1069, 0.0
    %v1134 = vmax.f32 %v1070, 0.0
    %v1135 = vmax.f32 %v1071, 0.0
    %v1136 = vmax.f32 %v1072, 0.0
    %v1137 = vmax.f32 %v1073, 0.0
    %v1138 = vmax.f32 %v1074, 0.0
    %v1139 = vmax.f32 %v1075, 0.0
    %v1140 = vmax.f32 %v1076, 0.0
    %1141 = vst [vmem:[#allocation2] sm:$0xf] 0
    %1142 = vst [vmem:[#allocation2 + $0x4] sm:$0xf] 0
    %1143 = vst [vmem:[#allocation2 + $0x14] sm:$0xf] 0
    %1144 = vst [vmem:[#allocation2 + $0x18] sm:$0xf] 0
    %1145 = vst [vmem:[#allocation2 + $0x28] sm:$0xf] 0
    %1146 = vst [vmem:[#allocation2 + $0x2c] sm:$0xf] 0
    %1147 = vst [vmem:[#allocation2 + $0x3c] sm:$0xf] 0
    %1148 = vst [vmem:[#allocation2 + $0x40] sm:$0xf] 0
    %1149 = vst [vmem:[#allocation2 + $0x50] sm:$0xf] 0
    %1150 = vst [vmem:[#allocation2 + $0x54] sm:$0xf] 0
    %1151 = vst [vmem:[#allocation2 + $0x64] sm:$0xf] 0
    %1152 = vst [vmem:[#allocation2 + $0x68] sm:$0xf] 0
    %1153 = vst [vmem:[#allocation2 + $0x78] sm:$0xf] 0
    %1154 = vst [vmem:[#allocation2 + $0x7c] sm:$0xf] 0
    %1155 = vst [vmem:[#allocation2 + $0x8c] sm:$0xf] 0
    %1156 = vst [vmem:[#allocation2 + $0x90] sm:$0xf] 0
    %1157 = vst [vmem:[#allocation2 + $0xa0] sm:$0xf] 0
    %1158 = vst [vmem:[#allocation2 + $0xa4] sm:$0xf] 0
    %1159 = vst [vmem:[#allocation2 + $0xb4] sm:$0xf] 0
    %1160 = vst [vmem:[#allocation2 + $0xb8] sm:$0xf] 0
    %1161 = vst [vmem:[#allocation2 + $0xc8] sm:$0xf] 0
    %1162 = vst [vmem:[#allocation2 + $0xcc] sm:$0xf] 0
    %1163 = vst [vmem:[#allocation2 + $0xdc] sm:$0xf] 0
    %1164 = vst [vmem:[#allocation2 + $0xe0] sm:$0xf] 0
    %1165 = vst [vmem:[#allocation2 + $0xf0] sm:$0xf] 0
    %1166 = vst [vmem:[#allocation2 + $0xf4] sm:$0xf] 0
    %1167 = vst [vmem:[#allocation2 + $0x104] sm:$0xf] 0
    %1168 = vst [vmem:[#allocation2 + $0x108] sm:$0xf] 0
    %1169 = vst [vmem:[#allocation2 + $0x118] sm:$0xf] 0
    %1170 = vst [vmem:[#allocation2 + $0x11c] sm:$0xf] 0
    %1171 = vst [vmem:[#allocation2 + $0x12c] sm:$0xf] 0
    %1172 = vst [vmem:[#allocation2 + $0x130] sm:$0xf] 0
    %1173 = vst [vmem:[#allocation2 + $0x140] sm:$0xf] 0
    %1174 = vst [vmem:[#allocation2 + $0x144] sm:$0xf] 0
    %1175 = vst [vmem:[#allocation2 + $0x154] sm:$0xf] 0
    %1176 = vst [vmem:[#allocation2 + $0x158] sm:$0xf] 0
    %1177 = vst [vmem:[#allocation2 + $0x168] sm:$0xf] 0
    %1178 = vst [vmem:[#allocation2 + $0x16c] sm:$0xf] 0
    %1179 = vst [vmem:[#allocation2 + $0x17c] sm:$0xf] 0
    %1180 = vst [vmem:[#allocation2 + $0x180] sm:$0xf] 0
    %1181 = vst [vmem:[#allocation2 + $0x190] sm:$0xf] 0
    %1182 = vst [vmem:[#allocation2 + $0x194] sm:$0xf] 0
    %1183 = vst [vmem:[#allocation2 + $0x1a4] sm:$0xf] 0
    %1184 = vst [vmem:[#allocation2 + $0x1a8] sm:$0xf] 0
    %1185 = vst [vmem:[#allocation2 + $0x1b8] sm:$0xf] 0
    %1186 = vst [vmem:[#allocation2 + $0x1bc] sm:$0xf] 0
    %1187 = vst [vmem:[#allocation2 + $0x1cc] sm:$0xf] 0
    %1188 = vst [vmem:[#allocation2 + $0x1d0] sm:$0xf] 0
    %1189 = vst [vmem:[#allocation2 + $0x1e0] sm:$0xf] 0
    %1190 = vst [vmem:[#allocation2 + $0x1e4] sm:$0xf] 0
    %1191 = vst [vmem:[#allocation2 + $0x1f4] sm:$0xf] 0
    %1192 = vst [vmem:[#allocation2 + $0x1f8] sm:$0xf] 0
    %1193 = vst [vmem:[#allocation2 + $0x208] sm:$0xf] 0
    %1194 = vst [vmem:[#allocation2 + $0x20c] sm:$0xf] 0
    %1195 = vst [vmem:[#allocation2 + $0x21c] sm:$0xf] 0
    %1196 = vst [vmem:[#allocation2 + $0x220] sm:$0xf] 0
    %1197 = vst [vmem:[#allocation2 + $0x230] sm:$0xf] 0
    %1198 = vst [vmem:[#allocation2 + $0x234] sm:$0xf] 0
    %1199 = vst [vmem:[#allocation2 + $0x244] sm:$0xf] 0
    %1200 = vst [vmem:[#allocation2 + $0x248] sm:$0xf] 0
    %1201 = vst [vmem:[#allocation2 + $0x258] sm:$0xf] 0
    %1202 = vst [vmem:[#allocation2 + $0x25c] sm:$0xf] 0
    %1203 = vst [vmem:[#allocation2 + $0x26c] sm:$0xf] 0
    %1204 = vst [vmem:[#allocation2 + $0x270] sm:$0xf] 0
    %1205 = vst [vmem:[#allocation2 + $0x280] sm:$0xf] 0
    %1206 = vst [vmem:[#allocation2 + $0x284] sm:$0xf] 0
    %1207 = vst [vmem:[#allocation2 + $0x294] sm:$0xf] 0
    %1208 = vst [vmem:[#allocation2 + $0x298] sm:$0xf] 0
    %1209 = vst [vmem:[#allocation2 + $0x2a8] sm:$0xf] 0
    %1210 = vst [vmem:[#allocation2 + $0x2ac] sm:$0xf] 0
    %1211 = vst [vmem:[#allocation2 + $0x2bc] sm:$0xf] 0
    %1212 = vst [vmem:[#allocation2 + $0x2c0] sm:$0xf] 0
    %vm1213 = vcmask 1040384
    %vm1214 = vsmask.f32 256
    %vm1215 = vmand %vm1213, %vm1214
    %v1216 = vld [vmem:[#allocation2 + $0x10] sm:$0x1]
    %v1217 = vsel %vm1215, 0, %v1216
    %1218 = vst [vmem:[#allocation2 + $0x10] sm:$0x1] %v1217
    %v1219 = vld [vmem:[#allocation2 + $0x24] sm:$0x1]
    %v1220 = vsel %vm1215, 0, %v1219
    %1221 = vst [vmem:[#allocation2 + $0x24] sm:$0x1] %v1220
    %v1222 = vld [vmem:[#allocation2 + $0x38] sm:$0x1]
    %v1223 = vsel %vm1215, 0, %v1222
    %1224 = vst [vmem:[#allocation2 + $0x38] sm:$0x1] %v1223
    %v1225 = vld [vmem:[#allocation2 + $0x4c] sm:$0x1]
    %v1226 = vsel %vm1215, 0, %v1225
    %1227 = vst [vmem:[#allocation2 + $0x4c] sm:$0x1] %v1226
    %v1228 = vld [vmem:[#allocation2 + $0x60] sm:$0x1]
    %v1229 = vsel %vm1215, 0, %v1228
    %1230 = vst [vmem:[#allocation2 + $0x60] sm:$0x1] %v1229
    %v1231 = vld [vmem:[#allocation2 + $0x74] sm:$0x1]
    %v1232 = vsel %vm1215, 0, %v1231
    %1233 = vst [vmem:[#allocation2 + $0x74] sm:$0x1] %v1232
    %v1234 = vld [vmem:[#allocation2 + $0x88] sm:$0x1]
    %v1235 = vsel %vm1215, 0, %v1234
    %1236 = vst [vmem:[#allocation2 + $0x88] sm:$0x1] %v1235
    %v1237 = vld [vmem:[#allocation2 + $0x9c] sm:$0x1]
    %v1238 = vsel %vm1215, 0, %v1237
    %1239 = vst [vmem:[#allocation2 + $0x9c] sm:$0x1] %v1238
    %v1240 = vld [vmem:[#allocation2 + $0xb0] sm:$0x1]
    %v1241 = vsel %vm1215, 0, %v1240
    %1242 = vst [vmem:[#allocation2 + $0xb0] sm:$0x1] %v1241
    %v1243 = vld [vmem:[#allocation2 + $0xc4] sm:$0x1]
    %v1244 = vsel %vm1215, 0, %v1243
    %1245 = vst [vmem:[#allocation2 + $0xc4] sm:$0x1] %v1244
    %v1246 = vld [vmem:[#allocation2 + $0xd8] sm:$0x1]
    %v1247 = vsel %vm1215, 0, %v1246
    %1248 = vst [vmem:[#allocation2 + $0xd8] sm:$0x1] %v1247
    %v1249 = vld [vmem:[#allocation2 + $0xec] sm:$0x1]
    %v1250 = vsel %vm1215, 0, %v1249
    %1251 = vst [vmem:[#allocation2 + $0xec] sm:$0x1] %v1250
    %v1252 = vld [vmem:[#allocation2 + $0x100] sm:$0x1]
    %v1253 = vsel %vm1215, 0, %v1252
    %1254 = vst [vmem:[#allocation2 + $0x100] sm:$0x1] %v1253
    %v1255 = vld [vmem:[#allocation2 + $0x114] sm:$0x1]
    %v1256 = vsel %vm1215, 0, %v1255
    %1257 = vst [vmem:[#allocation2 + $0x114] sm:$0x1] %v1256
    %v1258 = vld [vmem:[#allocation2 + $0x128] sm:$0x1]
    %v1259 = vsel %vm1215, 0, %v1258
    %1260 = vst [vmem:[#allocation2 + $0x128] sm:$0x1] %v1259
    %v1261 = vld [vmem:[#allocation2 + $0x13c] sm:$0x1]
    %v1262 = vsel %vm1215, 0, %v1261
    %1263 = vst [vmem:[#allocation2 + $0x13c] sm:$0x1] %v1262
    %v1264 = vld [vmem:[#allocation2 + $0x150] sm:$0x1]
    %v1265 = vsel %vm1215, 0, %v1264
    %1266 = vst [vmem:[#allocation2 + $0x150] sm:$0x1] %v1265
    %v1267 = vld [vmem:[#allocation2 + $0x164] sm:$0x1]
    %v1268 = vsel %vm1215, 0, %v1267
    %1269 = vst [vmem:[#allocation2 + $0x164] sm:$0x1] %v1268
    %v1270 = vld [vmem:[#allocation2 + $0x178] sm:$0x1]
    %v1271 = vsel %vm1215, 0, %v1270
    %1272 = vst [vmem:[#allocation2 + $0x178] sm:$0x1] %v1271
    %v1273 = vld [vmem:[#allocation2 + $0x18c] sm:$0x1]
    %v1274 = vsel %vm1215, 0, %v1273
    %1275 = vst [vmem:[#allocation2 + $0x18c] sm:$0x1] %v1274
    %v1276 = vld [vmem:[#allocation2 + $0x1a0] sm:$0x1]
    %v1277 = vsel %vm1215, 0, %v1276
    %1278 = vst [vmem:[#allocation2 + $0x1a0] sm:$0x1] %v1277
    %v1279 = vld [vmem:[#allocation2 + $0x1b4] sm:$0x1]
    %v1280 = vsel %vm1215, 0, %v1279
    %1281 = vst [vmem:[#allocation2 + $0x1b4] sm:$0x1] %v1280
    %v1282 = vld [vmem:[#allocation2 + $0x1c8] sm:$0x1]
    %v1283 = vsel %vm1215, 0, %v1282
    %1284 = vst [vmem:[#allocation2 + $0x1c8] sm:$0x1] %v1283
    %v1285 = vld [vmem:[#allocation2 + $0x1dc] sm:$0x1]
    %v1286 = vsel %vm1215, 0, %v1285
    %1287 = vst [vmem:[#allocation2 + $0x1dc] sm:$0x1] %v1286
    %v1288 = vld [vmem:[#allocation2 + $0x1f0] sm:$0x1]
    %v1289 = vsel %vm1215, 0, %v1288
    %1290 = vst [vmem:[#allocation2 + $0x1f0] sm:$0x1] %v1289
    %v1291 = vld [vmem:[#allocation2 + $0x204] sm:$0x1]
    %v1292 = vsel %vm1215, 0, %v1291
    %1293 = vst [vmem:[#allocation2 + $0x204] sm:$0x1] %v1292
    %v1294 = vld [vmem:[#allocation2 + $0x218] sm:$0x1]
    %v1295 = vsel %vm1215, 0, %v1294
    %1296 = vst [vmem:[#allocation2 + $0x218] sm:$0x1] %v1295
    %v1297 = vld [vmem:[#allocation2 + $0x22c] sm:$0x1]
    %v1298 = vsel %vm1215, 0, %v1297
    %1299 = vst [vmem:[#allocation2 + $0x22c] sm:$0x1] %v1298
    %v1300 = vld [vmem:[#allocation2 + $0x240] sm:$0x1]
    %v1301 = vsel %vm1215, 0, %v1300
    %1302 = vst [vmem:[#allocation2 + $0x240] sm:$0x1] %v1301
    %v1303 = vld [vmem:[#allocation2 + $0x254] sm:$0x1]
    %v1304 = vsel %vm1215, 0, %v1303
    %1305 = vst [vmem:[#allocation2 + $0x254] sm:$0x1] %v1304
    %v1306 = vld [vmem:[#allocation2 + $0x268] sm:$0x1]
    %v1307 = vsel %vm1215, 0, %v1306
    %1308 = vst [vmem:[#allocation2 + $0x268] sm:$0x1] %v1307
    %v1309 = vld [vmem:[#allocation2 + $0x27c] sm:$0x1]
    %v1310 = vsel %vm1215, 0, %v1309
    %1311 = vst [vmem:[#allocation2 + $0x27c] sm:$0x1] %v1310
    %v1312 = vld [vmem:[#allocation2 + $0x290] sm:$0x1]
    %v1313 = vsel %vm1215, 0, %v1312
    %1314 = vst [vmem:[#allocation2 + $0x290] sm:$0x1] %v1313
    %v1315 = vld [vmem:[#allocation2 + $0x2a4] sm:$0x1]
    %v1316 = vsel %vm1215, 0, %v1315
    %1317 = vst [vmem:[#allocation2 + $0x2a4] sm:$0x1] %v1316
    %v1318 = vld [vmem:[#allocation2 + $0x2b8] sm:$0x1]
    %v1319 = vsel %vm1215, 0, %v1318
    %1320 = vst [vmem:[#allocation2 + $0x2b8] sm:$0x1] %v1319
    %v1321 = vld [vmem:[#allocation2 + $0x2cc] sm:$0x1]
    %v1322 = vsel %vm1215, 0, %v1321
    %1323 = vst [vmem:[#allocation2 + $0x2cc] sm:$0x1] %v1322
    %1324 = vst [vmem:[#allocation2] sm:$0xf] 0
    %1325 = vst [vmem:[#allocation2 + $0x4] sm:$0xf] 0
    %1326 = vst [vmem:[#allocation2 + $0x8] sm:$0xf] 0
    %1327 = vst [vmem:[#allocation2 + $0xc] sm:$0xf] 0
    %v1328 = vld [vmem:[#allocation2 + $0x10] sm:$0x1]
    %v1329 = vsel %vm1215, 0, %v1328
    %1330 = vst [vmem:[#allocation2 + $0x10] sm:$0x1] %v1329
    %1331 = vst [vmem:[#allocation2 + $0x168] sm:$0xf] 0
    %1332 = vst [vmem:[#allocation2 + $0x16c] sm:$0xf] 0
    %1333 = vst [vmem:[#allocation2 + $0x170] sm:$0xf] 0
    %1334 = vst [vmem:[#allocation2 + $0x174] sm:$0xf] 0
    %v1335 = vld [vmem:[#allocation2 + $0x178] sm:$0x1]
    %v1336 = vsel %vm1215, 0, %v1335
    %1337 = vst [vmem:[#allocation2 + $0x178] sm:$0x1] %v1336
    %s1338 = scalar_lea.vmem [#allocation2], 340
    %1339 = vst [vmem:[%s1338] sm:$0xf] 0
    %1340 = vst [vmem:[%s1338 + $0x4] sm:$0xf] 0
    %1341 = vst [vmem:[%s1338 + $0x8] sm:$0xf] 0
    %1342 = vst [vmem:[%s1338 + $0xc] sm:$0xf] 0
    %v1343 = vld [vmem:[%s1338 + $0x10] sm:$0x1]
    %v1344 = vsel %vm1215, 0, %v1343
    %1345 = vst [vmem:[%s1338 + $0x10] sm:$0x1] %v1344
    %1346 = vst [vmem:[%s1338 + $0x168] sm:$0xf] 0
    %1347 = vst [vmem:[%s1338 + $0x16c] sm:$0xf] 0
    %1348 = vst [vmem:[%s1338 + $0x170] sm:$0xf] 0
    %1349 = vst [vmem:[%s1338 + $0x174] sm:$0xf] 0
    %v1350 = vld [vmem:[%s1338 + $0x178] sm:$0x1]
    %v1351 = vsel %vm1215, 0, %v1350
    %1352 = vst [vmem:[%s1338 + $0x178] sm:$0x1] %v1351
    %v1353 = vpack.c.bf16 %v1078, %v1077
    %v1354 = vpack.c.bf16 %v1080, %v1079
    %v1355 = vpack.c.bf16 %v1082, %v1081
    %v1356 = vpack.c.bf16 %v1084, %v1083
    %v1357 = vpack.c.bf16 %v1086, %v1085
    %v1358 = vpack.c.bf16 %v1088, %v1087
    %v1359 = vpack.c.bf16 %v1090, %v1089
    %v1360 = vpack.c.bf16 %v1092, %v1091
    %v1361 = vpack.c.bf16 %v1094, %v1093
    %v1362 = vpack.c.bf16 %v1096, %v1095
    %v1363 = vpack.c.bf16 %v1098, %v1097
    %v1364 = vpack.c.bf16 %v1100, %v1099
    %v1365 = vpack.c.bf16 %v1102, %v1101
    %v1366 = vpack.c.bf16 %v1104, %v1103
    %v1367 = vpack.c.bf16 %v1106, %v1105
    %v1368 = vpack.c.bf16 %v1108, %v1107
    %v1369 = vpack.c.bf16 %v1110, %v1109
    %v1370 = vpack.c.bf16 %v1112, %v1111
    %v1371 = vpack.c.bf16 %v1114, %v1113
    %v1372 = vpack.c.bf16 %v1116, %v1115
    %v1373 = vpack.c.bf16 %v1118, %v1117
    %v1374 = vpack.c.bf16 %v1120, %v1119
    %v1375 = vpack.c.bf16 %v1122, %v1121
    %v1376 = vpack.c.bf16 %v1124, %v1123
    %v1377 = vpack.c.bf16 %v1126, %v1125
    %v1378 = vpack.c.bf16 %v1128, %v1127
    %v1379 = vpack.c.bf16 %v1130, %v1129
    %v1380 = vpack.c.bf16 %v1132, %v1131
    %v1381 = vpack.c.bf16 %v1134, %v1133
    %v1382 = vpack.c.bf16 %v1136, %v1135
    %v1383 = vpack.c.bf16 %v1138, %v1137
    %v1384 = vpack.c.bf16 %v1140, %v1139
    %v1417 = vunpack.c.l.b16 %v1353
    %v1418 = vunpack.c.h.b16 %v1353
    %v1419 = vunpack.c.l.b16 %v1354
    %v1420 = vunpack.c.h.b16 %v1354
    %v1421 = vunpack.c.l.b16 %v1355
    %v1422 = vunpack.c.h.b16 %v1355
    %v1423 = vunpack.c.l.b16 %v1356
    %v1424 = vunpack.c.h.b16 %v1356
    %v1425 = vunpack.c.l.b16 %v1357
    %v1426 = vunpack.c.h.b16 %v1357
    %v1427 = vunpack.c.l.b16 %v1358
    %v1428 = vunpack.c.h.b16 %v1358
    %v1429 = vunpack.c.l.b16 %v1359
    %v1430 = vunpack.c.h.b16 %v1359
    %v1431 = vunpack.c.l.b16 %v1360
    %v1432 = vunpack.c.h.b16 %v1360
    %v1433 = vunpack.c.l.b16 %v1361
    %v1434 = vunpack.c.h.b16 %v1361
    %v1435 = vunpack.c.l.b16 %v1362
    %v1436 = vunpack.c.h.b16 %v1362
    %v1437 = vunpack.c.l.b16 %v1363
    %v1438 = vunpack.c.h.b16 %v1363
    %v1439 = vunpack.c.l.b16 %v1364
    %v1440 = vunpack.c.h.b16 %v1364
    %v1441 = vunpack.c.l.b16 %v1365
    %v1442 = vunpack.c.h.b16 %v1365
    %v1443 = vunpack.c.l.b16 %v1366
    %v1444 = vunpack.c.h.b16 %v1366
    %v1445 = vunpack.c.l.b16 %v1367
    %v1446 = vunpack.c.h.b16 %v1367
    %v1447 = vunpack.c.l.b16 %v1368
    %v1448 = vunpack.c.h.b16 %v1368
    %v1449 = vunpack.c.l.b16 %v1369
    %v1450 = vunpack.c.h.b16 %v1369
    %v1451 = vunpack.c.l.b16 %v1370
    %v1452 = vunpack.c.h.b16 %v1370
    %v1453 = vunpack.c.l.b16 %v1371
    %v1454 = vunpack.c.h.b16 %v1371
    %v1455 = vunpack.c.l.b16 %v1372
    %v1456 = vunpack.c.h.b16 %v1372
    %v1457 = vunpack.c.l.b16 %v1373
    %v1458 = vunpack.c.h.b16 %v1373
    %v1459 = vunpack.c.l.b16 %v1374
    %v1460 = vunpack.c.h.b16 %v1374
    %v1461 = vunpack.c.l.b16 %v1375
    %v1462 = vunpack.c.h.b16 %v1375
    %v1463 = vunpack.c.l.b16 %v1376
    %v1464 = vunpack.c.h.b16 %v1376
    %v1465 = vunpack.c.l.b16 %v1377
    %v1466 = vunpack.c.h.b16 %v1377
    %v1467 = vunpack.c.l.b16 %v1378
    %v1468 = vunpack.c.h.b16 %v1378
    %v1469 = vunpack.c.l.b16 %v1379
    %v1470 = vunpack.c.h.b16 %v1379
    %v1471 = vunpack.c.l.b16 %v1380
    %v1472 = vunpack.c.h.b16 %v1380
    %v1473 = vunpack.c.l.b16 %v1381
    %v1474 = vunpack.c.h.b16 %v1381
    %v1475 = vunpack.c.l.b16 %v1382
    %v1476 = vunpack.c.h.b16 %v1382
    %v1477 = vunpack.c.l.b16 %v1383
    %v1478 = vunpack.c.h.b16 %v1383
    %v1479 = vunpack.c.l.b16 %v1384
    %v1480 = vunpack.c.h.b16 %v1384
    %v1481 = vpack.c.b16 %v1417, %v1417
    %v1482 = vpack.c.b16 %v1418, %v1418
    %v1483 = vpack.c.b16 %v1419, %v1419
    %v1484 = vpack.c.b16 %v1420, %v1420
    %v1485 = vpack.c.b16 %v1421, %v1421
    %v1486 = vpack.c.b16 %v1422, %v1422
    %v1487 = vpack.c.b16 %v1423, %v1423
    %v1488 = vpack.c.b16 %v1424, %v1424
    %v1489 = vpack.c.b16 %v1425, %v1425
    %v1490 = vpack.c.b16 %v1426, %v1426
    %v1491 = vpack.c.b16 %v1427, %v1427
    %v1492 = vpack.c.b16 %v1428, %v1428
    %v1493 = vpack.c.b16 %v1429, %v1429
    %v1494 = vpack.c.b16 %v1430, %v1430
    %v1495 = vpack.c.b16 %v1431, %v1431
    %v1496 = vpack.c.b16 %v1432, %v1432
    %v1497 = vpack.c.b16 %v1433, %v1433
    %v1498 = vpack.c.b16 %v1434, %v1434
    %v1499 = vpack.c.b16 %v1435, %v1435
    %v1500 = vpack.c.b16 %v1436, %v1436
    %v1501 = vpack.c.b16 %v1437, %v1437
    %v1502 = vpack.c.b16 %v1438, %v1438
    %v1503 = vpack.c.b16 %v1439, %v1439
    %v1504 = vpack.c.b16 %v1440, %v1440
    %v1505 = vpack.c.b16 %v1441, %v1441
    %v1506 = vpack.c.b16 %v1442, %v1442
    %v1507 = vpack.c.b16 %v1443, %v1443
    %v1508 = vpack.c.b16 %v1444, %v1444
    %v1509 = vpack.c.b16 %v1445, %v1445
    %v1510 = vpack.c.b16 %v1446, %v1446
    %v1511 = vpack.c.b16 %v1447, %v1447
    %v1512 = vpack.c.b16 %v1448, %v1448
    %v1513 = vpack.c.b16 %v1449, %v1449
    %v1514 = vpack.c.b16 %v1450, %v1450
    %v1515 = vpack.c.b16 %v1451, %v1451
    %v1516 = vpack.c.b16 %v1452, %v1452
    %v1517 = vpack.c.b16 %v1453, %v1453
    %v1518 = vpack.c.b16 %v1454, %v1454
    %v1519 = vpack.c.b16 %v1455, %v1455
    %v1520 = vpack.c.b16 %v1456, %v1456
    %v1521 = vpack.c.b16 %v1457, %v1457
    %v1522 = vpack.c.b16 %v1458, %v1458
    %v1523 = vpack.c.b16 %v1459, %v1459
    %v1524 = vpack.c.b16 %v1460, %v1460
    %v1525 = vpack.c.b16 %v1461, %v1461
    %v1526 = vpack.c.b16 %v1462, %v1462
    %v1527 = vpack.c.b16 %v1463, %v1463
    %v1528 = vpack.c.b16 %v1464, %v1464
    %v1529 = vpack.c.b16 %v1465, %v1465
    %v1530 = vpack.c.b16 %v1466, %v1466
    %v1531 = vpack.c.b16 %v1467, %v1467
    %v1532 = vpack.c.b16 %v1468, %v1468
    %v1533 = vpack.c.b16 %v1469, %v1469
    %v1534 = vpack.c.b16 %v1470, %v1470
    %v1535 = vpack.c.b16 %v1471, %v1471
    %v1536 = vpack.c.b16 %v1472, %v1472
    %v1537 = vpack.c.b16 %v1473, %v1473
    %v1538 = vpack.c.b16 %v1474, %v1474
    %v1539 = vpack.c.b16 %v1475, %v1475
    %v1540 = vpack.c.b16 %v1476, %v1476
    %v1541 = vpack.c.b16 %v1477, %v1477
    %v1542 = vpack.c.b16 %v1478, %v1478
    %v1543 = vpack.c.b16 %v1479, %v1479
    %v1544 = vpack.c.b16 %v1480, %v1480
    %s1609 = scalar_lea.vmem [#allocation2], 20
    %1610 = vst [vmem:[%s1609 + $0x8] sm:$0xf] %v1481
    %1611 = vst [vmem:[%s1609 + $0xc] sm:$0xf] %v1482
    %1612 = vst [vmem:[%s1609 + $0x1c] sm:$0xf] %v1483
    %1613 = vst [vmem:[%s1609 + $0x20] sm:$0xf] %v1484
    %1614 = vst [vmem:[%s1609 + $0x30] sm:$0xf] %v1485
    %1615 = vst [vmem:[%s1609 + $0x34] sm:$0xf] %v1486
    %1616 = vst [vmem:[%s1609 + $0x44] sm:$0xf] %v1487
    %1617 = vst [vmem:[%s1609 + $0x48] sm:$0xf] %v1488
    %1618 = vst [vmem:[%s1609 + $0x58] sm:$0xf] %v1489
    %1619 = vst [vmem:[%s1609 + $0x5c] sm:$0xf] %v1490
    %1620 = vst [vmem:[%s1609 + $0x6c] sm:$0xf] %v1491
    %1621 = vst [vmem:[%s1609 + $0x70] sm:$0xf] %v1492
    %1622 = vst [vmem:[%s1609 + $0x80] sm:$0xf] %v1493
    %1623 = vst [vmem:[%s1609 + $0x84] sm:$0xf] %v1494
    %1624 = vst [vmem:[%s1609 + $0x94] sm:$0xf] %v1495
    %1625 = vst [vmem:[%s1609 + $0x98] sm:$0xf] %v1496
    %1626 = vst [vmem:[%s1609 + $0xa8] sm:$0xf] %v1497
    %1627 = vst [vmem:[%s1609 + $0xac] sm:$0xf] %v1498
    %1628 = vst [vmem:[%s1609 + $0xbc] sm:$0xf] %v1499
    %1629 = vst [vmem:[%s1609 + $0xc0] sm:$0xf] %v1500
    %1630 = vst [vmem:[%s1609 + $0xd0] sm:$0xf] %v1501
    %1631 = vst [vmem:[%s1609 + $0xd4] sm:$0xf] %v1502
    %1632 = vst [vmem:[%s1609 + $0xe4] sm:$0xf] %v1503
    %1633 = vst [vmem:[%s1609 + $0xe8] sm:$0xf] %v1504
    %1634 = vst [vmem:[%s1609 + $0xf8] sm:$0xf] %v1505
    %1635 = vst [vmem:[%s1609 + $0xfc] sm:$0xf] %v1506
    %1636 = vst [vmem:[%s1609 + $0x10c] sm:$0xf] %v1507
    %1637 = vst [vmem:[%s1609 + $0x110] sm:$0xf] %v1508
    %1638 = vst [vmem:[%s1609 + $0x120] sm:$0xf] %v1509
    %1639 = vst [vmem:[%s1609 + $0x124] sm:$0xf] %v1510
    %1640 = vst [vmem:[%s1609 + $0x134] sm:$0xf] %v1511
    %1641 = vst [vmem:[%s1609 + $0x138] sm:$0xf] %v1512
    %1642 = vst [vmem:[%s1609 + $0x170] sm:$0xf] %v1513
    %1643 = vst [vmem:[%s1609 + $0x174] sm:$0xf] %v1514
    %1644 = vst [vmem:[%s1609 + $0x184] sm:$0xf] %v1515
    %1645 = vst [vmem:[%s1609 + $0x188] sm:$0xf] %v1516
    %1646 = vst [vmem:[%s1609 + $0x198] sm:$0xf] %v1517
    %1647 = vst [vmem:[%s1609 + $0x19c] sm:$0xf] %v1518
    %1648 = vst [vmem:[%s1609 + $0x1ac] sm:$0xf] %v1519
    %1649 = vst [vmem:[%s1609 + $0x1b0] sm:$0xf] %v1520
    %1650 = vst [vmem:[%s1609 + $0x1c0] sm:$0xf] %v1521
    %1651 = vst [vmem:[%s1609 + $0x1c4] sm:$0xf] %v1522
    %1652 = vst [vmem:[%s1609 + $0x1d4] sm:$0xf] %v1523
    %1653 = vst [vmem:[%s1609 + $0x1d8] sm:$0xf] %v1524
    %1654 = vst [vmem:[%s1609 + $0x1e8] sm:$0xf] %v1525
    %1655 = vst [vmem:[%s1609 + $0x1ec] sm:$0xf] %v1526
    %1656 = vst [vmem:[%s1609 + $0x1fc] sm:$0xf] %v1527
    %1657 = vst [vmem:[%s1609 + $0x200] sm:$0xf] %v1528
    %1658 = vst [vmem:[%s1609 + $0x210] sm:$0xf] %v1529
    %1659 = vst [vmem:[%s1609 + $0x214] sm:$0xf] %v1530
    %1660 = vst [vmem:[%s1609 + $0x224] sm:$0xf] %v1531
    %1661 = vst [vmem:[%s1609 + $0x228] sm:$0xf] %v1532
    %1662 = vst [vmem:[%s1609 + $0x238] sm:$0xf] %v1533
    %1663 = vst [vmem:[%s1609 + $0x23c] sm:$0xf] %v1534
    %1664 = vst [vmem:[%s1609 + $0x24c] sm:$0xf] %v1535
    %1665 = vst [vmem:[%s1609 + $0x250] sm:$0xf] %v1536
    %1666 = vst [vmem:[%s1609 + $0x260] sm:$0xf] %v1537
    %1667 = vst [vmem:[%s1609 + $0x264] sm:$0xf] %v1538
    %1668 = vst [vmem:[%s1609 + $0x274] sm:$0xf] %v1539
    %1669 = vst [vmem:[%s1609 + $0x278] sm:$0xf] %v1540
    %1670 = vst [vmem:[%s1609 + $0x288] sm:$0xf] %v1541
    %1671 = vst [vmem:[%s1609 + $0x28c] sm:$0xf] %v1542
    %1672 = vst [vmem:[%s1609 + $0x29c] sm:$0xf] %v1543
    %1673 = vst [vmem:[%s1609 + $0x2a0] sm:$0xf] %v1544
    %v1674 = vld [vmem:[#allocation2 + $0x4] sm:$0xf]
    %v1675 = vld [vmem:[#allocation2 + $0x8] sm:$0xf]
    %v1676 = vld [vmem:[#allocation2 + $0xc] sm:$0xf]
    %v1677 = vld [vmem:[#allocation2 + $0x10] sm:$0x1]
    %v1678 = vld [vmem:[#allocation2 + $0x18] sm:$0xf]
    %v1679 = vld [vmem:[#allocation2 + $0x1c] sm:$0xf]
    %v1680 = vld [vmem:[#allocation2 + $0x20] sm:$0xf]
    %v1681 = vld [vmem:[#allocation2 + $0x24] sm:$0x1]
    %v1682 = vld [vmem:[#allocation2 + $0x2c] sm:$0xf]
    %v1683 = vld [vmem:[#allocation2 + $0x30] sm:$0xf]
    %v1684 = vld [vmem:[#allocation2 + $0x34] sm:$0xf]
    %v1685 = vld [vmem:[#allocation2 + $0x38] sm:$0x1]
    %v1686 = vld [vmem:[#allocation2 + $0x40] sm:$0xf]
    %v1687 = vld [vmem:[#allocation2 + $0x44] sm:$0xf]
    %v1688 = vld [vmem:[#allocation2 + $0x48] sm:$0xf]
    %v1689 = vld [vmem:[#allocation2 + $0x4c] sm:$0x1]
    %v1690 = vld [vmem:[#allocation2 + $0x54] sm:$0xf]
    %v1691 = vld [vmem:[#allocation2 + $0x58] sm:$0xf]
    %v1692 = vld [vmem:[#allocation2 + $0x5c] sm:$0xf]
    %v1693 = vld [vmem:[#allocation2 + $0x60] sm:$0x1]
    %v1694 = vld [vmem:[#allocation2 + $0x68] sm:$0xf]
    %v1695 = vld [vmem:[#allocation2 + $0x6c] sm:$0xf]
    %v1696 = vld [vmem:[#allocation2 + $0x70] sm:$0xf]
    %v1697 = vld [vmem:[#allocation2 + $0x74] sm:$0x1]
    %v1698 = vld [vmem:[#allocation2 + $0x7c] sm:$0xf]
    %v1699 = vld [vmem:[#allocation2 + $0x80] sm:$0xf]
    %v1700 = vld [vmem:[#allocation2 + $0x84] sm:$0xf]
    %v1701 = vld [vmem:[#allocation2 + $0x88] sm:$0x1]
    %v1702 = vld [vmem:[#allocation2 + $0x90] sm:$0xf]
    %v1703 = vld [vmem:[#allocation2 + $0x94] sm:$0xf]
    %v1704 = vld [vmem:[#allocation2 + $0x98] sm:$0xf]
    %v1705 = vld [vmem:[#allocation2 + $0x9c] sm:$0x1]
    %v1706 = vld [vmem:[#allocation2 + $0xa4] sm:$0xf]
    %v1707 = vld [vmem:[#allocation2 + $0xa8] sm:$0xf]
    %v1708 = vld [vmem:[#allocation2 + $0xac] sm:$0xf]
    %v1709 = vld [vmem:[#allocation2 + $0xb0] sm:$0x1]
    %v1710 = vld [vmem:[#allocation2 + $0xb8] sm:$0xf]
    %v1711 = vld [vmem:[#allocation2 + $0xbc] sm:$0xf]
    %v1712 = vld [vmem:[#allocation2 + $0xc0] sm:$0xf]
    %v1713 = vld [vmem:[#allocation2 + $0xc4] sm:$0x1]
    %v1714 = vld [vmem:[#allocation2 + $0xcc] sm:$0xf]
    %v1715 = vld [vmem:[#allocation2 + $0xd0] sm:$0xf]
    %v1716 = vld [vmem:[#allocation2 + $0xd4] sm:$0xf]
    %v1717 = vld [vmem:[#allocation2 + $0xd8] sm:$0x1]
    %v1718 = vld [vmem:[#allocation2 + $0xe0] sm:$0xf]
    %v1719 = vld [vmem:[#allocation2 + $0xe4] sm:$0xf]
    %v1720 = vld [vmem:[#allocation2 + $0xe8] sm:$0xf]
    %v1721 = vld [vmem:[#allocation2 + $0xec] sm:$0x1]
    %v1722 = vld [vmem:[#allocation2 + $0xf4] sm:$0xf]
    %v1723 = vld [vmem:[#allocation2 + $0xf8] sm:$0xf]
    %v1724 = vld [vmem:[#allocation2 + $0xfc] sm:$0xf]
    %v1725 = vld [vmem:[#allocation2 + $0x100] sm:$0x1]
    %v1726 = vld [vmem:[#allocation2 + $0x108] sm:$0xf]
    %v1727 = vld [vmem:[#allocation2 + $0x10c] sm:$0xf]
    %v1728 = vld [vmem:[#allocation2 + $0x110] sm:$0xf]
    %v1729 = vld [vmem:[#allocation2 + $0x114] sm:$0x1]
    %v1730 = vld [vmem:[#allocation2 + $0x11c] sm:$0xf]
    %v1731 = vld [vmem:[#allocation2 + $0x120] sm:$0xf]
    %v1732 = vld [vmem:[#allocation2 + $0x124] sm:$0xf]
    %v1733 = vld [vmem:[#allocation2 + $0x128] sm:$0x1]
    %v1734 = vld [vmem:[#allocation2 + $0x130] sm:$0xf]
    %v1735 = vld [vmem:[#allocation2 + $0x134] sm:$0xf]
    %v1736 = vld [vmem:[#allocation2 + $0x138] sm:$0xf]
    %v1737 = vld [vmem:[#allocation2 + $0x13c] sm:$0x1]
    %v1738 = vld [vmem:[#allocation2 + $0x144] sm:$0xf]
    %v1739 = vld [vmem:[#allocation2 + $0x148] sm:$0xf]
    %v1740 = vld [vmem:[#allocation2 + $0x14c] sm:$0xf]
    %v1741 = vld [vmem:[#allocation2 + $0x150] sm:$0x1]
    %v1742 = vld [vmem:[#allocation2 + $0x158] sm:$0xf]
    %v1743 = vld [vmem:[#allocation2 + $0x15c] sm:$0xf]
    %v1744 = vld [vmem:[#allocation2 + $0x160] sm:$0xf]
    %v1745 = vld [vmem:[#allocation2 + $0x164] sm:$0x1]
    %v1746 = vld [vmem:[#allocation2 + $0x16c] sm:$0xf]
    %v1747 = vld [vmem:[#allocation2 + $0x170] sm:$0xf]
    %v1748 = vld [vmem:[#allocation2 + $0x174] sm:$0xf]
    %v1749 = vld [vmem:[#allocation2 + $0x178] sm:$0x1]
    %v1750 = vld [vmem:[#allocation2 + $0x180] sm:$0xf]
    %v1751 = vld [vmem:[#allocation2 + $0x184] sm:$0xf]
    %v1752 = vld [vmem:[#allocation2 + $0x188] sm:$0xf]
    %v1753 = vld [vmem:[#allocation2 + $0x18c] sm:$0x1]
    %v1754 = vld [vmem:[#allocation2 + $0x194] sm:$0xf]
    %v1755 = vld [vmem:[#allocation2 + $0x198] sm:$0xf]
    %v1756 = vld [vmem:[#allocation2 + $0x19c] sm:$0xf]
    %v1757 = vld [vmem:[#allocation2 + $0x1a0] sm:$0x1]
    %v1758 = vld [vmem:[#allocation2 + $0x1a8] sm:$0xf]
    %v1759 = vld [vmem:[#allocation2 + $0x1ac] sm:$0xf]
    %v1760 = vld [vmem:[#allocation2 + $0x1b0] sm:$0xf]
    %v1761 = vld [vmem:[#allocation2 + $0x1b4] sm:$0x1]
    %v1762 = vld [vmem:[#allocation2 + $0x1bc] sm:$0xf]
    %v1763 = vld [vmem:[#allocation2 + $0x1c0] sm:$0xf]
    %v1764 = vld [vmem:[#allocation2 + $0x1c4] sm:$0xf]
    %v1765 = vld [vmem:[#allocation2 + $0x1c8] sm:$0x1]
    %v1766 = vld [vmem:[#allocation2 + $0x1d0] sm:$0xf]
    %v1767 = vld [vmem:[#allocation2 + $0x1d4] sm:$0xf]
    %v1768 = vld [vmem:[#allocation2 + $0x1d8] sm:$0xf]
    %v1769 = vld [vmem:[#allocation2 + $0x1dc] sm:$0x1]
    %v1770 = vld [vmem:[#allocation2 + $0x1e4] sm:$0xf]
    %v1771 = vld [vmem:[#allocation2 + $0x1e8] sm:$0xf]
    %v1772 = vld [vmem:[#allocation2 + $0x1ec] sm:$0xf]
    %v1773 = vld [vmem:[#allocation2 + $0x1f0] sm:$0x1]
    %v1774 = vld [vmem:[#allocation2 + $0x1f8] sm:$0xf]
    %v1775 = vld [vmem:[#allocation2 + $0x1fc] sm:$0xf]
    %v1776 = vld [vmem:[#allocation2 + $0x200] sm:$0xf]
    %v1777 = vld [vmem:[#allocation2 + $0x204] sm:$0x1]
    %v1778 = vld [vmem:[#allocation2 + $0x20c] sm:$0xf]
    %v1779 = vld [vmem:[#allocation2 + $0x210] sm:$0xf]
    %v1780 = vld [vmem:[#allocation2 + $0x214] sm:$0xf]
    %v1781 = vld [vmem:[#allocation2 + $0x218] sm:$0x1]
    %v1782 = vld [vmem:[#allocation2 + $0x220] sm:$0xf]
    %v1783 = vld [vmem:[#allocation2 + $0x224] sm:$0xf]
    %v1784 = vld [vmem:[#allocation2 + $0x228] sm:$0xf]
    %v1785 = vld [vmem:[#allocation2 + $0x22c] sm:$0x1]
    %v1786 = vld [vmem:[#allocation2 + $0x234] sm:$0xf]
    %v1787 = vld [vmem:[#allocation2 + $0x238] sm:$0xf]
    %v1788 = vld [vmem:[#allocation2 + $0x23c] sm:$0xf]
    %v1789 = vld [vmem:[#allocation2 + $0x240] sm:$0x1]
    %v1790 = vld [vmem:[#allocation2 + $0x248] sm:$0xf]
    %v1791 = vld [vmem:[#allocation2 + $0x24c] sm:$0xf]
    %v1792 = vld [vmem:[#allocation2 + $0x250] sm:$0xf]
    %v1793 = vld [vmem:[#allocation2 + $0x254] sm:$0x1]
    %v1794 = vld [vmem:[#allocation2 + $0x25c] sm:$0xf]
    %v1795 = vld [vmem:[#allocation2 + $0x260] sm:$0xf]
    %v1796 = vld [vmem:[#allocation2 + $0x264] sm:$0xf]
    %v1797 = vld [vmem:[#allocation2 + $0x268] sm:$0x1]
    %v1798 = vld [vmem:[#allocation2 + $0x270] sm:$0xf]
    %v1799 = vld [vmem:[#allocation2 + $0x274] sm:$0xf]
    %v1800 = vld [vmem:[#allocation2 + $0x278] sm:$0xf]
    %v1801 = vld [vmem:[#allocation2 + $0x27c] sm:$0x1]
    %v1802 = vld [vmem:[#allocation2 + $0x284] sm:$0xf]
    %v1803 = vld [vmem:[#allocation2 + $0x288] sm:$0xf]
    %v1804 = vld [vmem:[#allocation2 + $0x28c] sm:$0xf]
    %v1805 = vld [vmem:[#allocation2 + $0x290] sm:$0x1]
    %v1806 = vld [vmem:[#allocation2 + $0x298] sm:$0xf]
    %v1807 = vld [vmem:[#allocation2 + $0x29c] sm:$0xf]
    %v1808 = vld [vmem:[#allocation2 + $0x2a0] sm:$0xf]
    %v1809 = vld [vmem:[#allocation2 + $0x2a4] sm:$0x1]
    %v1810 = vld [vmem:[#allocation2 + $0x2ac] sm:$0xf]
    %v1811 = vld [vmem:[#allocation2 + $0x2b0] sm:$0xf]
    %v1812 = vld [vmem:[#allocation2 + $0x2b4] sm:$0xf]
    %v1813 = vld [vmem:[#allocation2 + $0x2b8] sm:$0x1]
    %v1814 = vld [vmem:[#allocation2 + $0x2c0] sm:$0xf]
    %v1815 = vld [vmem:[#allocation2 + $0x2c4] sm:$0xf]
    %v1816 = vld [vmem:[#allocation2 + $0x2c8] sm:$0xf]
    %v1817 = vld [vmem:[#allocation2 + $0x2cc] sm:$0x1]
    %v1818 = vld [vmem:[#allocation8] sm:$0xf]
    %v1819 = vld [vmem:[#allocation8 + $0x4] sm:$0xf]
    %v1820 = vld [vmem:[#allocation8 + $0x8] sm:$0xf]
    %v1821 = vld [vmem:[#allocation8 + $0xc] sm:$0xf]
    %v1822 = vld [vmem:[#allocation8 + $0x10] sm:$0xf]
    %v1823 = vld [vmem:[#allocation8 + $0x14] sm:$0xf]
    %v1824 = vld [vmem:[#allocation8 + $0x18] sm:$0xf]
    %v1825 = vld [vmem:[#allocation8 + $0x1c] sm:$0xf]
    %v1826 = vld [vmem:[#allocation8 + $0x20] sm:$0xf]
    %v1827 = vld [vmem:[#allocation8 + $0x24] sm:$0xf]
    %v1828 = vld [vmem:[#allocation8 + $0x28] sm:$0xf]
    %v1829 = vld [vmem:[#allocation8 + $0x2c] sm:$0xf]
    %v1830 = vld [vmem:[#allocation8 + $0x30] sm:$0xf]
    %v1831 = vld [vmem:[#allocation8 + $0x34] sm:$0xf]
    %v1832 = vld [vmem:[#allocation8 + $0x38] sm:$0xf]
    %v1833 = vld [vmem:[#allocation8 + $0x3c] sm:$0xf]
    %v1834 = vld [vmem:[#allocation8 + $0x40] sm:$0xf]
    %v1835 = vld [vmem:[#allocation8 + $0x44] sm:$0xf]
    %v1836 = vld [vmem:[#allocation8 + $0x48] sm:$0xf]
    %v1837 = vld [vmem:[#allocation8 + $0x4c] sm:$0xf]
    %v1838 = vld [vmem:[#allocation8 + $0x50] sm:$0xf]
    %v1839 = vld [vmem:[#allocation8 + $0x54] sm:$0xf]
    %v1840 = vld [vmem:[#allocation8 + $0x58] sm:$0xf]
    %v1841 = vld [vmem:[#allocation8 + $0x5c] sm:$0xf]
    %v1842 = vld [vmem:[#allocation8 + $0x60] sm:$0xf]
    %v1843 = vld [vmem:[#allocation8 + $0x64] sm:$0xf]
    %v1844 = vld [vmem:[#allocation8 + $0x68] sm:$0xf]
    %v1845 = vld [vmem:[#allocation8 + $0x6c] sm:$0xf]
    %v1846 = vld [vmem:[#allocation8 + $0x70] sm:$0xf]
    %v1847 = vld [vmem:[#allocation8 + $0x74] sm:$0xf]
    %v1848 = vld [vmem:[#allocation8 + $0x78] sm:$0xf]
    %v1849 = vld [vmem:[#allocation8 + $0x7c] sm:$0xf]
    %v1850 = vld [vmem:[#allocation8 + $0x80] sm:$0xf]
    %v1851 = vld [vmem:[#allocation8 + $0x84] sm:$0xf]
    %v1852 = vld [vmem:[#allocation8 + $0x88] sm:$0xf]
    %v1853 = vld [vmem:[#allocation8 + $0x8c] sm:$0xf]
    %v1854 = vld [vmem:[#allocation8 + $0x90] sm:$0xf]
    %v1855 = vld [vmem:[#allocation8 + $0x94] sm:$0xf]
    %v1856 = vld [vmem:[#allocation8 + $0x98] sm:$0xf]
    %v1857 = vld [vmem:[#allocation8 + $0x9c] sm:$0xf]
    %v1858 = vld [vmem:[#allocation8 + $0xa0] sm:$0xf]
    %v1859 = vld [vmem:[#allocation8 + $0xa4] sm:$0xf]
    %v1860 = vld [vmem:[#allocation8 + $0xa8] sm:$0xf]
    %v1861 = vld [vmem:[#allocation8 + $0xac] sm:$0xf]
    %v1862 = vld [vmem:[#allocation8 + $0xb0] sm:$0xf]
    %v1863 = vld [vmem:[#allocation8 + $0xb4] sm:$0xf]
    %v1864 = vld [vmem:[#allocation8 + $0xb8] sm:$0xf]
    %v1865 = vld [vmem:[#allocation8 + $0xbc] sm:$0xf]
    %v1866 = vld [vmem:[#allocation8 + $0xc0] sm:$0xf]
    %v1867 = vld [vmem:[#allocation8 + $0xc4] sm:$0xf]
    %v1868 = vld [vmem:[#allocation8 + $0xc8] sm:$0xf]
    %v1869 = vld [vmem:[#allocation8 + $0xcc] sm:$0xf]
    %v1870 = vld [vmem:[#allocation8 + $0xd0] sm:$0xf]
    %v1871 = vld [vmem:[#allocation8 + $0xd4] sm:$0xf]
    %v1872 = vld [vmem:[#allocation8 + $0xd8] sm:$0xf]
    %v1873 = vld [vmem:[#allocation8 + $0xdc] sm:$0xf]
    %v1874 = vld [vmem:[#allocation8 + $0xe0] sm:$0xf]
    %v1875 = vld [vmem:[#allocation8 + $0xe4] sm:$0xf]
    %v1876 = vld [vmem:[#allocation8 + $0xe8] sm:$0xf]
    %v1877 = vld [vmem:[#allocation8 + $0xec] sm:$0xf]
    %v1878 = vld [vmem:[#allocation8 + $0xf0] sm:$0xf]
    %v1879 = vld [vmem:[#allocation8 + $0xf4] sm:$0xf]
    %v1880 = vld [vmem:[#allocation8 + $0xf8] sm:$0xf]
    %v1881 = vld [vmem:[#allocation8 + $0xfc] sm:$0xf]
    %v1882 = vld [vmem:[#allocation8 + $0x100] sm:$0xf]
    %v1883 = vld [vmem:[#allocation8 + $0x104] sm:$0xf]
    %v1884 = vld [vmem:[#allocation8 + $0x108] sm:$0xf]
    %v1885 = vld [vmem:[#allocation8 + $0x10c] sm:$0xf]
    %v1886 = vld [vmem:[#allocation8 + $0x110] sm:$0xf]
    %v1887 = vld [vmem:[#allocation8 + $0x114] sm:$0xf]
    %v1888 = vld [vmem:[#allocation8 + $0x118] sm:$0xf]
    %v1889 = vld [vmem:[#allocation8 + $0x11c] sm:$0xf]
    %v1890 = vld [vmem:[#allocation8 + $0x120] sm:$0xf]
    %v1891 = vld [vmem:[#allocation8 + $0x124] sm:$0xf]
    %v1892 = vld [vmem:[#allocation8 + $0x128] sm:$0xf]
    %v1893 = vld [vmem:[#allocation8 + $0x12c] sm:$0xf]
    %v1894 = vld [vmem:[#allocation8 + $0x130] sm:$0xf]
    %v1895 = vld [vmem:[#allocation8 + $0x134] sm:$0xf]
    %v1896 = vld [vmem:[#allocation8 + $0x138] sm:$0xf]
    %v1897 = vld [vmem:[#allocation8 + $0x13c] sm:$0xf]
    %v1898 = vld [vmem:[#allocation8 + $0x140] sm:$0xf]
    %v1899 = vld [vmem:[#allocation8 + $0x144] sm:$0xf]
    %v1900 = vld [vmem:[#allocation8 + $0x148] sm:$0xf]
    %v1901 = vld [vmem:[#allocation8 + $0x14c] sm:$0xf]
    %v1902 = vld [vmem:[#allocation8 + $0x150] sm:$0xf]
    %v1903 = vld [vmem:[#allocation8 + $0x154] sm:$0xf]
    %v1904 = vld [vmem:[#allocation8 + $0x158] sm:$0xf]
    %v1905 = vld [vmem:[#allocation8 + $0x15c] sm:$0xf]
    %v1906 = vld [vmem:[#allocation8 + $0x160] sm:$0xf]
    %v1907 = vld [vmem:[#allocation8 + $0x164] sm:$0xf]
    %v1908 = vld [vmem:[#allocation8 + $0x168] sm:$0xf]
    %v1909 = vld [vmem:[#allocation8 + $0x16c] sm:$0xf]
    %v1910 = vld [vmem:[#allocation8 + $0x170] sm:$0xf]
    %v1911 = vld [vmem:[#allocation8 + $0x174] sm:$0xf]
    %v1912 = vld [vmem:[#allocation8 + $0x178] sm:$0xf]
    %v1913 = vld [vmem:[#allocation8 + $0x17c] sm:$0xf]
    %v1914 = vld [vmem:[#allocation8 + $0x180] sm:$0xf]
    %v1915 = vld [vmem:[#allocation8 + $0x184] sm:$0xf]
    %v1916 = vld [vmem:[#allocation8 + $0x188] sm:$0xf]
    %v1917 = vld [vmem:[#allocation8 + $0x18c] sm:$0xf]
    %v1918 = vld [vmem:[#allocation8 + $0x190] sm:$0xf]
    %v1919 = vld [vmem:[#allocation8 + $0x194] sm:$0xf]
    %v1920 = vld [vmem:[#allocation8 + $0x198] sm:$0xf]
    %v1921 = vld [vmem:[#allocation8 + $0x19c] sm:$0xf]
    %v1922 = vld [vmem:[#allocation8 + $0x1a0] sm:$0xf]
    %v1923 = vld [vmem:[#allocation8 + $0x1a4] sm:$0xf]
    %v1924 = vld [vmem:[#allocation8 + $0x1a8] sm:$0xf]
    %v1925 = vld [vmem:[#allocation8 + $0x1ac] sm:$0xf]
    %v1926 = vld [vmem:[#allocation8 + $0x1b0] sm:$0xf]
    %v1927 = vld [vmem:[#allocation8 + $0x1b4] sm:$0xf]
    %v1928 = vld [vmem:[#allocation8 + $0x1b8] sm:$0xf]
    %v1929 = vld [vmem:[#allocation8 + $0x1bc] sm:$0xf]
    %v1930 = vld [vmem:[#allocation8 + $0x1c0] sm:$0xf]
    %v1931 = vld [vmem:[#allocation8 + $0x1c4] sm:$0xf]
    %v1932 = vld [vmem:[#allocation8 + $0x1c8] sm:$0xf]
    %v1933 = vld [vmem:[#allocation8 + $0x1cc] sm:$0xf]
    %v1934 = vld [vmem:[#allocation8 + $0x1d0] sm:$0xf]
    %v1935 = vld [vmem:[#allocation8 + $0x1d4] sm:$0xf]
    %v1936 = vld [vmem:[#allocation8 + $0x1d8] sm:$0xf]
    %v1937 = vld [vmem:[#allocation8 + $0x1dc] sm:$0xf]
    %v1938 = vld [vmem:[#allocation8 + $0x1e0] sm:$0xf]
    %v1939 = vld [vmem:[#allocation8 + $0x1e4] sm:$0xf]
    %v1940 = vld [vmem:[#allocation8 + $0x1e8] sm:$0xf]
    %v1941 = vld [vmem:[#allocation8 + $0x1ec] sm:$0xf]
    %v1942 = vld [vmem:[#allocation8 + $0x1f0] sm:$0xf]
    %v1943 = vld [vmem:[#allocation8 + $0x1f4] sm:$0xf]
    %v1944 = vld [vmem:[#allocation8 + $0x1f8] sm:$0xf]
    %v1945 = vld [vmem:[#allocation8 + $0x1fc] sm:$0xf]
    %v1946 = vld [vmem:[#allocation8 + $0x200] sm:$0xf]
    %v1947 = vld [vmem:[#allocation8 + $0x204] sm:$0xf]
    %v1948 = vld [vmem:[#allocation8 + $0x208] sm:$0xf]
    %v1949 = vld [vmem:[#allocation8 + $0x20c] sm:$0xf]
    %v1950 = vld [vmem:[#allocation8 + $0x210] sm:$0xf]
    %v1951 = vld [vmem:[#allocation8 + $0x214] sm:$0xf]
    %v1952 = vld [vmem:[#allocation8 + $0x218] sm:$0xf]
    %v1953 = vld [vmem:[#allocation8 + $0x21c] sm:$0xf]
    %v1954 = vld [vmem:[#allocation8 + $0x220] sm:$0xf]
    %v1955 = vld [vmem:[#allocation8 + $0x224] sm:$0xf]
    %v1956 = vld [vmem:[#allocation8 + $0x228] sm:$0xf]
    %v1957 = vld [vmem:[#allocation8 + $0x22c] sm:$0xf]
    %v1958 = vld [vmem:[#allocation8 + $0x230] sm:$0xf]
    %v1959 = vld [vmem:[#allocation8 + $0x234] sm:$0xf]
    %v1960 = vld [vmem:[#allocation8 + $0x238] sm:$0xf]
    %v1961 = vld [vmem:[#allocation8 + $0x23c] sm:$0xf]
    %v2058 = vunpack.c.l.b16 %v1674
    %v2059 = vunpack.c.l.b16 %v1675
    %v2060 = vunpack.c.l.b16 %v1676
    %v2061 = vunpack.c.l.b16 %v1678
    %v2062 = vunpack.c.l.b16 %v1679
    %v2063 = vunpack.c.l.b16 %v1680
    %v2064 = vunpack.c.l.b16 %v1682
    %v2065 = vunpack.c.l.b16 %v1683
    %v2066 = vunpack.c.l.b16 %v1684
    %v2067 = vunpack.c.l.b16 %v1686
    %v2068 = vunpack.c.l.b16 %v1687
    %v2069 = vunpack.c.l.b16 %v1688
    %v2070 = vunpack.c.l.b16 %v1690
    %v2071 = vunpack.c.l.b16 %v1691
    %v2072 = vunpack.c.l.b16 %v1692
    %v2073 = vunpack.c.l.b16 %v1694
    %v2074 = vunpack.c.l.b16 %v1695
    %v2075 = vunpack.c.l.b16 %v1696
    %v2076 = vunpack.c.l.b16 %v1698
    %v2077 = vunpack.c.l.b16 %v1699
    %v2078 = vunpack.c.l.b16 %v1700
    %v2079 = vunpack.c.l.b16 %v1702
    %v2080 = vunpack.c.l.b16 %v1703
    %v2081 = vunpack.c.l.b16 %v1704
    %v2082 = vunpack.c.l.b16 %v1706
    %v2083 = vunpack.c.l.b16 %v1707
    %v2084 = vunpack.c.l.b16 %v1708
    %v2085 = vunpack.c.l.b16 %v1710
    %v2086 = vunpack.c.l.b16 %v1711
    %v2087 = vunpack.c.l.b16 %v1712
    %v2088 = vunpack.c.l.b16 %v1714
    %v2089 = vunpack.c.l.b16 %v1715
    %v2090 = vunpack.c.l.b16 %v1716
    %v2091 = vunpack.c.l.b16 %v1718
    %v2092 = vunpack.c.l.b16 %v1719
    %v2093 = vunpack.c.l.b16 %v1720
    %v2094 = vunpack.c.l.b16 %v1722
    %v2095 = vunpack.c.l.b16 %v1723
    %v2096 = vunpack.c.l.b16 %v1724
    %v2097 = vunpack.c.l.b16 %v1726
    %v2098 = vunpack.c.l.b16 %v1727
    %v2099 = vunpack.c.l.b16 %v1728
    %v2100 = vunpack.c.l.b16 %v1730
    %v2101 = vunpack.c.l.b16 %v1731
    %v2102 = vunpack.c.l.b16 %v1732
    %v2103 = vunpack.c.l.b16 %v1734
    %v2104 = vunpack.c.l.b16 %v1735
    %v2105 = vunpack.c.l.b16 %v1736
    %v2106 = vunpack.c.l.b16 %v1746
    %v2107 = vunpack.c.l.b16 %v1747
    %v2108 = vunpack.c.l.b16 %v1748
    %v2109 = vunpack.c.l.b16 %v1750
    %v2110 = vunpack.c.l.b16 %v1751
    %v2111 = vunpack.c.l.b16 %v1752
    %v2112 = vunpack.c.l.b16 %v1754
    %v2113 = vunpack.c.l.b16 %v1755
    %v2114 = vunpack.c.l.b16 %v1756
    %v2115 = vunpack.c.l.b16 %v1758
    %v2116 = vunpack.c.l.b16 %v1759
    %v2117 = vunpack.c.l.b16 %v1760
    %v2118 = vunpack.c.l.b16 %v1762
    %v2119 = vunpack.c.l.b16 %v1763
    %v2120 = vunpack.c.l.b16 %v1764
    %v2121 = vunpack.c.l.b16 %v1766
    %v2122 = vunpack.c.l.b16 %v1767
    %v2123 = vunpack.c.l.b16 %v1768
    %v2124 = vunpack.c.l.b16 %v1770
    %v2125 = vunpack.c.l.b16 %v1771
    %v2126 = vunpack.c.l.b16 %v1772
    %v2127 = vunpack.c.l.b16 %v1774
    %v2128 = vunpack.c.l.b16 %v1775
    %v2129 = vunpack.c.l.b16 %v1776
    %v2130 = vunpack.c.l.b16 %v1778
    %v2131 = vunpack.c.l.b16 %v1779
    %v2132 = vunpack.c.l.b16 %v1780
    %v2133 = vunpack.c.l.b16 %v1782
    %v2134 = vunpack.c.l.b16 %v1783
    %v2135 = vunpack.c.l.b16 %v1784
    %v2136 = vunpack.c.l.b16 %v1786
    %v2137 = vunpack.c.l.b16 %v1787
    %v2138 = vunpack.c.l.b16 %v1788
    %v2139 = vunpack.c.l.b16 %v1790
    %v2140 = vunpack.c.l.b16 %v1791
    %v2141 = vunpack.c.l.b16 %v1792
    %v2142 = vunpack.c.l.b16 %v1794
    %v2143 = vunpack.c.l.b16 %v1795
    %v2144 = vunpack.c.l.b16 %v1796
    %v2145 = vunpack.c.l.b16 %v1798
    %v2146 = vunpack.c.l.b16 %v1799
    %v2147 = vunpack.c.l.b16 %v1800
    %v2148 = vunpack.c.l.b16 %v1802
    %v2149 = vunpack.c.l.b16 %v1803
    %v2150 = vunpack.c.l.b16 %v1804
    %v2151 = vunpack.c.l.b16 %v1806
    %v2152 = vunpack.c.l.b16 %v1807
    %v2153 = vunpack.c.l.b16 %v1808
    %v2154 = vpack.c.b16 %v2059, %v2058
    %v2155 = vpack.c.b16 %v2060, %v2060
    %v2156 = vpack.c.b16 %v2062, %v2061
    %v2157 = vpack.c.b16 %v2063, %v2063
    %v2158 = vpack.c.b16 %v2065, %v2064
    %v2159 = vpack.c.b16 %v2066, %v2066
    %v2160 = vpack.c.b16 %v2068, %v2067
    %v2161 = vpack.c.b16 %v2069, %v2069
    %v2162 = vpack.c.b16 %v2071, %v2070
    %v2163 = vpack.c.b16 %v2072, %v2072
    %v2164 = vpack.c.b16 %v2074, %v2073
    %v2165 = vpack.c.b16 %v2075, %v2075
    %v2166 = vpack.c.b16 %v2077, %v2076
    %v2167 = vpack.c.b16 %v2078, %v2078
    %v2168 = vpack.c.b16 %v2080, %v2079
    %v2169 = vpack.c.b16 %v2081, %v2081
    %v2170 = vpack.c.b16 %v2083, %v2082
    %v2171 = vpack.c.b16 %v2084, %v2084
    %v2172 = vpack.c.b16 %v2086, %v2085
    %v2173 = vpack.c.b16 %v2087, %v2087
    %v2174 = vpack.c.b16 %v2089, %v2088
    %v2175 = vpack.c.b16 %v2090, %v2090
    %v2176 = vpack.c.b16 %v2092, %v2091
    %v2177 = vpack.c.b16 %v2093, %v2093
    %v2178 = vpack.c.b16 %v2095, %v2094
    %v2179 = vpack.c.b16 %v2096, %v2096
    %v2180 = vpack.c.b16 %v2098, %v2097
    %v2181 = vpack.c.b16 %v2099, %v2099
    %v2182 = vpack.c.b16 %v2101, %v2100
    %v2183 = vpack.c.b16 %v2102, %v2102
    %v2184 = vpack.c.b16 %v2104, %v2103
    %v2185 = vpack.c.b16 %v2105, %v2105
    %v2186 = vpack.c.b16 %v2107, %v2106
    %v2187 = vpack.c.b16 %v2108, %v2108
    %v2188 = vpack.c.b16 %v2110, %v2109
    %v2189 = vpack.c.b16 %v2111, %v2111
    %v2190 = vpack.c.b16 %v2113, %v2112
    %v2191 = vpack.c.b16 %v2114, %v2114
    %v2192 = vpack.c.b16 %v2116, %v2115
    %v2193 = vpack.c.b16 %v2117, %v2117
    %v2194 = vpack.c.b16 %v2119, %v2118
    %v2195 = vpack.c.b16 %v2120, %v2120
    %v2196 = vpack.c.b16 %v2122, %v2121
    %v2197 = vpack.c.b16 %v2123, %v2123
    %v2198 = vpack.c.b16 %v2125, %v2124
    %v2199 = vpack.c.b16 %v2126, %v2126
    %v2200 = vpack.c.b16 %v2128, %v2127
    %v2201 = vpack.c.b16 %v2129, %v2129
    %v2202 = vpack.c.b16 %v2131, %v2130
    %v2203 = vpack.c.b16 %v2132, %v2132
    %v2204 = vpack.c.b16 %v2134, %v2133
    %v2205 = vpack.c.b16 %v2135, %v2135
    %v2206 = vpack.c.b16 %v2137, %v2136
    %v2207 = vpack.c.b16 %v2138, %v2138
    %v2208 = vpack.c.b16 %v2140, %v2139
    %v2209 = vpack.c.b16 %v2141, %v2141
    %v2210 = vpack.c.b16 %v2143, %v2142
    %v2211 = vpack.c.b16 %v2144, %v2144
    %v2212 = vpack.c.b16 %v2146, %v2145
    %v2213 = vpack.c.b16 %v2147, %v2147
    %v2214 = vpack.c.b16 %v2149, %v2148
    %v2215 = vpack.c.b16 %v2150, %v2150
    %v2216 = vpack.c.b16 %v2152, %v2151
    %v2217 = vpack.c.b16 %v2153, %v2153
    %v2218 = vpack.c.b16 %v2060, %v2059
    %v2219 = vpack.c.b16 %v2063, %v2062
    %v2220 = vpack.c.b16 %v2066, %v2065
    %v2221 = vpack.c.b16 %v2069, %v2068
    %v2222 = vpack.c.b16 %v2072, %v2071
    %v2223 = vpack.c.b16 %v2075, %v2074
    %v2224 = vpack.c.b16 %v2078, %v2077
    %v2225 = vpack.c.b16 %v2081, %v2080
    %v2226 = vpack.c.b16 %v2084, %v2083
    %v2227 = vpack.c.b16 %v2087, %v2086
    %v2228 = vpack.c.b16 %v2090, %v2089
    %v2229 = vpack.c.b16 %v2093, %v2092
    %v2230 = vpack.c.b16 %v2096, %v2095
    %v2231 = vpack.c.b16 %v2099, %v2098
    %v2232 = vpack.c.b16 %v2102, %v2101
    %v2233 = vpack.c.b16 %v2105, %v2104
    %v2234 = vpack.c.b16 %v2108, %v2107
    %v2235 = vpack.c.b16 %v2111, %v2110
    %v2236 = vpack.c.b16 %v2114, %v2113
    %v2237 = vpack.c.b16 %v2117, %v2116
    %v2238 = vpack.c.b16 %v2120, %v2119
    %v2239 = vpack.c.b16 %v2123, %v2122
    %v2240 = vpack.c.b16 %v2126, %v2125
    %v2241 = vpack.c.b16 %v2129, %v2128
    %v2242 = vpack.c.b16 %v2132, %v2131
    %v2243 = vpack.c.b16 %v2135, %v2134
    %v2244 = vpack.c.b16 %v2138, %v2137
    %v2245 = vpack.c.b16 %v2141, %v2140
    %v2246 = vpack.c.b16 %v2144, %v2143
    %v2247 = vpack.c.b16 %v2147, %v2146
    %v2248 = vpack.c.b16 %v2150, %v2149
    %v2249 = vpack.c.b16 %v2153, %v2152
    %v2251 = vshrl.u32 %v2218, 16
    %v2253 = vrot.slane %v2251, 4
    %v2254 = vshll.u32 %v2218, 16
    %v2256 = vrot.slane %v2254, 5
    %v2257 = vor.u32 %v2253, %v2256
    %v2259 = vshrl.u32 %v2219, 16
    %v2261 = vrot.slane %v2259, 4
    %v2262 = vshll.u32 %v2219, 16
    %v2264 = vrot.slane %v2262, 5
    %v2265 = vor.u32 %v2261, %v2264
    %v2267 = vshrl.u32 %v2220, 16
    %v2269 = vrot.slane %v2267, 4
    %v2270 = vshll.u32 %v2220, 16
    %v2272 = vrot.slane %v2270, 5
    %v2273 = vor.u32 %v2269, %v2272
    %v2275 = vshrl.u32 %v2221, 16
    %v2277 = vrot.slane %v2275, 4
    %v2278 = vshll.u32 %v2221, 16
    %v2280 = vrot.slane %v2278, 5
    %v2281 = vor.u32 %v2277, %v2280
    %v2283 = vshrl.u32 %v2222, 16
    %v2285 = vrot.slane %v2283, 4
    %v2286 = vshll.u32 %v2222, 16
    %v2288 = vrot.slane %v2286, 5
    %v2289 = vor.u32 %v2285, %v2288
    %v2291 = vshrl.u32 %v2223, 16
    %v2293 = vrot.slane %v2291, 4
    %v2294 = vshll.u32 %v2223, 16
    %v2296 = vrot.slane %v2294, 5
    %v2297 = vor.u32 %v2293, %v2296
    %v2299 = vshrl.u32 %v2224, 16
    %v2301 = vrot.slane %v2299, 4
    %v2302 = vshll.u32 %v2224, 16
    %v2304 = vrot.slane %v2302, 5
    %v2305 = vor.u32 %v2301, %v2304
    %v2307 = vshrl.u32 %v2225, 16
    %v2309 = vrot.slane %v2307, 4
    %v2310 = vshll.u32 %v2225, 16
    %v2312 = vrot.slane %v2310, 5
    %v2313 = vor.u32 %v2309, %v2312
    %v2315 = vshrl.u32 %v2226, 16
    %v2317 = vrot.slane %v2315, 4
    %v2318 = vshll.u32 %v2226, 16
    %v2320 = vrot.slane %v2318, 5
    %v2321 = vor.u32 %v2317, %v2320
    %v2323 = vshrl.u32 %v2227, 16
    %v2325 = vrot.slane %v2323, 4
    %v2326 = vshll.u32 %v2227, 16
    %v2328 = vrot.slane %v2326, 5
    %v2329 = vor.u32 %v2325, %v2328
    %v2331 = vshrl.u32 %v2228, 16
    %v2333 = vrot.slane %v2331, 4
    %v2334 = vshll.u32 %v2228, 16
    %v2336 = vrot.slane %v2334, 5
    %v2337 = vor.u32 %v2333, %v2336
    %v2339 = vshrl.u32 %v2229, 16
    %v2341 = vrot.slane %v2339, 4
    %v2342 = vshll.u32 %v2229, 16
    %v2344 = vrot.slane %v2342, 5
    %v2345 = vor.u32 %v2341, %v2344
    %v2347 = vshrl.u32 %v2230, 16
    %v2349 = vrot.slane %v2347, 4
    %v2350 = vshll.u32 %v2230, 16
    %v2352 = vrot.slane %v2350, 5
    %v2353 = vor.u32 %v2349, %v2352
    %v2355 = vshrl.u32 %v2231, 16
    %v2357 = vrot.slane %v2355, 4
    %v2358 = vshll.u32 %v2231, 16
    %v2360 = vrot.slane %v2358, 5
    %v2361 = vor.u32 %v2357, %v2360
    %v2363 = vshrl.u32 %v2232, 16
    %v2365 = vrot.slane %v2363, 4
    %v2366 = vshll.u32 %v2232, 16
    %v2368 = vrot.slane %v2366, 5
    %v2369 = vor.u32 %v2365, %v2368
    %v2371 = vshrl.u32 %v2233, 16
    %v2373 = vrot.slane %v2371, 4
    %v2374 = vshll.u32 %v2233, 16
    %v2376 = vrot.slane %v2374, 5
    %v2377 = vor.u32 %v2373, %v2376
    %v2379 = vshrl.u32 %v2234, 16
    %v2381 = vrot.slane %v2379, 4
    %v2382 = vshll.u32 %v2234, 16
    %v2384 = vrot.slane %v2382, 5
    %v2385 = vor.u32 %v2381, %v2384
    %v2387 = vshrl.u32 %v2235, 16
    %v2389 = vrot.slane %v2387, 4
    %v2390 = vshll.u32 %v2235, 16
    %v2392 = vrot.slane %v2390, 5
    %v2393 = vor.u32 %v2389, %v2392
    %v2395 = vshrl.u32 %v2236, 16
    %v2397 = vrot.slane %v2395, 4
    %v2398 = vshll.u32 %v2236, 16
    %v2400 = vrot.slane %v2398, 5
    %v2401 = vor.u32 %v2397, %v2400
    %v2403 = vshrl.u32 %v2237, 16
    %v2405 = vrot.slane %v2403, 4
    %v2406 = vshll.u32 %v2237, 16
    %v2408 = vrot.slane %v2406, 5
    %v2409 = vor.u32 %v2405, %v2408
    %v2411 = vshrl.u32 %v2238, 16
    %v2413 = vrot.slane %v2411, 4
    %v2414 = vshll.u32 %v2238, 16
    %v2416 = vrot.slane %v2414, 5
    %v2417 = vor.u32 %v2413, %v2416
    %v2419 = vshrl.u32 %v2239, 16
    %v2421 = vrot.slane %v2419, 4
    %v2422 = vshll.u32 %v2239, 16
    %v2424 = vrot.slane %v2422, 5
    %v2425 = vor.u32 %v2421, %v2424
    %v2427 = vshrl.u32 %v2240, 16
    %v2429 = vrot.slane %v2427, 4
    %v2430 = vshll.u32 %v2240, 16
    %v2432 = vrot.slane %v2430, 5
    %v2433 = vor.u32 %v2429, %v2432
    %v2435 = vshrl.u32 %v2241, 16
    %v2437 = vrot.slane %v2435, 4
    %v2438 = vshll.u32 %v2241, 16
    %v2440 = vrot.slane %v2438, 5
    %v2441 = vor.u32 %v2437, %v2440
    %v2443 = vshrl.u32 %v2242, 16
    %v2445 = vrot.slane %v2443, 4
    %v2446 = vshll.u32 %v2242, 16
    %v2448 = vrot.slane %v2446, 5
    %v2449 = vor.u32 %v2445, %v2448
    %v2451 = vshrl.u32 %v2243, 16
    %v2453 = vrot.slane %v2451, 4
    %v2454 = vshll.u32 %v2243, 16
    %v2456 = vrot.slane %v2454, 5
    %v2457 = vor.u32 %v2453, %v2456
    %v2459 = vshrl.u32 %v2244, 16
    %v2461 = vrot.slane %v2459, 4
    %v2462 = vshll.u32 %v2244, 16
    %v2464 = vrot.slane %v2462, 5
    %v2465 = vor.u32 %v2461, %v2464
    %v2467 = vshrl.u32 %v2245, 16
    %v2469 = vrot.slane %v2467, 4
    %v2470 = vshll.u32 %v2245, 16
    %v2472 = vrot.slane %v2470, 5
    %v2473 = vor.u32 %v2469, %v2472
    %v2475 = vshrl.u32 %v2246, 16
    %v2477 = vrot.slane %v2475, 4
    %v2478 = vshll.u32 %v2246, 16
    %v2480 = vrot.slane %v2478, 5
    %v2481 = vor.u32 %v2477, %v2480
    %v2483 = vshrl.u32 %v2247, 16
    %v2485 = vrot.slane %v2483, 4
    %v2486 = vshll.u32 %v2247, 16
    %v2488 = vrot.slane %v2486, 5
    %v2489 = vor.u32 %v2485, %v2488
    %v2491 = vshrl.u32 %v2248, 16
    %v2493 = vrot.slane %v2491, 4
    %v2494 = vshll.u32 %v2248, 16
    %v2496 = vrot.slane %v2494, 5
    %v2497 = vor.u32 %v2493, %v2496
    %v2499 = vshrl.u32 %v2249, 16
    %v2501 = vrot.slane %v2499, 4
    %v2502 = vshll.u32 %v2249, 16
    %v2504 = vrot.slane %v2502, 5
    %v2505 = vor.u32 %v2501, %v2504
    %v2538 = vunpack.c.l.b16 %v1677
    %v2539 = vunpack.c.l.b16 %v1681
    %v2540 = vunpack.c.l.b16 %v1685
    %v2541 = vunpack.c.l.b16 %v1689
    %v2542 = vunpack.c.l.b16 %v1693
    %v2543 = vunpack.c.l.b16 %v1697
    %v2544 = vunpack.c.l.b16 %v1701
    %v2545 = vunpack.c.l.b16 %v1705
    %v2546 = vunpack.c.l.b16 %v1709
    %v2547 = vunpack.c.l.b16 %v1713
    %v2548 = vunpack.c.l.b16 %v1717
    %v2549 = vunpack.c.l.b16 %v1721
    %v2550 = vunpack.c.l.b16 %v1725
    %v2551 = vunpack.c.l.b16 %v1729
    %v2552 = vunpack.c.l.b16 %v1733
    %v2553 = vunpack.c.l.b16 %v1737
    %v2554 = vunpack.c.l.b16 %v1749
    %v2555 = vunpack.c.l.b16 %v1753
    %v2556 = vunpack.c.l.b16 %v1757
    %v2557 = vunpack.c.l.b16 %v1761
    %v2558 = vunpack.c.l.b16 %v1765
    %v2559 = vunpack.c.l.b16 %v1769
    %v2560 = vunpack.c.l.b16 %v1773
    %v2561 = vunpack.c.l.b16 %v1777
    %v2562 = vunpack.c.l.b16 %v1781
    %v2563 = vunpack.c.l.b16 %v1785
    %v2564 = vunpack.c.l.b16 %v1789
    %v2565 = vunpack.c.l.b16 %v1793
    %v2566 = vunpack.c.l.b16 %v1797
    %v2567 = vunpack.c.l.b16 %v1801
    %v2568 = vunpack.c.l.b16 %v1805
    %v2569 = vunpack.c.l.b16 %v1809
    %v2570 = vpack.c.b16 %v2538, %v2538
    %v2571 = vpack.c.b16 %v2539, %v2539
    %v2572 = vpack.c.b16 %v2540, %v2540
    %v2573 = vpack.c.b16 %v2541, %v2541
    %v2574 = vpack.c.b16 %v2542, %v2542
    %v2575 = vpack.c.b16 %v2543, %v2543
    %v2576 = vpack.c.b16 %v2544, %v2544
    %v2577 = vpack.c.b16 %v2545, %v2545
    %v2578 = vpack.c.b16 %v2546, %v2546
    %v2579 = vpack.c.b16 %v2547, %v2547
    %v2580 = vpack.c.b16 %v2548, %v2548
    %v2581 = vpack.c.b16 %v2549, %v2549
    %v2582 = vpack.c.b16 %v2550, %v2550
    %v2583 = vpack.c.b16 %v2551, %v2551
    %v2584 = vpack.c.b16 %v2552, %v2552
    %v2585 = vpack.c.b16 %v2553, %v2553
    %v2586 = vpack.c.b16 %v2554, %v2554
    %v2587 = vpack.c.b16 %v2555, %v2555
    %v2588 = vpack.c.b16 %v2556, %v2556
    %v2589 = vpack.c.b16 %v2557, %v2557
    %v2590 = vpack.c.b16 %v2558, %v2558
    %v2591 = vpack.c.b16 %v2559, %v2559
    %v2592 = vpack.c.b16 %v2560, %v2560
    %v2593 = vpack.c.b16 %v2561, %v2561
    %v2594 = vpack.c.b16 %v2562, %v2562
    %v2595 = vpack.c.b16 %v2563, %v2563
    %v2596 = vpack.c.b16 %v2564, %v2564
    %v2597 = vpack.c.b16 %v2565, %v2565
    %v2598 = vpack.c.b16 %v2566, %v2566
    %v2599 = vpack.c.b16 %v2567, %v2567
    %v2600 = vpack.c.b16 %v2568, %v2568
    %v2601 = vpack.c.b16 %v2569, %v2569
    %vm2602 = vcmask 1042432
    %v2603 = vrot.slane %v2218, 5
    %v2604 = vrot.slane %v2570, 5
    %v2605 = vsel %vm2602, %v2603, %v2604
    %v2606 = vrot.slane %v2219, 5
    %v2607 = vrot.slane %v2571, 5
    %v2608 = vsel %vm2602, %v2606, %v2607
    %v2609 = vrot.slane %v2220, 5
    %v2610 = vrot.slane %v2572, 5
    %v2611 = vsel %vm2602, %v2609, %v2610
    %v2612 = vrot.slane %v2221, 5
    %v2613 = vrot.slane %v2573, 5
    %v2614 = vsel %vm2602, %v2612, %v2613
    %v2615 = vrot.slane %v2222, 5
    %v2616 = vrot.slane %v2574, 5
    %v2617 = vsel %vm2602, %v2615, %v2616
    %v2618 = vrot.slane %v2223, 5
    %v2619 = vrot.slane %v2575, 5
    %v2620 = vsel %vm2602, %v2618, %v2619
    %v2621 = vrot.slane %v2224, 5
    %v2622 = vrot.slane %v2576, 5
    %v2623 = vsel %vm2602, %v2621, %v2622
    %v2624 = vrot.slane %v2225, 5
    %v2625 = vrot.slane %v2577, 5
    %v2626 = vsel %vm2602, %v2624, %v2625
    %v2627 = vrot.slane %v2226, 5
    %v2628 = vrot.slane %v2578, 5
    %v2629 = vsel %vm2602, %v2627, %v2628
    %v2630 = vrot.slane %v2227, 5
    %v2631 = vrot.slane %v2579, 5
    %v2632 = vsel %vm2602, %v2630, %v2631
    %v2633 = vrot.slane %v2228, 5
    %v2634 = vrot.slane %v2580, 5
    %v2635 = vsel %vm2602, %v2633, %v2634
    %v2636 = vrot.slane %v2229, 5
    %v2637 = vrot.slane %v2581, 5
    %v2638 = vsel %vm2602, %v2636, %v2637
    %v2639 = vrot.slane %v2230, 5
    %v2640 = vrot.slane %v2582, 5
    %v2641 = vsel %vm2602, %v2639, %v2640
    %v2642 = vrot.slane %v2231, 5
    %v2643 = vrot.slane %v2583, 5
    %v2644 = vsel %vm2602, %v2642, %v2643
    %v2645 = vrot.slane %v2232, 5
    %v2646 = vrot.slane %v2584, 5
    %v2647 = vsel %vm2602, %v2645, %v2646
    %v2648 = vrot.slane %v2233, 5
    %v2649 = vrot.slane %v2585, 5
    %v2650 = vsel %vm2602, %v2648, %v2649
    %v2651 = vrot.slane %v2234, 5
    %v2652 = vrot.slane %v2586, 5
    %v2653 = vsel %vm2602, %v2651, %v2652
    %v2654 = vrot.slane %v2235, 5
    %v2655 = vrot.slane %v2587, 5
    %v2656 = vsel %vm2602, %v2654, %v2655
    %v2657 = vrot.slane %v2236, 5
    %v2658 = vrot.slane %v2588, 5
    %v2659 = vsel %vm2602, %v2657, %v2658
    %v2660 = vrot.slane %v2237, 5
    %v2661 = vrot.slane %v2589, 5
    %v2662 = vsel %vm2602, %v2660, %v2661
    %v2663 = vrot.slane %v2238, 5
    %v2664 = vrot.slane %v2590, 5
    %v2665 = vsel %vm2602, %v2663, %v2664
    %v2666 = vrot.slane %v2239, 5
    %v2667 = vrot.slane %v2591, 5
    %v2668 = vsel %vm2602, %v2666, %v2667
    %v2669 = vrot.slane %v2240, 5
    %v2670 = vrot.slane %v2592, 5
    %v2671 = vsel %vm2602, %v2669, %v2670
    %v2672 = vrot.slane %v2241, 5
    %v2673 = vrot.slane %v2593, 5
    %v2674 = vsel %vm2602, %v2672, %v2673
    %v2675 = vrot.slane %v2242, 5
    %v2676 = vrot.slane %v2594, 5
    %v2677 = vsel %vm2602, %v2675, %v2676
    %v2678 = vrot.slane %v2243, 5
    %v2679 = vrot.slane %v2595, 5
    %v2680 = vsel %vm2602, %v2678, %v2679
    %v2681 = vrot.slane %v2244, 5
    %v2682 = vrot.slane %v2596, 5
    %v2683 = vsel %vm2602, %v2681, %v2682
    %v2684 = vrot.slane %v2245, 5
    %v2685 = vrot.slane %v2597, 5
    %v2686 = vsel %vm2602, %v2684, %v2685
    %v2687 = vrot.slane %v2246, 5
    %v2688 = vrot.slane %v2598, 5
    %v2689 = vsel %vm2602, %v2687, %v2688
    %v2690 = vrot.slane %v2247, 5
    %v2691 = vrot.slane %v2599, 5
    %v2692 = vsel %vm2602, %v2690, %v2691
    %v2693 = vrot.slane %v2248, 5
    %v2694 = vrot.slane %v2600, 5
    %v2695 = vsel %vm2602, %v2693, %v2694
    %v2696 = vrot.slane %v2249, 5
    %v2697 = vrot.slane %v2601, 5
    %v2698 = vsel %vm2602, %v2696, %v2697
    %vm2699 = vsmask.f32 4352
    %v2701 = vshrl.u32 %v2154, 16
    %v2703 = vrot.slane %v2701, 3
    %v2704 = vshll.u32 %v2154, 16
    %v2706 = vrot.slane %v2704, 4
    %v2707 = vor.u32 %v2703, %v2706
    %v2709 = vshrl.u32 %v2155, 16
    %v2711 = vrot.slane %v2709, 3
    %v2712 = vshll.u32 %v2155, 16
    %v2714 = vrot.slane %v2712, 4
    %v2715 = vor.u32 %v2711, %v2714
    %v2716 = vsel %vm2699, %v2707, %v2715
    %v2718 = vshrl.u32 %v2257, 16
    %v2720 = vrot.slane %v2718, 3
    %v2721 = vshll.u32 %v2257, 16
    %v2723 = vrot.slane %v2721, 4
    %v2724 = vor.u32 %v2720, %v2723
    %v2725 = vsel %vm2699, %v2724, %v2724
    %v2727 = vshrl.u32 %v2603, 16
    %v2729 = vrot.slane %v2727, 3
    %v2730 = vshll.u32 %v2603, 16
    %v2732 = vrot.slane %v2730, 4
    %v2733 = vor.u32 %v2729, %v2732
    %v2735 = vshrl.u32 %v2605, 16
    %v2737 = vrot.slane %v2735, 3
    %v2738 = vshll.u32 %v2605, 16
    %v2740 = vrot.slane %v2738, 4
    %v2741 = vor.u32 %v2737, %v2740
    %v2742 = vsel %vm2699, %v2733, %v2741
    %v2744 = vshrl.u32 %v2156, 16
    %v2746 = vrot.slane %v2744, 3
    %v2747 = vshll.u32 %v2156, 16
    %v2749 = vrot.slane %v2747, 4
    %v2750 = vor.u32 %v2746, %v2749
    %v2752 = vshrl.u32 %v2157, 16
    %v2754 = vrot.slane %v2752, 3
    %v2755 = vshll.u32 %v2157, 16
    %v2757 = vrot.slane %v2755, 4
    %v2758 = vor.u32 %v2754, %v2757
    %v2759 = vsel %vm2699, %v2750, %v2758
    %v2761 = vshrl.u32 %v2265, 16
    %v2763 = vrot.slane %v2761, 3
    %v2764 = vshll.u32 %v2265, 16
    %v2766 = vrot.slane %v2764, 4
    %v2767 = vor.u32 %v2763, %v2766
    %v2768 = vsel %vm2699, %v2767, %v2767
    %v2770 = vshrl.u32 %v2606, 16
    %v2772 = vrot.slane %v2770, 3
    %v2773 = vshll.u32 %v2606, 16
    %v2775 = vrot.slane %v2773, 4
    %v2776 = vor.u32 %v2772, %v2775
    %v2778 = vshrl.u32 %v2608, 16
    %v2780 = vrot.slane %v2778, 3
    %v2781 = vshll.u32 %v2608, 16
    %v2783 = vrot.slane %v2781, 4
    %v2784 = vor.u32 %v2780, %v2783
    %v2785 = vsel %vm2699, %v2776, %v2784
    %v2787 = vshrl.u32 %v2158, 16
    %v2789 = vrot.slane %v2787, 3
    %v2790 = vshll.u32 %v2158, 16
    %v2792 = vrot.slane %v2790, 4
    %v2793 = vor.u32 %v2789, %v2792
    %v2795 = vshrl.u32 %v2159, 16
    %v2797 = vrot.slane %v2795, 3
    %v2798 = vshll.u32 %v2159, 16
    %v2800 = vrot.slane %v2798, 4
    %v2801 = vor.u32 %v2797, %v2800
    %v2802 = vsel %vm2699, %v2793, %v2801
    %v2804 = vshrl.u32 %v2273, 16
    %v2806 = vrot.slane %v2804, 3
    %v2807 = vshll.u32 %v2273, 16
    %v2809 = vrot.slane %v2807, 4
    %v2810 = vor.u32 %v2806, %v2809
    %v2811 = vsel %vm2699, %v2810, %v2810
    %v2813 = vshrl.u32 %v2609, 16
    %v2815 = vrot.slane %v2813, 3
    %v2816 = vshll.u32 %v2609, 16
    %v2818 = vrot.slane %v2816, 4
    %v2819 = vor.u32 %v2815, %v2818
    %v2821 = vshrl.u32 %v2611, 16
    %v2823 = vrot.slane %v2821, 3
    %v2824 = vshll.u32 %v2611, 16
    %v2826 = vrot.slane %v2824, 4
    %v2827 = vor.u32 %v2823, %v2826
    %v2828 = vsel %vm2699, %v2819, %v2827
    %v2830 = vshrl.u32 %v2160, 16
    %v2832 = vrot.slane %v2830, 3
    %v2833 = vshll.u32 %v2160, 16
    %v2835 = vrot.slane %v2833, 4
    %v2836 = vor.u32 %v2832, %v2835
    %v2838 = vshrl.u32 %v2161, 16
    %v2840 = vrot.slane %v2838, 3
    %v2841 = vshll.u32 %v2161, 16
    %v2843 = vrot.slane %v2841, 4
    %v2844 = vor.u32 %v2840, %v2843
    %v2845 = vsel %vm2699, %v2836, %v2844
    %v2847 = vshrl.u32 %v2281, 16
    %v2849 = vrot.slane %v2847, 3
    %v2850 = vshll.u32 %v2281, 16
    %v2852 = vrot.slane %v2850, 4
    %v2853 = vor.u32 %v2849, %v2852
    %v2854 = vsel %vm2699, %v2853, %v2853
    %v2856 = vshrl.u32 %v2612, 16
    %v2858 = vrot.slane %v2856, 3
    %v2859 = vshll.u32 %v2612, 16
    %v2861 = vrot.slane %v2859, 4
    %v2862 = vor.u32 %v2858, %v2861
    %v2864 = vshrl.u32 %v2614, 16
    %v2866 = vrot.slane %v2864, 3
    %v2867 = vshll.u32 %v2614, 16
    %v2869 = vrot.slane %v2867, 4
    %v2870 = vor.u32 %v2866, %v2869
    %v2871 = vsel %vm2699, %v2862, %v2870
    %v2873 = vshrl.u32 %v2162, 16
    %v2875 = vrot.slane %v2873, 3
    %v2876 = vshll.u32 %v2162, 16
    %v2878 = vrot.slane %v2876, 4
    %v2879 = vor.u32 %v2875, %v2878
    %v2881 = vshrl.u32 %v2163, 16
    %v2883 = vrot.slane %v2881, 3
    %v2884 = vshll.u32 %v2163, 16
    %v2886 = vrot.slane %v2884, 4
    %v2887 = vor.u32 %v2883, %v2886
    %v2888 = vsel %vm2699, %v2879, %v2887
    %v2890 = vshrl.u32 %v2289, 16
    %v2892 = vrot.slane %v2890, 3
    %v2893 = vshll.u32 %v2289, 16
    %v2895 = vrot.slane %v2893, 4
    %v2896 = vor.u32 %v2892, %v2895
    %v2897 = vsel %vm2699, %v2896, %v2896
    %v2899 = vshrl.u32 %v2615, 16
    %v2901 = vrot.slane %v2899, 3
    %v2902 = vshll.u32 %v2615, 16
    %v2904 = vrot.slane %v2902, 4
    %v2905 = vor.u32 %v2901, %v2904
    %v2907 = vshrl.u32 %v2617, 16
    %v2909 = vrot.slane %v2907, 3
    %v2910 = vshll.u32 %v2617, 16
    %v2912 = vrot.slane %v2910, 4
    %v2913 = vor.u32 %v2909, %v2912
    %v2914 = vsel %vm2699, %v2905, %v2913
    %v2916 = vshrl.u32 %v2164, 16
    %v2918 = vrot.slane %v2916, 3
    %v2919 = vshll.u32 %v2164, 16
    %v2921 = vrot.slane %v2919, 4
    %v2922 = vor.u32 %v2918, %v2921
    %v2924 = vshrl.u32 %v2165, 16
    %v2926 = vrot.slane %v2924, 3
    %v2927 = vshll.u32 %v2165, 16
    %v2929 = vrot.slane %v2927, 4
    %v2930 = vor.u32 %v2926, %v2929
    %v2931 = vsel %vm2699, %v2922, %v2930
    %v2933 = vshrl.u32 %v2297, 16
    %v2935 = vrot.slane %v2933, 3
    %v2936 = vshll.u32 %v2297, 16
    %v2938 = vrot.slane %v2936, 4
    %v2939 = vor.u32 %v2935, %v2938
    %v2940 = vsel %vm2699, %v2939, %v2939
    %v2942 = vshrl.u32 %v2618, 16
    %v2944 = vrot.slane %v2942, 3
    %v2945 = vshll.u32 %v2618, 16
    %v2947 = vrot.slane %v2945, 4
    %v2948 = vor.u32 %v2944, %v2947
    %v2950 = vshrl.u32 %v2620, 16
    %v2952 = vrot.slane %v2950, 3
    %v2953 = vshll.u32 %v2620, 16
    %v2955 = vrot.slane %v2953, 4
    %v2956 = vor.u32 %v2952, %v2955
    %v2957 = vsel %vm2699, %v2948, %v2956
    %v2959 = vshrl.u32 %v2166, 16
    %v2961 = vrot.slane %v2959, 3
    %v2962 = vshll.u32 %v2166, 16
    %v2964 = vrot.slane %v2962, 4
    %v2965 = vor.u32 %v2961, %v2964
    %v2967 = vshrl.u32 %v2167, 16
    %v2969 = vrot.slane %v2967, 3
    %v2970 = vshll.u32 %v2167, 16
    %v2972 = vrot.slane %v2970, 4
    %v2973 = vor.u32 %v2969, %v2972
    %v2974 = vsel %vm2699, %v2965, %v2973
    %v2976 = vshrl.u32 %v2305, 16
    %v2978 = vrot.slane %v2976, 3
    %v2979 = vshll.u32 %v2305, 16
    %v2981 = vrot.slane %v2979, 4
    %v2982 = vor.u32 %v2978, %v2981
    %v2983 = vsel %vm2699, %v2982, %v2982
    %v2985 = vshrl.u32 %v2621, 16
    %v2987 = vrot.slane %v2985, 3
    %v2988 = vshll.u32 %v2621, 16
    %v2990 = vrot.slane %v2988, 4
    %v2991 = vor.u32 %v2987, %v2990
    %v2993 = vshrl.u32 %v2623, 16
    %v2995 = vrot.slane %v2993, 3
    %v2996 = vshll.u32 %v2623, 16
    %v2998 = vrot.slane %v2996, 4
    %v2999 = vor.u32 %v2995, %v2998
    %v3000 = vsel %vm2699, %v2991, %v2999
    %v3002 = vshrl.u32 %v2168, 16
    %v3004 = vrot.slane %v3002, 3
    %v3005 = vshll.u32 %v2168, 16
    %v3007 = vrot.slane %v3005, 4
    %v3008 = vor.u32 %v3004, %v3007
    %v3010 = vshrl.u32 %v2169, 16
    %v3012 = vrot.slane %v3010, 3
    %v3013 = vshll.u32 %v2169, 16
    %v3015 = vrot.slane %v3013, 4
    %v3016 = vor.u32 %v3012, %v3015
    %v3017 = vsel %vm2699, %v3008, %v3016
    %v3019 = vshrl.u32 %v2313, 16
    %v3021 = vrot.slane %v3019, 3
    %v3022 = vshll.u32 %v2313, 16
    %v3024 = vrot.slane %v3022, 4
    %v3025 = vor.u32 %v3021, %v3024
    %v3026 = vsel %vm2699, %v3025, %v3025
    %v3028 = vshrl.u32 %v2624, 16
    %v3030 = vrot.slane %v3028, 3
    %v3031 = vshll.u32 %v2624, 16
    %v3033 = vrot.slane %v3031, 4
    %v3034 = vor.u32 %v3030, %v3033
    %v3036 = vshrl.u32 %v2626, 16
    %v3038 = vrot.slane %v3036, 3
    %v3039 = vshll.u32 %v2626, 16
    %v3041 = vrot.slane %v3039, 4
    %v3042 = vor.u32 %v3038, %v3041
    %v3043 = vsel %vm2699, %v3034, %v3042
    %v3045 = vshrl.u32 %v2170, 16
    %v3047 = vrot.slane %v3045, 3
    %v3048 = vshll.u32 %v2170, 16
    %v3050 = vrot.slane %v3048, 4
    %v3051 = vor.u32 %v3047, %v3050
    %v3053 = vshrl.u32 %v2171, 16
    %v3055 = vrot.slane %v3053, 3
    %v3056 = vshll.u32 %v2171, 16
    %v3058 = vrot.slane %v3056, 4
    %v3059 = vor.u32 %v3055, %v3058
    %v3060 = vsel %vm2699, %v3051, %v3059
    %v3062 = vshrl.u32 %v2321, 16
    %v3064 = vrot.slane %v3062, 3
    %v3065 = vshll.u32 %v2321, 16
    %v3067 = vrot.slane %v3065, 4
    %v3068 = vor.u32 %v3064, %v3067
    %v3069 = vsel %vm2699, %v3068, %v3068
    %v3071 = vshrl.u32 %v2627, 16
    %v3073 = vrot.slane %v3071, 3
    %v3074 = vshll.u32 %v2627, 16
    %v3076 = vrot.slane %v3074, 4
    %v3077 = vor.u32 %v3073, %v3076
    %v3079 = vshrl.u32 %v2629, 16
    %v3081 = vrot.slane %v3079, 3
    %v3082 = vshll.u32 %v2629, 16
    %v3084 = vrot.slane %v3082, 4
    %v3085 = vor.u32 %v3081, %v3084
    %v3086 = vsel %vm2699, %v3077, %v3085
    %v3088 = vshrl.u32 %v2172, 16
    %v3090 = vrot.slane %v3088, 3
    %v3091 = vshll.u32 %v2172, 16
    %v3093 = vrot.slane %v3091, 4
    %v3094 = vor.u32 %v3090, %v3093
    %v3096 = vshrl.u32 %v2173, 16
    %v3098 = vrot.slane %v3096, 3
    %v3099 = vshll.u32 %v2173, 16
    %v3101 = vrot.slane %v3099, 4
    %v3102 = vor.u32 %v3098, %v3101
    %v3103 = vsel %vm2699, %v3094, %v3102
    %v3105 = vshrl.u32 %v2329, 16
    %v3107 = vrot.slane %v3105, 3
    %v3108 = vshll.u32 %v2329, 16
    %v3110 = vrot.slane %v3108, 4
    %v3111 = vor.u32 %v3107, %v3110
    %v3112 = vsel %vm2699, %v3111, %v3111
    %v3114 = vshrl.u32 %v2630, 16
    %v3116 = vrot.slane %v3114, 3
    %v3117 = vshll.u32 %v2630, 16
    %v3119 = vrot.slane %v3117, 4
    %v3120 = vor.u32 %v3116, %v3119
    %v3122 = vshrl.u32 %v2632, 16
    %v3124 = vrot.slane %v3122, 3
    %v3125 = vshll.u32 %v2632, 16
    %v3127 = vrot.slane %v3125, 4
    %v3128 = vor.u32 %v3124, %v3127
    %v3129 = vsel %vm2699, %v3120, %v3128
    %v3131 = vshrl.u32 %v2174, 16
    %v3133 = vrot.slane %v3131, 3
    %v3134 = vshll.u32 %v2174, 16
    %v3136 = vrot.slane %v3134, 4
    %v3137 = vor.u32 %v3133, %v3136
    %v3139 = vshrl.u32 %v2175, 16
    %v3141 = vrot.slane %v3139, 3
    %v3142 = vshll.u32 %v2175, 16
    %v3144 = vrot.slane %v3142, 4
    %v3145 = vor.u32 %v3141, %v3144
    %v3146 = vsel %vm2699, %v3137, %v3145
    %v3148 = vshrl.u32 %v2337, 16
    %v3150 = vrot.slane %v3148, 3
    %v3151 = vshll.u32 %v2337, 16
    %v3153 = vrot.slane %v3151, 4
    %v3154 = vor.u32 %v3150, %v3153
    %v3155 = vsel %vm2699, %v3154, %v3154
    %v3157 = vshrl.u32 %v2633, 16
    %v3159 = vrot.slane %v3157, 3
    %v3160 = vshll.u32 %v2633, 16
    %v3162 = vrot.slane %v3160, 4
    %v3163 = vor.u32 %v3159, %v3162
    %v3165 = vshrl.u32 %v2635, 16
    %v3167 = vrot.slane %v3165, 3
    %v3168 = vshll.u32 %v2635, 16
    %v3170 = vrot.slane %v3168, 4
    %v3171 = vor.u32 %v3167, %v3170
    %v3172 = vsel %vm2699, %v3163, %v3171
    %v3174 = vshrl.u32 %v2176, 16
    %v3176 = vrot.slane %v3174, 3
    %v3177 = vshll.u32 %v2176, 16
    %v3179 = vrot.slane %v3177, 4
    %v3180 = vor.u32 %v3176, %v3179
    %v3182 = vshrl.u32 %v2177, 16
    %v3184 = vrot.slane %v3182, 3
    %v3185 = vshll.u32 %v2177, 16
    %v3187 = vrot.slane %v3185, 4
    %v3188 = vor.u32 %v3184, %v3187
    %v3189 = vsel %vm2699, %v3180, %v3188
    %v3191 = vshrl.u32 %v2345, 16
    %v3193 = vrot.slane %v3191, 3
    %v3194 = vshll.u32 %v2345, 16
    %v3196 = vrot.slane %v3194, 4
    %v3197 = vor.u32 %v3193, %v3196
    %v3198 = vsel %vm2699, %v3197, %v3197
    %v3200 = vshrl.u32 %v2636, 16
    %v3202 = vrot.slane %v3200, 3
    %v3203 = vshll.u32 %v2636, 16
    %v3205 = vrot.slane %v3203, 4
    %v3206 = vor.u32 %v3202, %v3205
    %v3208 = vshrl.u32 %v2638, 16
    %v3210 = vrot.slane %v3208, 3
    %v3211 = vshll.u32 %v2638, 16
    %v3213 = vrot.slane %v3211, 4
    %v3214 = vor.u32 %v3210, %v3213
    %v3215 = vsel %vm2699, %v3206, %v3214
    %v3217 = vshrl.u32 %v2178, 16
    %v3219 = vrot.slane %v3217, 3
    %v3220 = vshll.u32 %v2178, 16
    %v3222 = vrot.slane %v3220, 4
    %v3223 = vor.u32 %v3219, %v3222
    %v3225 = vshrl.u32 %v2179, 16
    %v3227 = vrot.slane %v3225, 3
    %v3228 = vshll.u32 %v2179, 16
    %v3230 = vrot.slane %v3228, 4
    %v3231 = vor.u32 %v3227, %v3230
    %v3232 = vsel %vm2699, %v3223, %v3231
    %v3234 = vshrl.u32 %v2353, 16
    %v3236 = vrot.slane %v3234, 3
    %v3237 = vshll.u32 %v2353, 16
    %v3239 = vrot.slane %v3237, 4
    %v3240 = vor.u32 %v3236, %v3239
    %v3241 = vsel %vm2699, %v3240, %v3240
    %v3243 = vshrl.u32 %v2639, 16
    %v3245 = vrot.slane %v3243, 3
    %v3246 = vshll.u32 %v2639, 16
    %v3248 = vrot.slane %v3246, 4
    %v3249 = vor.u32 %v3245, %v3248
    %v3251 = vshrl.u32 %v2641, 16
    %v3253 = vrot.slane %v3251, 3
    %v3254 = vshll.u32 %v2641, 16
    %v3256 = vrot.slane %v3254, 4
    %v3257 = vor.u32 %v3253, %v3256
    %v3258 = vsel %vm2699, %v3249, %v3257
    %v3260 = vshrl.u32 %v2180, 16
    %v3262 = vrot.slane %v3260, 3
    %v3263 = vshll.u32 %v2180, 16
    %v3265 = vrot.slane %v3263, 4
    %v3266 = vor.u32 %v3262, %v3265
    %v3268 = vshrl.u32 %v2181, 16
    %v3270 = vrot.slane %v3268, 3
    %v3271 = vshll.u32 %v2181, 16
    %v3273 = vrot.slane %v3271, 4
    %v3274 = vor.u32 %v3270, %v3273
    %v3275 = vsel %vm2699, %v3266, %v3274
    %v3277 = vshrl.u32 %v2361, 16
    %v3279 = vrot.slane %v3277, 3
    %v3280 = vshll.u32 %v2361, 16
    %v3282 = vrot.slane %v3280, 4
    %v3283 = vor.u32 %v3279, %v3282
    %v3284 = vsel %vm2699, %v3283, %v3283
    %v3286 = vshrl.u32 %v2642, 16
    %v3288 = vrot.slane %v3286, 3
    %v3289 = vshll.u32 %v2642, 16
    %v3291 = vrot.slane %v3289, 4
    %v3292 = vor.u32 %v3288, %v3291
    %v3294 = vshrl.u32 %v2644, 16
    %v3296 = vrot.slane %v3294, 3
    %v3297 = vshll.u32 %v2644, 16
    %v3299 = vrot.slane %v3297, 4
    %v3300 = vor.u32 %v3296, %v3299
    %v3301 = vsel %vm2699, %v3292, %v3300
    %v3303 = vshrl.u32 %v2182, 16
    %v3305 = vrot.slane %v3303, 3
    %v3306 = vshll.u32 %v2182, 16
    %v3308 = vrot.slane %v3306, 4
    %v3309 = vor.u32 %v3305, %v3308
    %v3311 = vshrl.u32 %v2183, 16
    %v3313 = vrot.slane %v3311, 3
    %v3314 = vshll.u32 %v2183, 16
    %v3316 = vrot.slane %v3314, 4
    %v3317 = vor.u32 %v3313, %v3316
    %v3318 = vsel %vm2699, %v3309, %v3317
    %v3320 = vshrl.u32 %v2369, 16
    %v3322 = vrot.slane %v3320, 3
    %v3323 = vshll.u32 %v2369, 16
    %v3325 = vrot.slane %v3323, 4
    %v3326 = vor.u32 %v3322, %v3325
    %v3327 = vsel %vm2699, %v3326, %v3326
    %v3329 = vshrl.u32 %v2645, 16
    %v3331 = vrot.slane %v3329, 3
    %v3332 = vshll.u32 %v2645, 16
    %v3334 = vrot.slane %v3332, 4
    %v3335 = vor.u32 %v3331, %v3334
    %v3337 = vshrl.u32 %v2647, 16
    %v3339 = vrot.slane %v3337, 3
    %v3340 = vshll.u32 %v2647, 16
    %v3342 = vrot.slane %v3340, 4
    %v3343 = vor.u32 %v3339, %v3342
    %v3344 = vsel %vm2699, %v3335, %v3343
    %v3346 = vshrl.u32 %v2184, 16
    %v3348 = vrot.slane %v3346, 3
    %v3349 = vshll.u32 %v2184, 16
    %v3351 = vrot.slane %v3349, 4
    %v3352 = vor.u32 %v3348, %v3351
    %v3354 = vshrl.u32 %v2185, 16
    %v3356 = vrot.slane %v3354, 3
    %v3357 = vshll.u32 %v2185, 16
    %v3359 = vrot.slane %v3357, 4
    %v3360 = vor.u32 %v3356, %v3359
    %v3361 = vsel %vm2699, %v3352, %v3360
    %v3363 = vshrl.u32 %v2377, 16
    %v3365 = vrot.slane %v3363, 3
    %v3366 = vshll.u32 %v2377, 16
    %v3368 = vrot.slane %v3366, 4
    %v3369 = vor.u32 %v3365, %v3368
    %v3370 = vsel %vm2699, %v3369, %v3369
    %v3372 = vshrl.u32 %v2648, 16
    %v3374 = vrot.slane %v3372, 3
    %v3375 = vshll.u32 %v2648, 16
    %v3377 = vrot.slane %v3375, 4
    %v3378 = vor.u32 %v3374, %v3377
    %v3380 = vshrl.u32 %v2650, 16
    %v3382 = vrot.slane %v3380, 3
    %v3383 = vshll.u32 %v2650, 16
    %v3385 = vrot.slane %v3383, 4
    %v3386 = vor.u32 %v3382, %v3385
    %v3387 = vsel %vm2699, %v3378, %v3386
    %v3389 = vshrl.u32 %v2186, 16
    %v3391 = vrot.slane %v3389, 3
    %v3392 = vshll.u32 %v2186, 16
    %v3394 = vrot.slane %v3392, 4
    %v3395 = vor.u32 %v3391, %v3394
    %v3397 = vshrl.u32 %v2187, 16
    %v3399 = vrot.slane %v3397, 3
    %v3400 = vshll.u32 %v2187, 16
    %v3402 = vrot.slane %v3400, 4
    %v3403 = vor.u32 %v3399, %v3402
    %v3404 = vsel %vm2699, %v3395, %v3403
    %v3406 = vshrl.u32 %v2385, 16
    %v3408 = vrot.slane %v3406, 3
    %v3409 = vshll.u32 %v2385, 16
    %v3411 = vrot.slane %v3409, 4
    %v3412 = vor.u32 %v3408, %v3411
    %v3413 = vsel %vm2699, %v3412, %v3412
    %v3415 = vshrl.u32 %v2651, 16
    %v3417 = vrot.slane %v3415, 3
    %v3418 = vshll.u32 %v2651, 16
    %v3420 = vrot.slane %v3418, 4
    %v3421 = vor.u32 %v3417, %v3420
    %v3423 = vshrl.u32 %v2653, 16
    %v3425 = vrot.slane %v3423, 3
    %v3426 = vshll.u32 %v2653, 16
    %v3428 = vrot.slane %v3426, 4
    %v3429 = vor.u32 %v3425, %v3428
    %v3430 = vsel %vm2699, %v3421, %v3429
    %v3432 = vshrl.u32 %v2188, 16
    %v3434 = vrot.slane %v3432, 3
    %v3435 = vshll.u32 %v2188, 16
    %v3437 = vrot.slane %v3435, 4
    %v3438 = vor.u32 %v3434, %v3437
    %v3440 = vshrl.u32 %v2189, 16
    %v3442 = vrot.slane %v3440, 3
    %v3443 = vshll.u32 %v2189, 16
    %v3445 = vrot.slane %v3443, 4
    %v3446 = vor.u32 %v3442, %v3445
    %v3447 = vsel %vm2699, %v3438, %v3446
    %v3449 = vshrl.u32 %v2393, 16
    %v3451 = vrot.slane %v3449, 3
    %v3452 = vshll.u32 %v2393, 16
    %v3454 = vrot.slane %v3452, 4
    %v3455 = vor.u32 %v3451, %v3454
    %v3456 = vsel %vm2699, %v3455, %v3455
    %v3458 = vshrl.u32 %v2654, 16
    %v3460 = vrot.slane %v3458, 3
    %v3461 = vshll.u32 %v2654, 16
    %v3463 = vrot.slane %v3461, 4
    %v3464 = vor.u32 %v3460, %v3463
    %v3466 = vshrl.u32 %v2656, 16
    %v3468 = vrot.slane %v3466, 3
    %v3469 = vshll.u32 %v2656, 16
    %v3471 = vrot.slane %v3469, 4
    %v3472 = vor.u32 %v3468, %v3471
    %v3473 = vsel %vm2699, %v3464, %v3472
    %v3475 = vshrl.u32 %v2190, 16
    %v3477 = vrot.slane %v3475, 3
    %v3478 = vshll.u32 %v2190, 16
    %v3480 = vrot.slane %v3478, 4
    %v3481 = vor.u32 %v3477, %v3480
    %v3483 = vshrl.u32 %v2191, 16
    %v3485 = vrot.slane %v3483, 3
    %v3486 = vshll.u32 %v2191, 16
    %v3488 = vrot.slane %v3486, 4
    %v3489 = vor.u32 %v3485, %v3488
    %v3490 = vsel %vm2699, %v3481, %v3489
    %v3492 = vshrl.u32 %v2401, 16
    %v3494 = vrot.slane %v3492, 3
    %v3495 = vshll.u32 %v2401, 16
    %v3497 = vrot.slane %v3495, 4
    %v3498 = vor.u32 %v3494, %v3497
    %v3499 = vsel %vm2699, %v3498, %v3498
    %v3501 = vshrl.u32 %v2657, 16
    %v3503 = vrot.slane %v3501, 3
    %v3504 = vshll.u32 %v2657, 16
    %v3506 = vrot.slane %v3504, 4
    %v3507 = vor.u32 %v3503, %v3506
    %v3509 = vshrl.u32 %v2659, 16
    %v3511 = vrot.slane %v3509, 3
    %v3512 = vshll.u32 %v2659, 16
    %v3514 = vrot.slane %v3512, 4
    %v3515 = vor.u32 %v3511, %v3514
    %v3516 = vsel %vm2699, %v3507, %v3515
    %v3518 = vshrl.u32 %v2192, 16
    %v3520 = vrot.slane %v3518, 3
    %v3521 = vshll.u32 %v2192, 16
    %v3523 = vrot.slane %v3521, 4
    %v3524 = vor.u32 %v3520, %v3523
    %v3526 = vshrl.u32 %v2193, 16
    %v3528 = vrot.slane %v3526, 3
    %v3529 = vshll.u32 %v2193, 16
    %v3531 = vrot.slane %v3529, 4
    %v3532 = vor.u32 %v3528, %v3531
    %v3533 = vsel %vm2699, %v3524, %v3532
    %v3535 = vshrl.u32 %v2409, 16
    %v3537 = vrot.slane %v3535, 3
    %v3538 = vshll.u32 %v2409, 16
    %v3540 = vrot.slane %v3538, 4
    %v3541 = vor.u32 %v3537, %v3540
    %v3542 = vsel %vm2699, %v3541, %v3541
    %v3544 = vshrl.u32 %v2660, 16
    %v3546 = vrot.slane %v3544, 3
    %v3547 = vshll.u32 %v2660, 16
    %v3549 = vrot.slane %v3547, 4
    %v3550 = vor.u32 %v3546, %v3549
    %v3552 = vshrl.u32 %v2662, 16
    %v3554 = vrot.slane %v3552, 3
    %v3555 = vshll.u32 %v2662, 16
    %v3557 = vrot.slane %v3555, 4
    %v3558 = vor.u32 %v3554, %v3557
    %v3559 = vsel %vm2699, %v3550, %v3558
    %v3561 = vshrl.u32 %v2194, 16
    %v3563 = vrot.slane %v3561, 3
    %v3564 = vshll.u32 %v2194, 16
    %v3566 = vrot.slane %v3564, 4
    %v3567 = vor.u32 %v3563, %v3566
    %v3569 = vshrl.u32 %v2195, 16
    %v3571 = vrot.slane %v3569, 3
    %v3572 = vshll.u32 %v2195, 16
    %v3574 = vrot.slane %v3572, 4
    %v3575 = vor.u32 %v3571, %v3574
    %v3576 = vsel %vm2699, %v3567, %v3575
    %v3578 = vshrl.u32 %v2417, 16
    %v3580 = vrot.slane %v3578, 3
    %v3581 = vshll.u32 %v2417, 16
    %v3583 = vrot.slane %v3581, 4
    %v3584 = vor.u32 %v3580, %v3583
    %v3585 = vsel %vm2699, %v3584, %v3584
    %v3587 = vshrl.u32 %v2663, 16
    %v3589 = vrot.slane %v3587, 3
    %v3590 = vshll.u32 %v2663, 16
    %v3592 = vrot.slane %v3590, 4
    %v3593 = vor.u32 %v3589, %v3592
    %v3595 = vshrl.u32 %v2665, 16
    %v3597 = vrot.slane %v3595, 3
    %v3598 = vshll.u32 %v2665, 16
    %v3600 = vrot.slane %v3598, 4
    %v3601 = vor.u32 %v3597, %v3600
    %v3602 = vsel %vm2699, %v3593, %v3601
    %v3604 = vshrl.u32 %v2196, 16
    %v3606 = vrot.slane %v3604, 3
    %v3607 = vshll.u32 %v2196, 16
    %v3609 = vrot.slane %v3607, 4
    %v3610 = vor.u32 %v3606, %v3609
    %v3612 = vshrl.u32 %v2197, 16
    %v3614 = vrot.slane %v3612, 3
    %v3615 = vshll.u32 %v2197, 16
    %v3617 = vrot.slane %v3615, 4
    %v3618 = vor.u32 %v3614, %v3617
    %v3619 = vsel %vm2699, %v3610, %v3618
    %v3621 = vshrl.u32 %v2425, 16
    %v3623 = vrot.slane %v3621, 3
    %v3624 = vshll.u32 %v2425, 16
    %v3626 = vrot.slane %v3624, 4
    %v3627 = vor.u32 %v3623, %v3626
    %v3628 = vsel %vm2699, %v3627, %v3627
    %v3630 = vshrl.u32 %v2666, 16
    %v3632 = vrot.slane %v3630, 3
    %v3633 = vshll.u32 %v2666, 16
    %v3635 = vrot.slane %v3633, 4
    %v3636 = vor.u32 %v3632, %v3635
    %v3638 = vshrl.u32 %v2668, 16
    %v3640 = vrot.slane %v3638, 3
    %v3641 = vshll.u32 %v2668, 16
    %v3643 = vrot.slane %v3641, 4
    %v3644 = vor.u32 %v3640, %v3643
    %v3645 = vsel %vm2699, %v3636, %v3644
    %v3647 = vshrl.u32 %v2198, 16
    %v3649 = vrot.slane %v3647, 3
    %v3650 = vshll.u32 %v2198, 16
    %v3652 = vrot.slane %v3650, 4
    %v3653 = vor.u32 %v3649, %v3652
    %v3655 = vshrl.u32 %v2199, 16
    %v3657 = vrot.slane %v3655, 3
    %v3658 = vshll.u32 %v2199, 16
    %v3660 = vrot.slane %v3658, 4
    %v3661 = vor.u32 %v3657, %v3660
    %v3662 = vsel %vm2699, %v3653, %v3661
    %v3664 = vshrl.u32 %v2433, 16
    %v3666 = vrot.slane %v3664, 3
    %v3667 = vshll.u32 %v2433, 16
    %v3669 = vrot.slane %v3667, 4
    %v3670 = vor.u32 %v3666, %v3669
    %v3671 = vsel %vm2699, %v3670, %v3670
    %v3673 = vshrl.u32 %v2669, 16
    %v3675 = vrot.slane %v3673, 3
    %v3676 = vshll.u32 %v2669, 16
    %v3678 = vrot.slane %v3676, 4
    %v3679 = vor.u32 %v3675, %v3678
    %v3681 = vshrl.u32 %v2671, 16
    %v3683 = vrot.slane %v3681, 3
    %v3684 = vshll.u32 %v2671, 16
    %v3686 = vrot.slane %v3684, 4
    %v3687 = vor.u32 %v3683, %v3686
    %v3688 = vsel %vm2699, %v3679, %v3687
    %v3690 = vshrl.u32 %v2200, 16
    %v3692 = vrot.slane %v3690, 3
    %v3693 = vshll.u32 %v2200, 16
    %v3695 = vrot.slane %v3693, 4
    %v3696 = vor.u32 %v3692, %v3695
    %v3698 = vshrl.u32 %v2201, 16
    %v3700 = vrot.slane %v3698, 3
    %v3701 = vshll.u32 %v2201, 16
    %v3703 = vrot.slane %v3701, 4
    %v3704 = vor.u32 %v3700, %v3703
    %v3705 = vsel %vm2699, %v3696, %v3704
    %v3707 = vshrl.u32 %v2441, 16
    %v3709 = vrot.slane %v3707, 3
    %v3710 = vshll.u32 %v2441, 16
    %v3712 = vrot.slane %v3710, 4
    %v3713 = vor.u32 %v3709, %v3712
    %v3714 = vsel %vm2699, %v3713, %v3713
    %v3716 = vshrl.u32 %v2672, 16
    %v3718 = vrot.slane %v3716, 3
    %v3719 = vshll.u32 %v2672, 16
    %v3721 = vrot.slane %v3719, 4
    %v3722 = vor.u32 %v3718, %v3721
    %v3724 = vshrl.u32 %v2674, 16
    %v3726 = vrot.slane %v3724, 3
    %v3727 = vshll.u32 %v2674, 16
    %v3729 = vrot.slane %v3727, 4
    %v3730 = vor.u32 %v3726, %v3729
    %v3731 = vsel %vm2699, %v3722, %v3730
    %v3733 = vshrl.u32 %v2202, 16
    %v3735 = vrot.slane %v3733, 3
    %v3736 = vshll.u32 %v2202, 16
    %v3738 = vrot.slane %v3736, 4
    %v3739 = vor.u32 %v3735, %v3738
    %v3741 = vshrl.u32 %v2203, 16
    %v3743 = vrot.slane %v3741, 3
    %v3744 = vshll.u32 %v2203, 16
    %v3746 = vrot.slane %v3744, 4
    %v3747 = vor.u32 %v3743, %v3746
    %v3748 = vsel %vm2699, %v3739, %v3747
    %v3750 = vshrl.u32 %v2449, 16
    %v3752 = vrot.slane %v3750, 3
    %v3753 = vshll.u32 %v2449, 16
    %v3755 = vrot.slane %v3753, 4
    %v3756 = vor.u32 %v3752, %v3755
    %v3757 = vsel %vm2699, %v3756, %v3756
    %v3759 = vshrl.u32 %v2675, 16
    %v3761 = vrot.slane %v3759, 3
    %v3762 = vshll.u32 %v2675, 16
    %v3764 = vrot.slane %v3762, 4
    %v3765 = vor.u32 %v3761, %v3764
    %v3767 = vshrl.u32 %v2677, 16
    %v3769 = vrot.slane %v3767, 3
    %v3770 = vshll.u32 %v2677, 16
    %v3772 = vrot.slane %v3770, 4
    %v3773 = vor.u32 %v3769, %v3772
    %v3774 = vsel %vm2699, %v3765, %v3773
    %v3776 = vshrl.u32 %v2204, 16
    %v3778 = vrot.slane %v3776, 3
    %v3779 = vshll.u32 %v2204, 16
    %v3781 = vrot.slane %v3779, 4
    %v3782 = vor.u32 %v3778, %v3781
    %v3784 = vshrl.u32 %v2205, 16
    %v3786 = vrot.slane %v3784, 3
    %v3787 = vshll.u32 %v2205, 16
    %v3789 = vrot.slane %v3787, 4
    %v3790 = vor.u32 %v3786, %v3789
    %v3791 = vsel %vm2699, %v3782, %v3790
    %v3793 = vshrl.u32 %v2457, 16
    %v3795 = vrot.slane %v3793, 3
    %v3796 = vshll.u32 %v2457, 16
    %v3798 = vrot.slane %v3796, 4
    %v3799 = vor.u32 %v3795, %v3798
    %v3800 = vsel %vm2699, %v3799, %v3799
    %v3802 = vshrl.u32 %v2678, 16
    %v3804 = vrot.slane %v3802, 3
    %v3805 = vshll.u32 %v2678, 16
    %v3807 = vrot.slane %v3805, 4
    %v3808 = vor.u32 %v3804, %v3807
    %v3810 = vshrl.u32 %v2680, 16
    %v3812 = vrot.slane %v3810, 3
    %v3813 = vshll.u32 %v2680, 16
    %v3815 = vrot.slane %v3813, 4
    %v3816 = vor.u32 %v3812, %v3815
    %v3817 = vsel %vm2699, %v3808, %v3816
    %v3819 = vshrl.u32 %v2206, 16
    %v3821 = vrot.slane %v3819, 3
    %v3822 = vshll.u32 %v2206, 16
    %v3824 = vrot.slane %v3822, 4
    %v3825 = vor.u32 %v3821, %v3824
    %v3827 = vshrl.u32 %v2207, 16
    %v3829 = vrot.slane %v3827, 3
    %v3830 = vshll.u32 %v2207, 16
    %v3832 = vrot.slane %v3830, 4
    %v3833 = vor.u32 %v3829, %v3832
    %v3834 = vsel %vm2699, %v3825, %v3833
    %v3836 = vshrl.u32 %v2465, 16
    %v3838 = vrot.slane %v3836, 3
    %v3839 = vshll.u32 %v2465, 16
    %v3841 = vrot.slane %v3839, 4
    %v3842 = vor.u32 %v3838, %v3841
    %v3843 = vsel %vm2699, %v3842, %v3842
    %v3845 = vshrl.u32 %v2681, 16
    %v3847 = vrot.slane %v3845, 3
    %v3848 = vshll.u32 %v2681, 16
    %v3850 = vrot.slane %v3848, 4
    %v3851 = vor.u32 %v3847, %v3850
    %v3853 = vshrl.u32 %v2683, 16
    %v3855 = vrot.slane %v3853, 3
    %v3856 = vshll.u32 %v2683, 16
    %v3858 = vrot.slane %v3856, 4
    %v3859 = vor.u32 %v3855, %v3858
    %v3860 = vsel %vm2699, %v3851, %v3859
    %v3862 = vshrl.u32 %v2208, 16
    %v3864 = vrot.slane %v3862, 3
    %v3865 = vshll.u32 %v2208, 16
    %v3867 = vrot.slane %v3865, 4
    %v3868 = vor.u32 %v3864, %v3867
    %v3870 = vshrl.u32 %v2209, 16
    %v3872 = vrot.slane %v3870, 3
    %v3873 = vshll.u32 %v2209, 16
    %v3875 = vrot.slane %v3873, 4
    %v3876 = vor.u32 %v3872, %v3875
    %v3877 = vsel %vm2699, %v3868, %v3876
    %v3879 = vshrl.u32 %v2473, 16
    %v3881 = vrot.slane %v3879, 3
    %v3882 = vshll.u32 %v2473, 16
    %v3884 = vrot.slane %v3882, 4
    %v3885 = vor.u32 %v3881, %v3884
    %v3886 = vsel %vm2699, %v3885, %v3885
    %v3888 = vshrl.u32 %v2684, 16
    %v3890 = vrot.slane %v3888, 3
    %v3891 = vshll.u32 %v2684, 16
    %v3893 = vrot.slane %v3891, 4
    %v3894 = vor.u32 %v3890, %v3893
    %v3896 = vshrl.u32 %v2686, 16
    %v3898 = vrot.slane %v3896, 3
    %v3899 = vshll.u32 %v2686, 16
    %v3901 = vrot.slane %v3899, 4
    %v3902 = vor.u32 %v3898, %v3901
    %v3903 = vsel %vm2699, %v3894, %v3902
    %v3905 = vshrl.u32 %v2210, 16
    %v3907 = vrot.slane %v3905, 3
    %v3908 = vshll.u32 %v2210, 16
    %v3910 = vrot.slane %v3908, 4
    %v3911 = vor.u32 %v3907, %v3910
    %v3913 = vshrl.u32 %v2211, 16
    %v3915 = vrot.slane %v3913, 3
    %v3916 = vshll.u32 %v2211, 16
    %v3918 = vrot.slane %v3916, 4
    %v3919 = vor.u32 %v3915, %v3918
    %v3920 = vsel %vm2699, %v3911, %v3919
    %v3922 = vshrl.u32 %v2481, 16
    %v3924 = vrot.slane %v3922, 3
    %v3925 = vshll.u32 %v2481, 16
    %v3927 = vrot.slane %v3925, 4
    %v3928 = vor.u32 %v3924, %v3927
    %v3929 = vsel %vm2699, %v3928, %v3928
    %v3931 = vshrl.u32 %v2687, 16
    %v3933 = vrot.slane %v3931, 3
    %v3934 = vshll.u32 %v2687, 16
    %v3936 = vrot.slane %v3934, 4
    %v3937 = vor.u32 %v3933, %v3936
    %v3939 = vshrl.u32 %v2689, 16
    %v3941 = vrot.slane %v3939, 3
    %v3942 = vshll.u32 %v2689, 16
    %v3944 = vrot.slane %v3942, 4
    %v3945 = vor.u32 %v3941, %v3944
    %v3946 = vsel %vm2699, %v3937, %v3945
    %v3948 = vshrl.u32 %v2212, 16
    %v3950 = vrot.slane %v3948, 3
    %v3951 = vshll.u32 %v2212, 16
    %v3953 = vrot.slane %v3951, 4
    %v3954 = vor.u32 %v3950, %v3953
    %v3956 = vshrl.u32 %v2213, 16
    %v3958 = vrot.slane %v3956, 3
    %v3959 = vshll.u32 %v2213, 16
    %v3961 = vrot.slane %v3959, 4
    %v3962 = vor.u32 %v3958, %v3961
    %v3963 = vsel %vm2699, %v3954, %v3962
    %v3965 = vshrl.u32 %v2489, 16
    %v3967 = vrot.slane %v3965, 3
    %v3968 = vshll.u32 %v2489, 16
    %v3970 = vrot.slane %v3968, 4
    %v3971 = vor.u32 %v3967, %v3970
    %v3972 = vsel %vm2699, %v3971, %v3971
    %v3974 = vshrl.u32 %v2690, 16
    %v3976 = vrot.slane %v3974, 3
    %v3977 = vshll.u32 %v2690, 16
    %v3979 = vrot.slane %v3977, 4
    %v3980 = vor.u32 %v3976, %v3979
    %v3982 = vshrl.u32 %v2692, 16
    %v3984 = vrot.slane %v3982, 3
    %v3985 = vshll.u32 %v2692, 16
    %v3987 = vrot.slane %v3985, 4
    %v3988 = vor.u32 %v3984, %v3987
    %v3989 = vsel %vm2699, %v3980, %v3988
    %v3991 = vshrl.u32 %v2214, 16
    %v3993 = vrot.slane %v3991, 3
    %v3994 = vshll.u32 %v2214, 16
    %v3996 = vrot.slane %v3994, 4
    %v3997 = vor.u32 %v3993, %v3996
    %v3999 = vshrl.u32 %v2215, 16
    %v4001 = vrot.slane %v3999, 3
    %v4002 = vshll.u32 %v2215, 16
    %v4004 = vrot.slane %v4002, 4
    %v4005 = vor.u32 %v4001, %v4004
    %v4006 = vsel %vm2699, %v3997, %v4005
    %v4008 = vshrl.u32 %v2497, 16
    %v4010 = vrot.slane %v4008, 3
    %v4011 = vshll.u32 %v2497, 16
    %v4013 = vrot.slane %v4011, 4
    %v4014 = vor.u32 %v4010, %v4013
    %v4015 = vsel %vm2699, %v4014, %v4014
    %v4017 = vshrl.u32 %v2693, 16
    %v4019 = vrot.slane %v4017, 3
    %v4020 = vshll.u32 %v2693, 16
    %v4022 = vrot.slane %v4020, 4
    %v4023 = vor.u32 %v4019, %v4022
    %v4025 = vshrl.u32 %v2695, 16
    %v4027 = vrot.slane %v4025, 3
    %v4028 = vshll.u32 %v2695, 16
    %v4030 = vrot.slane %v4028, 4
    %v4031 = vor.u32 %v4027, %v4030
    %v4032 = vsel %vm2699, %v4023, %v4031
    %v4034 = vshrl.u32 %v2216, 16
    %v4036 = vrot.slane %v4034, 3
    %v4037 = vshll.u32 %v2216, 16
    %v4039 = vrot.slane %v4037, 4
    %v4040 = vor.u32 %v4036, %v4039
    %v4042 = vshrl.u32 %v2217, 16
    %v4044 = vrot.slane %v4042, 3
    %v4045 = vshll.u32 %v2217, 16
    %v4047 = vrot.slane %v4045, 4
    %v4048 = vor.u32 %v4044, %v4047
    %v4049 = vsel %vm2699, %v4040, %v4048
    %v4051 = vshrl.u32 %v2505, 16
    %v4053 = vrot.slane %v4051, 3
    %v4054 = vshll.u32 %v2505, 16
    %v4056 = vrot.slane %v4054, 4
    %v4057 = vor.u32 %v4053, %v4056
    %v4058 = vsel %vm2699, %v4057, %v4057
    %v4060 = vshrl.u32 %v2696, 16
    %v4062 = vrot.slane %v4060, 3
    %v4063 = vshll.u32 %v2696, 16
    %v4065 = vrot.slane %v4063, 4
    %v4066 = vor.u32 %v4062, %v4065
    %v4068 = vshrl.u32 %v2698, 16
    %v4070 = vrot.slane %v4068, 3
    %v4071 = vshll.u32 %v2698, 16
    %v4073 = vrot.slane %v4071, 4
    %v4074 = vor.u32 %v4070, %v4073
    %v4075 = vsel %vm2699, %v4066, %v4074
    %v4178 = vunpack.c.l.b16 %v1738
    %v4179 = vunpack.c.l.b16 %v1739
    %v4180 = vunpack.c.l.b16 %v1740
    %v4181 = vunpack.c.l.b16 %v1810
    %v4182 = vunpack.c.l.b16 %v1811
    %v4183 = vunpack.c.l.b16 %v1812
    %v4184 = vpack.c.b16 %v4179, %v4178
    %v4185 = vpack.c.b16 %v4180, %v4180
    %v4186 = vpack.c.b16 %v4182, %v4181
    %v4187 = vpack.c.b16 %v4183, %v4183
    %v4188 = vpack.c.b16 %v4180, %v4179
    %v4189 = vpack.c.b16 %v4183, %v4182
    %v4191 = vshrl.u32 %v4188, 16
    %v4193 = vrot.slane %v4191, 4
    %v4194 = vshll.u32 %v4188, 16
    %v4196 = vrot.slane %v4194, 5
    %v4197 = vor.u32 %v4193, %v4196
    %v4199 = vshrl.u32 %v4189, 16
    %v4201 = vrot.slane %v4199, 4
    %v4202 = vshll.u32 %v4189, 16
    %v4204 = vrot.slane %v4202, 5
    %v4205 = vor.u32 %v4201, %v4204
    %v4208 = vunpack.c.l.b16 %v1741
    %v4209 = vunpack.c.l.b16 %v1813
    %v4210 = vpack.c.b16 %v4208, %v4208
    %v4211 = vpack.c.b16 %v4209, %v4209
    %v4212 = vrot.slane %v4188, 5
    %v4213 = vrot.slane %v4210, 5
    %v4214 = vsel %vm2602, %v4212, %v4213
    %v4215 = vrot.slane %v4189, 5
    %v4216 = vrot.slane %v4211, 5
    %v4217 = vsel %vm2602, %v4215, %v4216
    %v4219 = vshrl.u32 %v4184, 16
    %v4221 = vrot.slane %v4219, 3
    %v4222 = vshll.u32 %v4184, 16
    %v4224 = vrot.slane %v4222, 4
    %v4225 = vor.u32 %v4221, %v4224
    %v4227 = vshrl.u32 %v4185, 16
    %v4229 = vrot.slane %v4227, 3
    %v4230 = vshll.u32 %v4185, 16
    %v4232 = vrot.slane %v4230, 4
    %v4233 = vor.u32 %v4229, %v4232
    %v4234 = vsel %vm2699, %v4225, %v4233
    %v4236 = vshrl.u32 %v4197, 16
    %v4238 = vrot.slane %v4236, 3
    %v4239 = vshll.u32 %v4197, 16
    %v4241 = vrot.slane %v4239, 4
    %v4242 = vor.u32 %v4238, %v4241
    %v4243 = vsel %vm2699, %v4242, %v4242
    %v4245 = vshrl.u32 %v4212, 16
    %v4247 = vrot.slane %v4245, 3
    %v4248 = vshll.u32 %v4212, 16
    %v4250 = vrot.slane %v4248, 4
    %v4251 = vor.u32 %v4247, %v4250
    %v4253 = vshrl.u32 %v4214, 16
    %v4255 = vrot.slane %v4253, 3
    %v4256 = vshll.u32 %v4214, 16
    %v4258 = vrot.slane %v4256, 4
    %v4259 = vor.u32 %v4255, %v4258
    %v4260 = vsel %vm2699, %v4251, %v4259
    %v4262 = vshrl.u32 %v4186, 16
    %v4264 = vrot.slane %v4262, 3
    %v4265 = vshll.u32 %v4186, 16
    %v4267 = vrot.slane %v4265, 4
    %v4268 = vor.u32 %v4264, %v4267
    %v4270 = vshrl.u32 %v4187, 16
    %v4272 = vrot.slane %v4270, 3
    %v4273 = vshll.u32 %v4187, 16
    %v4275 = vrot.slane %v4273, 4
    %v4276 = vor.u32 %v4272, %v4275
    %v4277 = vsel %vm2699, %v4268, %v4276
    %v4279 = vshrl.u32 %v4205, 16
    %v4281 = vrot.slane %v4279, 3
    %v4282 = vshll.u32 %v4205, 16
    %v4284 = vrot.slane %v4282, 4
    %v4285 = vor.u32 %v4281, %v4284
    %v4286 = vsel %vm2699, %v4285, %v4285
    %v4288 = vshrl.u32 %v4215, 16
    %v4290 = vrot.slane %v4288, 3
    %v4291 = vshll.u32 %v4215, 16
    %v4293 = vrot.slane %v4291, 4
    %v4294 = vor.u32 %v4290, %v4293
    %v4296 = vshrl.u32 %v4217, 16
    %v4298 = vrot.slane %v4296, 3
    %v4299 = vshll.u32 %v4217, 16
    %v4301 = vrot.slane %v4299, 4
    %v4302 = vor.u32 %v4298, %v4301
    %v4303 = vsel %vm2699, %v4294, %v4302
    %v4358 = vunpack.c.l.b16 %v1866
    %v4359 = vunpack.c.l.b16 %v1867
    %v4360 = vunpack.c.l.b16 %v1868
    %v4361 = vunpack.c.l.b16 %v1869
    %v4362 = vunpack.c.l.b16 %v1870
    %v4363 = vunpack.c.l.b16 %v1871
    %v4364 = vunpack.c.l.b16 %v1872
    %v4365 = vunpack.c.l.b16 %v1873
    %v4366 = vunpack.c.l.b16 %v1874
    %v4367 = vunpack.c.l.b16 %v1875
    %v4368 = vunpack.c.l.b16 %v1876
    %v4369 = vunpack.c.l.b16 %v1877
    %v4370 = vunpack.c.l.b16 %v1878
    %v4371 = vunpack.c.l.b16 %v1879
    %v4372 = vunpack.c.l.b16 %v1880
    %v4373 = vunpack.c.l.b16 %v1881
    %v4374 = vunpack.c.l.b16 %v1882
    %v4375 = vunpack.c.l.b16 %v1883
    %v4376 = vunpack.c.l.b16 %v1884
    %v4377 = vunpack.c.l.b16 %v1885
    %v4378 = vunpack.c.l.b16 %v1886
    %v4379 = vunpack.c.l.b16 %v1887
    %v4380 = vunpack.c.l.b16 %v1888
    %v4381 = vunpack.c.l.b16 %v1889
    %v4382 = vunpack.c.l.b16 %v1890
    %v4383 = vunpack.c.l.b16 %v1891
    %v4384 = vunpack.c.l.b16 %v1892
    %v4385 = vunpack.c.l.b16 %v1893
    %v4386 = vunpack.c.l.b16 %v1894
    %v4387 = vunpack.c.l.b16 %v1895
    %v4388 = vunpack.c.l.b16 %v1896
    %v4389 = vunpack.c.l.b16 %v1897
    %v4390 = vunpack.c.l.b16 %v1898
    %v4391 = vunpack.c.l.b16 %v1899
    %v4392 = vunpack.c.l.b16 %v1900
    %v4393 = vunpack.c.l.b16 %v1901
    %v4394 = vunpack.c.l.b16 %v1902
    %v4395 = vunpack.c.l.b16 %v1903
    %v4396 = vunpack.c.l.b16 %v1904
    %v4397 = vunpack.c.l.b16 %v1905
    %v4398 = vunpack.c.l.b16 %v1906
    %v4399 = vunpack.c.l.b16 %v1907
    %v4400 = vunpack.c.l.b16 %v1908
    %v4401 = vunpack.c.l.b16 %v1909
    %v4402 = vunpack.c.l.b16 %v1910
    %v4403 = vunpack.c.l.b16 %v1911
    %v4404 = vunpack.c.l.b16 %v1912
    %v4405 = vunpack.c.l.b16 %v1913
    %v4406 = vpack.c.b16 %v4359, %v4358
    %v4407 = vpack.c.b16 %v4361, %v4360
    %v4408 = vpack.c.b16 %v4363, %v4362
    %v4409 = vpack.c.b16 %v4365, %v4364
    %v4410 = vpack.c.b16 %v4367, %v4366
    %v4411 = vpack.c.b16 %v4369, %v4368
    %v4412 = vpack.c.b16 %v4371, %v4370
    %v4413 = vpack.c.b16 %v4373, %v4372
    %v4414 = vpack.c.b16 %v4375, %v4374
    %v4415 = vpack.c.b16 %v4377, %v4376
    %v4416 = vpack.c.b16 %v4379, %v4378
    %v4417 = vpack.c.b16 %v4381, %v4380
    %v4418 = vpack.c.b16 %v4383, %v4382
    %v4419 = vpack.c.b16 %v4385, %v4384
    %v4420 = vpack.c.b16 %v4387, %v4386
    %v4421 = vpack.c.b16 %v4389, %v4388
    %v4422 = vpack.c.b16 %v4391, %v4390
    %v4423 = vpack.c.b16 %v4393, %v4392
    %v4424 = vpack.c.b16 %v4395, %v4394
    %v4425 = vpack.c.b16 %v4397, %v4396
    %v4426 = vpack.c.b16 %v4399, %v4398
    %v4427 = vpack.c.b16 %v4401, %v4400
    %v4428 = vpack.c.b16 %v4403, %v4402
    %v4429 = vpack.c.b16 %v4405, %v4404
    %4454 = vmatprep.subr.bf16.mxu0 0
    %4455 = vmatpush1.bf16.msra.mxu0 %v4406
    %4456 = vmatprep.subr.bf16.mxu0 0
    %4457 = vmatpush1.bf16.msra.mxu0 %v4407
    %4458 = vmatprep.subr.bf16.mxu0 0
    %4459 = vmatpush1.bf16.msra.mxu0 %v4408
    %4460 = vmatprep.subr.bf16.mxu0 0
    %4461 = vmatpush1.bf16.msra.mxu0 %v4409
    %4462 = vmatprep.subr.bf16.mxu0 0
    %4463 = vmatpush1.bf16.msra.mxu0 %v4410
    %4464 = vmatprep.subr.bf16.mxu0 0
    %4465 = vmatpush1.bf16.msra.mxu0 %v4411
    %4466 = vmatprep.subr.bf16.mxu0 0
    %4467 = vmatpush1.bf16.msra.mxu0 %v4412
    %4468 = vmatprep.subr.bf16.mxu0 0
    %4469 = vmatpush1.bf16.msra.mxu0 %v4413
    %4470 = vmatprep.subr.bf16.mxu0 0
    %4471 = vmatpush1.bf16.msra.mxu0 %v4414
    %4472 = vmatprep.subr.bf16.mxu0 0
    %4473 = vmatpush1.bf16.msra.mxu0 %v4415
    %4474 = vmatprep.subr.bf16.mxu0 0
    %4475 = vmatpush1.bf16.msra.mxu0 %v4416
    %4476 = vmatprep.subr.bf16.mxu0 0
    %4477 = vmatpush1.bf16.msra.mxu0 %v4417
    %4478 = vmatprep.subr.bf16.mxu0 0
    %4479 = vmatpush1.bf16.msra.mxu0 %v4418
    %4480 = vmatprep.subr.bf16.mxu0 0
    %4481 = vmatpush1.bf16.msra.mxu0 %v4419
    %4482 = vmatprep.subr.bf16.mxu0 0
    %4483 = vmatpush1.bf16.msra.mxu0 %v4420
    %4484 = vmatprep.subr.bf16.mxu0 0
    %4485 = vmatpush1.bf16.msra.mxu0 %v4421
    %4486 = vmatprep.mubr.bf16.mxu0 %v2768
    %4487 = vmatmul.mubr.bf16.gmra.mrb[0].mxu0 %v2759
    %v4488 = vpop.f32.mrb[0].mxu0
    %v4489 = vadd.f32 0.0, %v4488
    %v4490 = vpop.f32.mrb[0].mxu0
    %v4491 = vpop.f32.mrb[0].mxu0
    %v4492 = vadd.f32 0.0, %v4491
    %v4493 = vpop.f32.mrb[0].mxu0
    %4494 = vmatprep.mubr.bf16.mxu0 %v2811
    %4495 = vmatmul.mubr.bf16.gmra.mrb[0].mxu0 %v2802
    %v4496 = vpop.f32.mrb[0].mxu0
    %v4497 = vadd.f32 0.0, %v4496
    %v4498 = vpop.f32.mrb[0].mxu0
    %v4499 = vpop.f32.mrb[0].mxu0
    %v4500 = vadd.f32 0.0, %v4499
    %v4501 = vpop.f32.mrb[0].mxu0
    %4502 = vmatprep.mubr.bf16.mxu0 %v2854
    %4503 = vmatmul.mubr.bf16.gmra.mrb[0].mxu0 %v2845
    %v4504 = vpop.f32.mrb[0].mxu0
    %v4505 = vadd.f32 0.0, %v4504
    %v4506 = vpop.f32.mrb[0].mxu0
    %v4507 = vpop.f32.mrb[0].mxu0
    %v4508 = vadd.f32 0.0, %v4507
    %v4509 = vpop.f32.mrb[0].mxu0
    %4510 = vmatprep.mubr.bf16.mxu0 %v2897
    %4511 = vmatmul.mubr.bf16.gmra.mrb[0].mxu0 %v2888
    %v4512 = vpop.f32.mrb[0].mxu0
    %v4513 = vadd.f32 0.0, %v4512
    %v4514 = vpop.f32.mrb[0].mxu0
    %v4515 = vpop.f32.mrb[0].mxu0
    %v4516 = vadd.f32 0.0, %v4515
    %v4517 = vpop.f32.mrb[0].mxu0
    %4518 = vmatprep.mubr.bf16.mxu0 %v2940
    %4519 = vmatmul.mubr.bf16.gmra.mrb[0].mxu0 %v2931
    %v4520 = vpop.f32.mrb[0].mxu0
    %v4521 = vadd.f32 0.0, %v4520
    %v4522 = vpop.f32.mrb[0].mxu0
    %v4523 = vpop.f32.mrb[0].mxu0
    %v4524 = vadd.f32 0.0, %v4523
    %v4525 = vpop.f32.mrb[0].mxu0
    %4526 = vmatprep.mubr.bf16.mxu0 %v2983
    %4527 = vmatmul.mubr.bf16.gmra.mrb[0].mxu0 %v2974
    %v4528 = vpop.f32.mrb[0].mxu0
    %v4529 = vadd.f32 0.0, %v4528
    %v4530 = vpop.f32.mrb[0].mxu0
    %v4531 = vpop.f32.mrb[0].mxu0
    %v4532 = vadd.f32 0.0, %v4531
    %v4533 = vpop.f32.mrb[0].mxu0
    %4534 = vmatprep.mubr.bf16.mxu0 %v3026
    %4535 = vmatmul.mubr.bf16.gmra.mrb[0].mxu0 %v3017
    %v4536 = vpop.f32.mrb[0].mxu0
    %v4537 = vadd.f32 0.0, %v4536
    %v4538 = vpop.f32.mrb[0].mxu0
    %v4539 = vpop.f32.mrb[0].mxu0
    %v4540 = vadd.f32 0.0, %v4539
    %v4541 = vpop.f32.mrb[0].mxu0
    %4542 = vmatprep.mubr.bf16.mxu0 %v3069
    %4543 = vmatmul.mubr.bf16.gmra.mrb[0].mxu0 %v3060
    %v4544 = vpop.f32.mrb[0].mxu0
    %v4545 = vadd.f32 0.0, %v4544
    %v4546 = vpop.f32.mrb[0].mxu0
    %v4547 = vpop.f32.mrb[0].mxu0
    %v4548 = vadd.f32 0.0, %v4547
    %v4549 = vpop.f32.mrb[0].mxu0
    %4550 = vmatprep.mubr.bf16.mxu0 %v3112
    %4551 = vmatmul.mubr.bf16.gmra.mrb[0].mxu0 %v3103
    %v4552 = vpop.f32.mrb[0].mxu0
    %v4553 = vadd.f32 0.0, %v4552
    %v4554 = vpop.f32.mrb[0].mxu0
    %v4555 = vpop.f32.mrb[0].mxu0
    %v4556 = vadd.f32 0.0, %v4555
    %v4557 = vpop.f32.mrb[0].mxu0
    %4558 = vmatprep.mubr.bf16.mxu0 %v3155
    %4559 = vmatmul.mubr.bf16.gmra.mrb[0].mxu0 %v3146
    %v4560 = vpop.f32.mrb[0].mxu0
    %v4561 = vadd.f32 0.0, %v4560
    %v4562 = vpop.f32.mrb[0].mxu0
    %v4563 = vpop.f32.mrb[0].mxu0
    %v4564 = vadd.f32 0.0, %v4563
    %v4565 = vpop.f32.mrb[0].mxu0
    %4566 = vmatprep.mubr.bf16.mxu0 %v3198
    %4567 = vmatmul.mubr.bf16.gmra.mrb[0].mxu0 %v3189
    %v4568 = vpop.f32.mrb[0].mxu0
    %v4569 = vadd.f32 0.0, %v4568
    %v4570 = vpop.f32.mrb[0].mxu0
    %v4571 = vpop.f32.mrb[0].mxu0
    %v4572 = vadd.f32 0.0, %v4571
    %v4573 = vpop.f32.mrb[0].mxu0
    %4574 = vmatprep.mubr.bf16.mxu0 %v3241
    %4575 = vmatmul.mubr.bf16.gmra.mrb[0].mxu0 %v3232
    %v4576 = vpop.f32.mrb[0].mxu0
    %v4577 = vadd.f32 0.0, %v4576
    %v4578 = vpop.f32.mrb[0].mxu0
    %v4579 = vpop.f32.mrb[0].mxu0
    %v4580 = vadd.f32 0.0, %v4579
    %v4581 = vpop.f32.mrb[0].mxu0
    %4582 = vmatprep.mubr.bf16.mxu0 %v3284
    %4583 = vmatmul.mubr.bf16.gmra.mrb[0].mxu0 %v3275
    %v4584 = vpop.f32.mrb[0].mxu0
    %v4585 = vadd.f32 0.0, %v4584
    %v4586 = vpop.f32.mrb[0].mxu0
    %v4587 = vpop.f32.mrb[0].mxu0
    %v4588 = vadd.f32 0.0, %v4587
    %v4589 = vpop.f32.mrb[0].mxu0
    %4590 = vmatprep.mubr.bf16.mxu0 %v3327
    %4591 = vmatmul.mubr.bf16.gmra.mrb[0].mxu0 %v3318
    %v4592 = vpop.f32.mrb[0].mxu0
    %v4593 = vadd.f32 0.0, %v4592
    %v4594 = vpop.f32.mrb[0].mxu0
    %v4595 = vpop.f32.mrb[0].mxu0
    %v4596 = vadd.f32 0.0, %v4595
    %v4597 = vpop.f32.mrb[0].mxu0
    %4598 = vmatprep.mubr.bf16.mxu0 %v3370
    %4599 = vmatmul.mubr.bf16.gmra.mrb[0].mxu0 %v3361
    %v4600 = vpop.f32.mrb[0].mxu0
    %v4601 = vadd.f32 0.0, %v4600
    %v4602 = vpop.f32.mrb[0].mxu0
    %v4603 = vpop.f32.mrb[0].mxu0
    %v4604 = vadd.f32 0.0, %v4603
    %v4605 = vpop.f32.mrb[0].mxu0
    %4606 = vmatprep.mubr.bf16.mxu0 %v4243
    %4607 = vmatmul.mubr.bf16.gmra.mrb[0].mxu0 %v4234
    %v4608 = vpop.f32.mrb[0].mxu0
    %v4609 = vadd.f32 0.0, %v4608
    %v4610 = vpop.f32.mrb[0].mxu0
    %v4611 = vpop.f32.mrb[0].mxu0
    %v4612 = vadd.f32 0.0, %v4611
    %v4613 = vpop.f32.mrb[0].mxu0
    %4614 = vmatprep.mubr.bf16.mxu0 %v3456
    %4615 = vmatmul.mubr.bf16.gmra.mrb[0].mxu0 %v3447
    %v4616 = vpop.f32.mrb[0].mxu0
    %v4617 = vadd.f32 0.0, %v4616
    %v4618 = vpop.f32.mrb[0].mxu0
    %v4619 = vpop.f32.mrb[0].mxu0
    %v4620 = vadd.f32 0.0, %v4619
    %v4621 = vpop.f32.mrb[0].mxu0
    %4622 = vmatprep.mubr.bf16.mxu0 %v3499
    %4623 = vmatmul.mubr.bf16.gmra.mrb[0].mxu0 %v3490
    %v4624 = vpop.f32.mrb[0].mxu0
    %v4625 = vadd.f32 0.0, %v4624
    %v4626 = vpop.f32.mrb[0].mxu0
    %v4627 = vpop.f32.mrb[0].mxu0
    %v4628 = vadd.f32 0.0, %v4627
    %v4629 = vpop.f32.mrb[0].mxu0
    %4630 = vmatprep.mubr.bf16.mxu0 %v3542
    %4631 = vmatmul.mubr.bf16.gmra.mrb[0].mxu0 %v3533
    %v4632 = vpop.f32.mrb[0].mxu0
    %v4633 = vadd.f32 0.0, %v4632
    %v4634 = vpop.f32.mrb[0].mxu0
    %v4635 = vpop.f32.mrb[0].mxu0
    %v4636 = vadd.f32 0.0, %v4635
    %v4637 = vpop.f32.mrb[0].mxu0
    %4638 = vmatprep.mubr.bf16.mxu0 %v3585
    %4639 = vmatmul.mubr.bf16.gmra.mrb[0].mxu0 %v3576
    %v4640 = vpop.f32.mrb[0].mxu0
    %v4641 = vadd.f32 0.0, %v4640
    %v4642 = vpop.f32.mrb[0].mxu0
    %v4643 = vpop.f32.mrb[0].mxu0
    %v4644 = vadd.f32 0.0, %v4643
    %v4645 = vpop.f32.mrb[0].mxu0
    %4646 = vmatprep.mubr.bf16.mxu0 %v3628
    %4647 = vmatmul.mubr.bf16.gmra.mrb[0].mxu0 %v3619
    %v4648 = vpop.f32.mrb[0].mxu0
    %v4649 = vadd.f32 0.0, %v4648
    %v4650 = vpop.f32.mrb[0].mxu0
    %v4651 = vpop.f32.mrb[0].mxu0
    %v4652 = vadd.f32 0.0, %v4651
    %v4653 = vpop.f32.mrb[0].mxu0
    %4654 = vmatprep.mubr.bf16.mxu0 %v3671
    %4655 = vmatmul.mubr.bf16.gmra.mrb[0].mxu0 %v3662
    %v4656 = vpop.f32.mrb[0].mxu0
    %v4657 = vadd.f32 0.0, %v4656
    %v4658 = vpop.f32.mrb[0].mxu0
    %v4659 = vpop.f32.mrb[0].mxu0
    %v4660 = vadd.f32 0.0, %v4659
    %v4661 = vpop.f32.mrb[0].mxu0
    %4662 = vmatprep.mubr.bf16.mxu0 %v3714
    %4663 = vmatmul.mubr.bf16.gmra.mrb[0].mxu0 %v3705
    %v4664 = vpop.f32.mrb[0].mxu0
    %v4665 = vadd.f32 0.0, %v4664
    %v4666 = vpop.f32.mrb[0].mxu0
    %v4667 = vpop.f32.mrb[0].mxu0
    %v4668 = vadd.f32 0.0, %v4667
    %v4669 = vpop.f32.mrb[0].mxu0
    %4670 = vmatprep.mubr.bf16.mxu0 %v3757
    %4671 = vmatmul.mubr.bf16.gmra.mrb[0].mxu0 %v3748
    %v4672 = vpop.f32.mrb[0].mxu0
    %v4673 = vadd.f32 0.0, %v4672
    %v4674 = vpop.f32.mrb[0].mxu0
    %v4675 = vpop.f32.mrb[0].mxu0
    %v4676 = vadd.f32 0.0, %v4675
    %v4677 = vpop.f32.mrb[0].mxu0
    %4678 = vmatprep.mubr.bf16.mxu0 %v3800
    %4679 = vmatmul.mubr.bf16.gmra.mrb[0].mxu0 %v3791
    %v4680 = vpop.f32.mrb[0].mxu0
    %v4681 = vadd.f32 0.0, %v4680
    %v4682 = vpop.f32.mrb[0].mxu0
    %v4683 = vpop.f32.mrb[0].mxu0
    %v4684 = vadd.f32 0.0, %v4683
    %v4685 = vpop.f32.mrb[0].mxu0
    %4686 = vmatprep.mubr.bf16.mxu0 %v3843
    %4687 = vmatmul.mubr.bf16.gmra.mrb[0].mxu0 %v3834
    %v4688 = vpop.f32.mrb[0].mxu0
    %v4689 = vadd.f32 0.0, %v4688
    %v4690 = vpop.f32.mrb[0].mxu0
    %v4691 = vpop.f32.mrb[0].mxu0
    %v4692 = vadd.f32 0.0, %v4691
    %v4693 = vpop.f32.mrb[0].mxu0
    %4694 = vmatprep.mubr.bf16.mxu0 %v3886
    %4695 = vmatmul.mubr.bf16.gmra.mrb[0].mxu0 %v3877
    %v4696 = vpop.f32.mrb[0].mxu0
    %v4697 = vadd.f32 0.0, %v4696
    %v4698 = vpop.f32.mrb[0].mxu0
    %v4699 = vpop.f32.mrb[0].mxu0
    %v4700 = vadd.f32 0.0, %v4699
    %v4701 = vpop.f32.mrb[0].mxu0
    %4702 = vmatprep.mubr.bf16.mxu0 %v3929
    %4703 = vmatmul.mubr.bf16.gmra.mrb[0].mxu0 %v3920
    %v4704 = vpop.f32.mrb[0].mxu0
    %v4705 = vadd.f32 0.0, %v4704
    %v4706 = vpop.f32.mrb[0].mxu0
    %v4707 = vpop.f32.mrb[0].mxu0
    %v4708 = vadd.f32 0.0, %v4707
    %v4709 = vpop.f32.mrb[0].mxu0
    %4710 = vmatprep.mubr.bf16.mxu0 %v3972
    %4711 = vmatmul.mubr.bf16.gmra.mrb[0].mxu0 %v3963
    %v4712 = vpop.f32.mrb[0].mxu0
    %v4713 = vadd.f32 0.0, %v4712
    %v4714 = vpop.f32.mrb[0].mxu0
    %v4715 = vpop.f32.mrb[0].mxu0
    %v4716 = vadd.f32 0.0, %v4715
    %v4717 = vpop.f32.mrb[0].mxu0
    %4718 = vmatprep.mubr.bf16.mxu0 %v4015
    %4719 = vmatmul.mubr.bf16.gmra.mrb[0].mxu0 %v4006
    %v4720 = vpop.f32.mrb[0].mxu0
    %v4721 = vadd.f32 0.0, %v4720
    %v4722 = vpop.f32.mrb[0].mxu0
    %v4723 = vpop.f32.mrb[0].mxu0
    %v4724 = vadd.f32 0.0, %v4723
    %v4725 = vpop.f32.mrb[0].mxu0
    %4726 = vmatprep.mubr.bf16.mxu0 %v4058
    %4727 = vmatmul.mubr.bf16.gmra.mrb[0].mxu0 %v4049
    %v4728 = vpop.f32.mrb[0].mxu0
    %v4729 = vadd.f32 0.0, %v4728
    %v4730 = vpop.f32.mrb[0].mxu0
    %v4731 = vpop.f32.mrb[0].mxu0
    %v4732 = vadd.f32 0.0, %v4731
    %v4733 = vpop.f32.mrb[0].mxu0
    %4734 = vmatprep.mubr.bf16.mxu0 %v4286
    %4735 = vmatmul.mubr.bf16.gmra.mrb[0].mxu0 %v4277
    %v4736 = vpop.f32.mrb[0].mxu0
    %v4737 = vadd.f32 0.0, %v4736
    %v4738 = vpop.f32.mrb[0].mxu0
    %v4739 = vpop.f32.mrb[0].mxu0
    %v4740 = vadd.f32 0.0, %v4739
    %v4741 = vpop.f32.mrb[0].mxu0
    %4742 = vdwg.mxu0
    %4743 = vmatprep.subr.bf16.mxu0 0
    %4744 = vmatpush1.bf16.msra.mxu0 %v4422
    %4745 = vmatprep.subr.bf16.mxu0 0
    %4746 = vmatpush1.bf16.msra.mxu0 %v4423
    %4747 = vmatprep.subr.bf16.mxu0 0
    %4748 = vmatpush1.bf16.msra.mxu0 %v4424
    %4749 = vmatprep.subr.bf16.mxu0 0
    %4750 = vmatpush1.bf16.msra.mxu0 %v4425
    %4751 = vmatprep.subr.bf16.mxu0 0
    %4752 = vmatpush1.bf16.msra.mxu0 %v4426
    %4753 = vmatprep.subr.bf16.mxu0 0
    %4754 = vmatpush1.bf16.msra.mxu0 %v4427
    %4755 = vmatprep.subr.bf16.mxu0 0
    %4756 = vmatpush1.bf16.msra.mxu0 %v4428
    %4757 = vmatprep.subr.bf16.mxu0 0
    %4758 = vmatpush1.bf16.msra.mxu0 %v4429
    %4759 = vmatprep.subr.bf16.mxu0 0
    %4760 = vmatpush1.bf16.msra.mxu0 0
    %4761 = vmatprep.subr.bf16.mxu0 0
    %4762 = vmatpush1.bf16.msra.mxu0 0
    %4763 = vmatprep.subr.bf16.mxu0 0
    %4764 = vmatpush1.bf16.msra.mxu0 0
    %4765 = vmatprep.subr.bf16.mxu0 0
    %4766 = vmatpush1.bf16.msra.mxu0 0
    %4767 = vmatprep.subr.bf16.mxu0 0
    %4768 = vmatpush1.bf16.msra.mxu0 0
    %4769 = vmatprep.subr.bf16.mxu0 0
    %4770 = vmatpush1.bf16.msra.mxu0 0
    %4771 = vmatprep.subr.bf16.mxu0 0
    %4772 = vmatpush1.bf16.msra.mxu0 0
    %4773 = vmatprep.subr.bf16.mxu0 0
    %4774 = vmatpush1.bf16.msra.mxu0 0
    %4775 = vmatprep.mubr.bf16.mxu0 0
    %4776 = vmatmul.mubr.bf16.gmra.mrb[0].mxu0 %v2785
    %v4777 = vpop.f32.mrb[0].mxu0
    %v4778 = vadd.f32 %v4489, %v4777
    %v4779 = vpop.f32.mrb[0].mxu0
    %v4780 = vpop.f32.mrb[0].mxu0
    %v4781 = vadd.f32 %v4492, %v4780
    %v4782 = vpop.f32.mrb[0].mxu0
    %4783 = vmatprep.mubr.bf16.mxu0 0
    %4784 = vmatmul.mubr.bf16.gmra.mrb[0].mxu0 %v2828
    %v4785 = vpop.f32.mrb[0].mxu0
    %v4786 = vadd.f32 %v4497, %v4785
    %v4787 = vpop.f32.mrb[0].mxu0
    %v4788 = vpop.f32.mrb[0].mxu0
    %v4789 = vadd.f32 %v4500, %v4788
    %v4790 = vpop.f32.mrb[0].mxu0
    %4791 = vmatprep.mubr.bf16.mxu0 0
    %4792 = vmatmul.mubr.bf16.gmra.mrb[0].mxu0 %v2871
    %v4793 = vpop.f32.mrb[0].mxu0
    %v4794 = vadd.f32 %v4505, %v4793
    %v4795 = vpop.f32.mrb[0].mxu0
    %v4796 = vpop.f32.mrb[0].mxu0
    %v4797 = vadd.f32 %v4508, %v4796
    %v4798 = vpop.f32.mrb[0].mxu0
    %4799 = vmatprep.mubr.bf16.mxu0 0
    %4800 = vmatmul.mubr.bf16.gmra.mrb[0].mxu0 %v2914
    %v4801 = vpop.f32.mrb[0].mxu0
    %v4802 = vadd.f32 %v4513, %v4801
    %v4803 = vpop.f32.mrb[0].mxu0
    %v4804 = vpop.f32.mrb[0].mxu0
    %v4805 = vadd.f32 %v4516, %v4804
    %v4806 = vpop.f32.mrb[0].mxu0
    %4807 = vmatprep.mubr.bf16.mxu0 0
    %4808 = vmatmul.mubr.bf16.gmra.mrb[0].mxu0 %v2957
    %v4809 = vpop.f32.mrb[0].mxu0
    %v4810 = vadd.f32 %v4521, %v4809
    %v4811 = vpop.f32.mrb[0].mxu0
    %v4812 = vpop.f32.mrb[0].mxu0
    %v4813 = vadd.f32 %v4524, %v4812
    %v4814 = vpop.f32.mrb[0].mxu0
    %4815 = vmatprep.mubr.bf16.mxu0 0
    %4816 = vmatmul.mubr.bf16.gmra.mrb[0].mxu0 %v3000
    %v4817 = vpop.f32.mrb[0].mxu0
    %v4818 = vadd.f32 %v4529, %v4817
    %v4819 = vpop.f32.mrb[0].mxu0
    %v4820 = vpop.f32.mrb[0].mxu0
    %v4821 = vadd.f32 %v4532, %v4820
    %v4822 = vpop.f32.mrb[0].mxu0
    %4823 = vmatprep.mubr.bf16.mxu0 0
    %4824 = vmatmul.mubr.bf16.gmra.mrb[0].mxu0 %v3043
    %v4825 = vpop.f32.mrb[0].mxu0
    %v4826 = vadd.f32 %v4537, %v4825
    %v4827 = vpop.f32.mrb[0].mxu0
    %v4828 = vpop.f32.mrb[0].mxu0
    %v4829 = vadd.f32 %v4540, %v4828
    %v4830 = vpop.f32.mrb[0].mxu0
    %4831 = vmatprep.mubr.bf16.mxu0 0
    %4832 = vmatmul.mubr.bf16.gmra.mrb[0].mxu0 %v3086
    %v4833 = vpop.f32.mrb[0].mxu0
    %v4834 = vadd.f32 %v4545, %v4833
    %v4835 = vpop.f32.mrb[0].mxu0
    %v4836 = vpop.f32.mrb[0].mxu0
    %v4837 = vadd.f32 %v4548, %v4836
    %v4838 = vpop.f32.mrb[0].mxu0
    %4839 = vmatprep.mubr.bf16.mxu0 0
    %4840 = vmatmul.mubr.bf16.gmra.mrb[0].mxu0 %v3129
    %v4841 = vpop.f32.mrb[0].mxu0
    %v4842 = vadd.f32 %v4553, %v4841
    %v4843 = vpop.f32.mrb[0].mxu0
    %v4844 = vpop.f32.mrb[0].mxu0
    %v4845 = vadd.f32 %v4556, %v4844
    %v4846 = vpop.f32.mrb[0].mxu0
    %4847 = vmatprep.mubr.bf16.mxu0 0
    %4848 = vmatmul.mubr.bf16.gmra.mrb[0].mxu0 %v3172
    %v4849 = vpop.f32.mrb[0].mxu0
    %v4850 = vadd.f32 %v4561, %v4849
    %v4851 = vpop.f32.mrb[0].mxu0
    %v4852 = vpop.f32.mrb[0].mxu0
    %v4853 = vadd.f32 %v4564, %v4852
    %v4854 = vpop.f32.mrb[0].mxu0
    %4855 = vmatprep.mubr.bf16.mxu0 0
    %4856 = vmatmul.mubr.bf16.gmra.mrb[0].mxu0 %v3215
    %v4857 = vpop.f32.mrb[0].mxu0
    %v4858 = vadd.f32 %v4569, %v4857
    %v4859 = vpop.f32.mrb[0].mxu0
    %v4860 = vpop.f32.mrb[0].mxu0
    %v4861 = vadd.f32 %v4572, %v4860
    %v4862 = vpop.f32.mrb[0].mxu0
    %4863 = vmatprep.mubr.bf16.mxu0 0
    %4864 = vmatmul.mubr.bf16.gmra.mrb[0].mxu0 %v3258
    %v4865 = vpop.f32.mrb[0].mxu0
    %v4866 = vadd.f32 %v4577, %v4865
    %v4867 = vpop.f32.mrb[0].mxu0
    %v4868 = vpop.f32.mrb[0].mxu0
    %v4869 = vadd.f32 %v4580, %v4868
    %v4870 = vpop.f32.mrb[0].mxu0
    %4871 = vmatprep.mubr.bf16.mxu0 0
    %4872 = vmatmul.mubr.bf16.gmra.mrb[0].mxu0 %v3301
    %v4873 = vpop.f32.mrb[0].mxu0
    %v4874 = vadd.f32 %v4585, %v4873
    %v4875 = vpop.f32.mrb[0].mxu0
    %v4876 = vpop.f32.mrb[0].mxu0
    %v4877 = vadd.f32 %v4588, %v4876
    %v4878 = vpop.f32.mrb[0].mxu0
    %4879 = vmatprep.mubr.bf16.mxu0 0
    %4880 = vmatmul.mubr.bf16.gmra.mrb[0].mxu0 %v3344
    %v4881 = vpop.f32.mrb[0].mxu0
    %v4882 = vadd.f32 %v4593, %v4881
    %v4883 = vpop.f32.mrb[0].mxu0
    %v4884 = vpop.f32.mrb[0].mxu0
    %v4885 = vadd.f32 %v4596, %v4884
    %v4886 = vpop.f32.mrb[0].mxu0
    %4887 = vmatprep.mubr.bf16.mxu0 0
    %4888 = vmatmul.mubr.bf16.gmra.mrb[0].mxu0 %v3387
    %v4889 = vpop.f32.mrb[0].mxu0
    %v4890 = vadd.f32 %v4601, %v4889
    %v4891 = vpop.f32.mrb[0].mxu0
    %v4892 = vpop.f32.mrb[0].mxu0
    %v4893 = vadd.f32 %v4604, %v4892
    %v4894 = vpop.f32.mrb[0].mxu0
    %4895 = vmatprep.mubr.bf16.mxu0 0
    %4896 = vmatmul.mubr.bf16.gmra.mrb[0].mxu0 %v4260
    %v4897 = vpop.f32.mrb[0].mxu0
    %v4898 = vadd.f32 %v4609, %v4897
    %v4899 = vpop.f32.mrb[0].mxu0
    %v4900 = vpop.f32.mrb[0].mxu0
    %v4901 = vadd.f32 %v4612, %v4900
    %v4902 = vpop.f32.mrb[0].mxu0
    %4903 = vmatprep.mubr.bf16.mxu0 0
    %4904 = vmatmul.mubr.bf16.gmra.mrb[0].mxu0 %v3473
    %v4905 = vpop.f32.mrb[0].mxu0
    %v4906 = vadd.f32 %v4617, %v4905
    %v4907 = vpop.f32.mrb[0].mxu0
    %v4908 = vpop.f32.mrb[0].mxu0
    %v4909 = vadd.f32 %v4620, %v4908
    %v4910 = vpop.f32.mrb[0].mxu0
    %4911 = vmatprep.mubr.bf16.mxu0 0
    %4912 = vmatmul.mubr.bf16.gmra.mrb[0].mxu0 %v3516
    %v4913 = vpop.f32.mrb[0].mxu0
    %v4914 = vadd.f32 %v4625, %v4913
    %v4915 = vpop.f32.mrb[0].mxu0
    %v4916 = vpop.f32.mrb[0].mxu0
    %v4917 = vadd.f32 %v4628, %v4916
    %v4918 = vpop.f32.mrb[0].mxu0
    %4919 = vmatprep.mubr.bf16.mxu0 0
    %4920 = vmatmul.mubr.bf16.gmra.mrb[0].mxu0 %v3559
    %v4921 = vpop.f32.mrb[0].mxu0
    %v4922 = vadd.f32 %v4633, %v4921
    %v4923 = vpop.f32.mrb[0].mxu0
    %v4924 = vpop.f32.mrb[0].mxu0
    %v4925 = vadd.f32 %v4636, %v4924
    %v4926 = vpop.f32.mrb[0].mxu0
    %4927 = vmatprep.mubr.bf16.mxu0 0
    %4928 = vmatmul.mubr.bf16.gmra.mrb[0].mxu0 %v3602
    %v4929 = vpop.f32.mrb[0].mxu0
    %v4930 = vadd.f32 %v4641, %v4929
    %v4931 = vpop.f32.mrb[0].mxu0
    %v4932 = vpop.f32.mrb[0].mxu0
    %v4933 = vadd.f32 %v4644, %v4932
    %v4934 = vpop.f32.mrb[0].mxu0
    %4935 = vmatprep.mubr.bf16.mxu0 0
    %4936 = vmatmul.mubr.bf16.gmra.mrb[0].mxu0 %v3645
    %v4937 = vpop.f32.mrb[0].mxu0
    %v4938 = vadd.f32 %v4649, %v4937
    %v4939 = vpop.f32.mrb[0].mxu0
    %v4940 = vpop.f32.mrb[0].mxu0
    %v4941 = vadd.f32 %v4652, %v4940
    %v4942 = vpop.f32.mrb[0].mxu0
    %4943 = vmatprep.mubr.bf16.mxu0 0
    %4944 = vmatmul.mubr.bf16.gmra.mrb[0].mxu0 %v3688
    %v4945 = vpop.f32.mrb[0].mxu0
    %v4946 = vadd.f32 %v4657, %v4945
    %v4947 = vpop.f32.mrb[0].mxu0
    %v4948 = vpop.f32.mrb[0].mxu0
    %v4949 = vadd.f32 %v4660, %v4948
    %v4950 = vpop.f32.mrb[0].mxu0
    %4951 = vmatprep.mubr.bf16.mxu0 0
    %4952 = vmatmul.mubr.bf16.gmra.mrb[0].mxu0 %v3731
    %v4953 = vpop.f32.mrb[0].mxu0
    %v4954 = vadd.f32 %v4665, %v4953
    %v4955 = vpop.f32.mrb[0].mxu0
    %v4956 = vpop.f32.mrb[0].mxu0
    %v4957 = vadd.f32 %v4668, %v4956
    %v4958 = vpop.f32.mrb[0].mxu0
    %4959 = vmatprep.mubr.bf16.mxu0 0
    %4960 = vmatmul.mubr.bf16.gmra.mrb[0].mxu0 %v3774
    %v4961 = vpop.f32.mrb[0].mxu0
    %v4962 = vadd.f32 %v4673, %v4961
    %v4963 = vpop.f32.mrb[0].mxu0
    %v4964 = vpop.f32.mrb[0].mxu0
    %v4965 = vadd.f32 %v4676, %v4964
    %v4966 = vpop.f32.mrb[0].mxu0
    %4967 = vmatprep.mubr.bf16.mxu0 0
    %4968 = vmatmul.mubr.bf16.gmra.mrb[0].mxu0 %v3817
    %v4969 = vpop.f32.mrb[0].mxu0
    %v4970 = vadd.f32 %v4681, %v4969
    %v4971 = vpop.f32.mrb[0].mxu0
    %v4972 = vpop.f32.mrb[0].mxu0
    %v4973 = vadd.f32 %v4684, %v4972
    %v4974 = vpop.f32.mrb[0].mxu0
    %4975 = vmatprep.mubr.bf16.mxu0 0
    %4976 = vmatmul.mubr.bf16.gmra.mrb[0].mxu0 %v3860
    %v4977 = vpop.f32.mrb[0].mxu0
    %v4978 = vadd.f32 %v4689, %v4977
    %v4979 = vpop.f32.mrb[0].mxu0
    %v4980 = vpop.f32.mrb[0].mxu0
    %v4981 = vadd.f32 %v4692, %v4980
    %v4982 = vpop.f32.mrb[0].mxu0
    %4983 = vmatprep.mubr.bf16.mxu0 0
    %4984 = vmatmul.mubr.bf16.gmra.mrb[0].mxu0 %v3903
    %v4985 = vpop.f32.mrb[0].mxu0
    %v4986 = vadd.f32 %v4697, %v4985
    %v4987 = vpop.f32.mrb[0].mxu0
    %v4988 = vpop.f32.mrb[0].mxu0
    %v4989 = vadd.f32 %v4700, %v4988
    %v4990 = vpop.f32.mrb[0].mxu0
    %4991 = vmatprep.mubr.bf16.mxu0 0
    %4992 = vmatmul.mubr.bf16.gmra.mrb[0].mxu0 %v3946
    %v4993 = vpop.f32.mrb[0].mxu0
    %v4994 = vadd.f32 %v4705, %v4993
    %v4995 = vpop.f32.mrb[0].mxu0
    %v4996 = vpop.f32.mrb[0].mxu0
    %v4997 = vadd.f32 %v4708, %v4996
    %v4998 = vpop.f32.mrb[0].mxu0
    %4999 = vmatprep.mubr.bf16.mxu0 0
    %5000 = vmatmul.mubr.bf16.gmra.mrb[0].mxu0 %v3989
    %v5001 = vpop.f32.mrb[0].mxu0
    %v5002 = vadd.f32 %v4713, %v5001
    %v5003 = vpop.f32.mrb[0].mxu0
    %v5004 = vpop.f32.mrb[0].mxu0
    %v5005 = vadd.f32 %v4716, %v5004
    %v5006 = vpop.f32.mrb[0].mxu0
    %5007 = vmatprep.mubr.bf16.mxu0 0
    %5008 = vmatmul.mubr.bf16.gmra.mrb[0].mxu0 %v4032
    %v5009 = vpop.f32.mrb[0].mxu0
    %v5010 = vadd.f32 %v4721, %v5009
    %v5011 = vpop.f32.mrb[0].mxu0
    %v5012 = vpop.f32.mrb[0].mxu0
    %v5013 = vadd.f32 %v4724, %v5012
    %v5014 = vpop.f32.mrb[0].mxu0
    %5015 = vmatprep.mubr.bf16.mxu0 0
    %5016 = vmatmul.mubr.bf16.gmra.mrb[0].mxu0 %v4075
    %v5017 = vpop.f32.mrb[0].mxu0
    %v5018 = vadd.f32 %v4729, %v5017
    %v5019 = vpop.f32.mrb[0].mxu0
    %v5020 = vpop.f32.mrb[0].mxu0
    %v5021 = vadd.f32 %v4732, %v5020
    %v5022 = vpop.f32.mrb[0].mxu0
    %5023 = vmatprep.mubr.bf16.mxu0 0
    %5024 = vmatmul.mubr.bf16.gmra.mrb[0].mxu0 %v4303
    %v5025 = vpop.f32.mrb[0].mxu0
    %v5026 = vadd.f32 %v4737, %v5025
    %v5027 = vpop.f32.mrb[0].mxu0
    %v5028 = vpop.f32.mrb[0].mxu0
    %v5029 = vadd.f32 %v4740, %v5028
    %v5030 = vpop.f32.mrb[0].mxu0
    %5031 = vdwg.mxu0
    %v5080 = vunpack.c.l.b16 %v1818
    %v5081 = vunpack.c.l.b16 %v1819
    %v5082 = vunpack.c.l.b16 %v1820
    %v5083 = vunpack.c.l.b16 %v1821
    %v5084 = vunpack.c.l.b16 %v1822
    %v5085 = vunpack.c.l.b16 %v1823
    %v5086 = vunpack.c.l.b16 %v1824
    %v5087 = vunpack.c.l.b16 %v1825
    %v5088 = vunpack.c.l.b16 %v1826
    %v5089 = vunpack.c.l.b16 %v1827
    %v5090 = vunpack.c.l.b16 %v1828
    %v5091 = vunpack.c.l.b16 %v1829
    %v5092 = vunpack.c.l.b16 %v1830
    %v5093 = vunpack.c.l.b16 %v1831
    %v5094 = vunpack.c.l.b16 %v1832
    %v5095 = vunpack.c.l.b16 %v1833
    %v5096 = vunpack.c.l.b16 %v1834
    %v5097 = vunpack.c.l.b16 %v1835
    %v5098 = vunpack.c.l.b16 %v1836
    %v5099 = vunpack.c.l.b16 %v1837
    %v5100 = vunpack.c.l.b16 %v1838
    %v5101 = vunpack.c.l.b16 %v1839
    %v5102 = vunpack.c.l.b16 %v1840
    %v5103 = vunpack.c.l.b16 %v1841
    %v5104 = vunpack.c.l.b16 %v1842
    %v5105 = vunpack.c.l.b16 %v1843
    %v5106 = vunpack.c.l.b16 %v1844
    %v5107 = vunpack.c.l.b16 %v1845
    %v5108 = vunpack.c.l.b16 %v1846
    %v5109 = vunpack.c.l.b16 %v1847
    %v5110 = vunpack.c.l.b16 %v1848
    %v5111 = vunpack.c.l.b16 %v1849
    %v5112 = vunpack.c.l.b16 %v1850
    %v5113 = vunpack.c.l.b16 %v1851
    %v5114 = vunpack.c.l.b16 %v1852
    %v5115 = vunpack.c.l.b16 %v1853
    %v5116 = vunpack.c.l.b16 %v1854
    %v5117 = vunpack.c.l.b16 %v1855
    %v5118 = vunpack.c.l.b16 %v1856
    %v5119 = vunpack.c.l.b16 %v1857
    %v5120 = vunpack.c.l.b16 %v1858
    %v5121 = vunpack.c.l.b16 %v1859
    %v5122 = vunpack.c.l.b16 %v1860
    %v5123 = vunpack.c.l.b16 %v1861
    %v5124 = vunpack.c.l.b16 %v1862
    %v5125 = vunpack.c.l.b16 %v1863
    %v5126 = vunpack.c.l.b16 %v1864
    %v5127 = vunpack.c.l.b16 %v1865
    %v5128 = vpack.c.b16 %v5081, %v5080
    %v5129 = vpack.c.b16 %v5083, %v5082
    %v5130 = vpack.c.b16 %v5085, %v5084
    %v5131 = vpack.c.b16 %v5087, %v5086
    %v5132 = vpack.c.b16 %v5089, %v5088
    %v5133 = vpack.c.b16 %v5091, %v5090
    %v5134 = vpack.c.b16 %v5093, %v5092
    %v5135 = vpack.c.b16 %v5095, %v5094
    %v5136 = vpack.c.b16 %v5097, %v5096
    %v5137 = vpack.c.b16 %v5099, %v5098
    %v5138 = vpack.c.b16 %v5101, %v5100
    %v5139 = vpack.c.b16 %v5103, %v5102
    %v5140 = vpack.c.b16 %v5105, %v5104
    %v5141 = vpack.c.b16 %v5107, %v5106
    %v5142 = vpack.c.b16 %v5109, %v5108
    %v5143 = vpack.c.b16 %v5111, %v5110
    %v5144 = vpack.c.b16 %v5113, %v5112
    %v5145 = vpack.c.b16 %v5115, %v5114
    %v5146 = vpack.c.b16 %v5117, %v5116
    %v5147 = vpack.c.b16 %v5119, %v5118
    %v5148 = vpack.c.b16 %v5121, %v5120
    %v5149 = vpack.c.b16 %v5123, %v5122
    %v5150 = vpack.c.b16 %v5125, %v5124
    %v5151 = vpack.c.b16 %v5127, %v5126
    %5176 = vmatprep.subr.bf16.mxu0 0
    %5177 = vmatpush1.bf16.msra.mxu0 %v5128
    %5178 = vmatprep.subr.bf16.mxu0 0
    %5179 = vmatpush1.bf16.msra.mxu0 %v5129
    %5180 = vmatprep.subr.bf16.mxu0 0
    %5181 = vmatpush1.bf16.msra.mxu0 %v5130
    %5182 = vmatprep.subr.bf16.mxu0 0
    %5183 = vmatpush1.bf16.msra.mxu0 %v5131
    %5184 = vmatprep.subr.bf16.mxu0 0
    %5185 = vmatpush1.bf16.msra.mxu0 %v5132
    %5186 = vmatprep.subr.bf16.mxu0 0
    %5187 = vmatpush1.bf16.msra.mxu0 %v5133
    %5188 = vmatprep.subr.bf16.mxu0 0
    %5189 = vmatpush1.bf16.msra.mxu0 %v5134
    %5190 = vmatprep.subr.bf16.mxu0 0
    %5191 = vmatpush1.bf16.msra.mxu0 %v5135
    %5192 = vmatprep.subr.bf16.mxu0 0
    %5193 = vmatpush1.bf16.msra.mxu0 %v5136
    %5194 = vmatprep.subr.bf16.mxu0 0
    %5195 = vmatpush1.bf16.msra.mxu0 %v5137
    %5196 = vmatprep.subr.bf16.mxu0 0
    %5197 = vmatpush1.bf16.msra.mxu0 %v5138
    %5198 = vmatprep.subr.bf16.mxu0 0
    %5199 = vmatpush1.bf16.msra.mxu0 %v5139
    %5200 = vmatprep.subr.bf16.mxu0 0
    %5201 = vmatpush1.bf16.msra.mxu0 %v5140
    %5202 = vmatprep.subr.bf16.mxu0 0
    %5203 = vmatpush1.bf16.msra.mxu0 %v5141
    %5204 = vmatprep.subr.bf16.mxu0 0
    %5205 = vmatpush1.bf16.msra.mxu0 %v5142
    %5206 = vmatprep.subr.bf16.mxu0 0
    %5207 = vmatpush1.bf16.msra.mxu0 %v5143
    %5208 = vmatprep.mubr.bf16.mxu0 %v2725
    %5209 = vmatmul.mubr.bf16.gmra.mrb[0].mxu0 %v2716
    %v5210 = vpop.f32.mrb[0].mxu0
    %v5211 = vadd.f32 %v4778, %v5210
    %v5212 = vpop.f32.mrb[0].mxu0
    %v5213 = vpop.f32.mrb[0].mxu0
    %v5214 = vadd.f32 %v4781, %v5213
    %v5215 = vpop.f32.mrb[0].mxu0
    %5216 = vmatprep.mubr.bf16.mxu0 %v2768
    %5217 = vmatmul.mubr.bf16.gmra.mrb[0].mxu0 %v2759
    %v5218 = vpop.f32.mrb[0].mxu0
    %v5219 = vadd.f32 %v4786, %v5218
    %v5220 = vpop.f32.mrb[0].mxu0
    %v5221 = vpop.f32.mrb[0].mxu0
    %v5222 = vadd.f32 %v4789, %v5221
    %v5223 = vpop.f32.mrb[0].mxu0
    %5224 = vmatprep.mubr.bf16.mxu0 %v2811
    %5225 = vmatmul.mubr.bf16.gmra.mrb[0].mxu0 %v2802
    %v5226 = vpop.f32.mrb[0].mxu0
    %v5227 = vadd.f32 %v4794, %v5226
    %v5228 = vpop.f32.mrb[0].mxu0
    %v5229 = vpop.f32.mrb[0].mxu0
    %v5230 = vadd.f32 %v4797, %v5229
    %v5231 = vpop.f32.mrb[0].mxu0
    %5232 = vmatprep.mubr.bf16.mxu0 %v2854
    %5233 = vmatmul.mubr.bf16.gmra.mrb[0].mxu0 %v2845
    %v5234 = vpop.f32.mrb[0].mxu0
    %v5235 = vadd.f32 %v4802, %v5234
    %v5236 = vpop.f32.mrb[0].mxu0
    %v5237 = vpop.f32.mrb[0].mxu0
    %v5238 = vadd.f32 %v4805, %v5237
    %v5239 = vpop.f32.mrb[0].mxu0
    %5240 = vmatprep.mubr.bf16.mxu0 %v2897
    %5241 = vmatmul.mubr.bf16.gmra.mrb[0].mxu0 %v2888
    %v5242 = vpop.f32.mrb[0].mxu0
    %v5243 = vadd.f32 %v4810, %v5242
    %v5244 = vpop.f32.mrb[0].mxu0
    %v5245 = vpop.f32.mrb[0].mxu0
    %v5246 = vadd.f32 %v4813, %v5245
    %v5247 = vpop.f32.mrb[0].mxu0
    %5248 = vmatprep.mubr.bf16.mxu0 %v2940
    %5249 = vmatmul.mubr.bf16.gmra.mrb[0].mxu0 %v2931
    %v5250 = vpop.f32.mrb[0].mxu0
    %v5251 = vadd.f32 %v4818, %v5250
    %v5252 = vpop.f32.mrb[0].mxu0
    %v5253 = vpop.f32.mrb[0].mxu0
    %v5254 = vadd.f32 %v4821, %v5253
    %v5255 = vpop.f32.mrb[0].mxu0
    %5256 = vmatprep.mubr.bf16.mxu0 %v2983
    %5257 = vmatmul.mubr.bf16.gmra.mrb[0].mxu0 %v2974
    %v5258 = vpop.f32.mrb[0].mxu0
    %v5259 = vadd.f32 %v4826, %v5258
    %v5260 = vpop.f32.mrb[0].mxu0
    %v5261 = vpop.f32.mrb[0].mxu0
    %v5262 = vadd.f32 %v4829, %v5261
    %v5263 = vpop.f32.mrb[0].mxu0
    %5264 = vmatprep.mubr.bf16.mxu0 %v3026
    %5265 = vmatmul.mubr.bf16.gmra.mrb[0].mxu0 %v3017
    %v5266 = vpop.f32.mrb[0].mxu0
    %v5267 = vadd.f32 %v4834, %v5266
    %v5268 = vpop.f32.mrb[0].mxu0
    %v5269 = vpop.f32.mrb[0].mxu0
    %v5270 = vadd.f32 %v4837, %v5269
    %v5271 = vpop.f32.mrb[0].mxu0
    %5272 = vmatprep.mubr.bf16.mxu0 %v3069
    %5273 = vmatmul.mubr.bf16.gmra.mrb[0].mxu0 %v3060
    %v5274 = vpop.f32.mrb[0].mxu0
    %v5275 = vadd.f32 %v4842, %v5274
    %v5276 = vpop.f32.mrb[0].mxu0
    %v5277 = vpop.f32.mrb[0].mxu0
    %v5278 = vadd.f32 %v4845, %v5277
    %v5279 = vpop.f32.mrb[0].mxu0
    %5280 = vmatprep.mubr.bf16.mxu0 %v3112
    %5281 = vmatmul.mubr.bf16.gmra.mrb[0].mxu0 %v3103
    %v5282 = vpop.f32.mrb[0].mxu0
    %v5283 = vadd.f32 %v4850, %v5282
    %v5284 = vpop.f32.mrb[0].mxu0
    %v5285 = vpop.f32.mrb[0].mxu0
    %v5286 = vadd.f32 %v4853, %v5285
    %v5287 = vpop.f32.mrb[0].mxu0
    %5288 = vmatprep.mubr.bf16.mxu0 %v3155
    %5289 = vmatmul.mubr.bf16.gmra.mrb[0].mxu0 %v3146
    %v5290 = vpop.f32.mrb[0].mxu0
    %v5291 = vadd.f32 %v4858, %v5290
    %v5292 = vpop.f32.mrb[0].mxu0
    %v5293 = vpop.f32.mrb[0].mxu0
    %v5294 = vadd.f32 %v4861, %v5293
    %v5295 = vpop.f32.mrb[0].mxu0
    %5296 = vmatprep.mubr.bf16.mxu0 %v3198
    %5297 = vmatmul.mubr.bf16.gmra.mrb[0].mxu0 %v3189
    %v5298 = vpop.f32.mrb[0].mxu0
    %v5299 = vadd.f32 %v4866, %v5298
    %v5300 = vpop.f32.mrb[0].mxu0
    %v5301 = vpop.f32.mrb[0].mxu0
    %v5302 = vadd.f32 %v4869, %v5301
    %v5303 = vpop.f32.mrb[0].mxu0
    %5304 = vmatprep.mubr.bf16.mxu0 %v3241
    %5305 = vmatmul.mubr.bf16.gmra.mrb[0].mxu0 %v3232
    %v5306 = vpop.f32.mrb[0].mxu0
    %v5307 = vadd.f32 %v4874, %v5306
    %v5308 = vpop.f32.mrb[0].mxu0
    %v5309 = vpop.f32.mrb[0].mxu0
    %v5310 = vadd.f32 %v4877, %v5309
    %v5311 = vpop.f32.mrb[0].mxu0
    %5312 = vmatprep.mubr.bf16.mxu0 %v3284
    %5313 = vmatmul.mubr.bf16.gmra.mrb[0].mxu0 %v3275
    %v5314 = vpop.f32.mrb[0].mxu0
    %v5315 = vadd.f32 %v4882, %v5314
    %v5316 = vpop.f32.mrb[0].mxu0
    %v5317 = vpop.f32.mrb[0].mxu0
    %v5318 = vadd.f32 %v4885, %v5317
    %v5319 = vpop.f32.mrb[0].mxu0
    %5320 = vmatprep.mubr.bf16.mxu0 %v3327
    %5321 = vmatmul.mubr.bf16.gmra.mrb[0].mxu0 %v3318
    %v5322 = vpop.f32.mrb[0].mxu0
    %v5323 = vadd.f32 %v4890, %v5322
    %v5324 = vpop.f32.mrb[0].mxu0
    %v5325 = vpop.f32.mrb[0].mxu0
    %v5326 = vadd.f32 %v4893, %v5325
    %v5327 = vpop.f32.mrb[0].mxu0
    %5328 = vmatprep.mubr.bf16.mxu0 %v3370
    %5329 = vmatmul.mubr.bf16.gmra.mrb[0].mxu0 %v3361
    %v5330 = vpop.f32.mrb[0].mxu0
    %v5331 = vadd.f32 %v4898, %v5330
    %v5332 = vpop.f32.mrb[0].mxu0
    %v5333 = vpop.f32.mrb[0].mxu0
    %v5334 = vadd.f32 %v4901, %v5333
    %v5335 = vpop.f32.mrb[0].mxu0
    %5336 = vmatprep.mubr.bf16.mxu0 %v3413
    %5337 = vmatmul.mubr.bf16.gmra.mrb[0].mxu0 %v3404
    %v5338 = vpop.f32.mrb[0].mxu0
    %v5339 = vadd.f32 %v4906, %v5338
    %v5340 = vpop.f32.mrb[0].mxu0
    %v5341 = vpop.f32.mrb[0].mxu0
    %v5342 = vadd.f32 %v4909, %v5341
    %v5343 = vpop.f32.mrb[0].mxu0
    %5344 = vmatprep.mubr.bf16.mxu0 %v3456
    %5345 = vmatmul.mubr.bf16.gmra.mrb[0].mxu0 %v3447
    %v5346 = vpop.f32.mrb[0].mxu0
    %v5347 = vadd.f32 %v4914, %v5346
    %v5348 = vpop.f32.mrb[0].mxu0
    %v5349 = vpop.f32.mrb[0].mxu0
    %v5350 = vadd.f32 %v4917, %v5349
    %v5351 = vpop.f32.mrb[0].mxu0
    %5352 = vmatprep.mubr.bf16.mxu0 %v3499
    %5353 = vmatmul.mubr.bf16.gmra.mrb[0].mxu0 %v3490
    %v5354 = vpop.f32.mrb[0].mxu0
    %v5355 = vadd.f32 %v4922, %v5354
    %v5356 = vpop.f32.mrb[0].mxu0
    %v5357 = vpop.f32.mrb[0].mxu0
    %v5358 = vadd.f32 %v4925, %v5357
    %v5359 = vpop.f32.mrb[0].mxu0
    %5360 = vmatprep.mubr.bf16.mxu0 %v3542
    %5361 = vmatmul.mubr.bf16.gmra.mrb[0].mxu0 %v3533
    %v5362 = vpop.f32.mrb[0].mxu0
    %v5363 = vadd.f32 %v4930, %v5362
    %v5364 = vpop.f32.mrb[0].mxu0
    %v5365 = vpop.f32.mrb[0].mxu0
    %v5366 = vadd.f32 %v4933, %v5365
    %v5367 = vpop.f32.mrb[0].mxu0
    %5368 = vmatprep.mubr.bf16.mxu0 %v3585
    %5369 = vmatmul.mubr.bf16.gmra.mrb[0].mxu0 %v3576
    %v5370 = vpop.f32.mrb[0].mxu0
    %v5371 = vadd.f32 %v4938, %v5370
    %v5372 = vpop.f32.mrb[0].mxu0
    %v5373 = vpop.f32.mrb[0].mxu0
    %v5374 = vadd.f32 %v4941, %v5373
    %v5375 = vpop.f32.mrb[0].mxu0
    %5376 = vmatprep.mubr.bf16.mxu0 %v3628
    %5377 = vmatmul.mubr.bf16.gmra.mrb[0].mxu0 %v3619
    %v5378 = vpop.f32.mrb[0].mxu0
    %v5379 = vadd.f32 %v4946, %v5378
    %v5380 = vpop.f32.mrb[0].mxu0
    %v5381 = vpop.f32.mrb[0].mxu0
    %v5382 = vadd.f32 %v4949, %v5381
    %v5383 = vpop.f32.mrb[0].mxu0
    %5384 = vmatprep.mubr.bf16.mxu0 %v3671
    %5385 = vmatmul.mubr.bf16.gmra.mrb[0].mxu0 %v3662
    %v5386 = vpop.f32.mrb[0].mxu0
    %v5387 = vadd.f32 %v4954, %v5386
    %v5388 = vpop.f32.mrb[0].mxu0
    %v5389 = vpop.f32.mrb[0].mxu0
    %v5390 = vadd.f32 %v4957, %v5389
    %v5391 = vpop.f32.mrb[0].mxu0
    %5392 = vmatprep.mubr.bf16.mxu0 %v3714
    %5393 = vmatmul.mubr.bf16.gmra.mrb[0].mxu0 %v3705
    %v5394 = vpop.f32.mrb[0].mxu0
    %v5395 = vadd.f32 %v4962, %v5394
    %v5396 = vpop.f32.mrb[0].mxu0
    %v5397 = vpop.f32.mrb[0].mxu0
    %v5398 = vadd.f32 %v4965, %v5397
    %v5399 = vpop.f32.mrb[0].mxu0
    %5400 = vmatprep.mubr.bf16.mxu0 %v3757
    %5401 = vmatmul.mubr.bf16.gmra.mrb[0].mxu0 %v3748
    %v5402 = vpop.f32.mrb[0].mxu0
    %v5403 = vadd.f32 %v4970, %v5402
    %v5404 = vpop.f32.mrb[0].mxu0
    %v5405 = vpop.f32.mrb[0].mxu0
    %v5406 = vadd.f32 %v4973, %v5405
    %v5407 = vpop.f32.mrb[0].mxu0
    %5408 = vmatprep.mubr.bf16.mxu0 %v3800
    %5409 = vmatmul.mubr.bf16.gmra.mrb[0].mxu0 %v3791
    %v5410 = vpop.f32.mrb[0].mxu0
    %v5411 = vadd.f32 %v4978, %v5410
    %v5412 = vpop.f32.mrb[0].mxu0
    %v5413 = vpop.f32.mrb[0].mxu0
    %v5414 = vadd.f32 %v4981, %v5413
    %v5415 = vpop.f32.mrb[0].mxu0
    %5416 = vmatprep.mubr.bf16.mxu0 %v3843
    %5417 = vmatmul.mubr.bf16.gmra.mrb[0].mxu0 %v3834
    %v5418 = vpop.f32.mrb[0].mxu0
    %v5419 = vadd.f32 %v4986, %v5418
    %v5420 = vpop.f32.mrb[0].mxu0
    %v5421 = vpop.f32.mrb[0].mxu0
    %v5422 = vadd.f32 %v4989, %v5421
    %v5423 = vpop.f32.mrb[0].mxu0
    %5424 = vmatprep.mubr.bf16.mxu0 %v3886
    %5425 = vmatmul.mubr.bf16.gmra.mrb[0].mxu0 %v3877
    %v5426 = vpop.f32.mrb[0].mxu0
    %v5427 = vadd.f32 %v4994, %v5426
    %v5428 = vpop.f32.mrb[0].mxu0
    %v5429 = vpop.f32.mrb[0].mxu0
    %v5430 = vadd.f32 %v4997, %v5429
    %v5431 = vpop.f32.mrb[0].mxu0
    %5432 = vmatprep.mubr.bf16.mxu0 %v3929
    %5433 = vmatmul.mubr.bf16.gmra.mrb[0].mxu0 %v3920
    %v5434 = vpop.f32.mrb[0].mxu0
    %v5435 = vadd.f32 %v5002, %v5434
    %v5436 = vpop.f32.mrb[0].mxu0
    %v5437 = vpop.f32.mrb[0].mxu0
    %v5438 = vadd.f32 %v5005, %v5437
    %v5439 = vpop.f32.mrb[0].mxu0
    %5440 = vmatprep.mubr.bf16.mxu0 %v3972
    %5441 = vmatmul.mubr.bf16.gmra.mrb[0].mxu0 %v3963
    %v5442 = vpop.f32.mrb[0].mxu0
    %v5443 = vadd.f32 %v5010, %v5442
    %v5444 = vpop.f32.mrb[0].mxu0
    %v5445 = vpop.f32.mrb[0].mxu0
    %v5446 = vadd.f32 %v5013, %v5445
    %v5447 = vpop.f32.mrb[0].mxu0
    %5448 = vmatprep.mubr.bf16.mxu0 %v4015
    %5449 = vmatmul.mubr.bf16.gmra.mrb[0].mxu0 %v4006
    %v5450 = vpop.f32.mrb[0].mxu0
    %v5451 = vadd.f32 %v5018, %v5450
    %v5452 = vpop.f32.mrb[0].mxu0
    %v5453 = vpop.f32.mrb[0].mxu0
    %v5454 = vadd.f32 %v5021, %v5453
    %v5455 = vpop.f32.mrb[0].mxu0
    %5456 = vmatprep.mubr.bf16.mxu0 %v4058
    %5457 = vmatmul.mubr.bf16.gmra.mrb[0].mxu0 %v4049
    %v5458 = vpop.f32.mrb[0].mxu0
    %v5459 = vadd.f32 %v5026, %v5458
    %v5460 = vpop.f32.mrb[0].mxu0
    %v5461 = vpop.f32.mrb[0].mxu0
    %v5462 = vadd.f32 %v5029, %v5461
    %v5463 = vpop.f32.mrb[0].mxu0
    %5464 = vdwg.mxu0
    %5465 = vmatprep.subr.bf16.mxu0 0
    %5466 = vmatpush1.bf16.msra.mxu0 %v5144
    %5467 = vmatprep.subr.bf16.mxu0 0
    %5468 = vmatpush1.bf16.msra.mxu0 %v5145
    %5469 = vmatprep.subr.bf16.mxu0 0
    %5470 = vmatpush1.bf16.msra.mxu0 %v5146
    %5471 = vmatprep.subr.bf16.mxu0 0
    %5472 = vmatpush1.bf16.msra.mxu0 %v5147
    %5473 = vmatprep.subr.bf16.mxu0 0
    %5474 = vmatpush1.bf16.msra.mxu0 %v5148
    %5475 = vmatprep.subr.bf16.mxu0 0
    %5476 = vmatpush1.bf16.msra.mxu0 %v5149
    %5477 = vmatprep.subr.bf16.mxu0 0
    %5478 = vmatpush1.bf16.msra.mxu0 %v5150
    %5479 = vmatprep.subr.bf16.mxu0 0
    %5480 = vmatpush1.bf16.msra.mxu0 %v5151
    %5481 = vmatprep.subr.bf16.mxu0 0
    %5482 = vmatpush1.bf16.msra.mxu0 0
    %5483 = vmatprep.subr.bf16.mxu0 0
    %5484 = vmatpush1.bf16.msra.mxu0 0
    %5485 = vmatprep.subr.bf16.mxu0 0
    %5486 = vmatpush1.bf16.msra.mxu0 0
    %5487 = vmatprep.subr.bf16.mxu0 0
    %5488 = vmatpush1.bf16.msra.mxu0 0
    %5489 = vmatprep.subr.bf16.mxu0 0
    %5490 = vmatpush1.bf16.msra.mxu0 0
    %5491 = vmatprep.subr.bf16.mxu0 0
    %5492 = vmatpush1.bf16.msra.mxu0 0
    %5493 = vmatprep.subr.bf16.mxu0 0
    %5494 = vmatpush1.bf16.msra.mxu0 0
    %5495 = vmatprep.subr.bf16.mxu0 0
    %5496 = vmatpush1.bf16.msra.mxu0 0
    %5497 = vmatprep.mubr.bf16.mxu0 0
    %5498 = vmatmul.mubr.bf16.gmra.mrb[0].mxu0 %v2742
    %v5499 = vpop.f32.mrb[0].mxu0
    %v5500 = vadd.f32 %v5211, %v5499
    %v5501 = vpop.f32.mrb[0].mxu0
    %v5502 = vpop.f32.mrb[0].mxu0
    %v5503 = vadd.f32 %v5214, %v5502
    %v5504 = vpop.f32.mrb[0].mxu0
    %5505 = vmatprep.mubr.bf16.mxu0 0
    %5506 = vmatmul.mubr.bf16.gmra.mrb[0].mxu0 %v2785
    %v5507 = vpop.f32.mrb[0].mxu0
    %v5508 = vadd.f32 %v5219, %v5507
    %v5509 = vpop.f32.mrb[0].mxu0
    %v5510 = vpop.f32.mrb[0].mxu0
    %v5511 = vadd.f32 %v5222, %v5510
    %v5512 = vpop.f32.mrb[0].mxu0
    %5513 = vmatprep.mubr.bf16.mxu0 0
    %5514 = vmatmul.mubr.bf16.gmra.mrb[0].mxu0 %v2828
    %v5515 = vpop.f32.mrb[0].mxu0
    %v5516 = vadd.f32 %v5227, %v5515
    %v5517 = vpop.f32.mrb[0].mxu0
    %v5518 = vpop.f32.mrb[0].mxu0
    %v5519 = vadd.f32 %v5230, %v5518
    %v5520 = vpop.f32.mrb[0].mxu0
    %5521 = vmatprep.mubr.bf16.mxu0 0
    %5522 = vmatmul.mubr.bf16.gmra.mrb[0].mxu0 %v2871
    %v5523 = vpop.f32.mrb[0].mxu0
    %v5524 = vadd.f32 %v5235, %v5523
    %v5525 = vpop.f32.mrb[0].mxu0
    %v5526 = vpop.f32.mrb[0].mxu0
    %v5527 = vadd.f32 %v5238, %v5526
    %v5528 = vpop.f32.mrb[0].mxu0
    %5529 = vmatprep.mubr.bf16.mxu0 0
    %5530 = vmatmul.mubr.bf16.gmra.mrb[0].mxu0 %v2914
    %v5531 = vpop.f32.mrb[0].mxu0
    %v5532 = vadd.f32 %v5243, %v5531
    %v5533 = vpop.f32.mrb[0].mxu0
    %v5534 = vpop.f32.mrb[0].mxu0
    %v5535 = vadd.f32 %v5246, %v5534
    %v5536 = vpop.f32.mrb[0].mxu0
    %5537 = vmatprep.mubr.bf16.mxu0 0
    %5538 = vmatmul.mubr.bf16.gmra.mrb[0].mxu0 %v2957
    %v5539 = vpop.f32.mrb[0].mxu0
    %v5540 = vadd.f32 %v5251, %v5539
    %v5541 = vpop.f32.mrb[0].mxu0
    %v5542 = vpop.f32.mrb[0].mxu0
    %v5543 = vadd.f32 %v5254, %v5542
    %v5544 = vpop.f32.mrb[0].mxu0
    %5545 = vmatprep.mubr.bf16.mxu0 0
    %5546 = vmatmul.mubr.bf16.gmra.mrb[0].mxu0 %v3000
    %v5547 = vpop.f32.mrb[0].mxu0
    %v5548 = vadd.f32 %v5259, %v5547
    %v5549 = vpop.f32.mrb[0].mxu0
    %v5550 = vpop.f32.mrb[0].mxu0
    %v5551 = vadd.f32 %v5262, %v5550
    %v5552 = vpop.f32.mrb[0].mxu0
    %5553 = vmatprep.mubr.bf16.mxu0 0
    %5554 = vmatmul.mubr.bf16.gmra.mrb[0].mxu0 %v3043
    %v5555 = vpop.f32.mrb[0].mxu0
    %v5556 = vadd.f32 %v5267, %v5555
    %v5557 = vpop.f32.mrb[0].mxu0
    %v5558 = vpop.f32.mrb[0].mxu0
    %v5559 = vadd.f32 %v5270, %v5558
    %v5560 = vpop.f32.mrb[0].mxu0
    %5561 = vmatprep.mubr.bf16.mxu0 0
    %5562 = vmatmul.mubr.bf16.gmra.mrb[0].mxu0 %v3086
    %v5563 = vpop.f32.mrb[0].mxu0
    %v5564 = vadd.f32 %v5275, %v5563
    %v5565 = vpop.f32.mrb[0].mxu0
    %v5566 = vpop.f32.mrb[0].mxu0
    %v5567 = vadd.f32 %v5278, %v5566
    %v5568 = vpop.f32.mrb[0].mxu0
    %5569 = vmatprep.mubr.bf16.mxu0 0
    %5570 = vmatmul.mubr.bf16.gmra.mrb[0].mxu0 %v3129
    %v5571 = vpop.f32.mrb[0].mxu0
    %v5572 = vadd.f32 %v5283, %v5571
    %v5573 = vpop.f32.mrb[0].mxu0
    %v5574 = vpop.f32.mrb[0].mxu0
    %v5575 = vadd.f32 %v5286, %v5574
    %v5576 = vpop.f32.mrb[0].mxu0
    %5577 = vmatprep.mubr.bf16.mxu0 0
    %5578 = vmatmul.mubr.bf16.gmra.mrb[0].mxu0 %v3172
    %v5579 = vpop.f32.mrb[0].mxu0
    %v5580 = vadd.f32 %v5291, %v5579
    %v5581 = vpop.f32.mrb[0].mxu0
    %v5582 = vpop.f32.mrb[0].mxu0
    %v5583 = vadd.f32 %v5294, %v5582
    %v5584 = vpop.f32.mrb[0].mxu0
    %5585 = vmatprep.mubr.bf16.mxu0 0
    %5586 = vmatmul.mubr.bf16.gmra.mrb[0].mxu0 %v3215
    %v5587 = vpop.f32.mrb[0].mxu0
    %v5588 = vadd.f32 %v5299, %v5587
    %v5589 = vpop.f32.mrb[0].mxu0
    %v5590 = vpop.f32.mrb[0].mxu0
    %v5591 = vadd.f32 %v5302, %v5590
    %v5592 = vpop.f32.mrb[0].mxu0
    %5593 = vmatprep.mubr.bf16.mxu0 0
    %5594 = vmatmul.mubr.bf16.gmra.mrb[0].mxu0 %v3258
    %v5595 = vpop.f32.mrb[0].mxu0
    %v5596 = vadd.f32 %v5307, %v5595
    %v5597 = vpop.f32.mrb[0].mxu0
    %v5598 = vpop.f32.mrb[0].mxu0
    %v5599 = vadd.f32 %v5310, %v5598
    %v5600 = vpop.f32.mrb[0].mxu0
    %5601 = vmatprep.mubr.bf16.mxu0 0
    %5602 = vmatmul.mubr.bf16.gmra.mrb[0].mxu0 %v3301
    %v5603 = vpop.f32.mrb[0].mxu0
    %v5604 = vadd.f32 %v5315, %v5603
    %v5605 = vpop.f32.mrb[0].mxu0
    %v5606 = vpop.f32.mrb[0].mxu0
    %v5607 = vadd.f32 %v5318, %v5606
    %v5608 = vpop.f32.mrb[0].mxu0
    %5609 = vmatprep.mubr.bf16.mxu0 0
    %5610 = vmatmul.mubr.bf16.gmra.mrb[0].mxu0 %v3344
    %v5611 = vpop.f32.mrb[0].mxu0
    %v5612 = vadd.f32 %v5323, %v5611
    %v5613 = vpop.f32.mrb[0].mxu0
    %v5614 = vpop.f32.mrb[0].mxu0
    %v5615 = vadd.f32 %v5326, %v5614
    %v5616 = vpop.f32.mrb[0].mxu0
    %5617 = vmatprep.mubr.bf16.mxu0 0
    %5618 = vmatmul.mubr.bf16.gmra.mrb[0].mxu0 %v3387
    %v5619 = vpop.f32.mrb[0].mxu0
    %v5620 = vadd.f32 %v5331, %v5619
    %v5621 = vpop.f32.mrb[0].mxu0
    %v5622 = vpop.f32.mrb[0].mxu0
    %v5623 = vadd.f32 %v5334, %v5622
    %v5624 = vpop.f32.mrb[0].mxu0
    %5625 = vmatprep.mubr.bf16.mxu0 0
    %5626 = vmatmul.mubr.bf16.gmra.mrb[0].mxu0 %v3430
    %v5627 = vpop.f32.mrb[0].mxu0
    %v5628 = vadd.f32 %v5339, %v5627
    %v5629 = vpop.f32.mrb[0].mxu0
    %v5630 = vpop.f32.mrb[0].mxu0
    %v5631 = vadd.f32 %v5342, %v5630
    %v5632 = vpop.f32.mrb[0].mxu0
    %5633 = vmatprep.mubr.bf16.mxu0 0
    %5634 = vmatmul.mubr.bf16.gmra.mrb[0].mxu0 %v3473
    %v5635 = vpop.f32.mrb[0].mxu0
    %v5636 = vadd.f32 %v5347, %v5635
    %v5637 = vpop.f32.mrb[0].mxu0
    %v5638 = vpop.f32.mrb[0].mxu0
    %v5639 = vadd.f32 %v5350, %v5638
    %v5640 = vpop.f32.mrb[0].mxu0
    %5641 = vmatprep.mubr.bf16.mxu0 0
    %5642 = vmatmul.mubr.bf16.gmra.mrb[0].mxu0 %v3516
    %v5643 = vpop.f32.mrb[0].mxu0
    %v5644 = vadd.f32 %v5355, %v5643
    %v5645 = vpop.f32.mrb[0].mxu0
    %v5646 = vpop.f32.mrb[0].mxu0
    %v5647 = vadd.f32 %v5358, %v5646
    %v5648 = vpop.f32.mrb[0].mxu0
    %5649 = vmatprep.mubr.bf16.mxu0 0
    %5650 = vmatmul.mubr.bf16.gmra.mrb[0].mxu0 %v3559
    %v5651 = vpop.f32.mrb[0].mxu0
    %v5652 = vadd.f32 %v5363, %v5651
    %v5653 = vpop.f32.mrb[0].mxu0
    %v5654 = vpop.f32.mrb[0].mxu0
    %v5655 = vadd.f32 %v5366, %v5654
    %v5656 = vpop.f32.mrb[0].mxu0
    %5657 = vmatprep.mubr.bf16.mxu0 0
    %5658 = vmatmul.mubr.bf16.gmra.mrb[0].mxu0 %v3602
    %v5659 = vpop.f32.mrb[0].mxu0
    %v5660 = vadd.f32 %v5371, %v5659
    %v5661 = vpop.f32.mrb[0].mxu0
    %v5662 = vpop.f32.mrb[0].mxu0
    %v5663 = vadd.f32 %v5374, %v5662
    %v5664 = vpop.f32.mrb[0].mxu0
    %5665 = vmatprep.mubr.bf16.mxu0 0
    %5666 = vmatmul.mubr.bf16.gmra.mrb[0].mxu0 %v3645
    %v5667 = vpop.f32.mrb[0].mxu0
    %v5668 = vadd.f32 %v5379, %v5667
    %v5669 = vpop.f32.mrb[0].mxu0
    %v5670 = vpop.f32.mrb[0].mxu0
    %v5671 = vadd.f32 %v5382, %v5670
    %v5672 = vpop.f32.mrb[0].mxu0
    %5673 = vmatprep.mubr.bf16.mxu0 0
    %5674 = vmatmul.mubr.bf16.gmra.mrb[0].mxu0 %v3688
    %v5675 = vpop.f32.mrb[0].mxu0
    %v5676 = vadd.f32 %v5387, %v5675
    %v5677 = vpop.f32.mrb[0].mxu0
    %v5678 = vpop.f32.mrb[0].mxu0
    %v5679 = vadd.f32 %v5390, %v5678
    %v5680 = vpop.f32.mrb[0].mxu0
    %5681 = vmatprep.mubr.bf16.mxu0 0
    %5682 = vmatmul.mubr.bf16.gmra.mrb[0].mxu0 %v3731
    %v5683 = vpop.f32.mrb[0].mxu0
    %v5684 = vadd.f32 %v5395, %v5683
    %v5685 = vpop.f32.mrb[0].mxu0
    %v5686 = vpop.f32.mrb[0].mxu0
    %v5687 = vadd.f32 %v5398, %v5686
    %v5688 = vpop.f32.mrb[0].mxu0
    %5689 = vmatprep.mubr.bf16.mxu0 0
    %5690 = vmatmul.mubr.bf16.gmra.mrb[0].mxu0 %v3774
    %v5691 = vpop.f32.mrb[0].mxu0
    %v5692 = vadd.f32 %v5403, %v5691
    %v5693 = vpop.f32.mrb[0].mxu0
    %v5694 = vpop.f32.mrb[0].mxu0
    %v5695 = vadd.f32 %v5406, %v5694
    %v5696 = vpop.f32.mrb[0].mxu0
    %5697 = vmatprep.mubr.bf16.mxu0 0
    %5698 = vmatmul.mubr.bf16.gmra.mrb[0].mxu0 %v3817
    %v5699 = vpop.f32.mrb[0].mxu0
    %v5700 = vadd.f32 %v5411, %v5699
    %v5701 = vpop.f32.mrb[0].mxu0
    %v5702 = vpop.f32.mrb[0].mxu0
    %v5703 = vadd.f32 %v5414, %v5702
    %v5704 = vpop.f32.mrb[0].mxu0
    %5705 = vmatprep.mubr.bf16.mxu0 0
    %5706 = vmatmul.mubr.bf16.gmra.mrb[0].mxu0 %v3860
    %v5707 = vpop.f32.mrb[0].mxu0
    %v5708 = vadd.f32 %v5419, %v5707
    %v5709 = vpop.f32.mrb[0].mxu0
    %v5710 = vpop.f32.mrb[0].mxu0
    %v5711 = vadd.f32 %v5422, %v5710
    %v5712 = vpop.f32.mrb[0].mxu0
    %5713 = vmatprep.mubr.bf16.mxu0 0
    %5714 = vmatmul.mubr.bf16.gmra.mrb[0].mxu0 %v3903
    %v5715 = vpop.f32.mrb[0].mxu0
    %v5716 = vadd.f32 %v5427, %v5715
    %v5717 = vpop.f32.mrb[0].mxu0
    %v5718 = vpop.f32.mrb[0].mxu0
    %v5719 = vadd.f32 %v5430, %v5718
    %v5720 = vpop.f32.mrb[0].mxu0
    %5721 = vmatprep.mubr.bf16.mxu0 0
    %5722 = vmatmul.mubr.bf16.gmra.mrb[0].mxu0 %v3946
    %v5723 = vpop.f32.mrb[0].mxu0
    %v5724 = vadd.f32 %v5435, %v5723
    %v5725 = vpop.f32.mrb[0].mxu0
    %v5726 = vpop.f32.mrb[0].mxu0
    %v5727 = vadd.f32 %v5438, %v5726
    %v5728 = vpop.f32.mrb[0].mxu0
    %5729 = vmatprep.mubr.bf16.mxu0 0
    %5730 = vmatmul.mubr.bf16.gmra.mrb[0].mxu0 %v3989
    %v5731 = vpop.f32.mrb[0].mxu0
    %v5732 = vadd.f32 %v5443, %v5731
    %v5733 = vpop.f32.mrb[0].mxu0
    %v5734 = vpop.f32.mrb[0].mxu0
    %v5735 = vadd.f32 %v5446, %v5734
    %v5736 = vpop.f32.mrb[0].mxu0
    %5737 = vmatprep.mubr.bf16.mxu0 0
    %5738 = vmatmul.mubr.bf16.gmra.mrb[0].mxu0 %v4032
    %v5739 = vpop.f32.mrb[0].mxu0
    %v5740 = vadd.f32 %v5451, %v5739
    %v5741 = vpop.f32.mrb[0].mxu0
    %v5742 = vpop.f32.mrb[0].mxu0
    %v5743 = vadd.f32 %v5454, %v5742
    %v5744 = vpop.f32.mrb[0].mxu0
    %5745 = vmatprep.mubr.bf16.mxu0 0
    %5746 = vmatmul.mubr.bf16.gmra.mrb[0].mxu0 %v4075
    %v5747 = vpop.f32.mrb[0].mxu0
    %v5748 = vadd.f32 %v5459, %v5747
    %v5749 = vpop.f32.mrb[0].mxu0
    %v5750 = vpop.f32.mrb[0].mxu0
    %v5751 = vadd.f32 %v5462, %v5750
    %v5752 = vpop.f32.mrb[0].mxu0
    %5753 = vdwg.mxu0
    %v5760 = vunpack.c.l.b16 %v1742
    %v5761 = vunpack.c.l.b16 %v1743
    %v5762 = vunpack.c.l.b16 %v1744
    %v5763 = vunpack.c.l.b16 %v1814
    %v5764 = vunpack.c.l.b16 %v1815
    %v5765 = vunpack.c.l.b16 %v1816
    %v5766 = vpack.c.b16 %v5761, %v5760
    %v5767 = vpack.c.b16 %v5762, %v5762
    %v5768 = vpack.c.b16 %v5764, %v5763
    %v5769 = vpack.c.b16 %v5765, %v5765
    %v5770 = vpack.c.b16 %v5762, %v5761
    %v5771 = vpack.c.b16 %v5765, %v5764
    %v5773 = vshrl.u32 %v5770, 16
    %v5775 = vrot.slane %v5773, 4
    %v5776 = vshll.u32 %v5770, 16
    %v5778 = vrot.slane %v5776, 5
    %v5779 = vor.u32 %v5775, %v5778
    %v5781 = vshrl.u32 %v5771, 16
    %v5783 = vrot.slane %v5781, 4
    %v5784 = vshll.u32 %v5771, 16
    %v5786 = vrot.slane %v5784, 5
    %v5787 = vor.u32 %v5783, %v5786
    %v5790 = vunpack.c.l.b16 %v1745
    %v5791 = vunpack.c.l.b16 %v1817
    %v5792 = vpack.c.b16 %v5790, %v5790
    %v5793 = vpack.c.b16 %v5791, %v5791
    %v5794 = vrot.slane %v5770, 5
    %v5795 = vrot.slane %v5792, 5
    %v5796 = vsel %vm2602, %v5794, %v5795
    %v5797 = vrot.slane %v5771, 5
    %v5798 = vrot.slane %v5793, 5
    %v5799 = vsel %vm2602, %v5797, %v5798
    %v5801 = vshrl.u32 %v5766, 16
    %v5803 = vrot.slane %v5801, 3
    %v5804 = vshll.u32 %v5766, 16
    %v5806 = vrot.slane %v5804, 4
    %v5807 = vor.u32 %v5803, %v5806
    %v5809 = vshrl.u32 %v5767, 16
    %v5811 = vrot.slane %v5809, 3
    %v5812 = vshll.u32 %v5767, 16
    %v5814 = vrot.slane %v5812, 4
    %v5815 = vor.u32 %v5811, %v5814
    %v5816 = vsel %vm2699, %v5807, %v5815
    %v5818 = vshrl.u32 %v5779, 16
    %v5820 = vrot.slane %v5818, 3
    %v5821 = vshll.u32 %v5779, 16
    %v5823 = vrot.slane %v5821, 4
    %v5824 = vor.u32 %v5820, %v5823
    %v5825 = vsel %vm2699, %v5824, %v5824
    %v5827 = vshrl.u32 %v5794, 16
    %v5829 = vrot.slane %v5827, 3
    %v5830 = vshll.u32 %v5794, 16
    %v5832 = vrot.slane %v5830, 4
    %v5833 = vor.u32 %v5829, %v5832
    %v5835 = vshrl.u32 %v5796, 16
    %v5837 = vrot.slane %v5835, 3
    %v5838 = vshll.u32 %v5796, 16
    %v5840 = vrot.slane %v5838, 4
    %v5841 = vor.u32 %v5837, %v5840
    %v5842 = vsel %vm2699, %v5833, %v5841
    %v5844 = vshrl.u32 %v5768, 16
    %v5846 = vrot.slane %v5844, 3
    %v5847 = vshll.u32 %v5768, 16
    %v5849 = vrot.slane %v5847, 4
    %v5850 = vor.u32 %v5846, %v5849
    %v5852 = vshrl.u32 %v5769, 16
    %v5854 = vrot.slane %v5852, 3
    %v5855 = vshll.u32 %v5769, 16
    %v5857 = vrot.slane %v5855, 4
    %v5858 = vor.u32 %v5854, %v5857
    %v5859 = vsel %vm2699, %v5850, %v5858
    %v5861 = vshrl.u32 %v5787, 16
    %v5863 = vrot.slane %v5861, 3
    %v5864 = vshll.u32 %v5787, 16
    %v5866 = vrot.slane %v5864, 4
    %v5867 = vor.u32 %v5863, %v5866
    %v5868 = vsel %vm2699, %v5867, %v5867
    %v5870 = vshrl.u32 %v5797, 16
    %v5872 = vrot.slane %v5870, 3
    %v5873 = vshll.u32 %v5797, 16
    %v5875 = vrot.slane %v5873, 4
    %v5876 = vor.u32 %v5872, %v5875
    %v5878 = vshrl.u32 %v5799, 16
    %v5880 = vrot.slane %v5878, 3
    %v5881 = vshll.u32 %v5799, 16
    %v5883 = vrot.slane %v5881, 4
    %v5884 = vor.u32 %v5880, %v5883
    %v5885 = vsel %vm2699, %v5876, %v5884
    %v5940 = vunpack.c.l.b16 %v1914
    %v5941 = vunpack.c.l.b16 %v1915
    %v5942 = vunpack.c.l.b16 %v1916
    %v5943 = vunpack.c.l.b16 %v1917
    %v5944 = vunpack.c.l.b16 %v1918
    %v5945 = vunpack.c.l.b16 %v1919
    %v5946 = vunpack.c.l.b16 %v1920
    %v5947 = vunpack.c.l.b16 %v1921
    %v5948 = vunpack.c.l.b16 %v1922
    %v5949 = vunpack.c.l.b16 %v1923
    %v5950 = vunpack.c.l.b16 %v1924
    %v5951 = vunpack.c.l.b16 %v1925
    %v5952 = vunpack.c.l.b16 %v1926
    %v5953 = vunpack.c.l.b16 %v1927
    %v5954 = vunpack.c.l.b16 %v1928
    %v5955 = vunpack.c.l.b16 %v1929
    %v5956 = vunpack.c.l.b16 %v1930
    %v5957 = vunpack.c.l.b16 %v1931
    %v5958 = vunpack.c.l.b16 %v1932
    %v5959 = vunpack.c.l.b16 %v1933
    %v5960 = vunpack.c.l.b16 %v1934
    %v5961 = vunpack.c.l.b16 %v1935
    %v5962 = vunpack.c.l.b16 %v1936
    %v5963 = vunpack.c.l.b16 %v1937
    %v5964 = vunpack.c.l.b16 %v1938
    %v5965 = vunpack.c.l.b16 %v1939
    %v5966 = vunpack.c.l.b16 %v1940
    %v5967 = vunpack.c.l.b16 %v1941
    %v5968 = vunpack.c.l.b16 %v1942
    %v5969 = vunpack.c.l.b16 %v1943
    %v5970 = vunpack.c.l.b16 %v1944
    %v5971 = vunpack.c.l.b16 %v1945
    %v5972 = vunpack.c.l.b16 %v1946
    %v5973 = vunpack.c.l.b16 %v1947
    %v5974 = vunpack.c.l.b16 %v1948
    %v5975 = vunpack.c.l.b16 %v1949
    %v5976 = vunpack.c.l.b16 %v1950
    %v5977 = vunpack.c.l.b16 %v1951
    %v5978 = vunpack.c.l.b16 %v1952
    %v5979 = vunpack.c.l.b16 %v1953
    %v5980 = vunpack.c.l.b16 %v1954
    %v5981 = vunpack.c.l.b16 %v1955
    %v5982 = vunpack.c.l.b16 %v1956
    %v5983 = vunpack.c.l.b16 %v1957
    %v5984 = vunpack.c.l.b16 %v1958
    %v5985 = vunpack.c.l.b16 %v1959
    %v5986 = vunpack.c.l.b16 %v1960
    %v5987 = vunpack.c.l.b16 %v1961
    %v5988 = vpack.c.b16 %v5941, %v5940
    %v5989 = vpack.c.b16 %v5943, %v5942
    %v5990 = vpack.c.b16 %v5945, %v5944
    %v5991 = vpack.c.b16 %v5947, %v5946
    %v5992 = vpack.c.b16 %v5949, %v5948
    %v5993 = vpack.c.b16 %v5951, %v5950
    %v5994 = vpack.c.b16 %v5953, %v5952
    %v5995 = vpack.c.b16 %v5955, %v5954
    %v5996 = vpack.c.b16 %v5957, %v5956
    %v5997 = vpack.c.b16 %v5959, %v5958
    %v5998 = vpack.c.b16 %v5961, %v5960
    %v5999 = vpack.c.b16 %v5963, %v5962
    %v6000 = vpack.c.b16 %v5965, %v5964
    %v6001 = vpack.c.b16 %v5967, %v5966
    %v6002 = vpack.c.b16 %v5969, %v5968
    %v6003 = vpack.c.b16 %v5971, %v5970
    %v6004 = vpack.c.b16 %v5973, %v5972
    %v6005 = vpack.c.b16 %v5975, %v5974
    %v6006 = vpack.c.b16 %v5977, %v5976
    %v6007 = vpack.c.b16 %v5979, %v5978
    %v6008 = vpack.c.b16 %v5981, %v5980
    %v6009 = vpack.c.b16 %v5983, %v5982
    %v6010 = vpack.c.b16 %v5985, %v5984
    %v6011 = vpack.c.b16 %v5987, %v5986
    %6036 = vmatprep.subr.bf16.mxu0 0
    %6037 = vmatpush1.bf16.msra.mxu0 %v5988
    %6038 = vmatprep.subr.bf16.mxu0 0
    %6039 = vmatpush1.bf16.msra.mxu0 %v5989
    %6040 = vmatprep.subr.bf16.mxu0 0
    %6041 = vmatpush1.bf16.msra.mxu0 %v5990
    %6042 = vmatprep.subr.bf16.mxu0 0
    %6043 = vmatpush1.bf16.msra.mxu0 %v5991
    %6044 = vmatprep.subr.bf16.mxu0 0
    %6045 = vmatpush1.bf16.msra.mxu0 %v5992
    %6046 = vmatprep.subr.bf16.mxu0 0
    %6047 = vmatpush1.bf16.msra.mxu0 %v5993
    %6048 = vmatprep.subr.bf16.mxu0 0
    %6049 = vmatpush1.bf16.msra.mxu0 %v5994
    %6050 = vmatprep.subr.bf16.mxu0 0
    %6051 = vmatpush1.bf16.msra.mxu0 %v5995
    %6052 = vmatprep.subr.bf16.mxu0 0
    %6053 = vmatpush1.bf16.msra.mxu0 %v5996
    %6054 = vmatprep.subr.bf16.mxu0 0
    %6055 = vmatpush1.bf16.msra.mxu0 %v5997
    %6056 = vmatprep.subr.bf16.mxu0 0
    %6057 = vmatpush1.bf16.msra.mxu0 %v5998
    %6058 = vmatprep.subr.bf16.mxu0 0
    %6059 = vmatpush1.bf16.msra.mxu0 %v5999
    %6060 = vmatprep.subr.bf16.mxu0 0
    %6061 = vmatpush1.bf16.msra.mxu0 %v6000
    %6062 = vmatprep.subr.bf16.mxu0 0
    %6063 = vmatpush1.bf16.msra.mxu0 %v6001
    %6064 = vmatprep.subr.bf16.mxu0 0
    %6065 = vmatpush1.bf16.msra.mxu0 %v6002
    %6066 = vmatprep.subr.bf16.mxu0 0
    %6067 = vmatpush1.bf16.msra.mxu0 %v6003
    %6068 = vmatprep.mubr.bf16.mxu0 %v2811
    %6069 = vmatmul.mubr.bf16.gmra.mrb[0].mxu0 %v2802
    %v6070 = vpop.f32.mrb[0].mxu0
    %v6071 = vadd.f32 0.0, %v6070
    %v6072 = vpop.f32.mrb[0].mxu0
    %v6073 = vpop.f32.mrb[0].mxu0
    %v6074 = vadd.f32 0.0, %v6073
    %v6075 = vpop.f32.mrb[0].mxu0
    %6076 = vmatprep.mubr.bf16.mxu0 %v2854
    %6077 = vmatmul.mubr.bf16.gmra.mrb[0].mxu0 %v2845
    %v6078 = vpop.f32.mrb[0].mxu0
    %v6079 = vadd.f32 0.0, %v6078
    %v6080 = vpop.f32.mrb[0].mxu0
    %v6081 = vpop.f32.mrb[0].mxu0
    %v6082 = vadd.f32 0.0, %v6081
    %v6083 = vpop.f32.mrb[0].mxu0
    %6084 = vmatprep.mubr.bf16.mxu0 %v2897
    %6085 = vmatmul.mubr.bf16.gmra.mrb[0].mxu0 %v2888
    %v6086 = vpop.f32.mrb[0].mxu0
    %v6087 = vadd.f32 0.0, %v6086
    %v6088 = vpop.f32.mrb[0].mxu0
    %v6089 = vpop.f32.mrb[0].mxu0
    %v6090 = vadd.f32 0.0, %v6089
    %v6091 = vpop.f32.mrb[0].mxu0
    %6092 = vmatprep.mubr.bf16.mxu0 %v2940
    %6093 = vmatmul.mubr.bf16.gmra.mrb[0].mxu0 %v2931
    %v6094 = vpop.f32.mrb[0].mxu0
    %v6095 = vadd.f32 0.0, %v6094
    %v6096 = vpop.f32.mrb[0].mxu0
    %v6097 = vpop.f32.mrb[0].mxu0
    %v6098 = vadd.f32 0.0, %v6097
    %v6099 = vpop.f32.mrb[0].mxu0
    %6100 = vmatprep.mubr.bf16.mxu0 %v2983
    %6101 = vmatmul.mubr.bf16.gmra.mrb[0].mxu0 %v2974
    %v6102 = vpop.f32.mrb[0].mxu0
    %v6103 = vadd.f32 0.0, %v6102
    %v6104 = vpop.f32.mrb[0].mxu0
    %v6105 = vpop.f32.mrb[0].mxu0
    %v6106 = vadd.f32 0.0, %v6105
    %v6107 = vpop.f32.mrb[0].mxu0
    %6108 = vmatprep.mubr.bf16.mxu0 %v3026
    %6109 = vmatmul.mubr.bf16.gmra.mrb[0].mxu0 %v3017
    %v6110 = vpop.f32.mrb[0].mxu0
    %v6111 = vadd.f32 0.0, %v6110
    %v6112 = vpop.f32.mrb[0].mxu0
    %v6113 = vpop.f32.mrb[0].mxu0
    %v6114 = vadd.f32 0.0, %v6113
    %v6115 = vpop.f32.mrb[0].mxu0
    %6116 = vmatprep.mubr.bf16.mxu0 %v3069
    %6117 = vmatmul.mubr.bf16.gmra.mrb[0].mxu0 %v3060
    %v6118 = vpop.f32.mrb[0].mxu0
    %v6119 = vadd.f32 0.0, %v6118
    %v6120 = vpop.f32.mrb[0].mxu0
    %v6121 = vpop.f32.mrb[0].mxu0
    %v6122 = vadd.f32 0.0, %v6121
    %v6123 = vpop.f32.mrb[0].mxu0
    %6124 = vmatprep.mubr.bf16.mxu0 %v3112
    %6125 = vmatmul.mubr.bf16.gmra.mrb[0].mxu0 %v3103
    %v6126 = vpop.f32.mrb[0].mxu0
    %v6127 = vadd.f32 0.0, %v6126
    %v6128 = vpop.f32.mrb[0].mxu0
    %v6129 = vpop.f32.mrb[0].mxu0
    %v6130 = vadd.f32 0.0, %v6129
    %v6131 = vpop.f32.mrb[0].mxu0
    %6132 = vmatprep.mubr.bf16.mxu0 %v3155
    %6133 = vmatmul.mubr.bf16.gmra.mrb[0].mxu0 %v3146
    %v6134 = vpop.f32.mrb[0].mxu0
    %v6135 = vadd.f32 0.0, %v6134
    %v6136 = vpop.f32.mrb[0].mxu0
    %v6137 = vpop.f32.mrb[0].mxu0
    %v6138 = vadd.f32 0.0, %v6137
    %v6139 = vpop.f32.mrb[0].mxu0
    %6140 = vmatprep.mubr.bf16.mxu0 %v3198
    %6141 = vmatmul.mubr.bf16.gmra.mrb[0].mxu0 %v3189
    %v6142 = vpop.f32.mrb[0].mxu0
    %v6143 = vadd.f32 0.0, %v6142
    %v6144 = vpop.f32.mrb[0].mxu0
    %v6145 = vpop.f32.mrb[0].mxu0
    %v6146 = vadd.f32 0.0, %v6145
    %v6147 = vpop.f32.mrb[0].mxu0
    %6148 = vmatprep.mubr.bf16.mxu0 %v3241
    %6149 = vmatmul.mubr.bf16.gmra.mrb[0].mxu0 %v3232
    %v6150 = vpop.f32.mrb[0].mxu0
    %v6151 = vadd.f32 0.0, %v6150
    %v6152 = vpop.f32.mrb[0].mxu0
    %v6153 = vpop.f32.mrb[0].mxu0
    %v6154 = vadd.f32 0.0, %v6153
    %v6155 = vpop.f32.mrb[0].mxu0
    %6156 = vmatprep.mubr.bf16.mxu0 %v3284
    %6157 = vmatmul.mubr.bf16.gmra.mrb[0].mxu0 %v3275
    %v6158 = vpop.f32.mrb[0].mxu0
    %v6159 = vadd.f32 0.0, %v6158
    %v6160 = vpop.f32.mrb[0].mxu0
    %v6161 = vpop.f32.mrb[0].mxu0
    %v6162 = vadd.f32 0.0, %v6161
    %v6163 = vpop.f32.mrb[0].mxu0
    %6164 = vmatprep.mubr.bf16.mxu0 %v3327
    %6165 = vmatmul.mubr.bf16.gmra.mrb[0].mxu0 %v3318
    %v6166 = vpop.f32.mrb[0].mxu0
    %v6167 = vadd.f32 0.0, %v6166
    %v6168 = vpop.f32.mrb[0].mxu0
    %v6169 = vpop.f32.mrb[0].mxu0
    %v6170 = vadd.f32 0.0, %v6169
    %v6171 = vpop.f32.mrb[0].mxu0
    %6172 = vmatprep.mubr.bf16.mxu0 %v3370
    %6173 = vmatmul.mubr.bf16.gmra.mrb[0].mxu0 %v3361
    %v6174 = vpop.f32.mrb[0].mxu0
    %v6175 = vadd.f32 0.0, %v6174
    %v6176 = vpop.f32.mrb[0].mxu0
    %v6177 = vpop.f32.mrb[0].mxu0
    %v6178 = vadd.f32 0.0, %v6177
    %v6179 = vpop.f32.mrb[0].mxu0
    %6180 = vmatprep.mubr.bf16.mxu0 %v4243
    %6181 = vmatmul.mubr.bf16.gmra.mrb[0].mxu0 %v4234
    %v6182 = vpop.f32.mrb[0].mxu0
    %v6183 = vadd.f32 0.0, %v6182
    %v6184 = vpop.f32.mrb[0].mxu0
    %v6185 = vpop.f32.mrb[0].mxu0
    %v6186 = vadd.f32 0.0, %v6185
    %v6187 = vpop.f32.mrb[0].mxu0
    %6188 = vmatprep.mubr.bf16.mxu0 %v5825
    %6189 = vmatmul.mubr.bf16.gmra.mrb[0].mxu0 %v5816
    %v6190 = vpop.f32.mrb[0].mxu0
    %v6191 = vadd.f32 0.0, %v6190
    %v6192 = vpop.f32.mrb[0].mxu0
    %v6193 = vpop.f32.mrb[0].mxu0
    %v6194 = vadd.f32 0.0, %v6193
    %v6195 = vpop.f32.mrb[0].mxu0
    %6196 = vmatprep.mubr.bf16.mxu0 %v3499
    %6197 = vmatmul.mubr.bf16.gmra.mrb[0].mxu0 %v3490
    %v6198 = vpop.f32.mrb[0].mxu0
    %v6199 = vadd.f32 0.0, %v6198
    %v6200 = vpop.f32.mrb[0].mxu0
    %v6201 = vpop.f32.mrb[0].mxu0
    %v6202 = vadd.f32 0.0, %v6201
    %v6203 = vpop.f32.mrb[0].mxu0
    %6204 = vmatprep.mubr.bf16.mxu0 %v3542
    %6205 = vmatmul.mubr.bf16.gmra.mrb[0].mxu0 %v3533
    %v6206 = vpop.f32.mrb[0].mxu0
    %v6207 = vadd.f32 0.0, %v6206
    %v6208 = vpop.f32.mrb[0].mxu0
    %v6209 = vpop.f32.mrb[0].mxu0
    %v6210 = vadd.f32 0.0, %v6209
    %v6211 = vpop.f32.mrb[0].mxu0
    %6212 = vmatprep.mubr.bf16.mxu0 %v3585
    %6213 = vmatmul.mubr.bf16.gmra.mrb[0].mxu0 %v3576
    %v6214 = vpop.f32.mrb[0].mxu0
    %v6215 = vadd.f32 0.0, %v6214
    %v6216 = vpop.f32.mrb[0].mxu0
    %v6217 = vpop.f32.mrb[0].mxu0
    %v6218 = vadd.f32 0.0, %v6217
    %v6219 = vpop.f32.mrb[0].mxu0
    %6220 = vmatprep.mubr.bf16.mxu0 %v3628
    %6221 = vmatmul.mubr.bf16.gmra.mrb[0].mxu0 %v3619
    %v6222 = vpop.f32.mrb[0].mxu0
    %v6223 = vadd.f32 0.0, %v6222
    %v6224 = vpop.f32.mrb[0].mxu0
    %v6225 = vpop.f32.mrb[0].mxu0
    %v6226 = vadd.f32 0.0, %v6225
    %v6227 = vpop.f32.mrb[0].mxu0
    %6228 = vmatprep.mubr.bf16.mxu0 %v3671
    %6229 = vmatmul.mubr.bf16.gmra.mrb[0].mxu0 %v3662
    %v6230 = vpop.f32.mrb[0].mxu0
    %v6231 = vadd.f32 0.0, %v6230
    %v6232 = vpop.f32.mrb[0].mxu0
    %v6233 = vpop.f32.mrb[0].mxu0
    %v6234 = vadd.f32 0.0, %v6233
    %v6235 = vpop.f32.mrb[0].mxu0
    %6236 = vmatprep.mubr.bf16.mxu0 %v3714
    %6237 = vmatmul.mubr.bf16.gmra.mrb[0].mxu0 %v3705
    %v6238 = vpop.f32.mrb[0].mxu0
    %v6239 = vadd.f32 0.0, %v6238
    %v6240 = vpop.f32.mrb[0].mxu0
    %v6241 = vpop.f32.mrb[0].mxu0
    %v6242 = vadd.f32 0.0, %v6241
    %v6243 = vpop.f32.mrb[0].mxu0
    %6244 = vmatprep.mubr.bf16.mxu0 %v3757
    %6245 = vmatmul.mubr.bf16.gmra.mrb[0].mxu0 %v3748
    %v6246 = vpop.f32.mrb[0].mxu0
    %v6247 = vadd.f32 0.0, %v6246
    %v6248 = vpop.f32.mrb[0].mxu0
    %v6249 = vpop.f32.mrb[0].mxu0
    %v6250 = vadd.f32 0.0, %v6249
    %v6251 = vpop.f32.mrb[0].mxu0
    %6252 = vmatprep.mubr.bf16.mxu0 %v3800
    %6253 = vmatmul.mubr.bf16.gmra.mrb[0].mxu0 %v3791
    %v6254 = vpop.f32.mrb[0].mxu0
    %v6255 = vadd.f32 0.0, %v6254
    %v6256 = vpop.f32.mrb[0].mxu0
    %v6257 = vpop.f32.mrb[0].mxu0
    %v6258 = vadd.f32 0.0, %v6257
    %v6259 = vpop.f32.mrb[0].mxu0
    %6260 = vmatprep.mubr.bf16.mxu0 %v3843
    %6261 = vmatmul.mubr.bf16.gmra.mrb[0].mxu0 %v3834
    %v6262 = vpop.f32.mrb[0].mxu0
    %v6263 = vadd.f32 0.0, %v6262
    %v6264 = vpop.f32.mrb[0].mxu0
    %v6265 = vpop.f32.mrb[0].mxu0
    %v6266 = vadd.f32 0.0, %v6265
    %v6267 = vpop.f32.mrb[0].mxu0
    %6268 = vmatprep.mubr.bf16.mxu0 %v3886
    %6269 = vmatmul.mubr.bf16.gmra.mrb[0].mxu0 %v3877
    %v6270 = vpop.f32.mrb[0].mxu0
    %v6271 = vadd.f32 0.0, %v6270
    %v6272 = vpop.f32.mrb[0].mxu0
    %v6273 = vpop.f32.mrb[0].mxu0
    %v6274 = vadd.f32 0.0, %v6273
    %v6275 = vpop.f32.mrb[0].mxu0
    %6276 = vmatprep.mubr.bf16.mxu0 %v3929
    %6277 = vmatmul.mubr.bf16.gmra.mrb[0].mxu0 %v3920
    %v6278 = vpop.f32.mrb[0].mxu0
    %v6279 = vadd.f32 0.0, %v6278
    %v6280 = vpop.f32.mrb[0].mxu0
    %v6281 = vpop.f32.mrb[0].mxu0
    %v6282 = vadd.f32 0.0, %v6281
    %v6283 = vpop.f32.mrb[0].mxu0
    %6284 = vmatprep.mubr.bf16.mxu0 %v3972
    %6285 = vmatmul.mubr.bf16.gmra.mrb[0].mxu0 %v3963
    %v6286 = vpop.f32.mrb[0].mxu0
    %v6287 = vadd.f32 0.0, %v6286
    %v6288 = vpop.f32.mrb[0].mxu0
    %v6289 = vpop.f32.mrb[0].mxu0
    %v6290 = vadd.f32 0.0, %v6289
    %v6291 = vpop.f32.mrb[0].mxu0
    %6292 = vmatprep.mubr.bf16.mxu0 %v4015
    %6293 = vmatmul.mubr.bf16.gmra.mrb[0].mxu0 %v4006
    %v6294 = vpop.f32.mrb[0].mxu0
    %v6295 = vadd.f32 0.0, %v6294
    %v6296 = vpop.f32.mrb[0].mxu0
    %v6297 = vpop.f32.mrb[0].mxu0
    %v6298 = vadd.f32 0.0, %v6297
    %v6299 = vpop.f32.mrb[0].mxu0
    %6300 = vmatprep.mubr.bf16.mxu0 %v4058
    %6301 = vmatmul.mubr.bf16.gmra.mrb[0].mxu0 %v4049
    %v6302 = vpop.f32.mrb[0].mxu0
    %v6303 = vadd.f32 0.0, %v6302
    %v6304 = vpop.f32.mrb[0].mxu0
    %v6305 = vpop.f32.mrb[0].mxu0
    %v6306 = vadd.f32 0.0, %v6305
    %v6307 = vpop.f32.mrb[0].mxu0
    %6308 = vmatprep.mubr.bf16.mxu0 %v4286
    %6309 = vmatmul.mubr.bf16.gmra.mrb[0].mxu0 %v4277
    %v6310 = vpop.f32.mrb[0].mxu0
    %v6311 = vadd.f32 0.0, %v6310
    %v6312 = vpop.f32.mrb[0].mxu0
    %v6313 = vpop.f32.mrb[0].mxu0
    %v6314 = vadd.f32 0.0, %v6313
    %v6315 = vpop.f32.mrb[0].mxu0
    %6316 = vmatprep.mubr.bf16.mxu0 %v5868
    %6317 = vmatmul.mubr.bf16.gmra.mrb[0].mxu0 %v5859
    %v6318 = vpop.f32.mrb[0].mxu0
    %v6319 = vadd.f32 0.0, %v6318
    %v6320 = vpop.f32.mrb[0].mxu0
    %v6321 = vpop.f32.mrb[0].mxu0
    %v6322 = vadd.f32 0.0, %v6321
    %v6323 = vpop.f32.mrb[0].mxu0
    %6324 = vdwg.mxu0
    %6325 = vmatprep.subr.bf16.mxu0 0
    %6326 = vmatpush1.bf16.msra.mxu0 %v6004
    %6327 = vmatprep.subr.bf16.mxu0 0
    %6328 = vmatpush1.bf16.msra.mxu0 %v6005
    %6329 = vmatprep.subr.bf16.mxu0 0
    %6330 = vmatpush1.bf16.msra.mxu0 %v6006
    %6331 = vmatprep.subr.bf16.mxu0 0
    %6332 = vmatpush1.bf16.msra.mxu0 %v6007
    %6333 = vmatprep.subr.bf16.mxu0 0
    %6334 = vmatpush1.bf16.msra.mxu0 %v6008
    %6335 = vmatprep.subr.bf16.mxu0 0
    %6336 = vmatpush1.bf16.msra.mxu0 %v6009
    %6337 = vmatprep.subr.bf16.mxu0 0
    %6338 = vmatpush1.bf16.msra.mxu0 %v6010
    %6339 = vmatprep.subr.bf16.mxu0 0
    %6340 = vmatpush1.bf16.msra.mxu0 %v6011
    %6341 = vmatprep.subr.bf16.mxu0 0
    %6342 = vmatpush1.bf16.msra.mxu0 0
    %6343 = vmatprep.subr.bf16.mxu0 0
    %6344 = vmatpush1.bf16.msra.mxu0 0
    %6345 = vmatprep.subr.bf16.mxu0 0
    %6346 = vmatpush1.bf16.msra.mxu0 0
    %6347 = vmatprep.subr.bf16.mxu0 0
    %6348 = vmatpush1.bf16.msra.mxu0 0
    %6349 = vmatprep.subr.bf16.mxu0 0
    %6350 = vmatpush1.bf16.msra.mxu0 0
    %6351 = vmatprep.subr.bf16.mxu0 0
    %6352 = vmatpush1.bf16.msra.mxu0 0
    %6353 = vmatprep.subr.bf16.mxu0 0
    %6354 = vmatpush1.bf16.msra.mxu0 0
    %6355 = vmatprep.subr.bf16.mxu0 0
    %6356 = vmatpush1.bf16.msra.mxu0 0
    %6357 = vmatprep.mubr.bf16.mxu0 0
    %6358 = vmatmul.mubr.bf16.gmra.mrb[0].mxu0 %v2828
    %v6359 = vpop.f32.mrb[0].mxu0
    %v6360 = vadd.f32 %v6071, %v6359
    %v6361 = vpop.f32.mrb[0].mxu0
    %v6362 = vpop.f32.mrb[0].mxu0
    %v6363 = vadd.f32 %v6074, %v6362
    %v6364 = vpop.f32.mrb[0].mxu0
    %6365 = vmatprep.mubr.bf16.mxu0 0
    %6366 = vmatmul.mubr.bf16.gmra.mrb[0].mxu0 %v2871
    %v6367 = vpop.f32.mrb[0].mxu0
    %v6368 = vadd.f32 %v6079, %v6367
    %v6369 = vpop.f32.mrb[0].mxu0
    %v6370 = vpop.f32.mrb[0].mxu0
    %v6371 = vadd.f32 %v6082, %v6370
    %v6372 = vpop.f32.mrb[0].mxu0
    %6373 = vmatprep.mubr.bf16.mxu0 0
    %6374 = vmatmul.mubr.bf16.gmra.mrb[0].mxu0 %v2914
    %v6375 = vpop.f32.mrb[0].mxu0
    %v6376 = vadd.f32 %v6087, %v6375
    %v6377 = vpop.f32.mrb[0].mxu0
    %v6378 = vpop.f32.mrb[0].mxu0
    %v6379 = vadd.f32 %v6090, %v6378
    %v6380 = vpop.f32.mrb[0].mxu0
    %6381 = vmatprep.mubr.bf16.mxu0 0
    %6382 = vmatmul.mubr.bf16.gmra.mrb[0].mxu0 %v2957
    %v6383 = vpop.f32.mrb[0].mxu0
    %v6384 = vadd.f32 %v6095, %v6383
    %v6385 = vpop.f32.mrb[0].mxu0
    %v6386 = vpop.f32.mrb[0].mxu0
    %v6387 = vadd.f32 %v6098, %v6386
    %v6388 = vpop.f32.mrb[0].mxu0
    %6389 = vmatprep.mubr.bf16.mxu0 0
    %6390 = vmatmul.mubr.bf16.gmra.mrb[0].mxu0 %v3000
    %v6391 = vpop.f32.mrb[0].mxu0
    %v6392 = vadd.f32 %v6103, %v6391
    %v6393 = vpop.f32.mrb[0].mxu0
    %v6394 = vpop.f32.mrb[0].mxu0
    %v6395 = vadd.f32 %v6106, %v6394
    %v6396 = vpop.f32.mrb[0].mxu0
    %6397 = vmatprep.mubr.bf16.mxu0 0
    %6398 = vmatmul.mubr.bf16.gmra.mrb[0].mxu0 %v3043
    %v6399 = vpop.f32.mrb[0].mxu0
    %v6400 = vadd.f32 %v6111, %v6399
    %v6401 = vpop.f32.mrb[0].mxu0
    %v6402 = vpop.f32.mrb[0].mxu0
    %v6403 = vadd.f32 %v6114, %v6402
    %v6404 = vpop.f32.mrb[0].mxu0
    %6405 = vmatprep.mubr.bf16.mxu0 0
    %6406 = vmatmul.mubr.bf16.gmra.mrb[0].mxu0 %v3086
    %v6407 = vpop.f32.mrb[0].mxu0
    %v6408 = vadd.f32 %v6119, %v6407
    %v6409 = vpop.f32.mrb[0].mxu0
    %v6410 = vpop.f32.mrb[0].mxu0
    %v6411 = vadd.f32 %v6122, %v6410
    %v6412 = vpop.f32.mrb[0].mxu0
    %6413 = vmatprep.mubr.bf16.mxu0 0
    %6414 = vmatmul.mubr.bf16.gmra.mrb[0].mxu0 %v3129
    %v6415 = vpop.f32.mrb[0].mxu0
    %v6416 = vadd.f32 %v6127, %v6415
    %v6417 = vpop.f32.mrb[0].mxu0
    %v6418 = vpop.f32.mrb[0].mxu0
    %v6419 = vadd.f32 %v6130, %v6418
    %v6420 = vpop.f32.mrb[0].mxu0
    %6421 = vmatprep.mubr.bf16.mxu0 0
    %6422 = vmatmul.mubr.bf16.gmra.mrb[0].mxu0 %v3172
    %v6423 = vpop.f32.mrb[0].mxu0
    %v6424 = vadd.f32 %v6135, %v6423
    %v6425 = vpop.f32.mrb[0].mxu0
    %v6426 = vpop.f32.mrb[0].mxu0
    %v6427 = vadd.f32 %v6138, %v6426
    %v6428 = vpop.f32.mrb[0].mxu0
    %6429 = vmatprep.mubr.bf16.mxu0 0
    %6430 = vmatmul.mubr.bf16.gmra.mrb[0].mxu0 %v3215
    %v6431 = vpop.f32.mrb[0].mxu0
    %v6432 = vadd.f32 %v6143, %v6431
    %v6433 = vpop.f32.mrb[0].mxu0
    %v6434 = vpop.f32.mrb[0].mxu0
    %v6435 = vadd.f32 %v6146, %v6434
    %v6436 = vpop.f32.mrb[0].mxu0
    %6437 = vmatprep.mubr.bf16.mxu0 0
    %6438 = vmatmul.mubr.bf16.gmra.mrb[0].mxu0 %v3258
    %v6439 = vpop.f32.mrb[0].mxu0
    %v6440 = vadd.f32 %v6151, %v6439
    %v6441 = vpop.f32.mrb[0].mxu0
    %v6442 = vpop.f32.mrb[0].mxu0
    %v6443 = vadd.f32 %v6154, %v6442
    %v6444 = vpop.f32.mrb[0].mxu0
    %6445 = vmatprep.mubr.bf16.mxu0 0
    %6446 = vmatmul.mubr.bf16.gmra.mrb[0].mxu0 %v3301
    %v6447 = vpop.f32.mrb[0].mxu0
    %v6448 = vadd.f32 %v6159, %v6447
    %v6449 = vpop.f32.mrb[0].mxu0
    %v6450 = vpop.f32.mrb[0].mxu0
    %v6451 = vadd.f32 %v6162, %v6450
    %v6452 = vpop.f32.mrb[0].mxu0
    %6453 = vmatprep.mubr.bf16.mxu0 0
    %6454 = vmatmul.mubr.bf16.gmra.mrb[0].mxu0 %v3344
    %v6455 = vpop.f32.mrb[0].mxu0
    %v6456 = vadd.f32 %v6167, %v6455
    %v6457 = vpop.f32.mrb[0].mxu0
    %v6458 = vpop.f32.mrb[0].mxu0
    %v6459 = vadd.f32 %v6170, %v6458
    %v6460 = vpop.f32.mrb[0].mxu0
    %6461 = vmatprep.mubr.bf16.mxu0 0
    %6462 = vmatmul.mubr.bf16.gmra.mrb[0].mxu0 %v3387
    %v6463 = vpop.f32.mrb[0].mxu0
    %v6464 = vadd.f32 %v6175, %v6463
    %v6465 = vpop.f32.mrb[0].mxu0
    %v6466 = vpop.f32.mrb[0].mxu0
    %v6467 = vadd.f32 %v6178, %v6466
    %v6468 = vpop.f32.mrb[0].mxu0
    %6469 = vmatprep.mubr.bf16.mxu0 0
    %6470 = vmatmul.mubr.bf16.gmra.mrb[0].mxu0 %v4260
    %v6471 = vpop.f32.mrb[0].mxu0
    %v6472 = vadd.f32 %v6183, %v6471
    %v6473 = vpop.f32.mrb[0].mxu0
    %v6474 = vpop.f32.mrb[0].mxu0
    %v6475 = vadd.f32 %v6186, %v6474
    %v6476 = vpop.f32.mrb[0].mxu0
    %6477 = vmatprep.mubr.bf16.mxu0 0
    %6478 = vmatmul.mubr.bf16.gmra.mrb[0].mxu0 %v5842
    %v6479 = vpop.f32.mrb[0].mxu0
    %v6480 = vadd.f32 %v6191, %v6479
    %v6481 = vpop.f32.mrb[0].mxu0
    %v6482 = vpop.f32.mrb[0].mxu0
    %v6483 = vadd.f32 %v6194, %v6482
    %v6484 = vpop.f32.mrb[0].mxu0
    %6485 = vmatprep.mubr.bf16.mxu0 0
    %6486 = vmatmul.mubr.bf16.gmra.mrb[0].mxu0 %v3516
    %v6487 = vpop.f32.mrb[0].mxu0
    %v6488 = vadd.f32 %v6199, %v6487
    %v6489 = vpop.f32.mrb[0].mxu0
    %v6490 = vpop.f32.mrb[0].mxu0
    %v6491 = vadd.f32 %v6202, %v6490
    %v6492 = vpop.f32.mrb[0].mxu0
    %6493 = vmatprep.mubr.bf16.mxu0 0
    %6494 = vmatmul.mubr.bf16.gmra.mrb[0].mxu0 %v3559
    %v6495 = vpop.f32.mrb[0].mxu0
    %v6496 = vadd.f32 %v6207, %v6495
    %v6497 = vpop.f32.mrb[0].mxu0
    %v6498 = vpop.f32.mrb[0].mxu0
    %v6499 = vadd.f32 %v6210, %v6498
    %v6500 = vpop.f32.mrb[0].mxu0
    %6501 = vmatprep.mubr.bf16.mxu0 0
    %6502 = vmatmul.mubr.bf16.gmra.mrb[0].mxu0 %v3602
    %v6503 = vpop.f32.mrb[0].mxu0
    %v6504 = vadd.f32 %v6215, %v6503
    %v6505 = vpop.f32.mrb[0].mxu0
    %v6506 = vpop.f32.mrb[0].mxu0
    %v6507 = vadd.f32 %v6218, %v6506
    %v6508 = vpop.f32.mrb[0].mxu0
    %6509 = vmatprep.mubr.bf16.mxu0 0
    %6510 = vmatmul.mubr.bf16.gmra.mrb[0].mxu0 %v3645
    %v6511 = vpop.f32.mrb[0].mxu0
    %v6512 = vadd.f32 %v6223, %v6511
    %v6513 = vpop.f32.mrb[0].mxu0
    %v6514 = vpop.f32.mrb[0].mxu0
    %v6515 = vadd.f32 %v6226, %v6514
    %v6516 = vpop.f32.mrb[0].mxu0
    %6517 = vmatprep.mubr.bf16.mxu0 0
    %6518 = vmatmul.mubr.bf16.gmra.mrb[0].mxu0 %v3688
    %v6519 = vpop.f32.mrb[0].mxu0
    %v6520 = vadd.f32 %v6231, %v6519
    %v6521 = vpop.f32.mrb[0].mxu0
    %v6522 = vpop.f32.mrb[0].mxu0
    %v6523 = vadd.f32 %v6234, %v6522
    %v6524 = vpop.f32.mrb[0].mxu0
    %6525 = vmatprep.mubr.bf16.mxu0 0
    %6526 = vmatmul.mubr.bf16.gmra.mrb[0].mxu0 %v3731
    %v6527 = vpop.f32.mrb[0].mxu0
    %v6528 = vadd.f32 %v6239, %v6527
    %v6529 = vpop.f32.mrb[0].mxu0
    %v6530 = vpop.f32.mrb[0].mxu0
    %v6531 = vadd.f32 %v6242, %v6530
    %v6532 = vpop.f32.mrb[0].mxu0
    %6533 = vmatprep.mubr.bf16.mxu0 0
    %6534 = vmatmul.mubr.bf16.gmra.mrb[0].mxu0 %v3774
    %v6535 = vpop.f32.mrb[0].mxu0
    %v6536 = vadd.f32 %v6247, %v6535
    %v6537 = vpop.f32.mrb[0].mxu0
    %v6538 = vpop.f32.mrb[0].mxu0
    %v6539 = vadd.f32 %v6250, %v6538
    %v6540 = vpop.f32.mrb[0].mxu0
    %6541 = vmatprep.mubr.bf16.mxu0 0
    %6542 = vmatmul.mubr.bf16.gmra.mrb[0].mxu0 %v3817
    %v6543 = vpop.f32.mrb[0].mxu0
    %v6544 = vadd.f32 %v6255, %v6543
    %v6545 = vpop.f32.mrb[0].mxu0
    %v6546 = vpop.f32.mrb[0].mxu0
    %v6547 = vadd.f32 %v6258, %v6546
    %v6548 = vpop.f32.mrb[0].mxu0
    %6549 = vmatprep.mubr.bf16.mxu0 0
    %6550 = vmatmul.mubr.bf16.gmra.mrb[0].mxu0 %v3860
    %v6551 = vpop.f32.mrb[0].mxu0
    %v6552 = vadd.f32 %v6263, %v6551
    %v6553 = vpop.f32.mrb[0].mxu0
    %v6554 = vpop.f32.mrb[0].mxu0
    %v6555 = vadd.f32 %v6266, %v6554
    %v6556 = vpop.f32.mrb[0].mxu0
    %6557 = vmatprep.mubr.bf16.mxu0 0
    %6558 = vmatmul.mubr.bf16.gmra.mrb[0].mxu0 %v3903
    %v6559 = vpop.f32.mrb[0].mxu0
    %v6560 = vadd.f32 %v6271, %v6559
    %v6561 = vpop.f32.mrb[0].mxu0
    %v6562 = vpop.f32.mrb[0].mxu0
    %v6563 = vadd.f32 %v6274, %v6562
    %v6564 = vpop.f32.mrb[0].mxu0
    %6565 = vmatprep.mubr.bf16.mxu0 0
    %6566 = vmatmul.mubr.bf16.gmra.mrb[0].mxu0 %v3946
    %v6567 = vpop.f32.mrb[0].mxu0
    %v6568 = vadd.f32 %v6279, %v6567
    %v6569 = vpop.f32.mrb[0].mxu0
    %v6570 = vpop.f32.mrb[0].mxu0
    %v6571 = vadd.f32 %v6282, %v6570
    %v6572 = vpop.f32.mrb[0].mxu0
    %6573 = vmatprep.mubr.bf16.mxu0 0
    %6574 = vmatmul.mubr.bf16.gmra.mrb[0].mxu0 %v3989
    %v6575 = vpop.f32.mrb[0].mxu0
    %v6576 = vadd.f32 %v6287, %v6575
    %v6577 = vpop.f32.mrb[0].mxu0
    %v6578 = vpop.f32.mrb[0].mxu0
    %v6579 = vadd.f32 %v6290, %v6578
    %v6580 = vpop.f32.mrb[0].mxu0
    %6581 = vmatprep.mubr.bf16.mxu0 0
    %6582 = vmatmul.mubr.bf16.gmra.mrb[0].mxu0 %v4032
    %v6583 = vpop.f32.mrb[0].mxu0
    %v6584 = vadd.f32 %v6295, %v6583
    %v6585 = vpop.f32.mrb[0].mxu0
    %v6586 = vpop.f32.mrb[0].mxu0
    %v6587 = vadd.f32 %v6298, %v6586
    %v6588 = vpop.f32.mrb[0].mxu0
    %6589 = vmatprep.mubr.bf16.mxu0 0
    %6590 = vmatmul.mubr.bf16.gmra.mrb[0].mxu0 %v4075
    %v6591 = vpop.f32.mrb[0].mxu0
    %v6592 = vadd.f32 %v6303, %v6591
    %v6593 = vpop.f32.mrb[0].mxu0
    %v6594 = vpop.f32.mrb[0].mxu0
    %v6595 = vadd.f32 %v6306, %v6594
    %v6596 = vpop.f32.mrb[0].mxu0
    %6597 = vmatprep.mubr.bf16.mxu0 0
    %6598 = vmatmul.mubr.bf16.gmra.mrb[0].mxu0 %v4303
    %v6599 = vpop.f32.mrb[0].mxu0
    %v6600 = vadd.f32 %v6311, %v6599
    %v6601 = vpop.f32.mrb[0].mxu0
    %v6602 = vpop.f32.mrb[0].mxu0
    %v6603 = vadd.f32 %v6314, %v6602
    %v6604 = vpop.f32.mrb[0].mxu0
    %6605 = vmatprep.mubr.bf16.mxu0 0
    %6606 = vmatmul.mubr.bf16.gmra.mrb[0].mxu0 %v5885
    %v6607 = vpop.f32.mrb[0].mxu0
    %v6608 = vadd.f32 %v6319, %v6607
    %v6609 = vpop.f32.mrb[0].mxu0
    %v6610 = vpop.f32.mrb[0].mxu0
    %v6611 = vadd.f32 %v6322, %v6610
    %v6612 = vpop.f32.mrb[0].mxu0
    %6613 = vdwg.mxu0
    %v6614 = vadd.f32 %v5500, %v6360
    %v6615 = vadd.f32 %v5503, %v6363
    %v6616 = vadd.f32 %v5508, %v6368
    %v6617 = vadd.f32 %v5511, %v6371
    %v6618 = vadd.f32 %v5516, %v6376
    %v6619 = vadd.f32 %v5519, %v6379
    %v6620 = vadd.f32 %v5524, %v6384
    %v6621 = vadd.f32 %v5527, %v6387
    %v6622 = vadd.f32 %v5532, %v6392
    %v6623 = vadd.f32 %v5535, %v6395
    %v6624 = vadd.f32 %v5540, %v6400
    %v6625 = vadd.f32 %v5543, %v6403
    %v6626 = vadd.f32 %v5548, %v6408
    %v6627 = vadd.f32 %v5551, %v6411
    %v6628 = vadd.f32 %v5556, %v6416
    %v6629 = vadd.f32 %v5559, %v6419
    %v6630 = vadd.f32 %v5564, %v6424
    %v6631 = vadd.f32 %v5567, %v6427
    %v6632 = vadd.f32 %v5572, %v6432
    %v6633 = vadd.f32 %v5575, %v6435
    %v6634 = vadd.f32 %v5580, %v6440
    %v6635 = vadd.f32 %v5583, %v6443
    %v6636 = vadd.f32 %v5588, %v6448
    %v6637 = vadd.f32 %v5591, %v6451
    %v6638 = vadd.f32 %v5596, %v6456
    %v6639 = vadd.f32 %v5599, %v6459
    %v6640 = vadd.f32 %v5604, %v6464
    %v6641 = vadd.f32 %v5607, %v6467
    %v6642 = vadd.f32 %v5612, %v6472
    %v6643 = vadd.f32 %v5615, %v6475
    %v6644 = vadd.f32 %v5620, %v6480
    %v6645 = vadd.f32 %v5623, %v6483
    %v6646 = vadd.f32 %v5628, %v6488
    %v6647 = vadd.f32 %v5631, %v6491
    %v6648 = vadd.f32 %v5636, %v6496
    %v6649 = vadd.f32 %v5639, %v6499
    %v6650 = vadd.f32 %v5644, %v6504
    %v6651 = vadd.f32 %v5647, %v6507
    %v6652 = vadd.f32 %v5652, %v6512
    %v6653 = vadd.f32 %v5655, %v6515
    %v6654 = vadd.f32 %v5660, %v6520
    %v6655 = vadd.f32 %v5663, %v6523
    %v6656 = vadd.f32 %v5668, %v6528
    %v6657 = vadd.f32 %v5671, %v6531
    %v6658 = vadd.f32 %v5676, %v6536
    %v6659 = vadd.f32 %v5679, %v6539
    %v6660 = vadd.f32 %v5684, %v6544
    %v6661 = vadd.f32 %v5687, %v6547
    %v6662 = vadd.f32 %v5692, %v6552
    %v6663 = vadd.f32 %v5695, %v6555
    %v6664 = vadd.f32 %v5700, %v6560
    %v6665 = vadd.f32 %v5703, %v6563
    %v6666 = vadd.f32 %v5708, %v6568
    %v6667 = vadd.f32 %v5711, %v6571
    %v6668 = vadd.f32 %v5716, %v6576
    %v6669 = vadd.f32 %v5719, %v6579
    %v6670 = vadd.f32 %v5724, %v6584
    %v6671 = vadd.f32 %v5727, %v6587
    %v6672 = vadd.f32 %v5732, %v6592
    %v6673 = vadd.f32 %v5735, %v6595
    %v6674 = vadd.f32 %v5740, %v6600
    %v6675 = vadd.f32 %v5743, %v6603
    %v6676 = vadd.f32 %v5748, %v6608
    %v6677 = vadd.f32 %v5751, %v6611
    %v6678 = vadd.f32 %v6614, %v6615
    %v6679 = vadd.f32 %v6678, %v6616
    %v6680 = vadd.f32 %v6679, %v6617
    %v6681 = vadd.f32 %v6680, %v6618
    %v6682 = vadd.f32 %v6681, %v6619
    %v6683 = vadd.f32 %v6682, %v6620
    %v6684 = vadd.f32 %v6683, %v6621
    %v6685 = vadd.f32 %v6684, %v6622
    %v6686 = vadd.f32 %v6685, %v6623
    %v6687 = vadd.f32 %v6686, %v6624
    %v6688 = vadd.f32 %v6687, %v6625
    %v6689 = vadd.f32 %v6688, %v6626
    %v6690 = vadd.f32 %v6689, %v6627
    %v6691 = vadd.f32 %v6690, %v6628
    %v6692 = vadd.f32 %v6691, %v6629
    %v6693 = vadd.f32 %v6692, %v6630
    %v6694 = vadd.f32 %v6693, %v6631
    %v6695 = vadd.f32 %v6694, %v6632
    %v6696 = vadd.f32 %v6695, %v6633
    %v6697 = vadd.f32 %v6696, %v6634
    %v6698 = vadd.f32 %v6697, %v6635
    %v6699 = vadd.f32 %v6698, %v6636
    %v6700 = vadd.f32 %v6699, %v6637
    %v6701 = vadd.f32 %v6700, %v6638
    %v6702 = vadd.f32 %v6701, %v6639
    %v6703 = vadd.f32 %v6702, %v6640
    %v6704 = vadd.f32 %v6703, %v6641
    %v6705 = vadd.f32 %v6704, %v6642
    %v6706 = vadd.f32 %v6705, %v6643
    %v6707 = vadd.f32 %v6706, %v6644
    %v6708 = vadd.f32 %v6707, %v6645
    %v6709 = vrot.slane %v6708, 4
    %v6710 = vadd.f32 %v6708, %v6709
    %v6711 = vrot.slane %v6710, 2
    %v6712 = vadd.f32 %v6710, %v6711
    %v6713 = vrot.slane %v6712, 1
    %v6714 = vadd.f32 %v6712, %v6713
    %v6715 = vadd.f32 %v6646, %v6647
    %v6716 = vadd.f32 %v6715, %v6648
    %v6717 = vadd.f32 %v6716, %v6649
    %v6718 = vadd.f32 %v6717, %v6650
    %v6719 = vadd.f32 %v6718, %v6651
    %v6720 = vadd.f32 %v6719, %v6652
    %v6721 = vadd.f32 %v6720, %v6653
    %v6722 = vadd.f32 %v6721, %v6654
    %v6723 = vadd.f32 %v6722, %v6655
    %v6724 = vadd.f32 %v6723, %v6656
    %v6725 = vadd.f32 %v6724, %v6657
    %v6726 = vadd.f32 %v6725, %v6658
    %v6727 = vadd.f32 %v6726, %v6659
    %v6728 = vadd.f32 %v6727, %v6660
    %v6729 = vadd.f32 %v6728, %v6661
    %v6730 = vadd.f32 %v6729, %v6662
    %v6731 = vadd.f32 %v6730, %v6663
    %v6732 = vadd.f32 %v6731, %v6664
    %v6733 = vadd.f32 %v6732, %v6665
    %v6734 = vadd.f32 %v6733, %v6666
    %v6735 = vadd.f32 %v6734, %v6667
    %v6736 = vadd.f32 %v6735, %v6668
    %v6737 = vadd.f32 %v6736, %v6669
    %v6738 = vadd.f32 %v6737, %v6670
    %v6739 = vadd.f32 %v6738, %v6671
    %v6740 = vadd.f32 %v6739, %v6672
    %v6741 = vadd.f32 %v6740, %v6673
    %v6742 = vadd.f32 %v6741, %v6674
    %v6743 = vadd.f32 %v6742, %v6675
    %v6744 = vadd.f32 %v6743, %v6676
    %v6745 = vadd.f32 %v6744, %v6677
    %v6746 = vrot.slane %v6745, 4
    %v6747 = vadd.f32 %v6745, %v6746
    %v6748 = vrot.slane %v6747, 2
    %v6749 = vadd.f32 %v6747, %v6748
    %v6750 = vrot.slane %v6749, 1
    %v6751 = vadd.f32 %v6749, %v6750
    %v6752 = vmul.f32 %v6614, %v6614
    %v6753 = vmul.f32 %v6615, %v6615
    %v6754 = vmul.f32 %v6616, %v6616
    %v6755 = vmul.f32 %v6617, %v6617
    %v6756 = vmul.f32 %v6618, %v6618
    %v6757 = vmul.f32 %v6619, %v6619
    %v6758 = vmul.f32 %v6620, %v6620
    %v6759 = vmul.f32 %v6621, %v6621
    %v6760 = vmul.f32 %v6622, %v6622
    %v6761 = vmul.f32 %v6623, %v6623
    %v6762 = vmul.f32 %v6624, %v6624
    %v6763 = vmul.f32 %v6625, %v6625
    %v6764 = vmul.f32 %v6626, %v6626
    %v6765 = vmul.f32 %v6627, %v6627
    %v6766 = vmul.f32 %v6628, %v6628
    %v6767 = vmul.f32 %v6629, %v6629
    %v6768 = vmul.f32 %v6630, %v6630
    %v6769 = vmul.f32 %v6631, %v6631
    %v6770 = vmul.f32 %v6632, %v6632
    %v6771 = vmul.f32 %v6633, %v6633
    %v6772 = vmul.f32 %v6634, %v6634
    %v6773 = vmul.f32 %v6635, %v6635
    %v6774 = vmul.f32 %v6636, %v6636
    %v6775 = vmul.f32 %v6637, %v6637
    %v6776 = vmul.f32 %v6638, %v6638
    %v6777 = vmul.f32 %v6639, %v6639
    %v6778 = vmul.f32 %v6640, %v6640
    %v6779 = vmul.f32 %v6641, %v6641
    %v6780 = vmul.f32 %v6642, %v6642
    %v6781 = vmul.f32 %v6643, %v6643
    %v6782 = vmul.f32 %v6644, %v6644
    %v6783 = vmul.f32 %v6645, %v6645
    %v6784 = vmul.f32 %v6646, %v6646
    %v6785 = vmul.f32 %v6647, %v6647
    %v6786 = vmul.f32 %v6648, %v6648
    %v6787 = vmul.f32 %v6649, %v6649
    %v6788 = vmul.f32 %v6650, %v6650
    %v6789 = vmul.f32 %v6651, %v6651
    %v6790 = vmul.f32 %v6652, %v6652
    %v6791 = vmul.f32 %v6653, %v6653
    %v6792 = vmul.f32 %v6654, %v6654
    %v6793 = vmul.f32 %v6655, %v6655
    %v6794 = vmul.f32 %v6656, %v6656
    %v6795 = vmul.f32 %v6657, %v6657
    %v6796 = vmul.f32 %v6658, %v6658
    %v6797 = vmul.f32 %v6659, %v6659
    %v6798 = vmul.f32 %v6660, %v6660
    %v6799 = vmul.f32 %v6661, %v6661
    %v6800 = vmul.f32 %v6662, %v6662
    %v6801 = vmul.f32 %v6663, %v6663
    %v6802 = vmul.f32 %v6664, %v6664
    %v6803 = vmul.f32 %v6665, %v6665
    %v6804 = vmul.f32 %v6666, %v6666
    %v6805 = vmul.f32 %v6667, %v6667
    %v6806 = vmul.f32 %v6668, %v6668
    %v6807 = vmul.f32 %v6669, %v6669
    %v6808 = vmul.f32 %v6670, %v6670
    %v6809 = vmul.f32 %v6671, %v6671
    %v6810 = vmul.f32 %v6672, %v6672
    %v6811 = vmul.f32 %v6673, %v6673
    %v6812 = vmul.f32 %v6674, %v6674
    %v6813 = vmul.f32 %v6675, %v6675
    %v6814 = vmul.f32 %v6676, %v6676
    %v6815 = vmul.f32 %v6677, %v6677
    %v6816 = vadd.f32 %v6752, %v6753
    %v6817 = vadd.f32 %v6816, %v6754
    %v6818 = vadd.f32 %v6817, %v6755
    %v6819 = vadd.f32 %v6818, %v6756
    %v6820 = vadd.f32 %v6819, %v6757
    %v6821 = vadd.f32 %v6820, %v6758
    %v6822 = vadd.f32 %v6821, %v6759
    %v6823 = vadd.f32 %v6822, %v6760
    %v6824 = vadd.f32 %v6823, %v6761
    %v6825 = vadd.f32 %v6824, %v6762
    %v6826 = vadd.f32 %v6825, %v6763
    %v6827 = vadd.f32 %v6826, %v6764
    %v6828 = vadd.f32 %v6827, %v6765
    %v6829 = vadd.f32 %v6828, %v6766
    %v6830 = vadd.f32 %v6829, %v6767
    %v6831 = vadd.f32 %v6830, %v6768
    %v6832 = vadd.f32 %v6831, %v6769
    %v6833 = vadd.f32 %v6832, %v6770
    %v6834 = vadd.f32 %v6833, %v6771
    %v6835 = vadd.f32 %v6834, %v6772
    %v6836 = vadd.f32 %v6835, %v6773
    %v6837 = vadd.f32 %v6836, %v6774
    %v6838 = vadd.f32 %v6837, %v6775
    %v6839 = vadd.f32 %v6838, %v6776
    %v6840 = vadd.f32 %v6839, %v6777
    %v6841 = vadd.f32 %v6840, %v6778
    %v6842 = vadd.f32 %v6841, %v6779
    %v6843 = vadd.f32 %v6842, %v6780
    %v6844 = vadd.f32 %v6843, %v6781
    %v6845 = vadd.f32 %v6844, %v6782
    %v6846 = vadd.f32 %v6845, %v6783
    %v6847 = vrot.slane %v6846, 4
    %v6848 = vadd.f32 %v6846, %v6847
    %v6849 = vrot.slane %v6848, 2
    %v6850 = vadd.f32 %v6848, %v6849
    %v6851 = vrot.slane %v6850, 1
    %v6852 = vadd.f32 %v6850, %v6851
    %v6853 = vadd.f32 %v6784, %v6785
    %v6854 = vadd.f32 %v6853, %v6786
    %v6855 = vadd.f32 %v6854, %v6787
    %v6856 = vadd.f32 %v6855, %v6788
    %v6857 = vadd.f32 %v6856, %v6789
    %v6858 = vadd.f32 %v6857, %v6790
    %v6859 = vadd.f32 %v6858, %v6791
    %v6860 = vadd.f32 %v6859, %v6792
    %v6861 = vadd.f32 %v6860, %v6793
    %v6862 = vadd.f32 %v6861, %v6794
    %v6863 = vadd.f32 %v6862, %v6795
    %v6864 = vadd.f32 %v6863, %v6796
    %v6865 = vadd.f32 %v6864, %v6797
    %v6866 = vadd.f32 %v6865, %v6798
    %v6867 = vadd.f32 %v6866, %v6799
    %v6868 = vadd.f32 %v6867, %v6800
    %v6869 = vadd.f32 %v6868, %v6801
    %v6870 = vadd.f32 %v6869, %v6802
    %v6871 = vadd.f32 %v6870, %v6803
    %v6872 = vadd.f32 %v6871, %v6804
    %v6873 = vadd.f32 %v6872, %v6805
    %v6874 = vadd.f32 %v6873, %v6806
    %v6875 = vadd.f32 %v6874, %v6807
    %v6876 = vadd.f32 %v6875, %v6808
    %v6877 = vadd.f32 %v6876, %v6809
    %v6878 = vadd.f32 %v6877, %v6810
    %v6879 = vadd.f32 %v6878, %v6811
    %v6880 = vadd.f32 %v6879, %v6812
    %v6881 = vadd.f32 %v6880, %v6813
    %v6882 = vadd.f32 %v6881, %v6814
    %v6883 = vadd.f32 %v6882, %v6815
    %v6884 = vrot.slane %v6883, 4
    %v6885 = vadd.f32 %v6883, %v6884
    %v6886 = vrot.slane %v6885, 2
    %v6887 = vadd.f32 %v6885, %v6886
    %v6888 = vrot.slane %v6887, 1
    %v6889 = vadd.f32 %v6887, %v6888
    %v6890 = vmul.f32 %v6714, %v890
    %v6891 = vmul.f32 %v6751, %v890
    %v6892 = vmul.f32 %v6852, %v890
    %v6893 = vmul.f32 %v6889, %v890
    %v6894 = vmul.f32 %v6890, %v6890
    %v6895 = vmul.f32 %v6891, %v6891
    %v6896 = vsub.f32 %v6892, %v6894
    %v6897 = vsub.f32 %v6893, %v6895
    %v6898 = vadd.f32 %v6714, %v6751
    %v6899 = vmul.f32 %v6898, %v900
    %v6900 = vadd.f32 %v6852, %v6889
    %v6901 = vmul.f32 %v6900, %v900
    %v6902 = vmul.f32 %v6899, %v6899
    %v6903 = vsub.f32 %v6901, %v6902
    %v6904 = vsel %vm910, %v6890, %v6899
    %v6905 = vsel %vm910, %v6891, %v6899
    %v6906 = vsel %vm910, %v6896, %v6903
    %v6907 = vsel %vm910, %v6897, %v6903
    %v6908 = vmax.f32 %v6906, 0.0
    %v6909 = vmax.f32 %v6907, 0.0
    %v6910 = vadd.f32 %v6908, 1e-05
    %v6911 = vadd.f32 %v6909, 1e-05
    %v6912 = vrsqrt.pop %v6910
    %v6913 = vrsqrt.pop %v6911
    %v6914 = vld [vmem:[%s5] sm:$0x1]
    %v6915 = vmul.f32 %v6912, %v6914
    %v6916 = vmul.f32 %v6913, %v6914
    %v6917 = vld [vmem:[%s6] sm:$0x1]
    %v6918 = vmul.f32 %v6904, %v6915
    %v6919 = vmul.f32 %v6905, %v6916
    %v6920 = vsub.f32 %v6917, %v6918
    %v6921 = vsub.f32 %v6917, %v6919
    %v6922 = vlaneseq
    %v6923 = vshrl.u32 %v6922, 7
    %v6924 = vsub.s32 0, %v6923
    %v6925 = vrot.slane %v6915, %v6924
    %v6926 = vlaneseq
    %v6927 = vshrl.u32 %v6926, 7
    %v6928 = vsub.s32 0, %v6927
    %v6929 = vrot.slane %v6916, %v6928
    %v6930 = vmul.f32 %v6614, %v6925
    %v6931 = vmul.f32 %v6615, %v6925
    %v6932 = vmul.f32 %v6616, %v6925
    %v6933 = vmul.f32 %v6617, %v6925
    %v6934 = vmul.f32 %v6618, %v6925
    %v6935 = vmul.f32 %v6619, %v6925
    %v6936 = vmul.f32 %v6620, %v6925
    %v6937 = vmul.f32 %v6621, %v6925
    %v6938 = vmul.f32 %v6622, %v6925
    %v6939 = vmul.f32 %v6623, %v6925
    %v6940 = vmul.f32 %v6624, %v6925
    %v6941 = vmul.f32 %v6625, %v6925
    %v6942 = vmul.f32 %v6626, %v6925
    %v6943 = vmul.f32 %v6627, %v6925
    %v6944 = vmul.f32 %v6628, %v6925
    %v6945 = vmul.f32 %v6629, %v6925
    %v6946 = vmul.f32 %v6630, %v6925
    %v6947 = vmul.f32 %v6631, %v6925
    %v6948 = vmul.f32 %v6632, %v6925
    %v6949 = vmul.f32 %v6633, %v6925
    %v6950 = vmul.f32 %v6634, %v6925
    %v6951 = vmul.f32 %v6635, %v6925
    %v6952 = vmul.f32 %v6636, %v6925
    %v6953 = vmul.f32 %v6637, %v6925
    %v6954 = vmul.f32 %v6638, %v6925
    %v6955 = vmul.f32 %v6639, %v6925
    %v6956 = vmul.f32 %v6640, %v6925
    %v6957 = vmul.f32 %v6641, %v6925
    %v6958 = vmul.f32 %v6642, %v6925
    %v6959 = vmul.f32 %v6643, %v6925
    %v6960 = vmul.f32 %v6644, %v6925
    %v6961 = vmul.f32 %v6645, %v6925
    %v6962 = vmul.f32 %v6646, %v6929
    %v6963 = vmul.f32 %v6647, %v6929
    %v6964 = vmul.f32 %v6648, %v6929
    %v6965 = vmul.f32 %v6649, %v6929
    %v6966 = vmul.f32 %v6650, %v6929
    %v6967 = vmul.f32 %v6651, %v6929
    %v6968 = vmul.f32 %v6652, %v6929
    %v6969 = vmul.f32 %v6653, %v6929
    %v6970 = vmul.f32 %v6654, %v6929
    %v6971 = vmul.f32 %v6655, %v6929
    %v6972 = vmul.f32 %v6656, %v6929
    %v6973 = vmul.f32 %v6657, %v6929
    %v6974 = vmul.f32 %v6658, %v6929
    %v6975 = vmul.f32 %v6659, %v6929
    %v6976 = vmul.f32 %v6660, %v6929
    %v6977 = vmul.f32 %v6661, %v6929
    %v6978 = vmul.f32 %v6662, %v6929
    %v6979 = vmul.f32 %v6663, %v6929
    %v6980 = vmul.f32 %v6664, %v6929
    %v6981 = vmul.f32 %v6665, %v6929
    %v6982 = vmul.f32 %v6666, %v6929
    %v6983 = vmul.f32 %v6667, %v6929
    %v6984 = vmul.f32 %v6668, %v6929
    %v6985 = vmul.f32 %v6669, %v6929
    %v6986 = vmul.f32 %v6670, %v6929
    %v6987 = vmul.f32 %v6671, %v6929
    %v6988 = vmul.f32 %v6672, %v6929
    %v6989 = vmul.f32 %v6673, %v6929
    %v6990 = vmul.f32 %v6674, %v6929
    %v6991 = vmul.f32 %v6675, %v6929
    %v6992 = vmul.f32 %v6676, %v6929
    %v6993 = vmul.f32 %v6677, %v6929
    %v6996 = vlaneseq
    %v6997 = vshrl.u32 %v6996, 7
    %v6998 = vsub.s32 0, %v6997
    %v6999 = vrot.slane %v6920, %v6998
    %v7000 = vlaneseq
    %v7001 = vshrl.u32 %v7000, 7
    %v7002 = vsub.s32 0, %v7001
    %v7003 = vrot.slane %v6921, %v7002
    %v7006 = vadd.f32 %v6930, %v6999
    %v7007 = vadd.f32 %v6931, %v6999
    %v7008 = vadd.f32 %v6932, %v6999
    %v7009 = vadd.f32 %v6933, %v6999
    %v7010 = vadd.f32 %v6934, %v6999
    %v7011 = vadd.f32 %v6935, %v6999
    %v7012 = vadd.f32 %v6936, %v6999
    %v7013 = vadd.f32 %v6937, %v6999
    %v7014 = vadd.f32 %v6938, %v6999
    %v7015 = vadd.f32 %v6939, %v6999
    %v7016 = vadd.f32 %v6940, %v6999
    %v7017 = vadd.f32 %v6941, %v6999
    %v7018 = vadd.f32 %v6942, %v6999
    %v7019 = vadd.f32 %v6943, %v6999
    %v7020 = vadd.f32 %v6944, %v6999
    %v7021 = vadd.f32 %v6945, %v6999
    %v7022 = vadd.f32 %v6946, %v6999
    %v7023 = vadd.f32 %v6947, %v6999
    %v7024 = vadd.f32 %v6948, %v6999
    %v7025 = vadd.f32 %v6949, %v6999
    %v7026 = vadd.f32 %v6950, %v6999
    %v7027 = vadd.f32 %v6951, %v6999
    %v7028 = vadd.f32 %v6952, %v6999
    %v7029 = vadd.f32 %v6953, %v6999
    %v7030 = vadd.f32 %v6954, %v6999
    %v7031 = vadd.f32 %v6955, %v6999
    %v7032 = vadd.f32 %v6956, %v6999
    %v7033 = vadd.f32 %v6957, %v6999
    %v7034 = vadd.f32 %v6958, %v6999
    %v7035 = vadd.f32 %v6959, %v6999
    %v7036 = vadd.f32 %v6960, %v6999
    %v7037 = vadd.f32 %v6961, %v6999
    %v7038 = vadd.f32 %v6962, %v7003
    %v7039 = vadd.f32 %v6963, %v7003
    %v7040 = vadd.f32 %v6964, %v7003
    %v7041 = vadd.f32 %v6965, %v7003
    %v7042 = vadd.f32 %v6966, %v7003
    %v7043 = vadd.f32 %v6967, %v7003
    %v7044 = vadd.f32 %v6968, %v7003
    %v7045 = vadd.f32 %v6969, %v7003
    %v7046 = vadd.f32 %v6970, %v7003
    %v7047 = vadd.f32 %v6971, %v7003
    %v7048 = vadd.f32 %v6972, %v7003
    %v7049 = vadd.f32 %v6973, %v7003
    %v7050 = vadd.f32 %v6974, %v7003
    %v7051 = vadd.f32 %v6975, %v7003
    %v7052 = vadd.f32 %v6976, %v7003
    %v7053 = vadd.f32 %v6977, %v7003
    %v7054 = vadd.f32 %v6978, %v7003
    %v7055 = vadd.f32 %v6979, %v7003
    %v7056 = vadd.f32 %v6980, %v7003
    %v7057 = vadd.f32 %v6981, %v7003
    %v7058 = vadd.f32 %v6982, %v7003
    %v7059 = vadd.f32 %v6983, %v7003
    %v7060 = vadd.f32 %v6984, %v7003
    %v7061 = vadd.f32 %v6985, %v7003
    %v7062 = vadd.f32 %v6986, %v7003
    %v7063 = vadd.f32 %v6987, %v7003
    %v7064 = vadd.f32 %v6988, %v7003
    %v7065 = vadd.f32 %v6989, %v7003
    %v7066 = vadd.f32 %v6990, %v7003
    %v7067 = vadd.f32 %v6991, %v7003
    %v7068 = vadd.f32 %v6992, %v7003
    %v7069 = vadd.f32 %v6993, %v7003
    %v7070 = vmax.f32 %v7006, 0.0
    %v7071 = vmax.f32 %v7007, 0.0
    %v7072 = vmax.f32 %v7008, 0.0
    %v7073 = vmax.f32 %v7009, 0.0
    %v7074 = vmax.f32 %v7010, 0.0
    %v7075 = vmax.f32 %v7011, 0.0
    %v7076 = vmax.f32 %v7012, 0.0
    %v7077 = vmax.f32 %v7013, 0.0
    %v7078 = vmax.f32 %v7014, 0.0
    %v7079 = vmax.f32 %v7015, 0.0
    %v7080 = vmax.f32 %v7016, 0.0
    %v7081 = vmax.f32 %v7017, 0.0
    %v7082 = vmax.f32 %v7018, 0.0
    %v7083 = vmax.f32 %v7019, 0.0
    %v7084 = vmax.f32 %v7020, 0.0
    %v7085 = vmax.f32 %v7021, 0.0
    %v7086 = vmax.f32 %v7022, 0.0
    %v7087 = vmax.f32 %v7023, 0.0
    %v7088 = vmax.f32 %v7024, 0.0
    %v7089 = vmax.f32 %v7025, 0.0
    %v7090 = vmax.f32 %v7026, 0.0
    %v7091 = vmax.f32 %v7027, 0.0
    %v7092 = vmax.f32 %v7028, 0.0
    %v7093 = vmax.f32 %v7029, 0.0
    %v7094 = vmax.f32 %v7030, 0.0
    %v7095 = vmax.f32 %v7031, 0.0
    %v7096 = vmax.f32 %v7032, 0.0
    %v7097 = vmax.f32 %v7033, 0.0
    %v7098 = vmax.f32 %v7034, 0.0
    %v7099 = vmax.f32 %v7035, 0.0
    %v7100 = vmax.f32 %v7036, 0.0
    %v7101 = vmax.f32 %v7037, 0.0
    %v7102 = vmax.f32 %v7038, 0.0
    %v7103 = vmax.f32 %v7039, 0.0
    %v7104 = vmax.f32 %v7040, 0.0
    %v7105 = vmax.f32 %v7041, 0.0
    %v7106 = vmax.f32 %v7042, 0.0
    %v7107 = vmax.f32 %v7043, 0.0
    %v7108 = vmax.f32 %v7044, 0.0
    %v7109 = vmax.f32 %v7045, 0.0
    %v7110 = vmax.f32 %v7046, 0.0
    %v7111 = vmax.f32 %v7047, 0.0
    %v7112 = vmax.f32 %v7048, 0.0
    %v7113 = vmax.f32 %v7049, 0.0
    %v7114 = vmax.f32 %v7050, 0.0
    %v7115 = vmax.f32 %v7051, 0.0
    %v7116 = vmax.f32 %v7052, 0.0
    %v7117 = vmax.f32 %v7053, 0.0
    %v7118 = vmax.f32 %v7054, 0.0
    %v7119 = vmax.f32 %v7055, 0.0
    %v7120 = vmax.f32 %v7056, 0.0
    %v7121 = vmax.f32 %v7057, 0.0
    %v7122 = vmax.f32 %v7058, 0.0
    %v7123 = vmax.f32 %v7059, 0.0
    %v7124 = vmax.f32 %v7060, 0.0
    %v7125 = vmax.f32 %v7061, 0.0
    %v7126 = vmax.f32 %v7062, 0.0
    %v7127 = vmax.f32 %v7063, 0.0
    %v7128 = vmax.f32 %v7064, 0.0
    %v7129 = vmax.f32 %v7065, 0.0
    %v7130 = vmax.f32 %v7066, 0.0
    %v7131 = vmax.f32 %v7067, 0.0
    %v7132 = vmax.f32 %v7068, 0.0
    %v7133 = vmax.f32 %v7069, 0.0
    %7134 = vst [vmem:[#allocation9] sm:$0xff] %v7070
    %7135 = vst [vmem:[#allocation9 + $0x8] sm:$0xff] %v7071
    %7136 = vst [vmem:[#allocation9 + $0x10] sm:$0xff] %v7072
    %7137 = vst [vmem:[#allocation9 + $0x18] sm:$0xff] %v7073
    %7138 = vst [vmem:[#allocation9 + $0x20] sm:$0xff] %v7074
    %7139 = vst [vmem:[#allocation9 + $0x28] sm:$0xff] %v7075
    %7140 = vst [vmem:[#allocation9 + $0x30] sm:$0xff] %v7076
    %7141 = vst [vmem:[#allocation9 + $0x38] sm:$0xff] %v7077
    %7142 = vst [vmem:[#allocation9 + $0x40] sm:$0xff] %v7078
    %7143 = vst [vmem:[#allocation9 + $0x48] sm:$0xff] %v7079
    %7144 = vst [vmem:[#allocation9 + $0x50] sm:$0xff] %v7080
    %7145 = vst [vmem:[#allocation9 + $0x58] sm:$0xff] %v7081
    %7146 = vst [vmem:[#allocation9 + $0x60] sm:$0xff] %v7082
    %7147 = vst [vmem:[#allocation9 + $0x68] sm:$0xff] %v7083
    %7148 = vst [vmem:[#allocation9 + $0x70] sm:$0xff] %v7084
    %7149 = vst [vmem:[#allocation9 + $0x78] sm:$0xff] %v7085
    %7150 = vst [vmem:[#allocation9 + $0x80] sm:$0xff] %v7086
    %7151 = vst [vmem:[#allocation9 + $0x88] sm:$0xff] %v7087
    %7152 = vst [vmem:[#allocation9 + $0x90] sm:$0xff] %v7088
    %7153 = vst [vmem:[#allocation9 + $0x98] sm:$0xff] %v7089
    %7154 = vst [vmem:[#allocation9 + $0xa0] sm:$0xff] %v7090
    %7155 = vst [vmem:[#allocation9 + $0xa8] sm:$0xff] %v7091
    %7156 = vst [vmem:[#allocation9 + $0xb0] sm:$0xff] %v7092
    %7157 = vst [vmem:[#allocation9 + $0xb8] sm:$0xff] %v7093
    %7158 = vst [vmem:[#allocation9 + $0xc0] sm:$0xff] %v7094
    %7159 = vst [vmem:[#allocation9 + $0xc8] sm:$0xff] %v7095
    %7160 = vst [vmem:[#allocation9 + $0xd0] sm:$0xff] %v7096
    %7161 = vst [vmem:[#allocation9 + $0xd8] sm:$0xff] %v7097
    %7162 = vst [vmem:[#allocation9 + $0xe0] sm:$0xff] %v7098
    %7163 = vst [vmem:[#allocation9 + $0xe8] sm:$0xff] %v7099
    %7164 = vst [vmem:[#allocation9 + $0xf0] sm:$0xff] %v7100
    %7165 = vst [vmem:[#allocation9 + $0xf8] sm:$0xff] %v7101
    %7166 = vst [vmem:[#allocation9 + $0x100] sm:$0xff] %v7102
    %7167 = vst [vmem:[#allocation9 + $0x108] sm:$0xff] %v7103
    %7168 = vst [vmem:[#allocation9 + $0x110] sm:$0xff] %v7104
    %7169 = vst [vmem:[#allocation9 + $0x118] sm:$0xff] %v7105
    %7170 = vst [vmem:[#allocation9 + $0x120] sm:$0xff] %v7106
    %7171 = vst [vmem:[#allocation9 + $0x128] sm:$0xff] %v7107
    %7172 = vst [vmem:[#allocation9 + $0x130] sm:$0xff] %v7108
    %7173 = vst [vmem:[#allocation9 + $0x138] sm:$0xff] %v7109
    %7174 = vst [vmem:[#allocation9 + $0x140] sm:$0xff] %v7110
    %7175 = vst [vmem:[#allocation9 + $0x148] sm:$0xff] %v7111
    %7176 = vst [vmem:[#allocation9 + $0x150] sm:$0xff] %v7112
    %7177 = vst [vmem:[#allocation9 + $0x158] sm:$0xff] %v7113
    %7178 = vst [vmem:[#allocation9 + $0x160] sm:$0xff] %v7114
    %7179 = vst [vmem:[#allocation9 + $0x168] sm:$0xff] %v7115
    %7180 = vst [vmem:[#allocation9 + $0x170] sm:$0xff] %v7116
    %7181 = vst [vmem:[#allocation9 + $0x178] sm:$0xff] %v7117
    %7182 = vst [vmem:[#allocation9 + $0x180] sm:$0xff] %v7118
    %7183 = vst [vmem:[#allocation9 + $0x188] sm:$0xff] %v7119
    %7184 = vst [vmem:[#allocation9 + $0x190] sm:$0xff] %v7120
    %7185 = vst [vmem:[#allocation9 + $0x198] sm:$0xff] %v7121
    %7186 = vst [vmem:[#allocation9 + $0x1a0] sm:$0xff] %v7122
    %7187 = vst [vmem:[#allocation9 + $0x1a8] sm:$0xff] %v7123
    %7188 = vst [vmem:[#allocation9 + $0x1b0] sm:$0xff] %v7124
    %7189 = vst [vmem:[#allocation9 + $0x1b8] sm:$0xff] %v7125
    %7190 = vst [vmem:[#allocation9 + $0x1c0] sm:$0xff] %v7126
    %7191 = vst [vmem:[#allocation9 + $0x1c8] sm:$0xff] %v7127
    %7192 = vst [vmem:[#allocation9 + $0x1d0] sm:$0xff] %v7128
    %7193 = vst [vmem:[#allocation9 + $0x1d8] sm:$0xff] %v7129
    %7194 = vst [vmem:[#allocation9 + $0x1e0] sm:$0xff] %v7130
    %7195 = vst [vmem:[#allocation9 + $0x1e8] sm:$0xff] %v7131
    %7196 = vst [vmem:[#allocation9 + $0x1f0] sm:$0xff] %v7132
    %7197 = vst [vmem:[#allocation9 + $0x1f8] sm:$0xff] %v7133
    // Predicated region
    $region42: #{tpu_custom_call.1} parent=1 // pred_check
      _
    $region43: #{tpu_custom_call.1} parent=1 // pred_check_branch
      %7199 = sbr.rel (0) target = $region45
    $region44: #{tpu_custom_call.1} parent=1 // pred_region
      %s7201 = ssub.s32 8192, 8192
      %7202 = vsyncadd [#allocation5], %s7201
      %s7203 = sshll.u32 [#allocation9], 4
      %s7204 = int_to_ptr.vmem [resolvable:$true] %s7203
      %7209 = dma.vmem_to_hbm [thread:$0]  %s7204, 8192, %s7, [#allocation5], 128, 128, 8
    $region45: #{tpu_custom_call.1} parent=1 // pred_fallthru
      _
    // Predicated region
    $region46: #{tpu_custom_call.1} parent=1 // pred_check
      _
    $region47: #{tpu_custom_call.1} parent=1 // pred_check_branch
      %7211 = sbr.rel (0) target = $region49
    $region48: #{tpu_custom_call.1} parent=1 // pred_region
      %7212 = dma.done [#allocation5], 8192
    $region49: #{tpu_custom_call.1} parent=1 // pred_fallthru
      _
    %7213 = vsyncpa [#allocation4], 1
    %7214 = vsyncpa [#allocation7], 1
    %7215 = vsyncpa [#allocation5], 1

</llo_original>
